<compile_context>
chip_gen: v7x
topology: tpu7x:2x2x1
jax: 0.10.0
libtpu: 0.0.40
codegen_flags: <defaults>
</compile_context>

<pallas_src>
import functools

import jax
import jax.numpy as jnp
from jax.experimental import pallas as pl
from jax.experimental.pallas import tpu as pltpu

_XPAD = 8  # sublane-aligned left/right halo width inside the padded VMEM buffers


def _make_fused_kernel(H, W, Cin, Cout, num_blocks, n_tile, compute_dtype):
    """Builds the fused head + residual-blocks kernel body."""
    Wp = W + 2 * _XPAD
    M = n_tile * H * W  # matmul M dimension (batch folded into the pixel axis)

    def conv3x3(pad_ref, col_ref, w3, b, ci):
        # pad_ref: (n_tile, H+2, Wp, ci)  f32 padded feature (interior at rows
        #          [1:H+1], cols [_XPAD:_XPAD+W]; halo is zero).
        # col_ref: (n_tile, H+2, W, 3*ci) compute-dtype im2col scratch.
        # w3     : (3, 3*ci, Cout) value in compute dtype;  b: (1, Cout) f32.
        #
        # 1) Build the kw-concatenated slab once per conv.  The two misaligned
        #    sublane reads (cols _XPAD-1 / _XPAD+1) happen here exactly once;
        #    every MXU LHS below is then an aligned 2-D tile.
        for kw in range(3):
            c0 = _XPAD - 1 + kw
            col_ref[:, :, :, kw * ci:(kw + 1) * ci] = (
                pad_ref[:, :, c0:c0 + W, :].astype(compute_dtype))
        # 2) Three matmuls with K = 3*ci (instead of nine K = ci dots), f32 acc.
        acc = jnp.zeros((M, Cout), jnp.float32)
        for kh in range(3):
            lhs = col_ref[:, kh:kh + H, :, :].reshape(M, 3 * ci)
            acc = acc + jnp.dot(lhs, w3[kh], preferred_element_type=jnp.float32)
        return acc + b  # f32 bias add

    def kernel(*refs):
        x_ref, head_w_ref, head_b_ref = refs[0], refs[1], refs[2]
        idx = 3
        if num_blocks:
            w1_ref, b1_ref, w2_ref, b2_ref = refs[3:7]
            idx = 7
        o_ref = refs[idx]
        xpad_ref, xcol_ref, fpad_ref, hpad_ref, fcol_ref = refs[idx + 1:idx + 6]

        def zero_halo(pad_ref, c):
            # Only the border the convs read; interior is always overwritten.
            pad_ref[:, :, 0:_XPAD, :] = jnp.zeros((n_tile, H + 2, _XPAD, c), jnp.float32)
            pad_ref[:, :, _XPAD + W:Wp, :] = jnp.zeros((n_tile, H + 2, _XPAD, c), jnp.float32)
            pad_ref[:, 0:1, _XPAD:_XPAD + W, :] = jnp.zeros((n_tile, 1, W, c), jnp.float32)
            pad_ref[:, H + 1:H + 2, _XPAD:_XPAD + W, :] = jnp.zeros((n_tile, 1, W, c), jnp.float32)

        def store_out(val):
            # val: (M, Cout) f32.  Store NCHW-native and lane-dense: each image
            # is transposed once to (Cout, H*W) so HBM writeback uses full
            # 256-lane unmasked stores and the wrapper needs no transpose.
            for t in range(n_tile):
                img = val[t * H * W:(t + 1) * H * W, :]
                o_ref[t] = jnp.transpose(img).astype(o_ref.dtype)

        zero_halo(xpad_ref, Cin)
        if num_blocks:
            zero_halo(fpad_ref, Cout)
            zero_halo(hpad_ref, Cout)

        # ---- head: conv3x3 + bias + ReLU ----
        xpad_ref[:, 1:H + 1, _XPAD:_XPAD + W, :] = x_ref[...].astype(jnp.float32)
        feat = jnp.maximum(
            conv3x3(xpad_ref, xcol_ref, head_w_ref[...], head_b_ref[...], Cin), 0.0)

        if num_blocks == 0:
            store_out(feat)
        else:
            fpad_ref[:, 1:H + 1, _XPAD:_XPAD + W, :] = feat.reshape(n_tile, H, W, Cout)
            # TODO(synk): for large num_blocks switch this unrolled Python loop
            # to lax.fori_loop over the stacked (NB, ...) weight refs.
            for i in range(num_blocks):
                h = jnp.maximum(
                    conv3x3(fpad_ref, fcol_ref, w1_ref[i], b1_ref[i], Cout), 0.0)
                hpad_ref[:, 1:H + 1, _XPAD:_XPAD + W, :] = h.reshape(n_tile, H, W, Cout)
                # Residual re-read from VMEM at the point of use (keeps the
                # padded feature out of the vreg live set during conv2).
                out = (conv3x3(hpad_ref, fcol_ref, w2_ref[i], b2_ref[i], Cout)
                       + fpad_ref[:, 1:H + 1, _XPAD:_XPAD + W, :].reshape(M, Cout))
                if i == num_blocks - 1:
                    store_out(out)
                else:
                    fpad_ref[:, 1:H + 1, _XPAD:_XPAD + W, :] = out.reshape(n_tile, H, W, Cout)

    return kernel


@functools.partial(jax.jit, static_argnames=("compute_dtype", "n_tile"))
def residual_blocks_forward(x_nchw, params, *, compute_dtype=jnp.float32, n_tile=None):
    """ResidualBlocks forward. x_nchw: (N, Cin, H, W) f32 -> (N, Cout, H, W) f32."""
    head_w, head_b = params["head"]
    blocks = params["blocks"]
    num_blocks = len(blocks)

    N, Cin, H, W = x_nchw.shape
    Cout = head_w.shape[-1]
    assert W % 8 == 0, "W must be a multiple of 8 (sublane tile)"

    if n_tile is None:
        # Fold batch into the matmul M dimension, but keep >= 2 grid steps so
        # both v7x TensorCores get work.
        n_tile = N // 2 if (N >= 2 and N % 2 == 0) else 1
    assert N % n_tile == 0, (N, n_tile)

    # Input is tiny (Cin channels): one small wrapper transpose to channels-last.
    # TODO(synk): if the surrounding model is NHWC end-to-end, feed NHWC directly
    # and drop this transpose (the output side already needs no transpose).
    x_nhwc = jnp.transpose(x_nchw, (0, 2, 3, 1))

    def prep_w(w):  # (3, 3, Ci, Co) HWIO -> (3, 3*Ci, Co), MXU compute dtype
        return w.reshape(3, 3 * w.shape[2], w.shape[3]).astype(compute_dtype)

    args = [x_nhwc, prep_w(head_w), head_b.reshape(1, Cout).astype(jnp.float32)]
    in_specs = [
        pl.BlockSpec((n_tile, H, W, Cin), lambda n: (n, 0, 0, 0)),
        pl.BlockSpec((3, 3 * Cin, Cout), lambda n: (0, 0, 0)),
        pl.BlockSpec((1, Cout), lambda n: (0, 0)),
    ]
    if num_blocks:
        w1 = jnp.stack([prep_w(w) for (w, _, _, _) in blocks])
        b1 = jnp.stack([b.reshape(1, Cout) for (_, b, _, _) in blocks]).astype(jnp.float32)
        w2 = jnp.stack([prep_w(w) for (_, _, w, _) in blocks])
        b2 = jnp.stack([b.reshape(1, Cout) for (_, _, _, b) in blocks]).astype(jnp.float32)
        args += [w1, b1, w2, b2]
        in_specs += [
            pl.BlockSpec((num_blocks, 3, 3 * Cout, Cout), lambda n: (0, 0, 0, 0)),
            pl.BlockSpec((num_blocks, 1, Cout), lambda n: (0, 0, 0)),
            pl.BlockSpec((num_blocks, 3, 3 * Cout, Cout), lambda n: (0, 0, 0, 0)),
            pl.BlockSpec((num_blocks, 1, Cout), lambda n: (0, 0, 0)),
        ]

    Wp = W + 2 * _XPAD
    kernel = _make_fused_kernel(H, W, Cin, Cout, num_blocks, n_tile, compute_dtype)

    out = pl.pallas_call(
        kernel,
        out_shape=jax.ShapeDtypeStruct((N, Cout, H * W), jnp.float32),
        grid=(N // n_tile,),
        in_specs=in_specs,
        # Last block dim is H*W = 256 lanes -> unmasked, lane-dense HBM stores.
        out_specs=pl.BlockSpec((n_tile, Cout, H * W), lambda n: (n, 0, 0)),
        scratch_shapes=[
            pltpu.VMEM((n_tile, H + 2, Wp, Cin), jnp.float32),        # padded input
            pltpu.VMEM((n_tile, H + 2, W, 3 * Cin), compute_dtype),   # head im2col slab
            pltpu.VMEM((n_tile, H + 2, Wp, Cout), jnp.float32),       # running feature (f32)
            pltpu.VMEM((n_tile, H + 2, Wp, Cout), jnp.float32),       # block intermediate (f32)
            pltpu.VMEM((n_tile, H + 2, W, 3 * Cout), compute_dtype),  # body im2col slab
        ],  # ~1.5 MiB total at n_tile=1: well under v5e's 16 MiB scoped default.
        compiler_params=pltpu.CompilerParams(dimension_semantics=("parallel",)),
    )(*args)

    # (N, Cout, H*W) -> (N, Cout, H, W): free metadata reshape (already NCHW).
    return out.reshape(N, Cout, H, W)


def init_params(key, in_channels, out_channels, num_blocks):
    """Deterministic synthetic parameters. Conv weights stored HWIO: (3,3,Cin,Cout)."""
    def conv_init(k, cin, cout):
        kw_, kb_ = jax.random.split(k)
        fan_in = cin * 9
        bound = 1.0 / jnp.sqrt(fan_in)
        w = jax.random.uniform(kw_, (3, 3, cin, cout), jnp.float32, -bound, bound)
        b = jax.random.uniform(kb_, (cout,), jnp.float32, -bound, bound)
        return w, b

    keys = jax.random.split(key, 1 + 2 * num_blocks)
    head_w, head_b = conv_init(keys[0], in_channels, out_channels)
    blocks = []
    for i in range(num_blocks):
        w1, b1 = conv_init(keys[1 + 2 * i], out_channels, out_channels)
        w2, b2 = conv_init(keys[2 + 2 * i], out_channels, out_channels)
        blocks.append((w1, b1, w2, b2))
    return {"head": (head_w, head_b), "blocks": blocks}


def _reference_forward(x_nchw, head_w, head_b, block_params):
    """Pure-JAX reference (lax.conv) for correctness check."""
    dn = jax.lax.conv_dimension_numbers(x_nchw.shape, (1, 1, 3, 3), ("NCHW", "OIHW", "NCHW"))

    def conv(x, w_hwio, b):
        w_oihw = jnp.transpose(w_hwio, (3, 2, 0, 1))
        y = jax.lax.conv_general_dilated(
            x, w_oihw, (1, 1), ((1, 1), (1, 1)), dimension_numbers=dn,
            precision=jax.lax.Precision.HIGHEST)
        return y + b[None, :, None, None]

    feat = jnp.maximum(conv(x_nchw, head_w, head_b), 0.0)
    for (w1, b1, w2, b2) in block_params:
        h = jnp.maximum(conv(feat, w1, b1), 0.0)
        feat = feat + conv(h, w2, b2)
    return feat


if __name__ == "__main__":
    key = jax.random.PRNGKey(0)
    k_x, k_p = jax.random.split(key)

    N, Cin, H, W = 2, 4, 16, 16
    Cout, num_blocks = 32, 2

    x = jax.random.normal(k_x, (N, Cin, H, W), jnp.float32)
    params = init_params(k_p, Cin, Cout, num_blocks)

    ref = _reference_forward(x, params["head"][0], params["head"][1], params["blocks"])

    # f32 MXU-operand path (one image per grid step): tight correctness check.
    out = jax.block_until_ready(
        residual_blocks_forward(x, params, compute_dtype=jnp.float32))
    assert out.shape == (N, Cout, H, W), out.shape
    assert jnp.allclose(out, ref, atol=2e-3, rtol=2e-3), float(jnp.max(jnp.abs(out - ref)))

    # Batch-folded path (both images in one grid step, M = 2*H*W).
    out_nt2 = jax.block_until_ready(
        residual_blocks_forward(x, params, compute_dtype=jnp.float32, n_tile=2))
    assert jnp.allclose(out_nt2, ref, atol=2e-3, rtol=2e-3), \
        float(jnp.max(jnp.abs(out_nt2 - ref)))

    # bf16 MXU-operand fast path (f32 accumulation + f32 elementwise): loose check.
    out_bf16 = jax.block_until_ready(
        residual_blocks_forward(x, params, compute_dtype=jnp.bfloat16))
    assert jnp.allclose(out_bf16, ref, atol=1e-1, rtol=1e-1), \
        float(jnp.max(jnp.abs(out_bf16 - ref)))

    print("KERNEL_OK")
</pallas_src>

<mosaic_0001>
module attributes {stable_mosaic.version = 11 : i64} {
  func.func @kernel(%arg0: i32, %arg1: memref<1x16x16x4xf32, #tpu.memory_space<vmem>>, %arg2: memref<3x12x32xf32, #tpu.memory_space<vmem>>, %arg3: memref<1x32xf32, #tpu.memory_space<vmem>>, %arg4: memref<2x3x96x32xf32, #tpu.memory_space<vmem>>, %arg5: memref<2x1x32xf32, #tpu.memory_space<vmem>>, %arg6: memref<2x3x96x32xf32, #tpu.memory_space<vmem>>, %arg7: memref<2x1x32xf32, #tpu.memory_space<vmem>>, %arg8: memref<1x32x256xf32, #tpu.memory_space<vmem>>, %arg9: memref<1x18x32x4xf32, #tpu.memory_space<vmem>>, %arg10: memref<1x18x16x12xf32, #tpu.memory_space<vmem>>, %arg11: memref<1x18x32x32xf32, #tpu.memory_space<vmem>>, %arg12: memref<1x18x32x32xf32, #tpu.memory_space<vmem>>, %arg13: memref<1x18x16x96xf32, #tpu.memory_space<vmem>>) attributes {dimension_semantics = [#tpu.dimension_semantics<parallel>], iteration_bounds = array<i64: 2>, scalar_prefetch = 0 : i64, scratch_operands = 5 : i64, tpu.core_type = #tpu.core_type<tc>, window_params = [{transform_indices = @transform_0, window_bounds = array<i64: 1, 16, 16, 4>}, {pipeline_mode = #tpu.pipeline_mode<synchronous>, transform_indices = @transform_1, window_bounds = array<i64: 3, 12, 32>}, {pipeline_mode = #tpu.pipeline_mode<synchronous>, transform_indices = @transform_2, window_bounds = array<i64: 1, 32>}, {pipeline_mode = #tpu.pipeline_mode<synchronous>, transform_indices = @transform_3, window_bounds = array<i64: 2, 3, 96, 32>}, {pipeline_mode = #tpu.pipeline_mode<synchronous>, transform_indices = @transform_4, window_bounds = array<i64: 2, 1, 32>}, {pipeline_mode = #tpu.pipeline_mode<synchronous>, transform_indices = @transform_5, window_bounds = array<i64: 2, 3, 96, 32>}, {pipeline_mode = #tpu.pipeline_mode<synchronous>, transform_indices = @transform_6, window_bounds = array<i64: 2, 1, 32>}, {transform_indices = @transform_7, window_bounds = array<i64: 1, 32, 256>}]} {
    %cst = arith.constant 0.000000e+00 : f32
    %0 = vector.broadcast %cst : f32 to vector<1x18x8x4xf32>
    %c0 = arith.constant 0 : index
    %c0_0 = arith.constant 0 : index
    %c0_1 = arith.constant 0 : index
    %c0_2 = arith.constant 0 : index
    %1 = vector.load %arg9[%c0, %c0_0, %c0_1, %c0_2] : memref<1x18x32x4xf32, #tpu.memory_space<vmem>>, vector<1x18x8x4xf32>
    tpu.vector_store %arg9[%c0, %c0_0, %c0_1, %c0_2], %0 {strides = array<i32>} : memref<1x18x32x4xf32, #tpu.memory_space<vmem>>, vector<1x18x8x4xf32>,
    %cst_3 = arith.constant 0.000000e+00 : f32
    %2 = vector.broadcast %cst_3 : f32 to vector<1x18x8x4xf32>
    %c0_4 = arith.constant 0 : index
    %c0_5 = arith.constant 0 : index
    %c24 = arith.constant 24 : index
    %c0_6 = arith.constant 0 : index
    %3 = vector.load %arg9[%c0_4, %c0_5, %c24, %c0_6] : memref<1x18x32x4xf32, #tpu.memory_space<vmem>>, vector<1x18x8x4xf32>
    tpu.vector_store %arg9[%c0_4, %c0_5, %c24, %c0_6], %2 {strides = array<i32>} : memref<1x18x32x4xf32, #tpu.memory_space<vmem>>, vector<1x18x8x4xf32>,
    %cst_7 = arith.constant 0.000000e+00 : f32
    %4 = vector.broadcast %cst_7 : f32 to vector<1x1x16x4xf32>
    %c0_8 = arith.constant 0 : index
    %c0_9 = arith.constant 0 : index
    %c8 = arith.constant 8 : index
    %c0_10 = arith.constant 0 : index
    %5 = vector.load %arg9[%c0_8, %c0_9, %c8, %c0_10] : memref<1x18x32x4xf32, #tpu.memory_space<vmem>>, vector<1x1x16x4xf32>
    tpu.vector_store %arg9[%c0_8, %c0_9, %c8, %c0_10], %4 {strides = array<i32>} : memref<1x18x32x4xf32, #tpu.memory_space<vmem>>, vector<1x1x16x4xf32>,
    %cst_11 = arith.constant 0.000000e+00 : f32
    %6 = vector.broadcast %cst_11 : f32 to vector<1x1x16x4xf32>
    %c0_12 = arith.constant 0 : index
    %c17 = arith.constant 17 : index
    %c8_13 = arith.constant 8 : index
    %c0_14 = arith.constant 0 : index
    %7 = vector.load %arg9[%c0_12, %c17, %c8_13, %c0_14] : memref<1x18x32x4xf32, #tpu.memory_space<vmem>>, vector<1x1x16x4xf32>
    tpu.vector_store %arg9[%c0_12, %c17, %c8_13, %c0_14], %6 {strides = array<i32>} : memref<1x18x32x4xf32, #tpu.memory_space<vmem>>, vector<1x1x16x4xf32>,
    %cst_15 = arith.constant 0.000000e+00 : f32
    %8 = vector.broadcast %cst_15 : f32 to vector<1x18x8x32xf32>
    %c0_16 = arith.constant 0 : index
    %c0_17 = arith.constant 0 : index
    %c0_18 = arith.constant 0 : index
    %c0_19 = arith.constant 0 : index
    %9 = vector.load %arg11[%c0_16, %c0_17, %c0_18, %c0_19] : memref<1x18x32x32xf32, #tpu.memory_space<vmem>>, vector<1x18x8x32xf32>
    tpu.vector_store %arg11[%c0_16, %c0_17, %c0_18, %c0_19], %8 {strides = array<i32>} : memref<1x18x32x32xf32, #tpu.memory_space<vmem>>, vector<1x18x8x32xf32>,
    %cst_20 = arith.constant 0.000000e+00 : f32
    %10 = vector.broadcast %cst_20 : f32 to vector<1x18x8x32xf32>
    %c0_21 = arith.constant 0 : index
    %c0_22 = arith.constant 0 : index
    %c24_23 = arith.constant 24 : index
    %c0_24 = arith.constant 0 : index
    %11 = vector.load %arg11[%c0_21, %c0_22, %c24_23, %c0_24] : memref<1x18x32x32xf32, #tpu.memory_space<vmem>>, vector<1x18x8x32xf32>
    tpu.vector_store %arg11[%c0_21, %c0_22, %c24_23, %c0_24], %10 {strides = array<i32>} : memref<1x18x32x32xf32, #tpu.memory_space<vmem>>, vector<1x18x8x32xf32>,
    %cst_25 = arith.constant 0.000000e+00 : f32
    %12 = vector.broadcast %cst_25 : f32 to vector<1x1x16x32xf32>
    %c0_26 = arith.constant 0 : index
    %c0_27 = arith.constant 0 : index
    %c8_28 = arith.constant 8 : index
    %c0_29 = arith.constant 0 : index
    %13 = vector.load %arg11[%c0_26, %c0_27, %c8_28, %c0_29] : memref<1x18x32x32xf32, #tpu.memory_space<vmem>>, vector<1x1x16x32xf32>
    tpu.vector_store %arg11[%c0_26, %c0_27, %c8_28, %c0_29], %12 {strides = array<i32>} : memref<1x18x32x32xf32, #tpu.memory_space<vmem>>, vector<1x1x16x32xf32>,
    %cst_30 = arith.constant 0.000000e+00 : f32
    %14 = vector.broadcast %cst_30 : f32 to vector<1x1x16x32xf32>
    %c0_31 = arith.constant 0 : index
    %c17_32 = arith.constant 17 : index
    %c8_33 = arith.constant 8 : index
    %c0_34 = arith.constant 0 : index
    %15 = vector.load %arg11[%c0_31, %c17_32, %c8_33, %c0_34] : memref<1x18x32x32xf32, #tpu.memory_space<vmem>>, vector<1x1x16x32xf32>
    tpu.vector_store %arg11[%c0_31, %c17_32, %c8_33, %c0_34], %14 {strides = array<i32>} : memref<1x18x32x32xf32, #tpu.memory_space<vmem>>, vector<1x1x16x32xf32>,
    %cst_35 = arith.constant 0.000000e+00 : f32
    %16 = vector.broadcast %cst_35 : f32 to vector<1x18x8x32xf32>
    %c0_36 = arith.constant 0 : index
    %c0_37 = arith.constant 0 : index
    %c0_38 = arith.constant 0 : index
    %c0_39 = arith.constant 0 : index
    %17 = vector.load %arg12[%c0_36, %c0_37, %c0_38, %c0_39] : memref<1x18x32x32xf32, #tpu.memory_space<vmem>>, vector<1x18x8x32xf32>
    tpu.vector_store %arg12[%c0_36, %c0_37, %c0_38, %c0_39], %16 {strides = array<i32>} : memref<1x18x32x32xf32, #tpu.memory_space<vmem>>, vector<1x18x8x32xf32>,
    %cst_40 = arith.constant 0.000000e+00 : f32
    %18 = vector.broadcast %cst_40 : f32 to vector<1x18x8x32xf32>
    %c0_41 = arith.constant 0 : index
    %c0_42 = arith.constant 0 : index
    %c24_43 = arith.constant 24 : index
    %c0_44 = arith.constant 0 : index
    %19 = vector.load %arg12[%c0_41, %c0_42, %c24_43, %c0_44] : memref<1x18x32x32xf32, #tpu.memory_space<vmem>>, vector<1x18x8x32xf32>
    tpu.vector_store %arg12[%c0_41, %c0_42, %c24_43, %c0_44], %18 {strides = array<i32>} : memref<1x18x32x32xf32, #tpu.memory_space<vmem>>, vector<1x18x8x32xf32>,
    %cst_45 = arith.constant 0.000000e+00 : f32
    %20 = vector.broadcast %cst_45 : f32 to vector<1x1x16x32xf32>
    %c0_46 = arith.constant 0 : index
    %c0_47 = arith.constant 0 : index
    %c8_48 = arith.constant 8 : index
    %c0_49 = arith.constant 0 : index
    %21 = vector.load %arg12[%c0_46, %c0_47, %c8_48, %c0_49] : memref<1x18x32x32xf32, #tpu.memory_space<vmem>>, vector<1x1x16x32xf32>
    tpu.vector_store %arg12[%c0_46, %c0_47, %c8_48, %c0_49], %20 {strides = array<i32>} : memref<1x18x32x32xf32, #tpu.memory_space<vmem>>, vector<1x1x16x32xf32>,
    %cst_50 = arith.constant 0.000000e+00 : f32
    %22 = vector.broadcast %cst_50 : f32 to vector<1x1x16x32xf32>
    %c0_51 = arith.constant 0 : index
    %c17_52 = arith.constant 17 : index
    %c8_53 = arith.constant 8 : index
    %c0_54 = arith.constant 0 : index
    %23 = vector.load %arg12[%c0_51, %c17_52, %c8_53, %c0_54] : memref<1x18x32x32xf32, #tpu.memory_space<vmem>>, vector<1x1x16x32xf32>
    tpu.vector_store %arg12[%c0_51, %c17_52, %c8_53, %c0_54], %22 {strides = array<i32>} : memref<1x18x32x32xf32, #tpu.memory_space<vmem>>, vector<1x1x16x32xf32>,
    %c0_55 = arith.constant 0 : index
    %c0_56 = arith.constant 0 : index
    %c0_57 = arith.constant 0 : index
    %c0_58 = arith.constant 0 : index
    %24 = vector.load %arg1[%c0_55, %c0_56, %c0_57, %c0_58] : memref<1x16x16x4xf32, #tpu.memory_space<vmem>>, vector<1x16x16x4xf32>
    %c0_59 = arith.constant 0 : index
    %c1 = arith.constant 1 : index
    %c8_60 = arith.constant 8 : index
    %c0_61 = arith.constant 0 : index
    %25 = vector.load %arg9[%c0_59, %c1, %c8_60, %c0_61] : memref<1x18x32x4xf32, #tpu.memory_space<vmem>>, vector<1x16x16x4xf32>
    tpu.vector_store %arg9[%c0_59, %c1, %c8_60, %c0_61], %24 {strides = array<i32>} : memref<1x18x32x4xf32, #tpu.memory_space<vmem>>, vector<1x16x16x4xf32>,
    %c0_62 = arith.constant 0 : index
    %c0_63 = arith.constant 0 : index
    %c0_64 = arith.constant 0 : index
    %26 = vector.load %arg2[%c0_62, %c0_63, %c0_64] : memref<3x12x32xf32, #tpu.memory_space<vmem>>, vector<3x12x32xf32>
    %c0_65 = arith.constant 0 : index
    %c0_66 = arith.constant 0 : index
    %27 = vector.load %arg3[%c0_65, %c0_66] : memref<1x32xf32, #tpu.memory_space<vmem>>, vector<1x32xf32>
    %c0_67 = arith.constant 0 : index
    %c0_68 = arith.constant 0 : index
    %c7 = arith.constant 7 : index
    %c0_69 = arith.constant 0 : index
    %28 = vector.load %arg9[%c0_67, %c0_68, %c7, %c0_69] : memref<1x18x32x4xf32, #tpu.memory_space<vmem>>, vector<1x18x16x4xf32>
    %c0_70 = arith.constant 0 : index
    %c0_71 = arith.constant 0 : index
    %c0_72 = arith.constant 0 : index
    %c0_73 = arith.constant 0 : index
    %29 = vector.load %arg10[%c0_70, %c0_71, %c0_72, %c0_73] : memref<1x18x16x12xf32, #tpu.memory_space<vmem>>, vector<1x18x16x4xf32>
    tpu.vector_store %arg10[%c0_70, %c0_71, %c0_72, %c0_73], %28 {strides = array<i32>} : memref<1x18x16x12xf32, #tpu.memory_space<vmem>>, vector<1x18x16x4xf32>,
    %c0_74 = arith.constant 0 : index
    %c0_75 = arith.constant 0 : index
    %c8_76 = arith.constant 8 : index
    %c0_77 = arith.constant 0 : index
    %30 = vector.load %arg9[%c0_74, %c0_75, %c8_76, %c0_77] : memref<1x18x32x4xf32, #tpu.memory_space<vmem>>, vector<1x18x16x4xf32>
    %c0_78 = arith.constant 0 : index
    %c0_79 = arith.constant 0 : index
    %c0_80 = arith.constant 0 : index
    %c4 = arith.constant 4 : index
    %31 = vector.load %arg10[%c0_78, %c0_79, %c0_80, %c4] : memref<1x18x16x12xf32, #tpu.memory_space<vmem>>, vector<1x18x16x4xf32>
    tpu.vector_store %arg10[%c0_78, %c0_79, %c0_80, %c4], %30 {strides = array<i32>} : memref<1x18x16x12xf32, #tpu.memory_space<vmem>>, vector<1x18x16x4xf32>,
    %c0_81 = arith.constant 0 : index
    %c0_82 = arith.constant 0 : index
    %c9 = arith.constant 9 : index
    %c0_83 = arith.constant 0 : index
    %32 = vector.load %arg9[%c0_81, %c0_82, %c9, %c0_83] : memref<1x18x32x4xf32, #tpu.memory_space<vmem>>, vector<1x18x16x4xf32>
    %c0_84 = arith.constant 0 : index
    %c0_85 = arith.constant 0 : index
    %c0_86 = arith.constant 0 : index
    %c8_87 = arith.constant 8 : index
    %33 = vector.load %arg10[%c0_84, %c0_85, %c0_86, %c8_87] : memref<1x18x16x12xf32, #tpu.memory_space<vmem>>, vector<1x18x16x4xf32>
    tpu.vector_store %arg10[%c0_84, %c0_85, %c0_86, %c8_87], %32 {strides = array<i32>} : memref<1x18x16x12xf32, #tpu.memory_space<vmem>>, vector<1x18x16x4xf32>,
    %cst_88 = arith.constant 0.000000e+00 : f32
    %34 = vector.broadcast %cst_88 : f32 to vector<256x32xf32>
    %c0_89 = arith.constant 0 : index
    %c0_90 = arith.constant 0 : index
    %c0_91 = arith.constant 0 : index
    %c0_92 = arith.constant 0 : index
    %35 = vector.load %arg10[%c0_89, %c0_90, %c0_91, %c0_92] : memref<1x18x16x12xf32, #tpu.memory_space<vmem>>, vector<1x16x16x12xf32>
    %36 = vector.shape_cast %35 : vector<1x16x16x12xf32> to vector<256x12xf32>
    %37 = vector.extract_strided_slice %26 {offsets = [0, 0, 0], sizes = [1, 12, 32], strides = [1, 1, 1]} : vector<3x12x32xf32> to vector<1x12x32xf32>
    %38 = vector.shape_cast %37 : vector<1x12x32xf32> to vector<12x32xf32>
    %cst_93 = arith.constant dense<0.000000e+00> : vector<256x32xf32>
    %39 = tpu.matmul %36, %38, %cst_93 {dimension_numbers = #tpu.dot_dimension_numbers<[1], [0], [0], [1], [0, 0, 1, 1], [], []>} : vector<256x12xf32>, vector<12x32xf32>, vector<256x32xf32> -> vector<256x32xf32>
    %40 = arith.addf %34, %39 : vector<256x32xf32>
    %c0_94 = arith.constant 0 : index
    %c1_95 = arith.constant 1 : index
    %c0_96 = arith.constant 0 : index
    %c0_97 = arith.constant 0 : index
    %41 = vector.load %arg10[%c0_94, %c1_95, %c0_96, %c0_97] : memref<1x18x16x12xf32, #tpu.memory_space<vmem>>, vector<1x16x16x12xf32>
    %42 = vector.shape_cast %41 : vector<1x16x16x12xf32> to vector<256x12xf32>
    %43 = vector.extract_strided_slice %26 {offsets = [1, 0, 0], sizes = [1, 12, 32], strides = [1, 1, 1]} : vector<3x12x32xf32> to vector<1x12x32xf32>
    %44 = vector.shape_cast %43 : vector<1x12x32xf32> to vector<12x32xf32>
    %cst_98 = arith.constant dense<0.000000e+00> : vector<256x32xf32>
    %45 = tpu.matmul %42, %44, %cst_98 {dimension_numbers = #tpu.dot_dimension_numbers<[1], [0], [0], [1], [0, 0, 1, 1], [], []>} : vector<256x12xf32>, vector<12x32xf32>, vector<256x32xf32> -> vector<256x32xf32>
    %46 = arith.addf %40, %45 : vector<256x32xf32>
    %c0_99 = arith.constant 0 : index
    %c2 = arith.constant 2 : index
    %c0_100 = arith.constant 0 : index
    %c0_101 = arith.constant 0 : index
    %47 = vector.load %arg10[%c0_99, %c2, %c0_100, %c0_101] : memref<1x18x16x12xf32, #tpu.memory_space<vmem>>, vector<1x16x16x12xf32>
    %48 = vector.shape_cast %47 : vector<1x16x16x12xf32> to vector<256x12xf32>
    %49 = vector.extract_strided_slice %26 {offsets = [2, 0, 0], sizes = [1, 12, 32], strides = [1, 1, 1]} : vector<3x12x32xf32> to vector<1x12x32xf32>
    %50 = vector.shape_cast %49 : vector<1x12x32xf32> to vector<12x32xf32>
    %cst_102 = arith.constant dense<0.000000e+00> : vector<256x32xf32>
    %51 = tpu.matmul %48, %50, %cst_102 {dimension_numbers = #tpu.dot_dimension_numbers<[1], [0], [0], [1], [0, 0, 1, 1], [], []>} : vector<256x12xf32>, vector<12x32xf32>, vector<256x32xf32> -> vector<256x32xf32>
    %52 = arith.addf %46, %51 : vector<256x32xf32>
    %53 = vector.broadcast %27 : vector<1x32xf32> to vector<256x32xf32>
    %54 = arith.addf %52, %53 : vector<256x32xf32>
    %cst_103 = arith.constant 0.000000e+00 : f32
    %55 = vector.broadcast %cst_103 : f32 to vector<256x32xf32>
    %56 = arith.maximumf %54, %55 : vector<256x32xf32>
    %57 = vector.shape_cast %56 : vector<256x32xf32> to vector<1x16x16x32xf32>
    %c0_104 = arith.constant 0 : index
    %c1_105 = arith.constant 1 : index
    %c8_106 = arith.constant 8 : index
    %c0_107 = arith.constant 0 : index
    %58 = vector.load %arg11[%c0_104, %c1_105, %c8_106, %c0_107] : memref<1x18x32x32xf32, #tpu.memory_space<vmem>>, vector<1x16x16x32xf32>
    tpu.vector_store %arg11[%c0_104, %c1_105, %c8_106, %c0_107], %57 {strides = array<i32>} : memref<1x18x32x32xf32, #tpu.memory_space<vmem>>, vector<1x16x16x32xf32>,
    %c0_108 = arith.constant 0 : index
    %c0_109 = arith.constant 0 : index
    %c0_110 = arith.constant 0 : index
    %c0_111 = arith.constant 0 : index
    %59 = vector.load %arg4[%c0_108, %c0_109, %c0_110, %c0_111] : memref<2x3x96x32xf32, #tpu.memory_space<vmem>>, vector<1x3x96x32xf32>
    %60 = vector.shape_cast %59 : vector<1x3x96x32xf32> to vector<3x96x32xf32>
    %c0_112 = arith.constant 0 : index
    %c0_113 = arith.constant 0 : index
    %c0_114 = arith.constant 0 : index
    %61 = vector.load %arg5[%c0_112, %c0_113, %c0_114] : memref<2x1x32xf32, #tpu.memory_space<vmem>>, vector<1x1x32xf32>
    %62 = vector.shape_cast %61 : vector<1x1x32xf32> to vector<1x32xf32>
    %c0_115 = arith.constant 0 : index
    %c0_116 = arith.constant 0 : index
    %c7_117 = arith.constant 7 : index
    %c0_118 = arith.constant 0 : index
    %63 = vector.load %arg11[%c0_115, %c0_116, %c7_117, %c0_118] : memref<1x18x32x32xf32, #tpu.memory_space<vmem>>, vector<1x18x16x32xf32>
    %c0_119 = arith.constant 0 : index
    %c0_120 = arith.constant 0 : index
    %c0_121 = arith.constant 0 : index
    %c0_122 = arith.constant 0 : index
    %64 = vector.load %arg13[%c0_119, %c0_120, %c0_121, %c0_122] : memref<1x18x16x96xf32, #tpu.memory_space<vmem>>, vector<1x18x16x32xf32>
    tpu.vector_store %arg13[%c0_119, %c0_120, %c0_121, %c0_122], %63 {strides = array<i32>} : memref<1x18x16x96xf32, #tpu.memory_space<vmem>>, vector<1x18x16x32xf32>,
    %c0_123 = arith.constant 0 : index
    %c0_124 = arith.constant 0 : index
    %c8_125 = arith.constant 8 : index
    %c0_126 = arith.constant 0 : index
    %65 = vector.load %arg11[%c0_123, %c0_124, %c8_125, %c0_126] : memref<1x18x32x32xf32, #tpu.memory_space<vmem>>, vector<1x18x16x32xf32>
    %c0_127 = arith.constant 0 : index
    %c0_128 = arith.constant 0 : index
    %c0_129 = arith.constant 0 : index
    %c32 = arith.constant 32 : index
    %66 = vector.load %arg13[%c0_127, %c0_128, %c0_129, %c32] : memref<1x18x16x96xf32, #tpu.memory_space<vmem>>, vector<1x18x16x32xf32>
    tpu.vector_store %arg13[%c0_127, %c0_128, %c0_129, %c32], %65 {strides = array<i32>} : memref<1x18x16x96xf32, #tpu.memory_space<vmem>>, vector<1x18x16x32xf32>,
    %c0_130 = arith.constant 0 : index
    %c0_131 = arith.constant 0 : index
    %c9_132 = arith.constant 9 : index
    %c0_133 = arith.constant 0 : index
    %67 = vector.load %arg11[%c0_130, %c0_131, %c9_132, %c0_133] : memref<1x18x32x32xf32, #tpu.memory_space<vmem>>, vector<1x18x16x32xf32>
    %c0_134 = arith.constant 0 : index
    %c0_135 = arith.constant 0 : index
    %c0_136 = arith.constant 0 : index
    %c64 = arith.constant 64 : index
    %68 = vector.load %arg13[%c0_134, %c0_135, %c0_136, %c64] : memref<1x18x16x96xf32, #tpu.memory_space<vmem>>, vector<1x18x16x32xf32>
    tpu.vector_store %arg13[%c0_134, %c0_135, %c0_136, %c64], %67 {strides = array<i32>} : memref<1x18x16x96xf32, #tpu.memory_space<vmem>>, vector<1x18x16x32xf32>,
    %cst_137 = arith.constant 0.000000e+00 : f32
    %69 = vector.broadcast %cst_137 : f32 to vector<256x32xf32>
    %c0_138 = arith.constant 0 : index
    %c0_139 = arith.constant 0 : index
    %c0_140 = arith.constant 0 : index
    %c0_141 = arith.constant 0 : index
    %70 = vector.load %arg13[%c0_138, %c0_139, %c0_140, %c0_141] : memref<1x18x16x96xf32, #tpu.memory_space<vmem>>, vector<1x16x16x96xf32>
    %71 = vector.shape_cast %70 : vector<1x16x16x96xf32> to vector<256x96xf32>
    %72 = vector.extract_strided_slice %60 {offsets = [0, 0, 0], sizes = [1, 96, 32], strides = [1, 1, 1]} : vector<3x96x32xf32> to vector<1x96x32xf32>
    %73 = vector.shape_cast %72 : vector<1x96x32xf32> to vector<96x32xf32>
    %cst_142 = arith.constant dense<0.000000e+00> : vector<256x32xf32>
    %74 = tpu.matmul %71, %73, %cst_142 {dimension_numbers = #tpu.dot_dimension_numbers<[1], [0], [0], [1], [0, 0, 1, 1], [], []>} : vector<256x96xf32>, vector<96x32xf32>, vector<256x32xf32> -> vector<256x32xf32>
    %75 = arith.addf %69, %74 : vector<256x32xf32>
    %c0_143 = arith.constant 0 : index
    %c1_144 = arith.constant 1 : index
    %c0_145 = arith.constant 0 : index
    %c0_146 = arith.constant 0 : index
    %76 = vector.load %arg13[%c0_143, %c1_144, %c0_145, %c0_146] : memref<1x18x16x96xf32, #tpu.memory_space<vmem>>, vector<1x16x16x96xf32>
    %77 = vector.shape_cast %76 : vector<1x16x16x96xf32> to vector<256x96xf32>
    %78 = vector.extract_strided_slice %60 {offsets = [1, 0, 0], sizes = [1, 96, 32], strides = [1, 1, 1]} : vector<3x96x32xf32> to vector<1x96x32xf32>
    %79 = vector.shape_cast %78 : vector<1x96x32xf32> to vector<96x32xf32>
    %cst_147 = arith.constant dense<0.000000e+00> : vector<256x32xf32>
    %80 = tpu.matmul %77, %79, %cst_147 {dimension_numbers = #tpu.dot_dimension_numbers<[1], [0], [0], [1], [0, 0, 1, 1], [], []>} : vector<256x96xf32>, vector<96x32xf32>, vector<256x32xf32> -> vector<256x32xf32>
    %81 = arith.addf %75, %80 : vector<256x32xf32>
    %c0_148 = arith.constant 0 : index
    %c2_149 = arith.constant 2 : index
    %c0_150 = arith.constant 0 : index
    %c0_151 = arith.constant 0 : index
    %82 = vector.load %arg13[%c0_148, %c2_149, %c0_150, %c0_151] : memref<1x18x16x96xf32, #tpu.memory_space<vmem>>, vector<1x16x16x96xf32>
    %83 = vector.shape_cast %82 : vector<1x16x16x96xf32> to vector<256x96xf32>
    %84 = vector.extract_strided_slice %60 {offsets = [2, 0, 0], sizes = [1, 96, 32], strides = [1, 1, 1]} : vector<3x96x32xf32> to vector<1x96x32xf32>
    %85 = vector.shape_cast %84 : vector<1x96x32xf32> to vector<96x32xf32>
    %cst_152 = arith.constant dense<0.000000e+00> : vector<256x32xf32>
    %86 = tpu.matmul %83, %85, %cst_152 {dimension_numbers = #tpu.dot_dimension_numbers<[1], [0], [0], [1], [0, 0, 1, 1], [], []>} : vector<256x96xf32>, vector<96x32xf32>, vector<256x32xf32> -> vector<256x32xf32>
    %87 = arith.addf %81, %86 : vector<256x32xf32>
    %88 = vector.broadcast %62 : vector<1x32xf32> to vector<256x32xf32>
    %89 = arith.addf %87, %88 : vector<256x32xf32>
    %cst_153 = arith.constant 0.000000e+00 : f32
    %90 = vector.broadcast %cst_153 : f32 to vector<256x32xf32>
    %91 = arith.maximumf %89, %90 : vector<256x32xf32>
    %92 = vector.shape_cast %91 : vector<256x32xf32> to vector<1x16x16x32xf32>
    %c0_154 = arith.constant 0 : index
    %c1_155 = arith.constant 1 : index
    %c8_156 = arith.constant 8 : index
    %c0_157 = arith.constant 0 : index
    %93 = vector.load %arg12[%c0_154, %c1_155, %c8_156, %c0_157] : memref<1x18x32x32xf32, #tpu.memory_space<vmem>>, vector<1x16x16x32xf32>
    tpu.vector_store %arg12[%c0_154, %c1_155, %c8_156, %c0_157], %92 {strides = array<i32>} : memref<1x18x32x32xf32, #tpu.memory_space<vmem>>, vector<1x16x16x32xf32>,
    %c0_158 = arith.constant 0 : index
    %c0_159 = arith.constant 0 : index
    %c0_160 = arith.constant 0 : index
    %c0_161 = arith.constant 0 : index
    %94 = vector.load %arg6[%c0_158, %c0_159, %c0_160, %c0_161] : memref<2x3x96x32xf32, #tpu.memory_space<vmem>>, vector<1x3x96x32xf32>
    %95 = vector.shape_cast %94 : vector<1x3x96x32xf32> to vector<3x96x32xf32>
    %c0_162 = arith.constant 0 : index
    %c0_163 = arith.constant 0 : index
    %c0_164 = arith.constant 0 : index
    %96 = vector.load %arg7[%c0_162, %c0_163, %c0_164] : memref<2x1x32xf32, #tpu.memory_space<vmem>>, vector<1x1x32xf32>
    %97 = vector.shape_cast %96 : vector<1x1x32xf32> to vector<1x32xf32>
    %c0_165 = arith.constant 0 : index
    %c0_166 = arith.constant 0 : index
    %c7_167 = arith.constant 7 : index
    %c0_168 = arith.constant 0 : index
    %98 = vector.load %arg12[%c0_165, %c0_166, %c7_167, %c0_168] : memref<1x18x32x32xf32, #tpu.memory_space<vmem>>, vector<1x18x16x32xf32>
    %c0_169 = arith.constant 0 : index
    %c0_170 = arith.constant 0 : index
    %c0_171 = arith.constant 0 : index
    %c0_172 = arith.constant 0 : index
    %99 = vector.load %arg13[%c0_169, %c0_170, %c0_171, %c0_172] : memref<1x18x16x96xf32, #tpu.memory_space<vmem>>, vector<1x18x16x32xf32>
    tpu.vector_store %arg13[%c0_169, %c0_170, %c0_171, %c0_172], %98 {strides = array<i32>} : memref<1x18x16x96xf32, #tpu.memory_space<vmem>>, vector<1x18x16x32xf32>,
    %c0_173 = arith.constant 0 : index
    %c0_174 = arith.constant 0 : index
    %c8_175 = arith.constant 8 : index
    %c0_176 = arith.constant 0 : index
    %100 = vector.load %arg12[%c0_173, %c0_174, %c8_175, %c0_176] : memref<1x18x32x32xf32, #tpu.memory_space<vmem>>, vector<1x18x16x32xf32>
    %c0_177 = arith.constant 0 : index
    %c0_178 = arith.constant 0 : index
    %c0_179 = arith.constant 0 : index
    %c32_180 = arith.constant 32 : index
    %101 = vector.load %arg13[%c0_177, %c0_178, %c0_179, %c32_180] : memref<1x18x16x96xf32, #tpu.memory_space<vmem>>, vector<1x18x16x32xf32>
    tpu.vector_store %arg13[%c0_177, %c0_178, %c0_179, %c32_180], %100 {strides = array<i32>} : memref<1x18x16x96xf32, #tpu.memory_space<vmem>>, vector<1x18x16x32xf32>,
    %c0_181 = arith.constant 0 : index
    %c0_182 = arith.constant 0 : index
    %c9_183 = arith.constant 9 : index
    %c0_184 = arith.constant 0 : index
    %102 = vector.load %arg12[%c0_181, %c0_182, %c9_183, %c0_184] : memref<1x18x32x32xf32, #tpu.memory_space<vmem>>, vector<1x18x16x32xf32>
    %c0_185 = arith.constant 0 : index
    %c0_186 = arith.constant 0 : index
    %c0_187 = arith.constant 0 : index
    %c64_188 = arith.constant 64 : index
    %103 = vector.load %arg13[%c0_185, %c0_186, %c0_187, %c64_188] : memref<1x18x16x96xf32, #tpu.memory_space<vmem>>, vector<1x18x16x32xf32>
    tpu.vector_store %arg13[%c0_185, %c0_186, %c0_187, %c64_188], %102 {strides = array<i32>} : memref<1x18x16x96xf32, #tpu.memory_space<vmem>>, vector<1x18x16x32xf32>,
    %cst_189 = arith.constant 0.000000e+00 : f32
    %104 = vector.broadcast %cst_189 : f32 to vector<256x32xf32>
    %c0_190 = arith.constant 0 : index
    %c0_191 = arith.constant 0 : index
    %c0_192 = arith.constant 0 : index
    %c0_193 = arith.constant 0 : index
    %105 = vector.load %arg13[%c0_190, %c0_191, %c0_192, %c0_193] : memref<1x18x16x96xf32, #tpu.memory_space<vmem>>, vector<1x16x16x96xf32>
    %106 = vector.shape_cast %105 : vector<1x16x16x96xf32> to vector<256x96xf32>
    %107 = vector.extract_strided_slice %95 {offsets = [0, 0, 0], sizes = [1, 96, 32], strides = [1, 1, 1]} : vector<3x96x32xf32> to vector<1x96x32xf32>
    %108 = vector.shape_cast %107 : vector<1x96x32xf32> to vector<96x32xf32>
    %cst_194 = arith.constant dense<0.000000e+00> : vector<256x32xf32>
    %109 = tpu.matmul %106, %108, %cst_194 {dimension_numbers = #tpu.dot_dimension_numbers<[1], [0], [0], [1], [0, 0, 1, 1], [], []>} : vector<256x96xf32>, vector<96x32xf32>, vector<256x32xf32> -> vector<256x32xf32>
    %110 = arith.addf %104, %109 : vector<256x32xf32>
    %c0_195 = arith.constant 0 : index
    %c1_196 = arith.constant 1 : index
    %c0_197 = arith.constant 0 : index
    %c0_198 = arith.constant 0 : index
    %111 = vector.load %arg13[%c0_195, %c1_196, %c0_197, %c0_198] : memref<1x18x16x96xf32, #tpu.memory_space<vmem>>, vector<1x16x16x96xf32>
    %112 = vector.shape_cast %111 : vector<1x16x16x96xf32> to vector<256x96xf32>
    %113 = vector.extract_strided_slice %95 {offsets = [1, 0, 0], sizes = [1, 96, 32], strides = [1, 1, 1]} : vector<3x96x32xf32> to vector<1x96x32xf32>
    %114 = vector.shape_cast %113 : vector<1x96x32xf32> to vector<96x32xf32>
    %cst_199 = arith.constant dense<0.000000e+00> : vector<256x32xf32>
    %115 = tpu.matmul %112, %114, %cst_199 {dimension_numbers = #tpu.dot_dimension_numbers<[1], [0], [0], [1], [0, 0, 1, 1], [], []>} : vector<256x96xf32>, vector<96x32xf32>, vector<256x32xf32> -> vector<256x32xf32>
    %116 = arith.addf %110, %115 : vector<256x32xf32>
    %c0_200 = arith.constant 0 : index
    %c2_201 = arith.constant 2 : index
    %c0_202 = arith.constant 0 : index
    %c0_203 = arith.constant 0 : index
    %117 = vector.load %arg13[%c0_200, %c2_201, %c0_202, %c0_203] : memref<1x18x16x96xf32, #tpu.memory_space<vmem>>, vector<1x16x16x96xf32>
    %118 = vector.shape_cast %117 : vector<1x16x16x96xf32> to vector<256x96xf32>
    %119 = vector.extract_strided_slice %95 {offsets = [2, 0, 0], sizes = [1, 96, 32], strides = [1, 1, 1]} : vector<3x96x32xf32> to vector<1x96x32xf32>
    %120 = vector.shape_cast %119 : vector<1x96x32xf32> to vector<96x32xf32>
    %cst_204 = arith.constant dense<0.000000e+00> : vector<256x32xf32>
    %121 = tpu.matmul %118, %120, %cst_204 {dimension_numbers = #tpu.dot_dimension_numbers<[1], [0], [0], [1], [0, 0, 1, 1], [], []>} : vector<256x96xf32>, vector<96x32xf32>, vector<256x32xf32> -> vector<256x32xf32>
    %122 = arith.addf %116, %121 : vector<256x32xf32>
    %123 = vector.broadcast %97 : vector<1x32xf32> to vector<256x32xf32>
    %124 = arith.addf %122, %123 : vector<256x32xf32>
    %c0_205 = arith.constant 0 : index
    %c1_206 = arith.constant 1 : index
    %c8_207 = arith.constant 8 : index
    %c0_208 = arith.constant 0 : index
    %125 = vector.load %arg11[%c0_205, %c1_206, %c8_207, %c0_208] : memref<1x18x32x32xf32, #tpu.memory_space<vmem>>, vector<1x16x16x32xf32>
    %126 = vector.shape_cast %125 : vector<1x16x16x32xf32> to vector<256x32xf32>
    %127 = arith.addf %124, %126 : vector<256x32xf32>
    %128 = vector.shape_cast %127 : vector<256x32xf32> to vector<1x16x16x32xf32>
    %c0_209 = arith.constant 0 : index
    %c1_210 = arith.constant 1 : index
    %c8_211 = arith.constant 8 : index
    %c0_212 = arith.constant 0 : index
    %129 = vector.load %arg11[%c0_209, %c1_210, %c8_211, %c0_212] : memref<1x18x32x32xf32, #tpu.memory_space<vmem>>, vector<1x16x16x32xf32>
    tpu.vector_store %arg11[%c0_209, %c1_210, %c8_211, %c0_212], %128 {strides = array<i32>} : memref<1x18x32x32xf32, #tpu.memory_space<vmem>>, vector<1x16x16x32xf32>,
    %c1_213 = arith.constant 1 : index
    %c0_214 = arith.constant 0 : index
    %c0_215 = arith.constant 0 : index
    %c0_216 = arith.constant 0 : index
    %130 = vector.load %arg4[%c1_213, %c0_214, %c0_215, %c0_216] : memref<2x3x96x32xf32, #tpu.memory_space<vmem>>, vector<1x3x96x32xf32>
    %131 = vector.shape_cast %130 : vector<1x3x96x32xf32> to vector<3x96x32xf32>
    %c1_217 = arith.constant 1 : index
    %c0_218 = arith.constant 0 : index
    %c0_219 = arith.constant 0 : index
    %132 = vector.load %arg5[%c1_217, %c0_218, %c0_219] : memref<2x1x32xf32, #tpu.memory_space<vmem>>, vector<1x1x32xf32>
    %133 = vector.shape_cast %132 : vector<1x1x32xf32> to vector<1x32xf32>
    %c0_220 = arith.constant 0 : index
    %c0_221 = arith.constant 0 : index
    %c7_222 = arith.constant 7 : index
    %c0_223 = arith.constant 0 : index
    %134 = vector.load %arg11[%c0_220, %c0_221, %c7_222, %c0_223] : memref<1x18x32x32xf32, #tpu.memory_space<vmem>>, vector<1x18x16x32xf32>
    %c0_224 = arith.constant 0 : index
    %c0_225 = arith.constant 0 : index
    %c0_226 = arith.constant 0 : index
    %c0_227 = arith.constant 0 : index
    %135 = vector.load %arg13[%c0_224, %c0_225, %c0_226, %c0_227] : memref<1x18x16x96xf32, #tpu.memory_space<vmem>>, vector<1x18x16x32xf32>
    tpu.vector_store %arg13[%c0_224, %c0_225, %c0_226, %c0_227], %134 {strides = array<i32>} : memref<1x18x16x96xf32, #tpu.memory_space<vmem>>, vector<1x18x16x32xf32>,
    %c0_228 = arith.constant 0 : index
    %c0_229 = arith.constant 0 : index
    %c8_230 = arith.constant 8 : index
    %c0_231 = arith.constant 0 : index
    %136 = vector.load %arg11[%c0_228, %c0_229, %c8_230, %c0_231] : memref<1x18x32x32xf32, #tpu.memory_space<vmem>>, vector<1x18x16x32xf32>
    %c0_232 = arith.constant 0 : index
    %c0_233 = arith.constant 0 : index
    %c0_234 = arith.constant 0 : index
    %c32_235 = arith.constant 32 : index
    %137 = vector.load %arg13[%c0_232, %c0_233, %c0_234, %c32_235] : memref<1x18x16x96xf32, #tpu.memory_space<vmem>>, vector<1x18x16x32xf32>
    tpu.vector_store %arg13[%c0_232, %c0_233, %c0_234, %c32_235], %136 {strides = array<i32>} : memref<1x18x16x96xf32, #tpu.memory_space<vmem>>, vector<1x18x16x32xf32>,
    %c0_236 = arith.constant 0 : index
    %c0_237 = arith.constant 0 : index
    %c9_238 = arith.constant 9 : index
    %c0_239 = arith.constant 0 : index
    %138 = vector.load %arg11[%c0_236, %c0_237, %c9_238, %c0_239] : memref<1x18x32x32xf32, #tpu.memory_space<vmem>>, vector<1x18x16x32xf32>
    %c0_240 = arith.constant 0 : index
    %c0_241 = arith.constant 0 : index
    %c0_242 = arith.constant 0 : index
    %c64_243 = arith.constant 64 : index
    %139 = vector.load %arg13[%c0_240, %c0_241, %c0_242, %c64_243] : memref<1x18x16x96xf32, #tpu.memory_space<vmem>>, vector<1x18x16x32xf32>
    tpu.vector_store %arg13[%c0_240, %c0_241, %c0_242, %c64_243], %138 {strides = array<i32>} : memref<1x18x16x96xf32, #tpu.memory_space<vmem>>, vector<1x18x16x32xf32>,
    %cst_244 = arith.constant 0.000000e+00 : f32
    %140 = vector.broadcast %cst_244 : f32 to vector<256x32xf32>
    %c0_245 = arith.constant 0 : index
    %c0_246 = arith.constant 0 : index
    %c0_247 = arith.constant 0 : index
    %c0_248 = arith.constant 0 : index
    %141 = vector.load %arg13[%c0_245, %c0_246, %c0_247, %c0_248] : memref<1x18x16x96xf32, #tpu.memory_space<vmem>>, vector<1x16x16x96xf32>
    %142 = vector.shape_cast %141 : vector<1x16x16x96xf32> to vector<256x96xf32>
    %143 = vector.extract_strided_slice %131 {offsets = [0, 0, 0], sizes = [1, 96, 32], strides = [1, 1, 1]} : vector<3x96x32xf32> to vector<1x96x32xf32>
    %144 = vector.shape_cast %143 : vector<1x96x32xf32> to vector<96x32xf32>
    %cst_249 = arith.constant dense<0.000000e+00> : vector<256x32xf32>
    %145 = tpu.matmul %142, %144, %cst_249 {dimension_numbers = #tpu.dot_dimension_numbers<[1], [0], [0], [1], [0, 0, 1, 1], [], []>} : vector<256x96xf32>, vector<96x32xf32>, vector<256x32xf32> -> vector<256x32xf32>
    %146 = arith.addf %140, %145 : vector<256x32xf32>
    %c0_250 = arith.constant 0 : index
    %c1_251 = arith.constant 1 : index
    %c0_252 = arith.constant 0 : index
    %c0_253 = arith.constant 0 : index
    %147 = vector.load %arg13[%c0_250, %c1_251, %c0_252, %c0_253] : memref<1x18x16x96xf32, #tpu.memory_space<vmem>>, vector<1x16x16x96xf32>
    %148 = vector.shape_cast %147 : vector<1x16x16x96xf32> to vector<256x96xf32>
    %149 = vector.extract_strided_slice %131 {offsets = [1, 0, 0], sizes = [1, 96, 32], strides = [1, 1, 1]} : vector<3x96x32xf32> to vector<1x96x32xf32>
    %150 = vector.shape_cast %149 : vector<1x96x32xf32> to vector<96x32xf32>
    %cst_254 = arith.constant dense<0.000000e+00> : vector<256x32xf32>
    %151 = tpu.matmul %148, %150, %cst_254 {dimension_numbers = #tpu.dot_dimension_numbers<[1], [0], [0], [1], [0, 0, 1, 1], [], []>} : vector<256x96xf32>, vector<96x32xf32>, vector<256x32xf32> -> vector<256x32xf32>
    %152 = arith.addf %146, %151 : vector<256x32xf32>
    %c0_255 = arith.constant 0 : index
    %c2_256 = arith.constant 2 : index
    %c0_257 = arith.constant 0 : index
    %c0_258 = arith.constant 0 : index
    %153 = vector.load %arg13[%c0_255, %c2_256, %c0_257, %c0_258] : memref<1x18x16x96xf32, #tpu.memory_space<vmem>>, vector<1x16x16x96xf32>
    %154 = vector.shape_cast %153 : vector<1x16x16x96xf32> to vector<256x96xf32>
    %155 = vector.extract_strided_slice %131 {offsets = [2, 0, 0], sizes = [1, 96, 32], strides = [1, 1, 1]} : vector<3x96x32xf32> to vector<1x96x32xf32>
    %156 = vector.shape_cast %155 : vector<1x96x32xf32> to vector<96x32xf32>
    %cst_259 = arith.constant dense<0.000000e+00> : vector<256x32xf32>
    %157 = tpu.matmul %154, %156, %cst_259 {dimension_numbers = #tpu.dot_dimension_numbers<[1], [0], [0], [1], [0, 0, 1, 1], [], []>} : vector<256x96xf32>, vector<96x32xf32>, vector<256x32xf32> -> vector<256x32xf32>
    %158 = arith.addf %152, %157 : vector<256x32xf32>
    %159 = vector.broadcast %133 : vector<1x32xf32> to vector<256x32xf32>
    %160 = arith.addf %158, %159 : vector<256x32xf32>
    %cst_260 = arith.constant 0.000000e+00 : f32
    %161 = vector.broadcast %cst_260 : f32 to vector<256x32xf32>
    %162 = arith.maximumf %160, %161 : vector<256x32xf32>
    %163 = vector.shape_cast %162 : vector<256x32xf32> to vector<1x16x16x32xf32>
    %c0_261 = arith.constant 0 : index
    %c1_262 = arith.constant 1 : index
    %c8_263 = arith.constant 8 : index
    %c0_264 = arith.constant 0 : index
    %164 = vector.load %arg12[%c0_261, %c1_262, %c8_263, %c0_264] : memref<1x18x32x32xf32, #tpu.memory_space<vmem>>, vector<1x16x16x32xf32>
    tpu.vector_store %arg12[%c0_261, %c1_262, %c8_263, %c0_264], %163 {strides = array<i32>} : memref<1x18x32x32xf32, #tpu.memory_space<vmem>>, vector<1x16x16x32xf32>,
    %c1_265 = arith.constant 1 : index
    %c0_266 = arith.constant 0 : index
    %c0_267 = arith.constant 0 : index
    %c0_268 = arith.constant 0 : index
    %165 = vector.load %arg6[%c1_265, %c0_266, %c0_267, %c0_268] : memref<2x3x96x32xf32, #tpu.memory_space<vmem>>, vector<1x3x96x32xf32>
    %166 = vector.shape_cast %165 : vector<1x3x96x32xf32> to vector<3x96x32xf32>
    %c1_269 = arith.constant 1 : index
    %c0_270 = arith.constant 0 : index
    %c0_271 = arith.constant 0 : index
    %167 = vector.load %arg7[%c1_269, %c0_270, %c0_271] : memref<2x1x32xf32, #tpu.memory_space<vmem>>, vector<1x1x32xf32>
    %168 = vector.shape_cast %167 : vector<1x1x32xf32> to vector<1x32xf32>
    %c0_272 = arith.constant 0 : index
    %c0_273 = arith.constant 0 : index
    %c7_274 = arith.constant 7 : index
    %c0_275 = arith.constant 0 : index
    %169 = vector.load %arg12[%c0_272, %c0_273, %c7_274, %c0_275] : memref<1x18x32x32xf32, #tpu.memory_space<vmem>>, vector<1x18x16x32xf32>
    %c0_276 = arith.constant 0 : index
    %c0_277 = arith.constant 0 : index
    %c0_278 = arith.constant 0 : index
    %c0_279 = arith.constant 0 : index
    %170 = vector.load %arg13[%c0_276, %c0_277, %c0_278, %c0_279] : memref<1x18x16x96xf32, #tpu.memory_space<vmem>>, vector<1x18x16x32xf32>
    tpu.vector_store %arg13[%c0_276, %c0_277, %c0_278, %c0_279], %169 {strides = array<i32>} : memref<1x18x16x96xf32, #tpu.memory_space<vmem>>, vector<1x18x16x32xf32>,
    %c0_280 = arith.constant 0 : index
    %c0_281 = arith.constant 0 : index
    %c8_282 = arith.constant 8 : index
    %c0_283 = arith.constant 0 : index
    %171 = vector.load %arg12[%c0_280, %c0_281, %c8_282, %c0_283] : memref<1x18x32x32xf32, #tpu.memory_space<vmem>>, vector<1x18x16x32xf32>
    %c0_284 = arith.constant 0 : index
    %c0_285 = arith.constant 0 : index
    %c0_286 = arith.constant 0 : index
    %c32_287 = arith.constant 32 : index
    %172 = vector.load %arg13[%c0_284, %c0_285, %c0_286, %c32_287] : memref<1x18x16x96xf32, #tpu.memory_space<vmem>>, vector<1x18x16x32xf32>
    tpu.vector_store %arg13[%c0_284, %c0_285, %c0_286, %c32_287], %171 {strides = array<i32>} : memref<1x18x16x96xf32, #tpu.memory_space<vmem>>, vector<1x18x16x32xf32>,
    %c0_288 = arith.constant 0 : index
    %c0_289 = arith.constant 0 : index
    %c9_290 = arith.constant 9 : index
    %c0_291 = arith.constant 0 : index
    %173 = vector.load %arg12[%c0_288, %c0_289, %c9_290, %c0_291] : memref<1x18x32x32xf32, #tpu.memory_space<vmem>>, vector<1x18x16x32xf32>
    %c0_292 = arith.constant 0 : index
    %c0_293 = arith.constant 0 : index
    %c0_294 = arith.constant 0 : index
    %c64_295 = arith.constant 64 : index
    %174 = vector.load %arg13[%c0_292, %c0_293, %c0_294, %c64_295] : memref<1x18x16x96xf32, #tpu.memory_space<vmem>>, vector<1x18x16x32xf32>
    tpu.vector_store %arg13[%c0_292, %c0_293, %c0_294, %c64_295], %173 {strides = array<i32>} : memref<1x18x16x96xf32, #tpu.memory_space<vmem>>, vector<1x18x16x32xf32>,
    %cst_296 = arith.constant 0.000000e+00 : f32
    %175 = vector.broadcast %cst_296 : f32 to vector<256x32xf32>
    %c0_297 = arith.constant 0 : index
    %c0_298 = arith.constant 0 : index
    %c0_299 = arith.constant 0 : index
    %c0_300 = arith.constant 0 : index
    %176 = vector.load %arg13[%c0_297, %c0_298, %c0_299, %c0_300] : memref<1x18x16x96xf32, #tpu.memory_space<vmem>>, vector<1x16x16x96xf32>
    %177 = vector.shape_cast %176 : vector<1x16x16x96xf32> to vector<256x96xf32>
    %178 = vector.extract_strided_slice %166 {offsets = [0, 0, 0], sizes = [1, 96, 32], strides = [1, 1, 1]} : vector<3x96x32xf32> to vector<1x96x32xf32>
    %179 = vector.shape_cast %178 : vector<1x96x32xf32> to vector<96x32xf32>
    %cst_301 = arith.constant dense<0.000000e+00> : vector<256x32xf32>
    %180 = tpu.matmul %177, %179, %cst_301 {dimension_numbers = #tpu.dot_dimension_numbers<[1], [0], [0], [1], [0, 0, 1, 1], [], []>} : vector<256x96xf32>, vector<96x32xf32>, vector<256x32xf32> -> vector<256x32xf32>
    %181 = arith.addf %175, %180 : vector<256x32xf32>
    %c0_302 = arith.constant 0 : index
    %c1_303 = arith.constant 1 : index
    %c0_304 = arith.constant 0 : index
    %c0_305 = arith.constant 0 : index
    %182 = vector.load %arg13[%c0_302, %c1_303, %c0_304, %c0_305] : memref<1x18x16x96xf32, #tpu.memory_space<vmem>>, vector<1x16x16x96xf32>
    %183 = vector.shape_cast %182 : vector<1x16x16x96xf32> to vector<256x96xf32>
    %184 = vector.extract_strided_slice %166 {offsets = [1, 0, 0], sizes = [1, 96, 32], strides = [1, 1, 1]} : vector<3x96x32xf32> to vector<1x96x32xf32>
    %185 = vector.shape_cast %184 : vector<1x96x32xf32> to vector<96x32xf32>
    %cst_306 = arith.constant dense<0.000000e+00> : vector<256x32xf32>
    %186 = tpu.matmul %183, %185, %cst_306 {dimension_numbers = #tpu.dot_dimension_numbers<[1], [0], [0], [1], [0, 0, 1, 1], [], []>} : vector<256x96xf32>, vector<96x32xf32>, vector<256x32xf32> -> vector<256x32xf32>
    %187 = arith.addf %181, %186 : vector<256x32xf32>
    %c0_307 = arith.constant 0 : index
    %c2_308 = arith.constant 2 : index
    %c0_309 = arith.constant 0 : index
    %c0_310 = arith.constant 0 : index
    %188 = vector.load %arg13[%c0_307, %c2_308, %c0_309, %c0_310] : memref<1x18x16x96xf32, #tpu.memory_space<vmem>>, vector<1x16x16x96xf32>
    %189 = vector.shape_cast %188 : vector<1x16x16x96xf32> to vector<256x96xf32>
    %190 = vector.extract_strided_slice %166 {offsets = [2, 0, 0], sizes = [1, 96, 32], strides = [1, 1, 1]} : vector<3x96x32xf32> to vector<1x96x32xf32>
    %191 = vector.shape_cast %190 : vector<1x96x32xf32> to vector<96x32xf32>
    %cst_311 = arith.constant dense<0.000000e+00> : vector<256x32xf32>
    %192 = tpu.matmul %189, %191, %cst_311 {dimension_numbers = #tpu.dot_dimension_numbers<[1], [0], [0], [1], [0, 0, 1, 1], [], []>} : vector<256x96xf32>, vector<96x32xf32>, vector<256x32xf32> -> vector<256x32xf32>
    %193 = arith.addf %187, %192 : vector<256x32xf32>
    %194 = vector.broadcast %168 : vector<1x32xf32> to vector<256x32xf32>
    %195 = arith.addf %193, %194 : vector<256x32xf32>
    %c0_312 = arith.constant 0 : index
    %c1_313 = arith.constant 1 : index
    %c8_314 = arith.constant 8 : index
    %c0_315 = arith.constant 0 : index
    %196 = vector.load %arg11[%c0_312, %c1_313, %c8_314, %c0_315] : memref<1x18x32x32xf32, #tpu.memory_space<vmem>>, vector<1x16x16x32xf32>
    %197 = vector.shape_cast %196 : vector<1x16x16x32xf32> to vector<256x32xf32>
    %198 = arith.addf %195, %197 : vector<256x32xf32>
    %199 = tpu.transpose %198, [1, 0] : vector<256x32xf32> -> vector<32x256xf32>
    %c0_316 = arith.constant 0 : index
    %c0_317 = arith.constant 0 : index
    %c0_318 = arith.constant 0 : index
    %200 = vector.load %arg8[%c0_316, %c0_317, %c0_318] : memref<1x32x256xf32, #tpu.memory_space<vmem>>, vector<1x32x256xf32>
    %201 = vector.shape_cast %200 : vector<1x32x256xf32> to vector<32x256xf32>
    %202 = vector.shape_cast %199 : vector<32x256xf32> to vector<1x32x256xf32>
    tpu.vector_store %arg8[%c0_316, %c0_317, %c0_318], %202 {strides = array<i32>} : memref<1x32x256xf32, #tpu.memory_space<vmem>>, vector<1x32x256xf32>,
    return
  }
  func.func @transform_0(%arg0: i32) -> (i32, i32, i32, i32) {
    %c0_i32 = arith.constant 0 : i32
    %c0_i32_0 = arith.constant 0 : i32
    %c0_i32_1 = arith.constant 0 : i32
    %c0_i32_2 = arith.constant 0 : i32
    return %arg0, %c0_i32, %c0_i32_0, %c0_i32_1 : i32, i32, i32, i32
  }
  func.func @transform_1(%arg0: i32) -> (i32, i32, i32) {
    %c0_i32 = arith.constant 0 : i32
    %c0_i32_0 = arith.constant 0 : i32
    %c0_i32_1 = arith.constant 0 : i32
    %c0_i32_2 = arith.constant 0 : i32
    return %c0_i32, %c0_i32_0, %c0_i32_1 : i32, i32, i32
  }
  func.func @transform_2(%arg0: i32) -> (i32, i32) {
    %c0_i32 = arith.constant 0 : i32
    %c0_i32_0 = arith.constant 0 : i32
    %c0_i32_1 = arith.constant 0 : i32
    return %c0_i32, %c0_i32_0 : i32, i32
  }
  func.func @transform_3(%arg0: i32) -> (i32, i32, i32, i32) {
    %c0_i32 = arith.constant 0 : i32
    %c0_i32_0 = arith.constant 0 : i32
    %c0_i32_1 = arith.constant 0 : i32
    %c0_i32_2 = arith.constant 0 : i32
    %c0_i32_3 = arith.constant 0 : i32
    return %c0_i32, %c0_i32_0, %c0_i32_1, %c0_i32_2 : i32, i32, i32, i32
  }
  func.func @transform_4(%arg0: i32) -> (i32, i32, i32) {
    %c0_i32 = arith.constant 0 : i32
    %c0_i32_0 = arith.constant 0 : i32
    %c0_i32_1 = arith.constant 0 : i32
    %c0_i32_2 = arith.constant 0 : i32
    return %c0_i32, %c0_i32_0, %c0_i32_1 : i32, i32, i32
  }
  func.func @transform_5(%arg0: i32) -> (i32, i32, i32, i32) {
    %c0_i32 = arith.constant 0 : i32
    %c0_i32_0 = arith.constant 0 : i32
    %c0_i32_1 = arith.constant 0 : i32
    %c0_i32_2 = arith.constant 0 : i32
    %c0_i32_3 = arith.constant 0 : i32
    return %c0_i32, %c0_i32_0, %c0_i32_1, %c0_i32_2 : i32, i32, i32, i32
  }
  func.func @transform_6(%arg0: i32) -> (i32, i32, i32) {
    %c0_i32 = arith.constant 0 : i32
    %c0_i32_0 = arith.constant 0 : i32
    %c0_i32_1 = arith.constant 0 : i32
    %c0_i32_2 = arith.constant 0 : i32
    return %c0_i32, %c0_i32_0, %c0_i32_1 : i32, i32, i32
  }
  func.func @transform_7(%arg0: i32) -> (i32, i32, i32) {
    %c0_i32 = arith.constant 0 : i32
    %c0_i32_0 = arith.constant 0 : i32
    %c0_i32_1 = arith.constant 0 : i32
    return %arg0, %c0_i32, %c0_i32_0 : i32, i32, i32
  }
}

</mosaic_0001>

<llo_original>
// kernel: residual_blocks_forward.1
$region0: #{residual_blocks_forward.1}
  #allocation0 [shape = 'u32[]', space=smem, size = 0x4, offset = 0x4, fixed_abs, tag = 'smem constant byte address 0x4 - core index']
  #allocation1 [shape = 'u32[144,128]{1,0:T(1,128)}', space=vmem, size = 0x12000, scoped, tag = 'internal scratch']
  #allocation2 [shape = 'f32[1,18,32,4]{3,2,1,0:T(8,128)}', space=vmem, size = 0x48000, scoped, tag = 'scratch operand']
  #allocation3 [shape = 'f32[1,18,16,12]{3,2,1,0:T(8,128)}', space=vmem, size = 0x24000, scoped, tag = 'scratch operand']
  #allocation4 [shape = 'f32[1,18,32,32]{3,2,1,0:T(8,128)}', space=vmem, size = 0x48000, scoped, tag = 'scratch operand']
  #allocation5 [shape = 'f32[1,18,32,32]{3,2,1,0:T(8,128)}', space=vmem, size = 0x48000, scoped, tag = 'scratch operand']
  #allocation6 [shape = 'f32[1,18,16,96]{3,2,1,0:T(8,128)}', space=vmem, size = 0x24000, scoped, tag = 'scratch operand']
  %s0 = inlined_call_operand.vmem [shape: f32[2,16,16,4], index: 0, kind: input, shape index: {}]
  %s1 = inlined_call_operand.vmem [shape: f32[3,12,32], index: 1, kind: input, shape index: {}]
  %s2 = inlined_call_operand.vmem [shape: f32[1,32], index: 2, kind: input, shape index: {}]
  %s3 = inlined_call_operand.vmem [shape: f32[2,3,96,32], index: 3, kind: input, shape index: {}]
  %s4 = inlined_call_operand.vmem [shape: f32[2,1,32], index: 4, kind: input, shape index: {}]
  %s5 = inlined_call_operand.vmem [shape: f32[2,3,96,32], index: 5, kind: input, shape index: {}]
  %s6 = inlined_call_operand.vmem [shape: f32[2,1,32], index: 6, kind: input, shape index: {}]
  %s7 = inlined_call_operand.vmem [shape: f32[2,32,256], index: 7, kind: output, shape index: {}]
  %s8 = sld [smem:[#allocation0]]
  $region61: #{residual_blocks_forward.1} parent=0
    _
  %s10 = ssub.s32 1, %s8
  %s11 = scalar_select 0, %s10, %s8
  loop: start=0, step=1, limit=4
  $region2: #{residual_blocks_forward.1} parent=0 // loop_pre_header
    _
  $region3: #{residual_blocks_forward.1} parent=0 // loop_header
    %s13 = sphi 0, %s17
    %p14 = scmp.ge.s32.totalorder %s13, 4
    %s23 = sphi 0, %s25
    %s26 = sphi 0, %s23
    %s27 = sphi 0, %s26
    %s43 = sphi 0, %s27
    %s47 = sphi 0, %s47
    %s49 = sphi 0, %s47
    %s50 = sphi 0, %s49
    %s64 = sphi 0, %s50
    %s68 = sphi 0, %s68
    %s70 = sphi 0, %s68
    %s71 = sphi 0, %s70
    %s85 = sphi 0, %s71
    %s89 = sphi 0, %s89
    %s91 = sphi 0, %s89
    %s92 = sphi 0, %s91
    %s106 = sphi 0, %s92
    %s110 = sphi 0, %s110
    %s112 = sphi 0, %s110
    %s113 = sphi 0, %s112
    %s127 = sphi 0, %s113
    %s131 = sphi 0, %s131
    %s133 = sphi 0, %s131
    %s134 = sphi 0, %s133
    %s148 = sphi 0, %s134
    %s152 = sphi 0, %s152
    %s154 = sphi 0, %s152
    %s155 = sphi 0, %s154
    %s169 = sphi 0, %s155
    %s175 = sphi 0, %s177
    %s178 = sphi 0, %s175
    %s179 = sphi 0, %s178
    %s195 = sphi 0, %s179
  $region4: #{residual_blocks_forward.1} parent=0 // loop_header_branch
    %16 = sbr.rel (%p14) target = $region8
  $region5: #{residual_blocks_forward.1} parent=0 // loop_body
    %s18 = ssub.s32 %s13, 1
    %s19 = ssub.s32 %s13, 2
    %s20 = sadd.s32 %s13, 1
    %s21 = ssub.s32 %s13, %s20
    %p22 = scmp.eq.s32.totalorder %s21, 0
    %s24 = sadd.s32 %s23, 1
    %s25 = scalar_select %p22, %s23, %s24
    %p28 = pneg %p22
    %p29 = scmp.eq.s32.totalorder %s13, 1
    %p30 = por %p28, %p29
    %p31 = scmp.ne.s32.totalorder %s23, %s26
    %p32 = scmp.eq.s32.totalorder %s13, 0
    %p33 = por %p31, %p32
    %p34 = scmp.ne.s32.totalorder %s23, %s26
    %p35 = scmp.eq.s32.totalorder %s18, 1
    %p36 = por %p34, %p35
    %p37 = scmp.ne.s32.totalorder %s26, %s27
    %p38 = scmp.eq.s32.totalorder %s18, 0
    %p39 = por %p37, %p38
    %p40 = scmp.ne.s32.totalorder %s26, %s27
    %p41 = scmp.eq.s32.totalorder %s19, 1
    %p42 = por %p40, %p41
    %p44 = scmp.ne.s32.totalorder %s27, %s43
    %p45 = scmp.eq.s32.totalorder %s19, 0
    %p46 = por %p44, %p45
    %s48 = sadd.s32 %s47, 1
    %p51 = scmp.eq.s32.totalorder %s13, 1
    %p52 = scmp.ne.s32.totalorder %s47, %s49
    %p53 = scmp.eq.s32.totalorder %s13, 0
    %p54 = por %p52, %p53
    %p55 = scmp.ne.s32.totalorder %s47, %s49
    %p56 = scmp.eq.s32.totalorder %s18, 1
    %p57 = por %p55, %p56
    %p58 = scmp.ne.s32.totalorder %s49, %s50
    %p59 = scmp.eq.s32.totalorder %s18, 0
    %p60 = por %p58, %p59
    %p61 = scmp.ne.s32.totalorder %s49, %s50
    %p62 = scmp.eq.s32.totalorder %s19, 1
    %p63 = por %p61, %p62
    %p65 = scmp.ne.s32.totalorder %s50, %s64
    %p66 = scmp.eq.s32.totalorder %s19, 0
    %p67 = por %p65, %p66
    %s69 = sadd.s32 %s68, 1
    %p72 = scmp.eq.s32.totalorder %s13, 1
    %p73 = scmp.ne.s32.totalorder %s68, %s70
    %p74 = scmp.eq.s32.totalorder %s13, 0
    %p75 = por %p73, %p74
    %p76 = scmp.ne.s32.totalorder %s68, %s70
    %p77 = scmp.eq.s32.totalorder %s18, 1
    %p78 = por %p76, %p77
    %p79 = scmp.ne.s32.totalorder %s70, %s71
    %p80 = scmp.eq.s32.totalorder %s18, 0
    %p81 = por %p79, %p80
    %p82 = scmp.ne.s32.totalorder %s70, %s71
    %p83 = scmp.eq.s32.totalorder %s19, 1
    %p84 = por %p82, %p83
    %p86 = scmp.ne.s32.totalorder %s71, %s85
    %p87 = scmp.eq.s32.totalorder %s19, 0
    %p88 = por %p86, %p87
    %s90 = sadd.s32 %s89, 1
    %p93 = scmp.eq.s32.totalorder %s13, 1
    %p94 = scmp.ne.s32.totalorder %s89, %s91
    %p95 = scmp.eq.s32.totalorder %s13, 0
    %p96 = por %p94, %p95
    %p97 = scmp.ne.s32.totalorder %s89, %s91
    %p98 = scmp.eq.s32.totalorder %s18, 1
    %p99 = por %p97, %p98
    %p100 = scmp.ne.s32.totalorder %s91, %s92
    %p101 = scmp.eq.s32.totalorder %s18, 0
    %p102 = por %p100, %p101
    %p103 = scmp.ne.s32.totalorder %s91, %s92
    %p104 = scmp.eq.s32.totalorder %s19, 1
    %p105 = por %p103, %p104
    %p107 = scmp.ne.s32.totalorder %s92, %s106
    %p108 = scmp.eq.s32.totalorder %s19, 0
    %p109 = por %p107, %p108
    %s111 = sadd.s32 %s110, 1
    %p114 = scmp.eq.s32.totalorder %s13, 1
    %p115 = scmp.ne.s32.totalorder %s110, %s112
    %p116 = scmp.eq.s32.totalorder %s13, 0
    %p117 = por %p115, %p116
    %p118 = scmp.ne.s32.totalorder %s110, %s112
    %p119 = scmp.eq.s32.totalorder %s18, 1
    %p120 = por %p118, %p119
    %p121 = scmp.ne.s32.totalorder %s112, %s113
    %p122 = scmp.eq.s32.totalorder %s18, 0
    %p123 = por %p121, %p122
    %p124 = scmp.ne.s32.totalorder %s112, %s113
    %p125 = scmp.eq.s32.totalorder %s19, 1
    %p126 = por %p124, %p125
    %p128 = scmp.ne.s32.totalorder %s113, %s127
    %p129 = scmp.eq.s32.totalorder %s19, 0
    %p130 = por %p128, %p129
    %s132 = sadd.s32 %s131, 1
    %p135 = scmp.eq.s32.totalorder %s13, 1
    %p136 = scmp.ne.s32.totalorder %s131, %s133
    %p137 = scmp.eq.s32.totalorder %s13, 0
    %p138 = por %p136, %p137
    %p139 = scmp.ne.s32.totalorder %s131, %s133
    %p140 = scmp.eq.s32.totalorder %s18, 1
    %p141 = por %p139, %p140
    %p142 = scmp.ne.s32.totalorder %s133, %s134
    %p143 = scmp.eq.s32.totalorder %s18, 0
    %p144 = por %p142, %p143
    %p145 = scmp.ne.s32.totalorder %s133, %s134
    %p146 = scmp.eq.s32.totalorder %s19, 1
    %p147 = por %p145, %p146
    %p149 = scmp.ne.s32.totalorder %s134, %s148
    %p150 = scmp.eq.s32.totalorder %s19, 0
    %p151 = por %p149, %p150
    %s153 = sadd.s32 %s152, 1
    %p156 = scmp.eq.s32.totalorder %s13, 1
    %p157 = scmp.ne.s32.totalorder %s152, %s154
    %p158 = scmp.eq.s32.totalorder %s13, 0
    %p159 = por %p157, %p158
    %p160 = scmp.ne.s32.totalorder %s152, %s154
    %p161 = scmp.eq.s32.totalorder %s18, 1
    %p162 = por %p160, %p161
    %p163 = scmp.ne.s32.totalorder %s154, %s155
    %p164 = scmp.eq.s32.totalorder %s18, 0
    %p165 = por %p163, %p164
    %p166 = scmp.ne.s32.totalorder %s154, %s155
    %p167 = scmp.eq.s32.totalorder %s19, 1
    %p168 = por %p166, %p167
    %p170 = scmp.ne.s32.totalorder %s155, %s169
    %p171 = scmp.eq.s32.totalorder %s19, 0
    %p172 = por %p170, %p171
    %s173 = ssub.s32 %s13, %s20
    %p174 = scmp.eq.s32.totalorder %s173, 0
    %s176 = sadd.s32 %s175, 1
    %s177 = scalar_select %p174, %s175, %s176
    %p180 = pneg %p174
    %p181 = scmp.eq.s32.totalorder %s13, 1
    %p182 = por %p180, %p181
    %p183 = scmp.ne.s32.totalorder %s175, %s178
    %p184 = scmp.eq.s32.totalorder %s13, 0
    %p185 = por %p183, %p184
    %p186 = scmp.ne.s32.totalorder %s175, %s178
    %p187 = scmp.eq.s32.totalorder %s18, 1
    %p188 = por %p186, %p187
    %p189 = scmp.ne.s32.totalorder %s178, %s179
    %p190 = scmp.eq.s32.totalorder %s18, 0
    %p191 = por %p189, %p190
    %p192 = scmp.ne.s32.totalorder %s178, %s179
    %p193 = scmp.eq.s32.totalorder %s19, 1
    %p194 = por %p192, %p193
    %p196 = scmp.ne.s32.totalorder %s179, %s195
    %p197 = scmp.eq.s32.totalorder %s19, 0
    %p198 = por %p196, %p197
    %p199 = scmp.le.s32.totalorder 1, %s13
    %p200 = scmp.lt.s32.totalorder %s13, 3
    %p201 = pnand %p199, %p200
    %p202 = pneg %p201
    // Predicated region
    $region9: #{residual_blocks_forward.1} parent=5 // pred_check
      _
    $region10: #{residual_blocks_forward.1} parent=5 // pred_check_branch
      %204 = sbr.rel (%p201) target = $region12
    $region11: #{residual_blocks_forward.1} parent=5 // pred_region
      %s205 = ssub.s32 %s13, 1
      // Predicated region
      $region13: #{residual_blocks_forward.1} parent=11 // pred_check
        %p206 = pneg %p60
      $region14: #{residual_blocks_forward.1} parent=11 // pred_check_branch
        %208 = sbr.rel (%p206) target = $region16
      $region15: #{residual_blocks_forward.1} parent=11 // pred_region
        _
      $region16: #{residual_blocks_forward.1} parent=11 // pred_fallthru
        _
      // Predicated region
      $region17: #{residual_blocks_forward.1} parent=11 // pred_check
        %p209 = pneg %p81
      $region18: #{residual_blocks_forward.1} parent=11 // pred_check_branch
        %211 = sbr.rel (%p209) target = $region20
      $region19: #{residual_blocks_forward.1} parent=11 // pred_region
        _
      $region20: #{residual_blocks_forward.1} parent=11 // pred_fallthru
        _
      // Predicated region
      $region21: #{residual_blocks_forward.1} parent=11 // pred_check
        %p212 = pneg %p102
      $region22: #{residual_blocks_forward.1} parent=11 // pred_check_branch
        %214 = sbr.rel (%p212) target = $region24
      $region23: #{residual_blocks_forward.1} parent=11 // pred_region
        _
      $region24: #{residual_blocks_forward.1} parent=11 // pred_fallthru
        _
      // Predicated region
      $region25: #{residual_blocks_forward.1} parent=11 // pred_check
        %p215 = pneg %p123
      $region26: #{residual_blocks_forward.1} parent=11 // pred_check_branch
        %217 = sbr.rel (%p215) target = $region28
      $region27: #{residual_blocks_forward.1} parent=11 // pred_region
        _
      $region28: #{residual_blocks_forward.1} parent=11 // pred_fallthru
        _
      // Predicated region
      $region29: #{residual_blocks_forward.1} parent=11 // pred_check
        %p218 = pneg %p144
      $region30: #{residual_blocks_forward.1} parent=11 // pred_check_branch
        %220 = sbr.rel (%p218) target = $region32
      $region31: #{residual_blocks_forward.1} parent=11 // pred_region
        _
      $region32: #{residual_blocks_forward.1} parent=11 // pred_fallthru
        _
      // Predicated region
      $region33: #{residual_blocks_forward.1} parent=11 // pred_check
        %p221 = pneg %p165
      $region34: #{residual_blocks_forward.1} parent=11 // pred_check_branch
        %223 = sbr.rel (%p221) target = $region36
      $region35: #{residual_blocks_forward.1} parent=11 // pred_region
        _
      $region36: #{residual_blocks_forward.1} parent=11 // pred_fallthru
        _
    $region12: #{residual_blocks_forward.1} parent=5 // pred_fallthru
      _
    %p224 = scmp.lt.s32.totalorder %s13, 2
    // Predicated region
    $region37: #{residual_blocks_forward.1} parent=5 // pred_check
      %p225 = pneg %p224
    $region38: #{residual_blocks_forward.1} parent=5 // pred_check_branch
      %227 = sbr.rel (%p225) target = $region40
    $region39: #{residual_blocks_forward.1} parent=5 // pred_region
      // Predicated region
      $region41: #{residual_blocks_forward.1} parent=39 // pred_check
        %p228 = pneg %p33
      $region42: #{residual_blocks_forward.1} parent=39 // pred_check_branch
        %230 = sbr.rel (%p228) target = $region44
      $region43: #{residual_blocks_forward.1} parent=39 // pred_region
        %p231 = scmp.lt.s32.totalorder %s13, 1
        %s232 = scalar_select %p231, %s13, 1
        %s233 = smul.addr %s232, 32
        %s234 = smul.addr %s233, 8
        %s235 = scalar_lea.vmem %s0, %s234
      $region44: #{residual_blocks_forward.1} parent=39 // pred_fallthru
        _
    $region40: #{residual_blocks_forward.1} parent=5 // pred_fallthru
      _
    %p236 = scmp.le.s32.totalorder 1, %s13
    %p237 = scmp.lt.s32.totalorder %s13, 3
    %p238 = pnand %p236, %p237
    %p239 = pneg %p238
    // Predicated region
    $region45: #{residual_blocks_forward.1} parent=5 // pred_check
      _
    $region46: #{residual_blocks_forward.1} parent=5 // pred_check_branch
      %241 = sbr.rel (%p238) target = $region48
    $region47: #{residual_blocks_forward.1} parent=5 // pred_region
      %s242 = ssub.s32 %s13, 1
      %p243 = scmp.lt.s32.totalorder %s18, 1
      %s244 = scalar_select %p243, %s18, 1
      %s245 = smul.addr %s244, 32
      %s246 = smul.addr %s245, 8
      %s247 = scalar_lea.vmem %s0, %s246
      %p248 = pneg %p39
      %p249 = pneg %p36
      %p250 = pneg %p60
      %p251 = pneg %p57
      %p252 = pneg %p81
      %p253 = pneg %p78
      %p254 = pneg %p102
      %p255 = pneg %p99
      %p256 = pneg %p123
      %p257 = pneg %p120
      %p258 = pneg %p144
      %p259 = pneg %p141
      %p260 = pneg %p165
      %p261 = pneg %p162
      %p262 = pneg %p191
      %p263 = pneg %p188
      %p264 = scmp.lt.s32.totalorder %s18, 1
      %s265 = scalar_select %p264, %s18, 1
      %s266 = smul.addr %s265, 8
      %s267 = smul.addr %s266, 8
      %s268 = scalar_lea.vmem %s7, %s267
      %p269 = scmp.lt.s32.totalorder %s18, 1
      %s270 = scalar_select %p269, %s18, 1
      %s271 = smul.addr %s270, 32
      %s272 = smul.addr %s271, 8
      %s273 = scalar_lea.vmem %s0, %s272
      %p274 = scmp.lt.s32.totalorder %s18, 1
      %s275 = scalar_select %p274, %s18, 1
      %s276 = smul.addr %s275, 8
      %s277 = smul.addr %s276, 8
      %s278 = scalar_lea.vmem %s7, %s277
      %vm279 = vcmask 31744
      %280 = vst.msk [vmem:[#allocation2] sm:$0xff] %vm279, 0.0
      %281 = vst.msk [vmem:[#allocation2 + $0x20] sm:$0xff] %vm279, 0.0
      %282 = vst.msk [vmem:[#allocation2 + $0x40] sm:$0xff] %vm279, 0.0
      %283 = vst.msk [vmem:[#allocation2 + $0x60] sm:$0xff] %vm279, 0.0
      %284 = vst.msk [vmem:[#allocation2 + $0x80] sm:$0xff] %vm279, 0.0
      %285 = vst.msk [vmem:[#allocation2 + $0xa0] sm:$0xff] %vm279, 0.0
      %286 = vst.msk [vmem:[#allocation2 + $0xc0] sm:$0xff] %vm279, 0.0
      %287 = vst.msk [vmem:[#allocation2 + $0xe0] sm:$0xff] %vm279, 0.0
      %288 = vst.msk [vmem:[#allocation2 + $0x100] sm:$0xff] %vm279, 0.0
      %289 = vst.msk [vmem:[#allocation2 + $0x120] sm:$0xff] %vm279, 0.0
      %290 = vst.msk [vmem:[#allocation2 + $0x140] sm:$0xff] %vm279, 0.0
      %291 = vst.msk [vmem:[#allocation2 + $0x160] sm:$0xff] %vm279, 0.0
      %292 = vst.msk [vmem:[#allocation2 + $0x180] sm:$0xff] %vm279, 0.0
      %293 = vst.msk [vmem:[#allocation2 + $0x1a0] sm:$0xff] %vm279, 0.0
      %294 = vst.msk [vmem:[#allocation2 + $0x1c0] sm:$0xff] %vm279, 0.0
      %295 = vst.msk [vmem:[#allocation2 + $0x1e0] sm:$0xff] %vm279, 0.0
      %296 = vst.msk [vmem:[#allocation2 + $0x200] sm:$0xff] %vm279, 0.0
      %297 = vst.msk [vmem:[#allocation2 + $0x220] sm:$0xff] %vm279, 0.0
      %298 = vst.msk [vmem:[#allocation2 + $0x18] sm:$0xff] %vm279, 0.0
      %299 = vst.msk [vmem:[#allocation2 + $0x38] sm:$0xff] %vm279, 0.0
      %300 = vst.msk [vmem:[#allocation2 + $0x58] sm:$0xff] %vm279, 0.0
      %301 = vst.msk [vmem:[#allocation2 + $0x78] sm:$0xff] %vm279, 0.0
      %302 = vst.msk [vmem:[#allocation2 + $0x98] sm:$0xff] %vm279, 0.0
      %303 = vst.msk [vmem:[#allocation2 + $0xb8] sm:$0xff] %vm279, 0.0
      %304 = vst.msk [vmem:[#allocation2 + $0xd8] sm:$0xff] %vm279, 0.0
      %305 = vst.msk [vmem:[#allocation2 + $0xf8] sm:$0xff] %vm279, 0.0
      %306 = vst.msk [vmem:[#allocation2 + $0x118] sm:$0xff] %vm279, 0.0
      %307 = vst.msk [vmem:[#allocation2 + $0x138] sm:$0xff] %vm279, 0.0
      %308 = vst.msk [vmem:[#allocation2 + $0x158] sm:$0xff] %vm279, 0.0
      %309 = vst.msk [vmem:[#allocation2 + $0x178] sm:$0xff] %vm279, 0.0
      %310 = vst.msk [vmem:[#allocation2 + $0x198] sm:$0xff] %vm279, 0.0
      %311 = vst.msk [vmem:[#allocation2 + $0x1b8] sm:$0xff] %vm279, 0.0
      %312 = vst.msk [vmem:[#allocation2 + $0x1d8] sm:$0xff] %vm279, 0.0
      %313 = vst.msk [vmem:[#allocation2 + $0x1f8] sm:$0xff] %vm279, 0.0
      %314 = vst.msk [vmem:[#allocation2 + $0x218] sm:$0xff] %vm279, 0.0
      %315 = vst.msk [vmem:[#allocation2 + $0x238] sm:$0xff] %vm279, 0.0
      %316 = vst.msk [vmem:[#allocation2 + $0x8] sm:$0xff] %vm279, 0.0
      %317 = vst.msk [vmem:[#allocation2 + $0x10] sm:$0xff] %vm279, 0.0
      %s318 = scalar_lea.vmem [#allocation2], 544
      %319 = vst.msk [vmem:[%s318 + $0x8] sm:$0xff] %vm279, 0.0
      %320 = vst.msk [vmem:[%s318 + $0x10] sm:$0xff] %vm279, 0.0
      %vm321 = vcmask 261120
      %322 = vst.msk [vmem:[#allocation4] sm:$0xff] %vm321, 0.0
      %323 = vst.msk [vmem:[#allocation4 + $0x20] sm:$0xff] %vm321, 0.0
      %324 = vst.msk [vmem:[#allocation4 + $0x40] sm:$0xff] %vm321, 0.0
      %325 = vst.msk [vmem:[#allocation4 + $0x60] sm:$0xff] %vm321, 0.0
      %326 = vst.msk [vmem:[#allocation4 + $0x80] sm:$0xff] %vm321, 0.0
      %327 = vst.msk [vmem:[#allocation4 + $0xa0] sm:$0xff] %vm321, 0.0
      %328 = vst.msk [vmem:[#allocation4 + $0xc0] sm:$0xff] %vm321, 0.0
      %329 = vst.msk [vmem:[#allocation4 + $0xe0] sm:$0xff] %vm321, 0.0
      %330 = vst.msk [vmem:[#allocation4 + $0x100] sm:$0xff] %vm321, 0.0
      %331 = vst.msk [vmem:[#allocation4 + $0x120] sm:$0xff] %vm321, 0.0
      %332 = vst.msk [vmem:[#allocation4 + $0x140] sm:$0xff] %vm321, 0.0
      %333 = vst.msk [vmem:[#allocation4 + $0x160] sm:$0xff] %vm321, 0.0
      %334 = vst.msk [vmem:[#allocation4 + $0x180] sm:$0xff] %vm321, 0.0
      %335 = vst.msk [vmem:[#allocation4 + $0x1a0] sm:$0xff] %vm321, 0.0
      %336 = vst.msk [vmem:[#allocation4 + $0x1c0] sm:$0xff] %vm321, 0.0
      %337 = vst.msk [vmem:[#allocation4 + $0x1e0] sm:$0xff] %vm321, 0.0
      %338 = vst.msk [vmem:[#allocation4 + $0x200] sm:$0xff] %vm321, 0.0
      %339 = vst.msk [vmem:[#allocation4 + $0x220] sm:$0xff] %vm321, 0.0
      %340 = vst.msk [vmem:[#allocation4 + $0x18] sm:$0xff] %vm321, 0.0
      %341 = vst.msk [vmem:[#allocation4 + $0x38] sm:$0xff] %vm321, 0.0
      %342 = vst.msk [vmem:[#allocation4 + $0x58] sm:$0xff] %vm321, 0.0
      %343 = vst.msk [vmem:[#allocation4 + $0x78] sm:$0xff] %vm321, 0.0
      %344 = vst.msk [vmem:[#allocation4 + $0x98] sm:$0xff] %vm321, 0.0
      %345 = vst.msk [vmem:[#allocation4 + $0xb8] sm:$0xff] %vm321, 0.0
      %346 = vst.msk [vmem:[#allocation4 + $0xd8] sm:$0xff] %vm321, 0.0
      %347 = vst.msk [vmem:[#allocation4 + $0xf8] sm:$0xff] %vm321, 0.0
      %348 = vst.msk [vmem:[#allocation4 + $0x118] sm:$0xff] %vm321, 0.0
      %349 = vst.msk [vmem:[#allocation4 + $0x138] sm:$0xff] %vm321, 0.0
      %350 = vst.msk [vmem:[#allocation4 + $0x158] sm:$0xff] %vm321, 0.0
      %351 = vst.msk [vmem:[#allocation4 + $0x178] sm:$0xff] %vm321, 0.0
      %352 = vst.msk [vmem:[#allocation4 + $0x198] sm:$0xff] %vm321, 0.0
      %353 = vst.msk [vmem:[#allocation4 + $0x1b8] sm:$0xff] %vm321, 0.0
      %354 = vst.msk [vmem:[#allocation4 + $0x1d8] sm:$0xff] %vm321, 0.0
      %355 = vst.msk [vmem:[#allocation4 + $0x1f8] sm:$0xff] %vm321, 0.0
      %356 = vst.msk [vmem:[#allocation4 + $0x218] sm:$0xff] %vm321, 0.0
      %357 = vst.msk [vmem:[#allocation4 + $0x238] sm:$0xff] %vm321, 0.0
      %358 = vst.msk [vmem:[#allocation4 + $0x8] sm:$0xff] %vm321, 0.0
      %359 = vst.msk [vmem:[#allocation4 + $0x10] sm:$0xff] %vm321, 0.0
      %s360 = scalar_lea.vmem [#allocation4], 544
      %361 = vst.msk [vmem:[%s360 + $0x8] sm:$0xff] %vm321, 0.0
      %362 = vst.msk [vmem:[%s360 + $0x10] sm:$0xff] %vm321, 0.0
      %363 = vst.msk [vmem:[#allocation5] sm:$0xff] %vm321, 0.0
      %364 = vst.msk [vmem:[#allocation5 + $0x20] sm:$0xff] %vm321, 0.0
      %365 = vst.msk [vmem:[#allocation5 + $0x40] sm:$0xff] %vm321, 0.0
      %366 = vst.msk [vmem:[#allocation5 + $0x60] sm:$0xff] %vm321, 0.0
      %367 = vst.msk [vmem:[#allocation5 + $0x80] sm:$0xff] %vm321, 0.0
      %368 = vst.msk [vmem:[#allocation5 + $0xa0] sm:$0xff] %vm321, 0.0
      %369 = vst.msk [vmem:[#allocation5 + $0xc0] sm:$0xff] %vm321, 0.0
      %370 = vst.msk [vmem:[#allocation5 + $0xe0] sm:$0xff] %vm321, 0.0
      %371 = vst.msk [vmem:[#allocation5 + $0x100] sm:$0xff] %vm321, 0.0
      %372 = vst.msk [vmem:[#allocation5 + $0x120] sm:$0xff] %vm321, 0.0
      %373 = vst.msk [vmem:[#allocation5 + $0x140] sm:$0xff] %vm321, 0.0
      %374 = vst.msk [vmem:[#allocation5 + $0x160] sm:$0xff] %vm321, 0.0
      %375 = vst.msk [vmem:[#allocation5 + $0x180] sm:$0xff] %vm321, 0.0
      %376 = vst.msk [vmem:[#allocation5 + $0x1a0] sm:$0xff] %vm321, 0.0
      %377 = vst.msk [vmem:[#allocation5 + $0x1c0] sm:$0xff] %vm321, 0.0
      %378 = vst.msk [vmem:[#allocation5 + $0x1e0] sm:$0xff] %vm321, 0.0
      %379 = vst.msk [vmem:[#allocation5 + $0x200] sm:$0xff] %vm321, 0.0
      %380 = vst.msk [vmem:[#allocation5 + $0x220] sm:$0xff] %vm321, 0.0
      %381 = vst.msk [vmem:[#allocation5 + $0x18] sm:$0xff] %vm321, 0.0
      %382 = vst.msk [vmem:[#allocation5 + $0x38] sm:$0xff] %vm321, 0.0
      %383 = vst.msk [vmem:[#allocation5 + $0x58] sm:$0xff] %vm321, 0.0
      %384 = vst.msk [vmem:[#allocation5 + $0x78] sm:$0xff] %vm321, 0.0
      %385 = vst.msk [vmem:[#allocation5 + $0x98] sm:$0xff] %vm321, 0.0
      %386 = vst.msk [vmem:[#allocation5 + $0xb8] sm:$0xff] %vm321, 0.0
      %387 = vst.msk [vmem:[#allocation5 + $0xd8] sm:$0xff] %vm321, 0.0
      %388 = vst.msk [vmem:[#allocation5 + $0xf8] sm:$0xff] %vm321, 0.0
      %389 = vst.msk [vmem:[#allocation5 + $0x118] sm:$0xff] %vm321, 0.0
      %390 = vst.msk [vmem:[#allocation5 + $0x138] sm:$0xff] %vm321, 0.0
      %391 = vst.msk [vmem:[#allocation5 + $0x158] sm:$0xff] %vm321, 0.0
      %392 = vst.msk [vmem:[#allocation5 + $0x178] sm:$0xff] %vm321, 0.0
      %393 = vst.msk [vmem:[#allocation5 + $0x198] sm:$0xff] %vm321, 0.0
      %394 = vst.msk [vmem:[#allocation5 + $0x1b8] sm:$0xff] %vm321, 0.0
      %395 = vst.msk [vmem:[#allocation5 + $0x1d8] sm:$0xff] %vm321, 0.0
      %396 = vst.msk [vmem:[#allocation5 + $0x1f8] sm:$0xff] %vm321, 0.0
      %397 = vst.msk [vmem:[#allocation5 + $0x218] sm:$0xff] %vm321, 0.0
      %398 = vst.msk [vmem:[#allocation5 + $0x238] sm:$0xff] %vm321, 0.0
      %399 = vst.msk [vmem:[#allocation5 + $0x8] sm:$0xff] %vm321, 0.0
      %400 = vst.msk [vmem:[#allocation5 + $0x10] sm:$0xff] %vm321, 0.0
      %s401 = scalar_lea.vmem [#allocation5], 544
      %402 = vst.msk [vmem:[%s401 + $0x8] sm:$0xff] %vm321, 0.0
      %403 = vst.msk [vmem:[%s401 + $0x10] sm:$0xff] %vm321, 0.0
      %v404 = vld [vmem:[%s273] sm:$0xff]
      %v405 = vld [vmem:[%s273 + $0x8] sm:$0xff]
      %v406 = vld [vmem:[%s273 + $0x10] sm:$0xff]
      %v407 = vld [vmem:[%s273 + $0x18] sm:$0xff]
      %v408 = vld [vmem:[%s273 + $0x20] sm:$0xff]
      %v409 = vld [vmem:[%s273 + $0x28] sm:$0xff]
      %v410 = vld [vmem:[%s273 + $0x30] sm:$0xff]
      %v411 = vld [vmem:[%s273 + $0x38] sm:$0xff]
      %v412 = vld [vmem:[%s273 + $0x40] sm:$0xff]
      %v413 = vld [vmem:[%s273 + $0x48] sm:$0xff]
      %v414 = vld [vmem:[%s273 + $0x50] sm:$0xff]
      %v415 = vld [vmem:[%s273 + $0x58] sm:$0xff]
      %v416 = vld [vmem:[%s273 + $0x60] sm:$0xff]
      %v417 = vld [vmem:[%s273 + $0x68] sm:$0xff]
      %v418 = vld [vmem:[%s273 + $0x70] sm:$0xff]
      %v419 = vld [vmem:[%s273 + $0x78] sm:$0xff]
      %v420 = vld [vmem:[%s273 + $0x80] sm:$0xff]
      %v421 = vld [vmem:[%s273 + $0x88] sm:$0xff]
      %v422 = vld [vmem:[%s273 + $0x90] sm:$0xff]
      %v423 = vld [vmem:[%s273 + $0x98] sm:$0xff]
      %v424 = vld [vmem:[%s273 + $0xa0] sm:$0xff]
      %v425 = vld [vmem:[%s273 + $0xa8] sm:$0xff]
      %v426 = vld [vmem:[%s273 + $0xb0] sm:$0xff]
      %v427 = vld [vmem:[%s273 + $0xb8] sm:$0xff]
      %v428 = vld [vmem:[%s273 + $0xc0] sm:$0xff]
      %v429 = vld [vmem:[%s273 + $0xc8] sm:$0xff]
      %v430 = vld [vmem:[%s273 + $0xd0] sm:$0xff]
      %v431 = vld [vmem:[%s273 + $0xd8] sm:$0xff]
      %v432 = vld [vmem:[%s273 + $0xe0] sm:$0xff]
      %v433 = vld [vmem:[%s273 + $0xe8] sm:$0xff]
      %v434 = vld [vmem:[%s273 + $0xf0] sm:$0xff]
      %v435 = vld [vmem:[%s273 + $0xf8] sm:$0xff]
      %s436 = scalar_lea.vmem [#allocation2], 32
      %437 = vst.msk [vmem:[%s436 + $0x8] sm:$0xff] %vm279, %v404
      %438 = vst.msk [vmem:[%s436 + $0x10] sm:$0xff] %vm279, %v405
      %439 = vst.msk [vmem:[%s436 + $0x28] sm:$0xff] %vm279, %v406
      %440 = vst.msk [vmem:[%s436 + $0x30] sm:$0xff] %vm279, %v407
      %441 = vst.msk [vmem:[%s436 + $0x48] sm:$0xff] %vm279, %v408
      %442 = vst.msk [vmem:[%s436 + $0x50] sm:$0xff] %vm279, %v409
      %443 = vst.msk [vmem:[%s436 + $0x68] sm:$0xff] %vm279, %v410
      %444 = vst.msk [vmem:[%s436 + $0x70] sm:$0xff] %vm279, %v411
      %445 = vst.msk [vmem:[%s436 + $0x88] sm:$0xff] %vm279, %v412
      %446 = vst.msk [vmem:[%s436 + $0x90] sm:$0xff] %vm279, %v413
      %447 = vst.msk [vmem:[%s436 + $0xa8] sm:$0xff] %vm279, %v414
      %448 = vst.msk [vmem:[%s436 + $0xb0] sm:$0xff] %vm279, %v415
      %449 = vst.msk [vmem:[%s436 + $0xc8] sm:$0xff] %vm279, %v416
      %450 = vst.msk [vmem:[%s436 + $0xd0] sm:$0xff] %vm279, %v417
      %451 = vst.msk [vmem:[%s436 + $0xe8] sm:$0xff] %vm279, %v418
      %452 = vst.msk [vmem:[%s436 + $0xf0] sm:$0xff] %vm279, %v419
      %453 = vst.msk [vmem:[%s436 + $0x108] sm:$0xff] %vm279, %v420
      %454 = vst.msk [vmem:[%s436 + $0x110] sm:$0xff] %vm279, %v421
      %455 = vst.msk [vmem:[%s436 + $0x128] sm:$0xff] %vm279, %v422
      %456 = vst.msk [vmem:[%s436 + $0x130] sm:$0xff] %vm279, %v423
      %457 = vst.msk [vmem:[%s436 + $0x148] sm:$0xff] %vm279, %v424
      %458 = vst.msk [vmem:[%s436 + $0x150] sm:$0xff] %vm279, %v425
      %459 = vst.msk [vmem:[%s436 + $0x168] sm:$0xff] %vm279, %v426
      %460 = vst.msk [vmem:[%s436 + $0x170] sm:$0xff] %vm279, %v427
      %461 = vst.msk [vmem:[%s436 + $0x188] sm:$0xff] %vm279, %v428
      %462 = vst.msk [vmem:[%s436 + $0x190] sm:$0xff] %vm279, %v429
      %463 = vst.msk [vmem:[%s436 + $0x1a8] sm:$0xff] %vm279, %v430
      %464 = vst.msk [vmem:[%s436 + $0x1b0] sm:$0xff] %vm279, %v431
      %465 = vst.msk [vmem:[%s436 + $0x1c8] sm:$0xff] %vm279, %v432
      %466 = vst.msk [vmem:[%s436 + $0x1d0] sm:$0xff] %vm279, %v433
      %467 = vst.msk [vmem:[%s436 + $0x1e8] sm:$0xff] %vm279, %v434
      %468 = vst.msk [vmem:[%s436 + $0x1f0] sm:$0xff] %vm279, %v435
      %v469 = vld [vmem:[%s1] sm:$0xff]
      %v470 = vld [vmem:[%s1 + $0x8] sm:$0xf]
      %v471 = vld [vmem:[%s1 + $0x10] sm:$0xff]
      %v472 = vld [vmem:[%s1 + $0x18] sm:$0xf]
      %v473 = vld [vmem:[%s1 + $0x20] sm:$0xff]
      %v474 = vld [vmem:[%s1 + $0x28] sm:$0xf]
      %v475 = vld [vmem:[%s2] sm:$0x1]
      %v476 = vld [vmem:[#allocation2 + $0x7] sm:$0xff]
      %v477 = vld [vmem:[#allocation2 + $0xf] sm:$0xff]
      %v478 = vld [vmem:[#allocation2 + $0x27] sm:$0xff]
      %v479 = vld [vmem:[#allocation2 + $0x2f] sm:$0xff]
      %v480 = vld [vmem:[#allocation2 + $0x47] sm:$0xff]
      %v481 = vld [vmem:[#allocation2 + $0x4f] sm:$0xff]
      %v482 = vld [vmem:[#allocation2 + $0x67] sm:$0xff]
      %v483 = vld [vmem:[#allocation2 + $0x6f] sm:$0xff]
      %v484 = vld [vmem:[#allocation2 + $0x87] sm:$0xff]
      %v485 = vld [vmem:[#allocation2 + $0x8f] sm:$0xff]
      %v486 = vld [vmem:[#allocation2 + $0xa7] sm:$0xff]
      %v487 = vld [vmem:[#allocation2 + $0xaf] sm:$0xff]
      %v488 = vld [vmem:[#allocation2 + $0xc7] sm:$0xff]
      %v489 = vld [vmem:[#allocation2 + $0xcf] sm:$0xff]
      %v490 = vld [vmem:[#allocation2 + $0xe7] sm:$0xff]
      %v491 = vld [vmem:[#allocation2 + $0xef] sm:$0xff]
      %v492 = vld [vmem:[#allocation2 + $0x107] sm:$0xff]
      %v493 = vld [vmem:[#allocation2 + $0x10f] sm:$0xff]
      %v494 = vld [vmem:[#allocation2 + $0x127] sm:$0xff]
      %v495 = vld [vmem:[#allocation2 + $0x12f] sm:$0xff]
      %v496 = vld [vmem:[#allocation2 + $0x147] sm:$0xff]
      %v497 = vld [vmem:[#allocation2 + $0x14f] sm:$0xff]
      %v498 = vld [vmem:[#allocation2 + $0x167] sm:$0xff]
      %v499 = vld [vmem:[#allocation2 + $0x16f] sm:$0xff]
      %v500 = vld [vmem:[#allocation2 + $0x187] sm:$0xff]
      %v501 = vld [vmem:[#allocation2 + $0x18f] sm:$0xff]
      %v502 = vld [vmem:[#allocation2 + $0x1a7] sm:$0xff]
      %v503 = vld [vmem:[#allocation2 + $0x1af] sm:$0xff]
      %v504 = vld [vmem:[#allocation2 + $0x1c7] sm:$0xff]
      %v505 = vld [vmem:[#allocation2 + $0x1cf] sm:$0xff]
      %v506 = vld [vmem:[#allocation2 + $0x1e7] sm:$0xff]
      %v507 = vld [vmem:[#allocation2 + $0x1ef] sm:$0xff]
      %v508 = vld [vmem:[#allocation2 + $0x207] sm:$0xff]
      %v509 = vld [vmem:[#allocation2 + $0x20f] sm:$0xff]
      %v510 = vld [vmem:[#allocation2 + $0x227] sm:$0xff]
      %v511 = vld [vmem:[#allocation2 + $0x22f] sm:$0xff]
      %512 = vst.msk [vmem:[#allocation3] sm:$0xff] %vm279, %v476
      %513 = vst.msk [vmem:[#allocation3 + $0x8] sm:$0xff] %vm279, %v477
      %514 = vst.msk [vmem:[#allocation3 + $0x10] sm:$0xff] %vm279, %v478
      %515 = vst.msk [vmem:[#allocation3 + $0x18] sm:$0xff] %vm279, %v479
      %516 = vst.msk [vmem:[#allocation3 + $0x20] sm:$0xff] %vm279, %v480
      %517 = vst.msk [vmem:[#allocation3 + $0x28] sm:$0xff] %vm279, %v481
      %518 = vst.msk [vmem:[#allocation3 + $0x30] sm:$0xff] %vm279, %v482
      %519 = vst.msk [vmem:[#allocation3 + $0x38] sm:$0xff] %vm279, %v483
      %520 = vst.msk [vmem:[#allocation3 + $0x40] sm:$0xff] %vm279, %v484
      %521 = vst.msk [vmem:[#allocation3 + $0x48] sm:$0xff] %vm279, %v485
      %522 = vst.msk [vmem:[#allocation3 + $0x50] sm:$0xff] %vm279, %v486
      %523 = vst.msk [vmem:[#allocation3 + $0x58] sm:$0xff] %vm279, %v487
      %524 = vst.msk [vmem:[#allocation3 + $0x60] sm:$0xff] %vm279, %v488
      %525 = vst.msk [vmem:[#allocation3 + $0x68] sm:$0xff] %vm279, %v489
      %526 = vst.msk [vmem:[#allocation3 + $0x70] sm:$0xff] %vm279, %v490
      %527 = vst.msk [vmem:[#allocation3 + $0x78] sm:$0xff] %vm279, %v491
      %528 = vst.msk [vmem:[#allocation3 + $0x80] sm:$0xff] %vm279, %v492
      %529 = vst.msk [vmem:[#allocation3 + $0x88] sm:$0xff] %vm279, %v493
      %530 = vst.msk [vmem:[#allocation3 + $0x90] sm:$0xff] %vm279, %v494
      %531 = vst.msk [vmem:[#allocation3 + $0x98] sm:$0xff] %vm279, %v495
      %532 = vst.msk [vmem:[#allocation3 + $0xa0] sm:$0xff] %vm279, %v496
      %533 = vst.msk [vmem:[#allocation3 + $0xa8] sm:$0xff] %vm279, %v497
      %534 = vst.msk [vmem:[#allocation3 + $0xb0] sm:$0xff] %vm279, %v498
      %535 = vst.msk [vmem:[#allocation3 + $0xb8] sm:$0xff] %vm279, %v499
      %536 = vst.msk [vmem:[#allocation3 + $0xc0] sm:$0xff] %vm279, %v500
      %537 = vst.msk [vmem:[#allocation3 + $0xc8] sm:$0xff] %vm279, %v501
      %538 = vst.msk [vmem:[#allocation3 + $0xd0] sm:$0xff] %vm279, %v502
      %539 = vst.msk [vmem:[#allocation3 + $0xd8] sm:$0xff] %vm279, %v503
      %540 = vst.msk [vmem:[#allocation3 + $0xe0] sm:$0xff] %vm279, %v504
      %541 = vst.msk [vmem:[#allocation3 + $0xe8] sm:$0xff] %vm279, %v505
      %542 = vst.msk [vmem:[#allocation3 + $0xf0] sm:$0xff] %vm279, %v506
      %543 = vst.msk [vmem:[#allocation3 + $0xf8] sm:$0xff] %vm279, %v507
      %544 = vst.msk [vmem:[#allocation3 + $0x100] sm:$0xff] %vm279, %v508
      %545 = vst.msk [vmem:[#allocation3 + $0x108] sm:$0xff] %vm279, %v509
      %546 = vst.msk [vmem:[#allocation3 + $0x110] sm:$0xff] %vm279, %v510
      %547 = vst.msk [vmem:[#allocation3 + $0x118] sm:$0xff] %vm279, %v511
      %v548 = vld [vmem:[#allocation2 + $0x8] sm:$0xff]
      %v549 = vld [vmem:[#allocation2 + $0x10] sm:$0xff]
      %v550 = vld [vmem:[#allocation2 + $0x28] sm:$0xff]
      %v551 = vld [vmem:[#allocation2 + $0x30] sm:$0xff]
      %v552 = vld [vmem:[#allocation2 + $0x48] sm:$0xff]
      %v553 = vld [vmem:[#allocation2 + $0x50] sm:$0xff]
      %v554 = vld [vmem:[#allocation2 + $0x68] sm:$0xff]
      %v555 = vld [vmem:[#allocation2 + $0x70] sm:$0xff]
      %v556 = vld [vmem:[#allocation2 + $0x88] sm:$0xff]
      %v557 = vld [vmem:[#allocation2 + $0x90] sm:$0xff]
      %v558 = vld [vmem:[#allocation2 + $0xa8] sm:$0xff]
      %v559 = vld [vmem:[#allocation2 + $0xb0] sm:$0xff]
      %v560 = vld [vmem:[#allocation2 + $0xc8] sm:$0xff]
      %v561 = vld [vmem:[#allocation2 + $0xd0] sm:$0xff]
      %v562 = vld [vmem:[#allocation2 + $0xe8] sm:$0xff]
      %v563 = vld [vmem:[#allocation2 + $0xf0] sm:$0xff]
      %v564 = vld [vmem:[#allocation2 + $0x108] sm:$0xff]
      %v565 = vld [vmem:[#allocation2 + $0x110] sm:$0xff]
      %v566 = vld [vmem:[#allocation2 + $0x128] sm:$0xff]
      %v567 = vld [vmem:[#allocation2 + $0x130] sm:$0xff]
      %v568 = vld [vmem:[#allocation2 + $0x148] sm:$0xff]
      %v569 = vld [vmem:[#allocation2 + $0x150] sm:$0xff]
      %v570 = vld [vmem:[#allocation2 + $0x168] sm:$0xff]
      %v571 = vld [vmem:[#allocation2 + $0x170] sm:$0xff]
      %v572 = vld [vmem:[#allocation2 + $0x188] sm:$0xff]
      %v573 = vld [vmem:[#allocation2 + $0x190] sm:$0xff]
      %v574 = vld [vmem:[#allocation2 + $0x1a8] sm:$0xff]
      %v575 = vld [vmem:[#allocation2 + $0x1b0] sm:$0xff]
      %v576 = vld [vmem:[#allocation2 + $0x1c8] sm:$0xff]
      %v577 = vld [vmem:[#allocation2 + $0x1d0] sm:$0xff]
      %v578 = vld [vmem:[#allocation2 + $0x1e8] sm:$0xff]
      %v579 = vld [vmem:[#allocation2 + $0x1f0] sm:$0xff]
      %v580 = vld [vmem:[#allocation2 + $0x208] sm:$0xff]
      %v581 = vld [vmem:[#allocation2 + $0x210] sm:$0xff]
      %v582 = vld [vmem:[#allocation2 + $0x228] sm:$0xff]
      %v583 = vld [vmem:[#allocation2 + $0x230] sm:$0xff]
      %620 = vrot.lane.b32.xlu0 %v548, 4
      %v621 = vpop.permute.xlu0 %620
      %622 = vrot.lane.b32.xlu0 %v549, 4
      %v623 = vpop.permute.xlu0 %622
      %624 = vrot.lane.b32.xlu0 %v550, 4
      %v625 = vpop.permute.xlu0 %624
      %626 = vrot.lane.b32.xlu0 %v551, 4
      %v627 = vpop.permute.xlu0 %626
      %628 = vrot.lane.b32.xlu0 %v552, 4
      %v629 = vpop.permute.xlu0 %628
      %630 = vrot.lane.b32.xlu0 %v553, 4
      %v631 = vpop.permute.xlu0 %630
      %632 = vrot.lane.b32.xlu0 %v554, 4
      %v633 = vpop.permute.xlu0 %632
      %634 = vrot.lane.b32.xlu0 %v555, 4
      %v635 = vpop.permute.xlu0 %634
      %636 = vrot.lane.b32.xlu0 %v556, 4
      %v637 = vpop.permute.xlu0 %636
      %638 = vrot.lane.b32.xlu0 %v557, 4
      %v639 = vpop.permute.xlu0 %638
      %640 = vrot.lane.b32.xlu0 %v558, 4
      %v641 = vpop.permute.xlu0 %640
      %642 = vrot.lane.b32.xlu0 %v559, 4
      %v643 = vpop.permute.xlu0 %642
      %644 = vrot.lane.b32.xlu0 %v560, 4
      %v645 = vpop.permute.xlu0 %644
      %646 = vrot.lane.b32.xlu0 %v561, 4
      %v647 = vpop.permute.xlu0 %646
      %648 = vrot.lane.b32.xlu0 %v562, 4
      %v649 = vpop.permute.xlu0 %648
      %650 = vrot.lane.b32.xlu0 %v563, 4
      %v651 = vpop.permute.xlu0 %650
      %652 = vrot.lane.b32.xlu0 %v564, 4
      %v653 = vpop.permute.xlu0 %652
      %654 = vrot.lane.b32.xlu0 %v565, 4
      %v655 = vpop.permute.xlu0 %654
      %656 = vrot.lane.b32.xlu0 %v566, 4
      %v657 = vpop.permute.xlu0 %656
      %658 = vrot.lane.b32.xlu0 %v567, 4
      %v659 = vpop.permute.xlu0 %658
      %660 = vrot.lane.b32.xlu0 %v568, 4
      %v661 = vpop.permute.xlu0 %660
      %662 = vrot.lane.b32.xlu0 %v569, 4
      %v663 = vpop.permute.xlu0 %662
      %664 = vrot.lane.b32.xlu0 %v570, 4
      %v665 = vpop.permute.xlu0 %664
      %666 = vrot.lane.b32.xlu0 %v571, 4
      %v667 = vpop.permute.xlu0 %666
      %668 = vrot.lane.b32.xlu0 %v572, 4
      %v669 = vpop.permute.xlu0 %668
      %670 = vrot.lane.b32.xlu0 %v573, 4
      %v671 = vpop.permute.xlu0 %670
      %672 = vrot.lane.b32.xlu0 %v574, 4
      %v673 = vpop.permute.xlu0 %672
      %674 = vrot.lane.b32.xlu0 %v575, 4
      %v675 = vpop.permute.xlu0 %674
      %676 = vrot.lane.b32.xlu0 %v576, 4
      %v677 = vpop.permute.xlu0 %676
      %678 = vrot.lane.b32.xlu0 %v577, 4
      %v679 = vpop.permute.xlu0 %678
      %680 = vrot.lane.b32.xlu0 %v578, 4
      %v681 = vpop.permute.xlu0 %680
      %682 = vrot.lane.b32.xlu0 %v579, 4
      %v683 = vpop.permute.xlu0 %682
      %684 = vrot.lane.b32.xlu0 %v580, 4
      %v685 = vpop.permute.xlu0 %684
      %686 = vrot.lane.b32.xlu0 %v581, 4
      %v687 = vpop.permute.xlu0 %686
      %688 = vrot.lane.b32.xlu0 %v582, 4
      %v689 = vpop.permute.xlu0 %688
      %690 = vrot.lane.b32.xlu0 %v583, 4
      %v691 = vpop.permute.xlu0 %690
      %vm728 = vcmask 64544
      %729 = vst.msk [vmem:[#allocation3] sm:$0xff] %vm728, %v621
      %730 = vst.msk [vmem:[#allocation3 + $0x8] sm:$0xff] %vm728, %v623
      %731 = vst.msk [vmem:[#allocation3 + $0x10] sm:$0xff] %vm728, %v625
      %732 = vst.msk [vmem:[#allocation3 + $0x18] sm:$0xff] %vm728, %v627
      %733 = vst.msk [vmem:[#allocation3 + $0x20] sm:$0xff] %vm728, %v629
      %734 = vst.msk [vmem:[#allocation3 + $0x28] sm:$0xff] %vm728, %v631
      %735 = vst.msk [vmem:[#allocation3 + $0x30] sm:$0xff] %vm728, %v633
      %736 = vst.msk [vmem:[#allocation3 + $0x38] sm:$0xff] %vm728, %v635
      %737 = vst.msk [vmem:[#allocation3 + $0x40] sm:$0xff] %vm728, %v637
      %738 = vst.msk [vmem:[#allocation3 + $0x48] sm:$0xff] %vm728, %v639
      %739 = vst.msk [vmem:[#allocation3 + $0x50] sm:$0xff] %vm728, %v641
      %740 = vst.msk [vmem:[#allocation3 + $0x58] sm:$0xff] %vm728, %v643
      %741 = vst.msk [vmem:[#allocation3 + $0x60] sm:$0xff] %vm728, %v645
      %742 = vst.msk [vmem:[#allocation3 + $0x68] sm:$0xff] %vm728, %v647
      %743 = vst.msk [vmem:[#allocation3 + $0x70] sm:$0xff] %vm728, %v649
      %744 = vst.msk [vmem:[#allocation3 + $0x78] sm:$0xff] %vm728, %v651
      %745 = vst.msk [vmem:[#allocation3 + $0x80] sm:$0xff] %vm728, %v653
      %746 = vst.msk [vmem:[#allocation3 + $0x88] sm:$0xff] %vm728, %v655
      %747 = vst.msk [vmem:[#allocation3 + $0x90] sm:$0xff] %vm728, %v657
      %748 = vst.msk [vmem:[#allocation3 + $0x98] sm:$0xff] %vm728, %v659
      %749 = vst.msk [vmem:[#allocation3 + $0xa0] sm:$0xff] %vm728, %v661
      %750 = vst.msk [vmem:[#allocation3 + $0xa8] sm:$0xff] %vm728, %v663
      %751 = vst.msk [vmem:[#allocation3 + $0xb0] sm:$0xff] %vm728, %v665
      %752 = vst.msk [vmem:[#allocation3 + $0xb8] sm:$0xff] %vm728, %v667
      %753 = vst.msk [vmem:[#allocation3 + $0xc0] sm:$0xff] %vm728, %v669
      %754 = vst.msk [vmem:[#allocation3 + $0xc8] sm:$0xff] %vm728, %v671
      %755 = vst.msk [vmem:[#allocation3 + $0xd0] sm:$0xff] %vm728, %v673
      %756 = vst.msk [vmem:[#allocation3 + $0xd8] sm:$0xff] %vm728, %v675
      %757 = vst.msk [vmem:[#allocation3 + $0xe0] sm:$0xff] %vm728, %v677
      %758 = vst.msk [vmem:[#allocation3 + $0xe8] sm:$0xff] %vm728, %v679
      %759 = vst.msk [vmem:[#allocation3 + $0xf0] sm:$0xff] %vm728, %v681
      %760 = vst.msk [vmem:[#allocation3 + $0xf8] sm:$0xff] %vm728, %v683
      %761 = vst.msk [vmem:[#allocation3 + $0x100] sm:$0xff] %vm728, %v685
      %762 = vst.msk [vmem:[#allocation3 + $0x108] sm:$0xff] %vm728, %v687
      %763 = vst.msk [vmem:[#allocation3 + $0x110] sm:$0xff] %vm728, %v689
      %764 = vst.msk [vmem:[#allocation3 + $0x118] sm:$0xff] %vm728, %v691
      %v765 = vld [vmem:[#allocation2 + $0x9] sm:$0xff]
      %v766 = vld [vmem:[#allocation2 + $0x11] sm:$0xff]
      %v767 = vld [vmem:[#allocation2 + $0x29] sm:$0xff]
      %v768 = vld [vmem:[#allocation2 + $0x31] sm:$0xff]
      %v769 = vld [vmem:[#allocation2 + $0x49] sm:$0xff]
      %v770 = vld [vmem:[#allocation2 + $0x51] sm:$0xff]
      %v771 = vld [vmem:[#allocation2 + $0x69] sm:$0xff]
      %v772 = vld [vmem:[#allocation2 + $0x71] sm:$0xff]
      %v773 = vld [vmem:[#allocation2 + $0x89] sm:$0xff]
      %v774 = vld [vmem:[#allocation2 + $0x91] sm:$0xff]
      %v775 = vld [vmem:[#allocation2 + $0xa9] sm:$0xff]
      %v776 = vld [vmem:[#allocation2 + $0xb1] sm:$0xff]
      %v777 = vld [vmem:[#allocation2 + $0xc9] sm:$0xff]
      %v778 = vld [vmem:[#allocation2 + $0xd1] sm:$0xff]
      %v779 = vld [vmem:[#allocation2 + $0xe9] sm:$0xff]
      %v780 = vld [vmem:[#allocation2 + $0xf1] sm:$0xff]
      %v781 = vld [vmem:[#allocation2 + $0x109] sm:$0xff]
      %v782 = vld [vmem:[#allocation2 + $0x111] sm:$0xff]
      %v783 = vld [vmem:[#allocation2 + $0x129] sm:$0xff]
      %v784 = vld [vmem:[#allocation2 + $0x131] sm:$0xff]
      %v785 = vld [vmem:[#allocation2 + $0x149] sm:$0xff]
      %v786 = vld [vmem:[#allocation2 + $0x151] sm:$0xff]
      %v787 = vld [vmem:[#allocation2 + $0x169] sm:$0xff]
      %v788 = vld [vmem:[#allocation2 + $0x171] sm:$0xff]
      %v789 = vld [vmem:[#allocation2 + $0x189] sm:$0xff]
      %v790 = vld [vmem:[#allocation2 + $0x191] sm:$0xff]
      %v791 = vld [vmem:[#allocation2 + $0x1a9] sm:$0xff]
      %v792 = vld [vmem:[#allocation2 + $0x1b1] sm:$0xff]
      %v793 = vld [vmem:[#allocation2 + $0x1c9] sm:$0xff]
      %v794 = vld [vmem:[#allocation2 + $0x1d1] sm:$0xff]
      %v795 = vld [vmem:[#allocation2 + $0x1e9] sm:$0xff]
      %v796 = vld [vmem:[#allocation2 + $0x1f1] sm:$0xff]
      %v797 = vld [vmem:[#allocation2 + $0x209] sm:$0xff]
      %v798 = vld [vmem:[#allocation2 + $0x211] sm:$0xff]
      %v799 = vld [vmem:[#allocation2 + $0x229] sm:$0xff]
      %v800 = vld [vmem:[#allocation2 + $0x231] sm:$0xff]
      %837 = vrot.lane.b32.xlu0 %v765, 8
      %v838 = vpop.permute.xlu0 %837
      %839 = vrot.lane.b32.xlu0 %v766, 8
      %v840 = vpop.permute.xlu0 %839
      %841 = vrot.lane.b32.xlu0 %v767, 8
      %v842 = vpop.permute.xlu0 %841
      %843 = vrot.lane.b32.xlu0 %v768, 8
      %v844 = vpop.permute.xlu0 %843
      %845 = vrot.lane.b32.xlu0 %v769, 8
      %v846 = vpop.permute.xlu0 %845
      %847 = vrot.lane.b32.xlu0 %v770, 8
      %v848 = vpop.permute.xlu0 %847
      %849 = vrot.lane.b32.xlu0 %v771, 8
      %v850 = vpop.permute.xlu0 %849
      %851 = vrot.lane.b32.xlu0 %v772, 8
      %v852 = vpop.permute.xlu0 %851
      %853 = vrot.lane.b32.xlu0 %v773, 8
      %v854 = vpop.permute.xlu0 %853
      %855 = vrot.lane.b32.xlu0 %v774, 8
      %v856 = vpop.permute.xlu0 %855
      %857 = vrot.lane.b32.xlu0 %v775, 8
      %v858 = vpop.permute.xlu0 %857
      %859 = vrot.lane.b32.xlu0 %v776, 8
      %v860 = vpop.permute.xlu0 %859
      %861 = vrot.lane.b32.xlu0 %v777, 8
      %v862 = vpop.permute.xlu0 %861
      %863 = vrot.lane.b32.xlu0 %v778, 8
      %v864 = vpop.permute.xlu0 %863
      %865 = vrot.lane.b32.xlu0 %v779, 8
      %v866 = vpop.permute.xlu0 %865
      %867 = vrot.lane.b32.xlu0 %v780, 8
      %v868 = vpop.permute.xlu0 %867
      %869 = vrot.lane.b32.xlu0 %v781, 8
      %v870 = vpop.permute.xlu0 %869
      %871 = vrot.lane.b32.xlu0 %v782, 8
      %v872 = vpop.permute.xlu0 %871
      %873 = vrot.lane.b32.xlu0 %v783, 8
      %v874 = vpop.permute.xlu0 %873
      %875 = vrot.lane.b32.xlu0 %v784, 8
      %v876 = vpop.permute.xlu0 %875
      %877 = vrot.lane.b32.xlu0 %v785, 8
      %v878 = vpop.permute.xlu0 %877
      %879 = vrot.lane.b32.xlu0 %v786, 8
      %v880 = vpop.permute.xlu0 %879
      %881 = vrot.lane.b32.xlu0 %v787, 8
      %v882 = vpop.permute.xlu0 %881
      %883 = vrot.lane.b32.xlu0 %v788, 8
      %v884 = vpop.permute.xlu0 %883
      %885 = vrot.lane.b32.xlu0 %v789, 8
      %v886 = vpop.permute.xlu0 %885
      %887 = vrot.lane.b32.xlu0 %v790, 8
      %v888 = vpop.permute.xlu0 %887
      %889 = vrot.lane.b32.xlu0 %v791, 8
      %v890 = vpop.permute.xlu0 %889
      %891 = vrot.lane.b32.xlu0 %v792, 8
      %v892 = vpop.permute.xlu0 %891
      %893 = vrot.lane.b32.xlu0 %v793, 8
      %v894 = vpop.permute.xlu0 %893
      %895 = vrot.lane.b32.xlu0 %v794, 8
      %v896 = vpop.permute.xlu0 %895
      %897 = vrot.lane.b32.xlu0 %v795, 8
      %v898 = vpop.permute.xlu0 %897
      %899 = vrot.lane.b32.xlu0 %v796, 8
      %v900 = vpop.permute.xlu0 %899
      %901 = vrot.lane.b32.xlu0 %v797, 8
      %v902 = vpop.permute.xlu0 %901
      %903 = vrot.lane.b32.xlu0 %v798, 8
      %v904 = vpop.permute.xlu0 %903
      %905 = vrot.lane.b32.xlu0 %v799, 8
      %v906 = vpop.permute.xlu0 %905
      %907 = vrot.lane.b32.xlu0 %v800, 8
      %v908 = vpop.permute.xlu0 %907
      %vm945 = vcmask 97344
      %946 = vst.msk [vmem:[#allocation3] sm:$0xff] %vm945, %v838
      %947 = vst.msk [vmem:[#allocation3 + $0x8] sm:$0xff] %vm945, %v840
      %948 = vst.msk [vmem:[#allocation3 + $0x10] sm:$0xff] %vm945, %v842
      %949 = vst.msk [vmem:[#allocation3 + $0x18] sm:$0xff] %vm945, %v844
      %950 = vst.msk [vmem:[#allocation3 + $0x20] sm:$0xff] %vm945, %v846
      %951 = vst.msk [vmem:[#allocation3 + $0x28] sm:$0xff] %vm945, %v848
      %952 = vst.msk [vmem:[#allocation3 + $0x30] sm:$0xff] %vm945, %v850
      %953 = vst.msk [vmem:[#allocation3 + $0x38] sm:$0xff] %vm945, %v852
      %954 = vst.msk [vmem:[#allocation3 + $0x40] sm:$0xff] %vm945, %v854
      %955 = vst.msk [vmem:[#allocation3 + $0x48] sm:$0xff] %vm945, %v856
      %956 = vst.msk [vmem:[#allocation3 + $0x50] sm:$0xff] %vm945, %v858
      %957 = vst.msk [vmem:[#allocation3 + $0x58] sm:$0xff] %vm945, %v860
      %958 = vst.msk [vmem:[#allocation3 + $0x60] sm:$0xff] %vm945, %v862
      %959 = vst.msk [vmem:[#allocation3 + $0x68] sm:$0xff] %vm945, %v864
      %960 = vst.msk [vmem:[#allocation3 + $0x70] sm:$0xff] %vm945, %v866
      %961 = vst.msk [vmem:[#allocation3 + $0x78] sm:$0xff] %vm945, %v868
      %962 = vst.msk [vmem:[#allocation3 + $0x80] sm:$0xff] %vm945, %v870
      %963 = vst.msk [vmem:[#allocation3 + $0x88] sm:$0xff] %vm945, %v872
      %964 = vst.msk [vmem:[#allocation3 + $0x90] sm:$0xff] %vm945, %v874
      %965 = vst.msk [vmem:[#allocation3 + $0x98] sm:$0xff] %vm945, %v876
      %966 = vst.msk [vmem:[#allocation3 + $0xa0] sm:$0xff] %vm945, %v878
      %967 = vst.msk [vmem:[#allocation3 + $0xa8] sm:$0xff] %vm945, %v880
      %968 = vst.msk [vmem:[#allocation3 + $0xb0] sm:$0xff] %vm945, %v882
      %969 = vst.msk [vmem:[#allocation3 + $0xb8] sm:$0xff] %vm945, %v884
      %970 = vst.msk [vmem:[#allocation3 + $0xc0] sm:$0xff] %vm945, %v886
      %971 = vst.msk [vmem:[#allocation3 + $0xc8] sm:$0xff] %vm945, %v888
      %972 = vst.msk [vmem:[#allocation3 + $0xd0] sm:$0xff] %vm945, %v890
      %973 = vst.msk [vmem:[#allocation3 + $0xd8] sm:$0xff] %vm945, %v892
      %974 = vst.msk [vmem:[#allocation3 + $0xe0] sm:$0xff] %vm945, %v894
      %975 = vst.msk [vmem:[#allocation3 + $0xe8] sm:$0xff] %vm945, %v896
      %976 = vst.msk [vmem:[#allocation3 + $0xf0] sm:$0xff] %vm945, %v898
      %977 = vst.msk [vmem:[#allocation3 + $0xf8] sm:$0xff] %vm945, %v900
      %978 = vst.msk [vmem:[#allocation3 + $0x100] sm:$0xff] %vm945, %v902
      %979 = vst.msk [vmem:[#allocation3 + $0x108] sm:$0xff] %vm945, %v904
      %980 = vst.msk [vmem:[#allocation3 + $0x110] sm:$0xff] %vm945, %v906
      %981 = vst.msk [vmem:[#allocation3 + $0x118] sm:$0xff] %vm945, %v908
      %v982 = vld [vmem:[#allocation3] sm:$0xff]
      %v983 = vld [vmem:[#allocation3 + $0x8] sm:$0xff]
      %v984 = vld [vmem:[#allocation3 + $0x10] sm:$0xff]
      %v985 = vld [vmem:[#allocation3 + $0x18] sm:$0xff]
      %v986 = vld [vmem:[#allocation3 + $0x20] sm:$0xff]
      %v987 = vld [vmem:[#allocation3 + $0x28] sm:$0xff]
      %v988 = vld [vmem:[#allocation3 + $0x30] sm:$0xff]
      %v989 = vld [vmem:[#allocation3 + $0x38] sm:$0xff]
      %v990 = vld [vmem:[#allocation3 + $0x40] sm:$0xff]
      %v991 = vld [vmem:[#allocation3 + $0x48] sm:$0xff]
      %v992 = vld [vmem:[#allocation3 + $0x50] sm:$0xff]
      %v993 = vld [vmem:[#allocation3 + $0x58] sm:$0xff]
      %v994 = vld [vmem:[#allocation3 + $0x60] sm:$0xff]
      %v995 = vld [vmem:[#allocation3 + $0x68] sm:$0xff]
      %v996 = vld [vmem:[#allocation3 + $0x70] sm:$0xff]
      %v997 = vld [vmem:[#allocation3 + $0x78] sm:$0xff]
      %v998 = vld [vmem:[#allocation3 + $0x80] sm:$0xff]
      %v999 = vld [vmem:[#allocation3 + $0x88] sm:$0xff]
      %v1000 = vld [vmem:[#allocation3 + $0x90] sm:$0xff]
      %v1001 = vld [vmem:[#allocation3 + $0x98] sm:$0xff]
      %v1002 = vld [vmem:[#allocation3 + $0xa0] sm:$0xff]
      %v1003 = vld [vmem:[#allocation3 + $0xa8] sm:$0xff]
      %v1004 = vld [vmem:[#allocation3 + $0xb0] sm:$0xff]
      %v1005 = vld [vmem:[#allocation3 + $0xb8] sm:$0xff]
      %v1006 = vld [vmem:[#allocation3 + $0xc0] sm:$0xff]
      %v1007 = vld [vmem:[#allocation3 + $0xc8] sm:$0xff]
      %v1008 = vld [vmem:[#allocation3 + $0xd0] sm:$0xff]
      %v1009 = vld [vmem:[#allocation3 + $0xd8] sm:$0xff]
      %v1010 = vld [vmem:[#allocation3 + $0xe0] sm:$0xff]
      %v1011 = vld [vmem:[#allocation3 + $0xe8] sm:$0xff]
      %v1012 = vld [vmem:[#allocation3 + $0xf0] sm:$0xff]
      %v1013 = vld [vmem:[#allocation3 + $0xf8] sm:$0xff]
      %s1014 = scalar_lea.vmem [#allocation3], 16
      %v1015 = vld [vmem:[%s1014] sm:$0xff]
      %v1016 = vld [vmem:[%s1014 + $0x8] sm:$0xff]
      %v1017 = vld [vmem:[%s1014 + $0x10] sm:$0xff]
      %v1018 = vld [vmem:[%s1014 + $0x18] sm:$0xff]
      %v1019 = vld [vmem:[%s1014 + $0x20] sm:$0xff]
      %v1020 = vld [vmem:[%s1014 + $0x28] sm:$0xff]
      %v1021 = vld [vmem:[%s1014 + $0x30] sm:$0xff]
      %v1022 = vld [vmem:[%s1014 + $0x38] sm:$0xff]
      %v1023 = vld [vmem:[%s1014 + $0x40] sm:$0xff]
      %v1024 = vld [vmem:[%s1014 + $0x48] sm:$0xff]
      %v1025 = vld [vmem:[%s1014 + $0x50] sm:$0xff]
      %v1026 = vld [vmem:[%s1014 + $0x58] sm:$0xff]
      %v1027 = vld [vmem:[%s1014 + $0x60] sm:$0xff]
      %v1028 = vld [vmem:[%s1014 + $0x68] sm:$0xff]
      %v1029 = vld [vmem:[%s1014 + $0x70] sm:$0xff]
      %v1030 = vld [vmem:[%s1014 + $0x78] sm:$0xff]
      %v1031 = vld [vmem:[%s1014 + $0x80] sm:$0xff]
      %v1032 = vld [vmem:[%s1014 + $0x88] sm:$0xff]
      %v1033 = vld [vmem:[%s1014 + $0x90] sm:$0xff]
      %v1034 = vld [vmem:[%s1014 + $0x98] sm:$0xff]
      %v1035 = vld [vmem:[%s1014 + $0xa0] sm:$0xff]
      %v1036 = vld [vmem:[%s1014 + $0xa8] sm:$0xff]
      %v1037 = vld [vmem:[%s1014 + $0xb0] sm:$0xff]
      %v1038 = vld [vmem:[%s1014 + $0xb8] sm:$0xff]
      %v1039 = vld [vmem:[%s1014 + $0xc0] sm:$0xff]
      %v1040 = vld [vmem:[%s1014 + $0xc8] sm:$0xff]
      %v1041 = vld [vmem:[%s1014 + $0xd0] sm:$0xff]
      %v1042 = vld [vmem:[%s1014 + $0xd8] sm:$0xff]
      %v1043 = vld [vmem:[%s1014 + $0xe0] sm:$0xff]
      %v1044 = vld [vmem:[%s1014 + $0xe8] sm:$0xff]
      %v1045 = vld [vmem:[%s1014 + $0xf0] sm:$0xff]
      %v1046 = vld [vmem:[%s1014 + $0xf8] sm:$0xff]
      %vm1047 = vcmask 97280
      %v1049 = vsel %vm1047, %v1015, 0
      %v1052 = vsel %vm1047, %v1016, 0
      %v1055 = vsel %vm1047, %v1017, 0
      %v1058 = vsel %vm1047, %v1018, 0
      %v1061 = vsel %vm1047, %v1019, 0
      %v1064 = vsel %vm1047, %v1020, 0
      %v1067 = vsel %vm1047, %v1021, 0
      %v1070 = vsel %vm1047, %v1022, 0
      %v1073 = vsel %vm1047, %v1023, 0
      %v1076 = vsel %vm1047, %v1024, 0
      %v1079 = vsel %vm1047, %v1025, 0
      %v1082 = vsel %vm1047, %v1026, 0
      %v1085 = vsel %vm1047, %v1027, 0
      %v1088 = vsel %vm1047, %v1028, 0
      %v1091 = vsel %vm1047, %v1029, 0
      %v1094 = vsel %vm1047, %v1030, 0
      %v1097 = vsel %vm1047, %v1031, 0
      %v1100 = vsel %vm1047, %v1032, 0
      %v1103 = vsel %vm1047, %v1033, 0
      %v1106 = vsel %vm1047, %v1034, 0
      %v1109 = vsel %vm1047, %v1035, 0
      %v1112 = vsel %vm1047, %v1036, 0
      %v1115 = vsel %vm1047, %v1037, 0
      %v1118 = vsel %vm1047, %v1038, 0
      %v1121 = vsel %vm1047, %v1039, 0
      %v1124 = vsel %vm1047, %v1040, 0
      %v1127 = vsel %vm1047, %v1041, 0
      %v1130 = vsel %vm1047, %v1042, 0
      %v1133 = vsel %vm1047, %v1043, 0
      %v1136 = vsel %vm1047, %v1044, 0
      %v1139 = vsel %vm1047, %v1045, 0
      %v1142 = vsel %vm1047, %v1046, 0
      %vm1144 = vcmask 1043456
      %v1146 = vsel %vm1144, %v472, 0
      %1148 = vmatprep.subr.mxu0 0.0
      %1149 = vmatpush1.msra.mxu0 %v471
      %1150 = vmatprep.subr.mxu0 0.0
      %1151 = vmatpush1.msra.mxu0 %v1146
      %1152 = vmatprep.subr.mxu0 0.0
      %1153 = vmatpush1.msra.mxu0 0.0
      %1154 = vmatprep.subr.mxu0 0.0
      %1155 = vmatpush1.msra.mxu0 0.0
      %1156 = vmatprep.subr.mxu0 0.0
      %1157 = vmatpush1.msra.mxu0 0.0
      %1158 = vmatprep.subr.mxu0 0.0
      %1159 = vmatpush1.msra.mxu0 0.0
      %1160 = vmatprep.subr.mxu0 0.0
      %1161 = vmatpush1.msra.mxu0 0.0
      %1162 = vmatprep.subr.mxu0 0.0
      %1163 = vmatpush1.msra.mxu0 0.0
      %1164 = vmatprep.subr.mxu0 0.0
      %1165 = vmatpush1.msra.mxu0 0.0
      %1166 = vmatprep.subr.mxu0 0.0
      %1167 = vmatpush1.msra.mxu0 0.0
      %1168 = vmatprep.subr.mxu0 0.0
      %1169 = vmatpush1.msra.mxu0 0.0
      %1170 = vmatprep.subr.mxu0 0.0
      %1171 = vmatpush1.msra.mxu0 0.0
      %1172 = vmatprep.subr.mxu0 0.0
      %1173 = vmatpush1.msra.mxu0 0.0
      %1174 = vmatprep.subr.mxu0 0.0
      %1175 = vmatpush1.msra.mxu0 0.0
      %1176 = vmatprep.subr.mxu0 0.0
      %1177 = vmatpush1.msra.mxu0 0.0
      %1178 = vmatprep.subr.mxu0 0.0
      %1179 = vmatpush1.msra.mxu0 0.0
      %1180 = vmatprep.subr.mxu0 0.0
      %1181 = vmatpush1.msra.mxu0 0.0
      %1182 = vmatprep.subr.mxu0 0.0
      %1183 = vmatpush1.msra.mxu0 0.0
      %1184 = vmatprep.subr.mxu0 0.0
      %1185 = vmatpush1.msra.mxu0 0.0
      %1186 = vmatprep.subr.mxu0 0.0
      %1187 = vmatpush1.msra.mxu0 0.0
      %1188 = vmatprep.subr.mxu0 0.0
      %1189 = vmatpush1.msra.mxu0 0.0
      %1190 = vmatprep.subr.mxu0 0.0
      %1191 = vmatpush1.msra.mxu0 0.0
      %1192 = vmatprep.subr.mxu0 0.0
      %1193 = vmatpush1.msra.mxu0 0.0
      %1194 = vmatprep.subr.mxu0 0.0
      %1195 = vmatpush1.msra.mxu0 0.0
      %1196 = vmatprep.subr.mxu0 0.0
      %1197 = vmatpush1.msra.mxu0 0.0
      %1198 = vmatprep.subr.mxu0 0.0
      %1199 = vmatpush1.msra.mxu0 0.0
      %1200 = vmatprep.subr.mxu0 0.0
      %1201 = vmatpush1.msra.mxu0 0.0
      %1202 = vmatprep.subr.mxu0 0.0
      %1203 = vmatpush1.msra.mxu0 0.0
      %1204 = vmatprep.subr.mxu0 0.0
      %1205 = vmatpush1.msra.mxu0 0.0
      %1206 = vmatprep.subr.mxu0 0.0
      %1207 = vmatpush1.msra.mxu0 0.0
      %1208 = vmatprep.subr.mxu0 0.0
      %1209 = vmatpush1.msra.mxu0 0.0
      %1210 = vmatprep.subr.mxu0 0.0
      %1211 = vmatpush1.msra.mxu0 0.0
      %1212 = vmatprep.mubr.f32.mxu0 0.0
      %1213 = vmatmul.mubr.f32.gmra.mrb[0].mxu0 %v1049
      %v1214 = vpop.f32.mrb[0].mxu0
      %v1215 = vadd.f32 0.0, %v1214
      %v1216 = vpop.f32.mrb[0].mxu0
      %1217 = vmatprep.mubr.f32.mxu0 0.0
      %1218 = vmatmul.mubr.f32.gmra.mrb[0].mxu0 %v1052
      %v1219 = vpop.f32.mrb[0].mxu0
      %v1220 = vadd.f32 0.0, %v1219
      %v1221 = vpop.f32.mrb[0].mxu0
      %1222 = vmatprep.mubr.f32.mxu0 0.0
      %1223 = vmatmul.mubr.f32.gmra.mrb[0].mxu0 %v1055
      %v1224 = vpop.f32.mrb[0].mxu0
      %v1225 = vadd.f32 0.0, %v1224
      %v1226 = vpop.f32.mrb[0].mxu0
      %1227 = vmatprep.mubr.f32.mxu0 0.0
      %1228 = vmatmul.mubr.f32.gmra.mrb[0].mxu0 %v1058
      %v1229 = vpop.f32.mrb[0].mxu0
      %v1230 = vadd.f32 0.0, %v1229
      %v1231 = vpop.f32.mrb[0].mxu0
      %1232 = vmatprep.mubr.f32.mxu0 0.0
      %1233 = vmatmul.mubr.f32.gmra.mrb[0].mxu0 %v1061
      %v1234 = vpop.f32.mrb[0].mxu0
      %v1235 = vadd.f32 0.0, %v1234
      %v1236 = vpop.f32.mrb[0].mxu0
      %1237 = vmatprep.mubr.f32.mxu0 0.0
      %1238 = vmatmul.mubr.f32.gmra.mrb[0].mxu0 %v1064
      %v1239 = vpop.f32.mrb[0].mxu0
      %v1240 = vadd.f32 0.0, %v1239
      %v1241 = vpop.f32.mrb[0].mxu0
      %1242 = vmatprep.mubr.f32.mxu0 0.0
      %1243 = vmatmul.mubr.f32.gmra.mrb[0].mxu0 %v1067
      %v1244 = vpop.f32.mrb[0].mxu0
      %v1245 = vadd.f32 0.0, %v1244
      %v1246 = vpop.f32.mrb[0].mxu0
      %1247 = vmatprep.mubr.f32.mxu0 0.0
      %1248 = vmatmul.mubr.f32.gmra.mrb[0].mxu0 %v1070
      %v1249 = vpop.f32.mrb[0].mxu0
      %v1250 = vadd.f32 0.0, %v1249
      %v1251 = vpop.f32.mrb[0].mxu0
      %1252 = vmatprep.mubr.f32.mxu0 0.0
      %1253 = vmatmul.mubr.f32.gmra.mrb[0].mxu0 %v1073
      %v1254 = vpop.f32.mrb[0].mxu0
      %v1255 = vadd.f32 0.0, %v1254
      %v1256 = vpop.f32.mrb[0].mxu0
      %1257 = vmatprep.mubr.f32.mxu0 0.0
      %1258 = vmatmul.mubr.f32.gmra.mrb[0].mxu0 %v1076
      %v1259 = vpop.f32.mrb[0].mxu0
      %v1260 = vadd.f32 0.0, %v1259
      %v1261 = vpop.f32.mrb[0].mxu0
      %1262 = vmatprep.mubr.f32.mxu0 0.0
      %1263 = vmatmul.mubr.f32.gmra.mrb[0].mxu0 %v1079
      %v1264 = vpop.f32.mrb[0].mxu0
      %v1265 = vadd.f32 0.0, %v1264
      %v1266 = vpop.f32.mrb[0].mxu0
      %1267 = vmatprep.mubr.f32.mxu0 0.0
      %1268 = vmatmul.mubr.f32.gmra.mrb[0].mxu0 %v1082
      %v1269 = vpop.f32.mrb[0].mxu0
      %v1270 = vadd.f32 0.0, %v1269
      %v1271 = vpop.f32.mrb[0].mxu0
      %1272 = vmatprep.mubr.f32.mxu0 0.0
      %1273 = vmatmul.mubr.f32.gmra.mrb[0].mxu0 %v1085
      %v1274 = vpop.f32.mrb[0].mxu0
      %v1275 = vadd.f32 0.0, %v1274
      %v1276 = vpop.f32.mrb[0].mxu0
      %1277 = vmatprep.mubr.f32.mxu0 0.0
      %1278 = vmatmul.mubr.f32.gmra.mrb[0].mxu0 %v1088
      %v1279 = vpop.f32.mrb[0].mxu0
      %v1280 = vadd.f32 0.0, %v1279
      %v1281 = vpop.f32.mrb[0].mxu0
      %1282 = vmatprep.mubr.f32.mxu0 0.0
      %1283 = vmatmul.mubr.f32.gmra.mrb[0].mxu0 %v1091
      %v1284 = vpop.f32.mrb[0].mxu0
      %v1285 = vadd.f32 0.0, %v1284
      %v1286 = vpop.f32.mrb[0].mxu0
      %1287 = vmatprep.mubr.f32.mxu0 0.0
      %1288 = vmatmul.mubr.f32.gmra.mrb[0].mxu0 %v1094
      %v1289 = vpop.f32.mrb[0].mxu0
      %v1290 = vadd.f32 0.0, %v1289
      %v1291 = vpop.f32.mrb[0].mxu0
      %1292 = vmatprep.mubr.f32.mxu0 0.0
      %1293 = vmatmul.mubr.f32.gmra.mrb[0].mxu0 %v1097
      %v1294 = vpop.f32.mrb[0].mxu0
      %v1295 = vadd.f32 0.0, %v1294
      %v1296 = vpop.f32.mrb[0].mxu0
      %1297 = vmatprep.mubr.f32.mxu0 0.0
      %1298 = vmatmul.mubr.f32.gmra.mrb[0].mxu0 %v1100
      %v1299 = vpop.f32.mrb[0].mxu0
      %v1300 = vadd.f32 0.0, %v1299
      %v1301 = vpop.f32.mrb[0].mxu0
      %1302 = vmatprep.mubr.f32.mxu0 0.0
      %1303 = vmatmul.mubr.f32.gmra.mrb[0].mxu0 %v1103
      %v1304 = vpop.f32.mrb[0].mxu0
      %v1305 = vadd.f32 0.0, %v1304
      %v1306 = vpop.f32.mrb[0].mxu0
      %1307 = vmatprep.mubr.f32.mxu0 0.0
      %1308 = vmatmul.mubr.f32.gmra.mrb[0].mxu0 %v1106
      %v1309 = vpop.f32.mrb[0].mxu0
      %v1310 = vadd.f32 0.0, %v1309
      %v1311 = vpop.f32.mrb[0].mxu0
      %1312 = vmatprep.mubr.f32.mxu0 0.0
      %1313 = vmatmul.mubr.f32.gmra.mrb[0].mxu0 %v1109
      %v1314 = vpop.f32.mrb[0].mxu0
      %v1315 = vadd.f32 0.0, %v1314
      %v1316 = vpop.f32.mrb[0].mxu0
      %1317 = vmatprep.mubr.f32.mxu0 0.0
      %1318 = vmatmul.mubr.f32.gmra.mrb[0].mxu0 %v1112
      %v1319 = vpop.f32.mrb[0].mxu0
      %v1320 = vadd.f32 0.0, %v1319
      %v1321 = vpop.f32.mrb[0].mxu0
      %1322 = vmatprep.mubr.f32.mxu0 0.0
      %1323 = vmatmul.mubr.f32.gmra.mrb[0].mxu0 %v1115
      %v1324 = vpop.f32.mrb[0].mxu0
      %v1325 = vadd.f32 0.0, %v1324
      %v1326 = vpop.f32.mrb[0].mxu0
      %1327 = vmatprep.mubr.f32.mxu0 0.0
      %1328 = vmatmul.mubr.f32.gmra.mrb[0].mxu0 %v1118
      %v1329 = vpop.f32.mrb[0].mxu0
      %v1330 = vadd.f32 0.0, %v1329
      %v1331 = vpop.f32.mrb[0].mxu0
      %1332 = vmatprep.mubr.f32.mxu0 0.0
      %1333 = vmatmul.mubr.f32.gmra.mrb[0].mxu0 %v1121
      %v1334 = vpop.f32.mrb[0].mxu0
      %v1335 = vadd.f32 0.0, %v1334
      %v1336 = vpop.f32.mrb[0].mxu0
      %1337 = vmatprep.mubr.f32.mxu0 0.0
      %1338 = vmatmul.mubr.f32.gmra.mrb[0].mxu0 %v1124
      %v1339 = vpop.f32.mrb[0].mxu0
      %v1340 = vadd.f32 0.0, %v1339
      %v1341 = vpop.f32.mrb[0].mxu0
      %1342 = vmatprep.mubr.f32.mxu0 0.0
      %1343 = vmatmul.mubr.f32.gmra.mrb[0].mxu0 %v1127
      %v1344 = vpop.f32.mrb[0].mxu0
      %v1345 = vadd.f32 0.0, %v1344
      %v1346 = vpop.f32.mrb[0].mxu0
      %1347 = vmatprep.mubr.f32.mxu0 0.0
      %1348 = vmatmul.mubr.f32.gmra.mrb[0].mxu0 %v1130
      %v1349 = vpop.f32.mrb[0].mxu0
      %v1350 = vadd.f32 0.0, %v1349
      %v1351 = vpop.f32.mrb[0].mxu0
      %1352 = vmatprep.mubr.f32.mxu0 0.0
      %1353 = vmatmul.mubr.f32.gmra.mrb[0].mxu0 %v1133
      %v1354 = vpop.f32.mrb[0].mxu0
      %v1355 = vadd.f32 0.0, %v1354
      %v1356 = vpop.f32.mrb[0].mxu0
      %1357 = vmatprep.mubr.f32.mxu0 0.0
      %1358 = vmatmul.mubr.f32.gmra.mrb[0].mxu0 %v1136
      %v1359 = vpop.f32.mrb[0].mxu0
      %v1360 = vadd.f32 0.0, %v1359
      %v1361 = vpop.f32.mrb[0].mxu0
      %1362 = vmatprep.mubr.f32.mxu0 0.0
      %1363 = vmatmul.mubr.f32.gmra.mrb[0].mxu0 %v1139
      %v1364 = vpop.f32.mrb[0].mxu0
      %v1365 = vadd.f32 0.0, %v1364
      %v1366 = vpop.f32.mrb[0].mxu0
      %1367 = vmatprep.mubr.f32.mxu0 0.0
      %1368 = vmatmul.mubr.f32.gmra.mrb[0].mxu0 %v1142
      %v1369 = vpop.f32.mrb[0].mxu0
      %v1370 = vadd.f32 0.0, %v1369
      %v1371 = vpop.f32.mrb[0].mxu0
      %1372 = vdwg.mxu0
      %v1374 = vsel %vm1047, %v982, 0
      %v1377 = vsel %vm1047, %v983, 0
      %v1380 = vsel %vm1047, %v984, 0
      %v1383 = vsel %vm1047, %v985, 0
      %v1386 = vsel %vm1047, %v986, 0
      %v1389 = vsel %vm1047, %v987, 0
      %v1392 = vsel %vm1047, %v988, 0
      %v1395 = vsel %vm1047, %v989, 0
      %v1398 = vsel %vm1047, %v990, 0
      %v1401 = vsel %vm1047, %v991, 0
      %v1404 = vsel %vm1047, %v992, 0
      %v1407 = vsel %vm1047, %v993, 0
      %v1410 = vsel %vm1047, %v994, 0
      %v1413 = vsel %vm1047, %v995, 0
      %v1416 = vsel %vm1047, %v996, 0
      %v1419 = vsel %vm1047, %v997, 0
      %v1422 = vsel %vm1047, %v998, 0
      %v1425 = vsel %vm1047, %v999, 0
      %v1428 = vsel %vm1047, %v1000, 0
      %v1431 = vsel %vm1047, %v1001, 0
      %v1434 = vsel %vm1047, %v1002, 0
      %v1437 = vsel %vm1047, %v1003, 0
      %v1440 = vsel %vm1047, %v1004, 0
      %v1443 = vsel %vm1047, %v1005, 0
      %v1446 = vsel %vm1047, %v1006, 0
      %v1449 = vsel %vm1047, %v1007, 0
      %v1452 = vsel %vm1047, %v1008, 0
      %v1455 = vsel %vm1047, %v1009, 0
      %v1458 = vsel %vm1047, %v1010, 0
      %v1461 = vsel %vm1047, %v1011, 0
      %v1464 = vsel %vm1047, %v1012, 0
      %v1467 = vsel %vm1047, %v1013, 0
      %v1470 = vsel %vm1144, %v470, 0
      %1472 = vmatprep.subr.mxu0 0.0
      %1473 = vmatpush1.msra.mxu0 %v469
      %1474 = vmatprep.subr.mxu0 0.0
      %1475 = vmatpush1.msra.mxu0 %v1470
      %1476 = vmatprep.subr.mxu0 0.0
      %1477 = vmatpush1.msra.mxu0 0.0
      %1478 = vmatprep.subr.mxu0 0.0
      %1479 = vmatpush1.msra.mxu0 0.0
      %1480 = vmatprep.subr.mxu0 0.0
      %1481 = vmatpush1.msra.mxu0 0.0
      %1482 = vmatprep.subr.mxu0 0.0
      %1483 = vmatpush1.msra.mxu0 0.0
      %1484 = vmatprep.subr.mxu0 0.0
      %1485 = vmatpush1.msra.mxu0 0.0
      %1486 = vmatprep.subr.mxu0 0.0
      %1487 = vmatpush1.msra.mxu0 0.0
      %1488 = vmatprep.subr.mxu0 0.0
      %1489 = vmatpush1.msra.mxu0 0.0
      %1490 = vmatprep.subr.mxu0 0.0
      %1491 = vmatpush1.msra.mxu0 0.0
      %1492 = vmatprep.subr.mxu0 0.0
      %1493 = vmatpush1.msra.mxu0 0.0
      %1494 = vmatprep.subr.mxu0 0.0
      %1495 = vmatpush1.msra.mxu0 0.0
      %1496 = vmatprep.subr.mxu0 0.0
      %1497 = vmatpush1.msra.mxu0 0.0
      %1498 = vmatprep.subr.mxu0 0.0
      %1499 = vmatpush1.msra.mxu0 0.0
      %1500 = vmatprep.subr.mxu0 0.0
      %1501 = vmatpush1.msra.mxu0 0.0
      %1502 = vmatprep.subr.mxu0 0.0
      %1503 = vmatpush1.msra.mxu0 0.0
      %1504 = vmatprep.subr.mxu0 0.0
      %1505 = vmatpush1.msra.mxu0 0.0
      %1506 = vmatprep.subr.mxu0 0.0
      %1507 = vmatpush1.msra.mxu0 0.0
      %1508 = vmatprep.subr.mxu0 0.0
      %1509 = vmatpush1.msra.mxu0 0.0
      %1510 = vmatprep.subr.mxu0 0.0
      %1511 = vmatpush1.msra.mxu0 0.0
      %1512 = vmatprep.subr.mxu0 0.0
      %1513 = vmatpush1.msra.mxu0 0.0
      %1514 = vmatprep.subr.mxu0 0.0
      %1515 = vmatpush1.msra.mxu0 0.0
      %1516 = vmatprep.subr.mxu0 0.0
      %1517 = vmatpush1.msra.mxu0 0.0
      %1518 = vmatprep.subr.mxu0 0.0
      %1519 = vmatpush1.msra.mxu0 0.0
      %1520 = vmatprep.subr.mxu0 0.0
      %1521 = vmatpush1.msra.mxu0 0.0
      %1522 = vmatprep.subr.mxu0 0.0
      %1523 = vmatpush1.msra.mxu0 0.0
      %1524 = vmatprep.subr.mxu0 0.0
      %1525 = vmatpush1.msra.mxu0 0.0
      %1526 = vmatprep.subr.mxu0 0.0
      %1527 = vmatpush1.msra.mxu0 0.0
      %1528 = vmatprep.subr.mxu0 0.0
      %1529 = vmatpush1.msra.mxu0 0.0
      %1530 = vmatprep.subr.mxu0 0.0
      %1531 = vmatpush1.msra.mxu0 0.0
      %1532 = vmatprep.subr.mxu0 0.0
      %1533 = vmatpush1.msra.mxu0 0.0
      %1534 = vmatprep.subr.mxu0 0.0
      %1535 = vmatpush1.msra.mxu0 0.0
      %1536 = vmatprep.mubr.f32.mxu0 0.0
      %1537 = vmatmul.mubr.f32.gmra.mrb[0].mxu0 %v1374
      %v1538 = vpop.f32.mrb[0].mxu0
      %v1539 = vadd.f32 %v1215, %v1538
      %v1540 = vpop.f32.mrb[0].mxu0
      %1541 = vmatprep.mubr.f32.mxu0 0.0
      %1542 = vmatmul.mubr.f32.gmra.mrb[0].mxu0 %v1377
      %v1543 = vpop.f32.mrb[0].mxu0
      %v1544 = vadd.f32 %v1220, %v1543
      %v1545 = vpop.f32.mrb[0].mxu0
      %1546 = vmatprep.mubr.f32.mxu0 0.0
      %1547 = vmatmul.mubr.f32.gmra.mrb[0].mxu0 %v1380
      %v1548 = vpop.f32.mrb[0].mxu0
      %v1549 = vadd.f32 %v1225, %v1548
      %v1550 = vpop.f32.mrb[0].mxu0
      %1551 = vmatprep.mubr.f32.mxu0 0.0
      %1552 = vmatmul.mubr.f32.gmra.mrb[0].mxu0 %v1383
      %v1553 = vpop.f32.mrb[0].mxu0
      %v1554 = vadd.f32 %v1230, %v1553
      %v1555 = vpop.f32.mrb[0].mxu0
      %1556 = vmatprep.mubr.f32.mxu0 0.0
      %1557 = vmatmul.mubr.f32.gmra.mrb[0].mxu0 %v1386
      %v1558 = vpop.f32.mrb[0].mxu0
      %v1559 = vadd.f32 %v1235, %v1558
      %v1560 = vpop.f32.mrb[0].mxu0
      %1561 = vmatprep.mubr.f32.mxu0 0.0
      %1562 = vmatmul.mubr.f32.gmra.mrb[0].mxu0 %v1389
      %v1563 = vpop.f32.mrb[0].mxu0
      %v1564 = vadd.f32 %v1240, %v1563
      %v1565 = vpop.f32.mrb[0].mxu0
      %1566 = vmatprep.mubr.f32.mxu0 0.0
      %1567 = vmatmul.mubr.f32.gmra.mrb[0].mxu0 %v1392
      %v1568 = vpop.f32.mrb[0].mxu0
      %v1569 = vadd.f32 %v1245, %v1568
      %v1570 = vpop.f32.mrb[0].mxu0
      %1571 = vmatprep.mubr.f32.mxu0 0.0
      %1572 = vmatmul.mubr.f32.gmra.mrb[0].mxu0 %v1395
      %v1573 = vpop.f32.mrb[0].mxu0
      %v1574 = vadd.f32 %v1250, %v1573
      %v1575 = vpop.f32.mrb[0].mxu0
      %1576 = vmatprep.mubr.f32.mxu0 0.0
      %1577 = vmatmul.mubr.f32.gmra.mrb[0].mxu0 %v1398
      %v1578 = vpop.f32.mrb[0].mxu0
      %v1579 = vadd.f32 %v1255, %v1578
      %v1580 = vpop.f32.mrb[0].mxu0
      %1581 = vmatprep.mubr.f32.mxu0 0.0
      %1582 = vmatmul.mubr.f32.gmra.mrb[0].mxu0 %v1401
      %v1583 = vpop.f32.mrb[0].mxu0
      %v1584 = vadd.f32 %v1260, %v1583
      %v1585 = vpop.f32.mrb[0].mxu0
      %1586 = vmatprep.mubr.f32.mxu0 0.0
      %1587 = vmatmul.mubr.f32.gmra.mrb[0].mxu0 %v1404
      %v1588 = vpop.f32.mrb[0].mxu0
      %v1589 = vadd.f32 %v1265, %v1588
      %v1590 = vpop.f32.mrb[0].mxu0
      %1591 = vmatprep.mubr.f32.mxu0 0.0
      %1592 = vmatmul.mubr.f32.gmra.mrb[0].mxu0 %v1407
      %v1593 = vpop.f32.mrb[0].mxu0
      %v1594 = vadd.f32 %v1270, %v1593
      %v1595 = vpop.f32.mrb[0].mxu0
      %1596 = vmatprep.mubr.f32.mxu0 0.0
      %1597 = vmatmul.mubr.f32.gmra.mrb[0].mxu0 %v1410
      %v1598 = vpop.f32.mrb[0].mxu0
      %v1599 = vadd.f32 %v1275, %v1598
      %v1600 = vpop.f32.mrb[0].mxu0
      %1601 = vmatprep.mubr.f32.mxu0 0.0
      %1602 = vmatmul.mubr.f32.gmra.mrb[0].mxu0 %v1413
      %v1603 = vpop.f32.mrb[0].mxu0
      %v1604 = vadd.f32 %v1280, %v1603
      %v1605 = vpop.f32.mrb[0].mxu0
      %1606 = vmatprep.mubr.f32.mxu0 0.0
      %1607 = vmatmul.mubr.f32.gmra.mrb[0].mxu0 %v1416
      %v1608 = vpop.f32.mrb[0].mxu0
      %v1609 = vadd.f32 %v1285, %v1608
      %v1610 = vpop.f32.mrb[0].mxu0
      %1611 = vmatprep.mubr.f32.mxu0 0.0
      %1612 = vmatmul.mubr.f32.gmra.mrb[0].mxu0 %v1419
      %v1613 = vpop.f32.mrb[0].mxu0
      %v1614 = vadd.f32 %v1290, %v1613
      %v1615 = vpop.f32.mrb[0].mxu0
      %1616 = vmatprep.mubr.f32.mxu0 0.0
      %1617 = vmatmul.mubr.f32.gmra.mrb[0].mxu0 %v1422
      %v1618 = vpop.f32.mrb[0].mxu0
      %v1619 = vadd.f32 %v1295, %v1618
      %v1620 = vpop.f32.mrb[0].mxu0
      %1621 = vmatprep.mubr.f32.mxu0 0.0
      %1622 = vmatmul.mubr.f32.gmra.mrb[0].mxu0 %v1425
      %v1623 = vpop.f32.mrb[0].mxu0
      %v1624 = vadd.f32 %v1300, %v1623
      %v1625 = vpop.f32.mrb[0].mxu0
      %1626 = vmatprep.mubr.f32.mxu0 0.0
      %1627 = vmatmul.mubr.f32.gmra.mrb[0].mxu0 %v1428
      %v1628 = vpop.f32.mrb[0].mxu0
      %v1629 = vadd.f32 %v1305, %v1628
      %v1630 = vpop.f32.mrb[0].mxu0
      %1631 = vmatprep.mubr.f32.mxu0 0.0
      %1632 = vmatmul.mubr.f32.gmra.mrb[0].mxu0 %v1431
      %v1633 = vpop.f32.mrb[0].mxu0
      %v1634 = vadd.f32 %v1310, %v1633
      %v1635 = vpop.f32.mrb[0].mxu0
      %1636 = vmatprep.mubr.f32.mxu0 0.0
      %1637 = vmatmul.mubr.f32.gmra.mrb[0].mxu0 %v1434
      %v1638 = vpop.f32.mrb[0].mxu0
      %v1639 = vadd.f32 %v1315, %v1638
      %v1640 = vpop.f32.mrb[0].mxu0
      %1641 = vmatprep.mubr.f32.mxu0 0.0
      %1642 = vmatmul.mubr.f32.gmra.mrb[0].mxu0 %v1437
      %v1643 = vpop.f32.mrb[0].mxu0
      %v1644 = vadd.f32 %v1320, %v1643
      %v1645 = vpop.f32.mrb[0].mxu0
      %1646 = vmatprep.mubr.f32.mxu0 0.0
      %1647 = vmatmul.mubr.f32.gmra.mrb[0].mxu0 %v1440
      %v1648 = vpop.f32.mrb[0].mxu0
      %v1649 = vadd.f32 %v1325, %v1648
      %v1650 = vpop.f32.mrb[0].mxu0
      %1651 = vmatprep.mubr.f32.mxu0 0.0
      %1652 = vmatmul.mubr.f32.gmra.mrb[0].mxu0 %v1443
      %v1653 = vpop.f32.mrb[0].mxu0
      %v1654 = vadd.f32 %v1330, %v1653
      %v1655 = vpop.f32.mrb[0].mxu0
      %1656 = vmatprep.mubr.f32.mxu0 0.0
      %1657 = vmatmul.mubr.f32.gmra.mrb[0].mxu0 %v1446
      %v1658 = vpop.f32.mrb[0].mxu0
      %v1659 = vadd.f32 %v1335, %v1658
      %v1660 = vpop.f32.mrb[0].mxu0
      %1661 = vmatprep.mubr.f32.mxu0 0.0
      %1662 = vmatmul.mubr.f32.gmra.mrb[0].mxu0 %v1449
      %v1663 = vpop.f32.mrb[0].mxu0
      %v1664 = vadd.f32 %v1340, %v1663
      %v1665 = vpop.f32.mrb[0].mxu0
      %1666 = vmatprep.mubr.f32.mxu0 0.0
      %1667 = vmatmul.mubr.f32.gmra.mrb[0].mxu0 %v1452
      %v1668 = vpop.f32.mrb[0].mxu0
      %v1669 = vadd.f32 %v1345, %v1668
      %v1670 = vpop.f32.mrb[0].mxu0
      %1671 = vmatprep.mubr.f32.mxu0 0.0
      %1672 = vmatmul.mubr.f32.gmra.mrb[0].mxu0 %v1455
      %v1673 = vpop.f32.mrb[0].mxu0
      %v1674 = vadd.f32 %v1350, %v1673
      %v1675 = vpop.f32.mrb[0].mxu0
      %1676 = vmatprep.mubr.f32.mxu0 0.0
      %1677 = vmatmul.mubr.f32.gmra.mrb[0].mxu0 %v1458
      %v1678 = vpop.f32.mrb[0].mxu0
      %v1679 = vadd.f32 %v1355, %v1678
      %v1680 = vpop.f32.mrb[0].mxu0
      %1681 = vmatprep.mubr.f32.mxu0 0.0
      %1682 = vmatmul.mubr.f32.gmra.mrb[0].mxu0 %v1461
      %v1683 = vpop.f32.mrb[0].mxu0
      %v1684 = vadd.f32 %v1360, %v1683
      %v1685 = vpop.f32.mrb[0].mxu0
      %1686 = vmatprep.mubr.f32.mxu0 0.0
      %1687 = vmatmul.mubr.f32.gmra.mrb[0].mxu0 %v1464
      %v1688 = vpop.f32.mrb[0].mxu0
      %v1689 = vadd.f32 %v1365, %v1688
      %v1690 = vpop.f32.mrb[0].mxu0
      %1691 = vmatprep.mubr.f32.mxu0 0.0
      %1692 = vmatmul.mubr.f32.gmra.mrb[0].mxu0 %v1467
      %v1693 = vpop.f32.mrb[0].mxu0
      %v1694 = vadd.f32 %v1370, %v1693
      %v1695 = vpop.f32.mrb[0].mxu0
      %1696 = vdwg.mxu0
      %s1697 = scalar_lea.vmem [#allocation3], 32
      %v1698 = vld [vmem:[%s1697] sm:$0xff]
      %v1699 = vld [vmem:[%s1697 + $0x8] sm:$0xff]
      %v1700 = vld [vmem:[%s1697 + $0x10] sm:$0xff]
      %v1701 = vld [vmem:[%s1697 + $0x18] sm:$0xff]
      %v1702 = vld [vmem:[%s1697 + $0x20] sm:$0xff]
      %v1703 = vld [vmem:[%s1697 + $0x28] sm:$0xff]
      %v1704 = vld [vmem:[%s1697 + $0x30] sm:$0xff]
      %v1705 = vld [vmem:[%s1697 + $0x38] sm:$0xff]
      %v1706 = vld [vmem:[%s1697 + $0x40] sm:$0xff]
      %v1707 = vld [vmem:[%s1697 + $0x48] sm:$0xff]
      %v1708 = vld [vmem:[%s1697 + $0x50] sm:$0xff]
      %v1709 = vld [vmem:[%s1697 + $0x58] sm:$0xff]
      %v1710 = vld [vmem:[%s1697 + $0x60] sm:$0xff]
      %v1711 = vld [vmem:[%s1697 + $0x68] sm:$0xff]
      %v1712 = vld [vmem:[%s1697 + $0x70] sm:$0xff]
      %v1713 = vld [vmem:[%s1697 + $0x78] sm:$0xff]
      %v1714 = vld [vmem:[%s1697 + $0x80] sm:$0xff]
      %v1715 = vld [vmem:[%s1697 + $0x88] sm:$0xff]
      %v1716 = vld [vmem:[%s1697 + $0x90] sm:$0xff]
      %v1717 = vld [vmem:[%s1697 + $0x98] sm:$0xff]
      %v1718 = vld [vmem:[%s1697 + $0xa0] sm:$0xff]
      %v1719 = vld [vmem:[%s1697 + $0xa8] sm:$0xff]
      %v1720 = vld [vmem:[%s1697 + $0xb0] sm:$0xff]
      %v1721 = vld [vmem:[%s1697 + $0xb8] sm:$0xff]
      %v1722 = vld [vmem:[%s1697 + $0xc0] sm:$0xff]
      %v1723 = vld [vmem:[%s1697 + $0xc8] sm:$0xff]
      %v1724 = vld [vmem:[%s1697 + $0xd0] sm:$0xff]
      %v1725 = vld [vmem:[%s1697 + $0xd8] sm:$0xff]
      %v1726 = vld [vmem:[%s1697 + $0xe0] sm:$0xff]
      %v1727 = vld [vmem:[%s1697 + $0xe8] sm:$0xff]
      %v1728 = vld [vmem:[%s1697 + $0xf0] sm:$0xff]
      %v1729 = vld [vmem:[%s1697 + $0xf8] sm:$0xff]
      %v1731 = vsel %vm1047, %v1698, 0
      %v1734 = vsel %vm1047, %v1699, 0
      %v1737 = vsel %vm1047, %v1700, 0
      %v1740 = vsel %vm1047, %v1701, 0
      %v1743 = vsel %vm1047, %v1702, 0
      %v1746 = vsel %vm1047, %v1703, 0
      %v1749 = vsel %vm1047, %v1704, 0
      %v1752 = vsel %vm1047, %v1705, 0
      %v1755 = vsel %vm1047, %v1706, 0
      %v1758 = vsel %vm1047, %v1707, 0
      %v1761 = vsel %vm1047, %v1708, 0
      %v1764 = vsel %vm1047, %v1709, 0
      %v1767 = vsel %vm1047, %v1710, 0
      %v1770 = vsel %vm1047, %v1711, 0
      %v1773 = vsel %vm1047, %v1712, 0
      %v1776 = vsel %vm1047, %v1713, 0
      %v1779 = vsel %vm1047, %v1714, 0
      %v1782 = vsel %vm1047, %v1715, 0
      %v1785 = vsel %vm1047, %v1716, 0
      %v1788 = vsel %vm1047, %v1717, 0
      %v1791 = vsel %vm1047, %v1718, 0
      %v1794 = vsel %vm1047, %v1719, 0
      %v1797 = vsel %vm1047, %v1720, 0
      %v1800 = vsel %vm1047, %v1721, 0
      %v1803 = vsel %vm1047, %v1722, 0
      %v1806 = vsel %vm1047, %v1723, 0
      %v1809 = vsel %vm1047, %v1724, 0
      %v1812 = vsel %vm1047, %v1725, 0
      %v1815 = vsel %vm1047, %v1726, 0
      %v1818 = vsel %vm1047, %v1727, 0
      %v1821 = vsel %vm1047, %v1728, 0
      %v1824 = vsel %vm1047, %v1729, 0
      %v1827 = vsel %vm1144, %v474, 0
      %1829 = vmatprep.subr.mxu0 0.0
      %1830 = vmatpush1.msra.mxu0 %v473
      %1831 = vmatprep.subr.mxu0 0.0
      %1832 = vmatpush1.msra.mxu0 %v1827
      %1833 = vmatprep.subr.mxu0 0.0
      %1834 = vmatpush1.msra.mxu0 0.0
      %1835 = vmatprep.subr.mxu0 0.0
      %1836 = vmatpush1.msra.mxu0 0.0
      %1837 = vmatprep.subr.mxu0 0.0
      %1838 = vmatpush1.msra.mxu0 0.0
      %1839 = vmatprep.subr.mxu0 0.0
      %1840 = vmatpush1.msra.mxu0 0.0
      %1841 = vmatprep.subr.mxu0 0.0
      %1842 = vmatpush1.msra.mxu0 0.0
      %1843 = vmatprep.subr.mxu0 0.0
      %1844 = vmatpush1.msra.mxu0 0.0
      %1845 = vmatprep.subr.mxu0 0.0
      %1846 = vmatpush1.msra.mxu0 0.0
      %1847 = vmatprep.subr.mxu0 0.0
      %1848 = vmatpush1.msra.mxu0 0.0
      %1849 = vmatprep.subr.mxu0 0.0
      %1850 = vmatpush1.msra.mxu0 0.0
      %1851 = vmatprep.subr.mxu0 0.0
      %1852 = vmatpush1.msra.mxu0 0.0
      %1853 = vmatprep.subr.mxu0 0.0
      %1854 = vmatpush1.msra.mxu0 0.0
      %1855 = vmatprep.subr.mxu0 0.0
      %1856 = vmatpush1.msra.mxu0 0.0
      %1857 = vmatprep.subr.mxu0 0.0
      %1858 = vmatpush1.msra.mxu0 0.0
      %1859 = vmatprep.subr.mxu0 0.0
      %1860 = vmatpush1.msra.mxu0 0.0
      %1861 = vmatprep.subr.mxu0 0.0
      %1862 = vmatpush1.msra.mxu0 0.0
      %1863 = vmatprep.subr.mxu0 0.0
      %1864 = vmatpush1.msra.mxu0 0.0
      %1865 = vmatprep.subr.mxu0 0.0
      %1866 = vmatpush1.msra.mxu0 0.0
      %1867 = vmatprep.subr.mxu0 0.0
      %1868 = vmatpush1.msra.mxu0 0.0
      %1869 = vmatprep.subr.mxu0 0.0
      %1870 = vmatpush1.msra.mxu0 0.0
      %1871 = vmatprep.subr.mxu0 0.0
      %1872 = vmatpush1.msra.mxu0 0.0
      %1873 = vmatprep.subr.mxu0 0.0
      %1874 = vmatpush1.msra.mxu0 0.0
      %1875 = vmatprep.subr.mxu0 0.0
      %1876 = vmatpush1.msra.mxu0 0.0
      %1877 = vmatprep.subr.mxu0 0.0
      %1878 = vmatpush1.msra.mxu0 0.0
      %1879 = vmatprep.subr.mxu0 0.0
      %1880 = vmatpush1.msra.mxu0 0.0
      %1881 = vmatprep.subr.mxu0 0.0
      %1882 = vmatpush1.msra.mxu0 0.0
      %1883 = vmatprep.subr.mxu0 0.0
      %1884 = vmatpush1.msra.mxu0 0.0
      %1885 = vmatprep.subr.mxu0 0.0
      %1886 = vmatpush1.msra.mxu0 0.0
      %1887 = vmatprep.subr.mxu0 0.0
      %1888 = vmatpush1.msra.mxu0 0.0
      %1889 = vmatprep.subr.mxu0 0.0
      %1890 = vmatpush1.msra.mxu0 0.0
      %1891 = vmatprep.subr.mxu0 0.0
      %1892 = vmatpush1.msra.mxu0 0.0
      %1893 = vmatprep.mubr.f32.mxu0 0.0
      %1894 = vmatmul.mubr.f32.gmra.mrb[0].mxu0 %v1731
      %v1895 = vpop.f32.mrb[0].mxu0
      %v1896 = vadd.f32 0.0, %v1895
      %v1897 = vpop.f32.mrb[0].mxu0
      %1898 = vmatprep.mubr.f32.mxu0 0.0
      %1899 = vmatmul.mubr.f32.gmra.mrb[0].mxu0 %v1734
      %v1900 = vpop.f32.mrb[0].mxu0
      %v1901 = vadd.f32 0.0, %v1900
      %v1902 = vpop.f32.mrb[0].mxu0
      %1903 = vmatprep.mubr.f32.mxu0 0.0
      %1904 = vmatmul.mubr.f32.gmra.mrb[0].mxu0 %v1737
      %v1905 = vpop.f32.mrb[0].mxu0
      %v1906 = vadd.f32 0.0, %v1905
      %v1907 = vpop.f32.mrb[0].mxu0
      %1908 = vmatprep.mubr.f32.mxu0 0.0
      %1909 = vmatmul.mubr.f32.gmra.mrb[0].mxu0 %v1740
      %v1910 = vpop.f32.mrb[0].mxu0
      %v1911 = vadd.f32 0.0, %v1910
      %v1912 = vpop.f32.mrb[0].mxu0
      %1913 = vmatprep.mubr.f32.mxu0 0.0
      %1914 = vmatmul.mubr.f32.gmra.mrb[0].mxu0 %v1743
      %v1915 = vpop.f32.mrb[0].mxu0
      %v1916 = vadd.f32 0.0, %v1915
      %v1917 = vpop.f32.mrb[0].mxu0
      %1918 = vmatprep.mubr.f32.mxu0 0.0
      %1919 = vmatmul.mubr.f32.gmra.mrb[0].mxu0 %v1746
      %v1920 = vpop.f32.mrb[0].mxu0
      %v1921 = vadd.f32 0.0, %v1920
      %v1922 = vpop.f32.mrb[0].mxu0
      %1923 = vmatprep.mubr.f32.mxu0 0.0
      %1924 = vmatmul.mubr.f32.gmra.mrb[0].mxu0 %v1749
      %v1925 = vpop.f32.mrb[0].mxu0
      %v1926 = vadd.f32 0.0, %v1925
      %v1927 = vpop.f32.mrb[0].mxu0
      %1928 = vmatprep.mubr.f32.mxu0 0.0
      %1929 = vmatmul.mubr.f32.gmra.mrb[0].mxu0 %v1752
      %v1930 = vpop.f32.mrb[0].mxu0
      %v1931 = vadd.f32 0.0, %v1930
      %v1932 = vpop.f32.mrb[0].mxu0
      %1933 = vmatprep.mubr.f32.mxu0 0.0
      %1934 = vmatmul.mubr.f32.gmra.mrb[0].mxu0 %v1755
      %v1935 = vpop.f32.mrb[0].mxu0
      %v1936 = vadd.f32 0.0, %v1935
      %v1937 = vpop.f32.mrb[0].mxu0
      %1938 = vmatprep.mubr.f32.mxu0 0.0
      %1939 = vmatmul.mubr.f32.gmra.mrb[0].mxu0 %v1758
      %v1940 = vpop.f32.mrb[0].mxu0
      %v1941 = vadd.f32 0.0, %v1940
      %v1942 = vpop.f32.mrb[0].mxu0
      %1943 = vmatprep.mubr.f32.mxu0 0.0
      %1944 = vmatmul.mubr.f32.gmra.mrb[0].mxu0 %v1761
      %v1945 = vpop.f32.mrb[0].mxu0
      %v1946 = vadd.f32 0.0, %v1945
      %v1947 = vpop.f32.mrb[0].mxu0
      %1948 = vmatprep.mubr.f32.mxu0 0.0
      %1949 = vmatmul.mubr.f32.gmra.mrb[0].mxu0 %v1764
      %v1950 = vpop.f32.mrb[0].mxu0
      %v1951 = vadd.f32 0.0, %v1950
      %v1952 = vpop.f32.mrb[0].mxu0
      %1953 = vmatprep.mubr.f32.mxu0 0.0
      %1954 = vmatmul.mubr.f32.gmra.mrb[0].mxu0 %v1767
      %v1955 = vpop.f32.mrb[0].mxu0
      %v1956 = vadd.f32 0.0, %v1955
      %v1957 = vpop.f32.mrb[0].mxu0
      %1958 = vmatprep.mubr.f32.mxu0 0.0
      %1959 = vmatmul.mubr.f32.gmra.mrb[0].mxu0 %v1770
      %v1960 = vpop.f32.mrb[0].mxu0
      %v1961 = vadd.f32 0.0, %v1960
      %v1962 = vpop.f32.mrb[0].mxu0
      %1963 = vmatprep.mubr.f32.mxu0 0.0
      %1964 = vmatmul.mubr.f32.gmra.mrb[0].mxu0 %v1773
      %v1965 = vpop.f32.mrb[0].mxu0
      %v1966 = vadd.f32 0.0, %v1965
      %v1967 = vpop.f32.mrb[0].mxu0
      %1968 = vmatprep.mubr.f32.mxu0 0.0
      %1969 = vmatmul.mubr.f32.gmra.mrb[0].mxu0 %v1776
      %v1970 = vpop.f32.mrb[0].mxu0
      %v1971 = vadd.f32 0.0, %v1970
      %v1972 = vpop.f32.mrb[0].mxu0
      %1973 = vmatprep.mubr.f32.mxu0 0.0
      %1974 = vmatmul.mubr.f32.gmra.mrb[0].mxu0 %v1779
      %v1975 = vpop.f32.mrb[0].mxu0
      %v1976 = vadd.f32 0.0, %v1975
      %v1977 = vpop.f32.mrb[0].mxu0
      %1978 = vmatprep.mubr.f32.mxu0 0.0
      %1979 = vmatmul.mubr.f32.gmra.mrb[0].mxu0 %v1782
      %v1980 = vpop.f32.mrb[0].mxu0
      %v1981 = vadd.f32 0.0, %v1980
      %v1982 = vpop.f32.mrb[0].mxu0
      %1983 = vmatprep.mubr.f32.mxu0 0.0
      %1984 = vmatmul.mubr.f32.gmra.mrb[0].mxu0 %v1785
      %v1985 = vpop.f32.mrb[0].mxu0
      %v1986 = vadd.f32 0.0, %v1985
      %v1987 = vpop.f32.mrb[0].mxu0
      %1988 = vmatprep.mubr.f32.mxu0 0.0
      %1989 = vmatmul.mubr.f32.gmra.mrb[0].mxu0 %v1788
      %v1990 = vpop.f32.mrb[0].mxu0
      %v1991 = vadd.f32 0.0, %v1990
      %v1992 = vpop.f32.mrb[0].mxu0
      %1993 = vmatprep.mubr.f32.mxu0 0.0
      %1994 = vmatmul.mubr.f32.gmra.mrb[0].mxu0 %v1791
      %v1995 = vpop.f32.mrb[0].mxu0
      %v1996 = vadd.f32 0.0, %v1995
      %v1997 = vpop.f32.mrb[0].mxu0
      %1998 = vmatprep.mubr.f32.mxu0 0.0
      %1999 = vmatmul.mubr.f32.gmra.mrb[0].mxu0 %v1794
      %v2000 = vpop.f32.mrb[0].mxu0
      %v2001 = vadd.f32 0.0, %v2000
      %v2002 = vpop.f32.mrb[0].mxu0
      %2003 = vmatprep.mubr.f32.mxu0 0.0
      %2004 = vmatmul.mubr.f32.gmra.mrb[0].mxu0 %v1797
      %v2005 = vpop.f32.mrb[0].mxu0
      %v2006 = vadd.f32 0.0, %v2005
      %v2007 = vpop.f32.mrb[0].mxu0
      %2008 = vmatprep.mubr.f32.mxu0 0.0
      %2009 = vmatmul.mubr.f32.gmra.mrb[0].mxu0 %v1800
      %v2010 = vpop.f32.mrb[0].mxu0
      %v2011 = vadd.f32 0.0, %v2010
      %v2012 = vpop.f32.mrb[0].mxu0
      %2013 = vmatprep.mubr.f32.mxu0 0.0
      %2014 = vmatmul.mubr.f32.gmra.mrb[0].mxu0 %v1803
      %v2015 = vpop.f32.mrb[0].mxu0
      %v2016 = vadd.f32 0.0, %v2015
      %v2017 = vpop.f32.mrb[0].mxu0
      %2018 = vmatprep.mubr.f32.mxu0 0.0
      %2019 = vmatmul.mubr.f32.gmra.mrb[0].mxu0 %v1806
      %v2020 = vpop.f32.mrb[0].mxu0
      %v2021 = vadd.f32 0.0, %v2020
      %v2022 = vpop.f32.mrb[0].mxu0
      %2023 = vmatprep.mubr.f32.mxu0 0.0
      %2024 = vmatmul.mubr.f32.gmra.mrb[0].mxu0 %v1809
      %v2025 = vpop.f32.mrb[0].mxu0
      %v2026 = vadd.f32 0.0, %v2025
      %v2027 = vpop.f32.mrb[0].mxu0
      %2028 = vmatprep.mubr.f32.mxu0 0.0
      %2029 = vmatmul.mubr.f32.gmra.mrb[0].mxu0 %v1812
      %v2030 = vpop.f32.mrb[0].mxu0
      %v2031 = vadd.f32 0.0, %v2030
      %v2032 = vpop.f32.mrb[0].mxu0
      %2033 = vmatprep.mubr.f32.mxu0 0.0
      %2034 = vmatmul.mubr.f32.gmra.mrb[0].mxu0 %v1815
      %v2035 = vpop.f32.mrb[0].mxu0
      %v2036 = vadd.f32 0.0, %v2035
      %v2037 = vpop.f32.mrb[0].mxu0
      %2038 = vmatprep.mubr.f32.mxu0 0.0
      %2039 = vmatmul.mubr.f32.gmra.mrb[0].mxu0 %v1818
      %v2040 = vpop.f32.mrb[0].mxu0
      %v2041 = vadd.f32 0.0, %v2040
      %v2042 = vpop.f32.mrb[0].mxu0
      %2043 = vmatprep.mubr.f32.mxu0 0.0
      %2044 = vmatmul.mubr.f32.gmra.mrb[0].mxu0 %v1821
      %v2045 = vpop.f32.mrb[0].mxu0
      %v2046 = vadd.f32 0.0, %v2045
      %v2047 = vpop.f32.mrb[0].mxu0
      %2048 = vmatprep.mubr.f32.mxu0 0.0
      %2049 = vmatmul.mubr.f32.gmra.mrb[0].mxu0 %v1824
      %v2050 = vpop.f32.mrb[0].mxu0
      %v2051 = vadd.f32 0.0, %v2050
      %v2052 = vpop.f32.mrb[0].mxu0
      %2053 = vdwg.mxu0
      %v2054 = vadd.f32 %v1539, %v1896
      %v2055 = vadd.f32 %v1544, %v1901
      %v2056 = vadd.f32 %v1549, %v1906
      %v2057 = vadd.f32 %v1554, %v1911
      %v2058 = vadd.f32 %v1559, %v1916
      %v2059 = vadd.f32 %v1564, %v1921
      %v2060 = vadd.f32 %v1569, %v1926
      %v2061 = vadd.f32 %v1574, %v1931
      %v2062 = vadd.f32 %v1579, %v1936
      %v2063 = vadd.f32 %v1584, %v1941
      %v2064 = vadd.f32 %v1589, %v1946
      %v2065 = vadd.f32 %v1594, %v1951
      %v2066 = vadd.f32 %v1599, %v1956
      %v2067 = vadd.f32 %v1604, %v1961
      %v2068 = vadd.f32 %v1609, %v1966
      %v2069 = vadd.f32 %v1614, %v1971
      %v2070 = vadd.f32 %v1619, %v1976
      %v2071 = vadd.f32 %v1624, %v1981
      %v2072 = vadd.f32 %v1629, %v1986
      %v2073 = vadd.f32 %v1634, %v1991
      %v2074 = vadd.f32 %v1639, %v1996
      %v2075 = vadd.f32 %v1644, %v2001
      %v2076 = vadd.f32 %v1649, %v2006
      %v2077 = vadd.f32 %v1654, %v2011
      %v2078 = vadd.f32 %v1659, %v2016
      %v2079 = vadd.f32 %v1664, %v2021
      %v2080 = vadd.f32 %v1669, %v2026
      %v2081 = vadd.f32 %v1674, %v2031
      %v2082 = vadd.f32 %v1679, %v2036
      %v2083 = vadd.f32 %v1684, %v2041
      %v2084 = vadd.f32 %v1689, %v2046
      %v2085 = vadd.f32 %v1694, %v2051
      %v2087 = vlaneseq
      %v2088 = vshrl.u32 %v2087, 7
      %v2089 = vsub.s32 0, %v2088
      %v2090 = vrot.slane %v475, %v2089
      %v2092 = vadd.f32 %v2054, %v2090
      %v2093 = vadd.f32 %v2055, %v2090
      %v2094 = vadd.f32 %v2056, %v2090
      %v2095 = vadd.f32 %v2057, %v2090
      %v2096 = vadd.f32 %v2058, %v2090
      %v2097 = vadd.f32 %v2059, %v2090
      %v2098 = vadd.f32 %v2060, %v2090
      %v2099 = vadd.f32 %v2061, %v2090
      %v2100 = vadd.f32 %v2062, %v2090
      %v2101 = vadd.f32 %v2063, %v2090
      %v2102 = vadd.f32 %v2064, %v2090
      %v2103 = vadd.f32 %v2065, %v2090
      %v2104 = vadd.f32 %v2066, %v2090
      %v2105 = vadd.f32 %v2067, %v2090
      %v2106 = vadd.f32 %v2068, %v2090
      %v2107 = vadd.f32 %v2069, %v2090
      %v2108 = vadd.f32 %v2070, %v2090
      %v2109 = vadd.f32 %v2071, %v2090
      %v2110 = vadd.f32 %v2072, %v2090
      %v2111 = vadd.f32 %v2073, %v2090
      %v2112 = vadd.f32 %v2074, %v2090
      %v2113 = vadd.f32 %v2075, %v2090
      %v2114 = vadd.f32 %v2076, %v2090
      %v2115 = vadd.f32 %v2077, %v2090
      %v2116 = vadd.f32 %v2078, %v2090
      %v2117 = vadd.f32 %v2079, %v2090
      %v2118 = vadd.f32 %v2080, %v2090
      %v2119 = vadd.f32 %v2081, %v2090
      %v2120 = vadd.f32 %v2082, %v2090
      %v2121 = vadd.f32 %v2083, %v2090
      %v2122 = vadd.f32 %v2084, %v2090
      %v2123 = vadd.f32 %v2085, %v2090
      %v2124 = vmax.f32 %v2092, 0.0
      %v2125 = vmax.f32 %v2093, 0.0
      %v2126 = vmax.f32 %v2094, 0.0
      %v2127 = vmax.f32 %v2095, 0.0
      %v2128 = vmax.f32 %v2096, 0.0
      %v2129 = vmax.f32 %v2097, 0.0
      %v2130 = vmax.f32 %v2098, 0.0
      %v2131 = vmax.f32 %v2099, 0.0
      %v2132 = vmax.f32 %v2100, 0.0
      %v2133 = vmax.f32 %v2101, 0.0
      %v2134 = vmax.f32 %v2102, 0.0
      %v2135 = vmax.f32 %v2103, 0.0
      %v2136 = vmax.f32 %v2104, 0.0
      %v2137 = vmax.f32 %v2105, 0.0
      %v2138 = vmax.f32 %v2106, 0.0
      %v2139 = vmax.f32 %v2107, 0.0
      %v2140 = vmax.f32 %v2108, 0.0
      %v2141 = vmax.f32 %v2109, 0.0
      %v2142 = vmax.f32 %v2110, 0.0
      %v2143 = vmax.f32 %v2111, 0.0
      %v2144 = vmax.f32 %v2112, 0.0
      %v2145 = vmax.f32 %v2113, 0.0
      %v2146 = vmax.f32 %v2114, 0.0
      %v2147 = vmax.f32 %v2115, 0.0
      %v2148 = vmax.f32 %v2116, 0.0
      %v2149 = vmax.f32 %v2117, 0.0
      %v2150 = vmax.f32 %v2118, 0.0
      %v2151 = vmax.f32 %v2119, 0.0
      %v2152 = vmax.f32 %v2120, 0.0
      %v2153 = vmax.f32 %v2121, 0.0
      %v2154 = vmax.f32 %v2122, 0.0
      %v2155 = vmax.f32 %v2123, 0.0
      %s2156 = scalar_lea.vmem [#allocation4], 32
      %2157 = vst.msk [vmem:[%s2156 + $0x8] sm:$0xff] %vm321, %v2124
      %2158 = vst.msk [vmem:[%s2156 + $0x10] sm:$0xff] %vm321, %v2125
      %2159 = vst.msk [vmem:[%s2156 + $0x28] sm:$0xff] %vm321, %v2126
      %2160 = vst.msk [vmem:[%s2156 + $0x30] sm:$0xff] %vm321, %v2127
      %2161 = vst.msk [vmem:[%s2156 + $0x48] sm:$0xff] %vm321, %v2128
      %2162 = vst.msk [vmem:[%s2156 + $0x50] sm:$0xff] %vm321, %v2129
      %2163 = vst.msk [vmem:[%s2156 + $0x68] sm:$0xff] %vm321, %v2130
      %2164 = vst.msk [vmem:[%s2156 + $0x70] sm:$0xff] %vm321, %v2131
      %2165 = vst.msk [vmem:[%s2156 + $0x88] sm:$0xff] %vm321, %v2132
      %2166 = vst.msk [vmem:[%s2156 + $0x90] sm:$0xff] %vm321, %v2133
      %2167 = vst.msk [vmem:[%s2156 + $0xa8] sm:$0xff] %vm321, %v2134
      %2168 = vst.msk [vmem:[%s2156 + $0xb0] sm:$0xff] %vm321, %v2135
      %2169 = vst.msk [vmem:[%s2156 + $0xc8] sm:$0xff] %vm321, %v2136
      %2170 = vst.msk [vmem:[%s2156 + $0xd0] sm:$0xff] %vm321, %v2137
      %2171 = vst.msk [vmem:[%s2156 + $0xe8] sm:$0xff] %vm321, %v2138
      %2172 = vst.msk [vmem:[%s2156 + $0xf0] sm:$0xff] %vm321, %v2139
      %2173 = vst.msk [vmem:[%s2156 + $0x108] sm:$0xff] %vm321, %v2140
      %2174 = vst.msk [vmem:[%s2156 + $0x110] sm:$0xff] %vm321, %v2141
      %2175 = vst.msk [vmem:[%s2156 + $0x128] sm:$0xff] %vm321, %v2142
      %2176 = vst.msk [vmem:[%s2156 + $0x130] sm:$0xff] %vm321, %v2143
      %2177 = vst.msk [vmem:[%s2156 + $0x148] sm:$0xff] %vm321, %v2144
      %2178 = vst.msk [vmem:[%s2156 + $0x150] sm:$0xff] %vm321, %v2145
      %2179 = vst.msk [vmem:[%s2156 + $0x168] sm:$0xff] %vm321, %v2146
      %2180 = vst.msk [vmem:[%s2156 + $0x170] sm:$0xff] %vm321, %v2147
      %2181 = vst.msk [vmem:[%s2156 + $0x188] sm:$0xff] %vm321, %v2148
      %2182 = vst.msk [vmem:[%s2156 + $0x190] sm:$0xff] %vm321, %v2149
      %2183 = vst.msk [vmem:[%s2156 + $0x1a8] sm:$0xff] %vm321, %v2150
      %2184 = vst.msk [vmem:[%s2156 + $0x1b0] sm:$0xff] %vm321, %v2151
      %2185 = vst.msk [vmem:[%s2156 + $0x1c8] sm:$0xff] %vm321, %v2152
      %2186 = vst.msk [vmem:[%s2156 + $0x1d0] sm:$0xff] %vm321, %v2153
      %2187 = vst.msk [vmem:[%s2156 + $0x1e8] sm:$0xff] %vm321, %v2154
      %2188 = vst.msk [vmem:[%s2156 + $0x1f0] sm:$0xff] %vm321, %v2155
      %v2189 = vld [vmem:[%s3] sm:$0xff]
      %v2190 = vld [vmem:[%s3 + $0x8] sm:$0xff]
      %v2191 = vld [vmem:[%s3 + $0x10] sm:$0xff]
      %v2192 = vld [vmem:[%s3 + $0x18] sm:$0xff]
      %v2193 = vld [vmem:[%s3 + $0x20] sm:$0xff]
      %v2194 = vld [vmem:[%s3 + $0x28] sm:$0xff]
      %v2195 = vld [vmem:[%s3 + $0x30] sm:$0xff]
      %v2196 = vld [vmem:[%s3 + $0x38] sm:$0xff]
      %v2197 = vld [vmem:[%s3 + $0x40] sm:$0xff]
      %v2198 = vld [vmem:[%s3 + $0x48] sm:$0xff]
      %v2199 = vld [vmem:[%s3 + $0x50] sm:$0xff]
      %v2200 = vld [vmem:[%s3 + $0x58] sm:$0xff]
      %v2201 = vld [vmem:[%s3 + $0x60] sm:$0xff]
      %v2202 = vld [vmem:[%s3 + $0x68] sm:$0xff]
      %v2203 = vld [vmem:[%s3 + $0x70] sm:$0xff]
      %v2204 = vld [vmem:[%s3 + $0x78] sm:$0xff]
      %v2205 = vld [vmem:[%s3 + $0x80] sm:$0xff]
      %v2206 = vld [vmem:[%s3 + $0x88] sm:$0xff]
      %v2207 = vld [vmem:[%s3 + $0x90] sm:$0xff]
      %v2208 = vld [vmem:[%s3 + $0x98] sm:$0xff]
      %v2209 = vld [vmem:[%s3 + $0xa0] sm:$0xff]
      %v2210 = vld [vmem:[%s3 + $0xa8] sm:$0xff]
      %v2211 = vld [vmem:[%s3 + $0xb0] sm:$0xff]
      %v2212 = vld [vmem:[%s3 + $0xb8] sm:$0xff]
      %v2213 = vld [vmem:[%s3 + $0xc0] sm:$0xff]
      %v2214 = vld [vmem:[%s3 + $0xc8] sm:$0xff]
      %v2215 = vld [vmem:[%s3 + $0xd0] sm:$0xff]
      %v2216 = vld [vmem:[%s3 + $0xd8] sm:$0xff]
      %v2217 = vld [vmem:[%s3 + $0xe0] sm:$0xff]
      %v2218 = vld [vmem:[%s3 + $0xe8] sm:$0xff]
      %v2219 = vld [vmem:[%s3 + $0xf0] sm:$0xff]
      %v2220 = vld [vmem:[%s3 + $0xf8] sm:$0xff]
      %v2221 = vld [vmem:[%s3 + $0x100] sm:$0xff]
      %v2222 = vld [vmem:[%s3 + $0x108] sm:$0xff]
      %v2223 = vld [vmem:[%s3 + $0x110] sm:$0xff]
      %v2224 = vld [vmem:[%s3 + $0x118] sm:$0xff]
      %v2225 = vld [vmem:[%s4] sm:$0x1]
      %v2226 = vld [vmem:[#allocation4 + $0x7] sm:$0xff]
      %v2227 = vld [vmem:[#allocation4 + $0xf] sm:$0xff]
      %v2228 = vld [vmem:[#allocation4 + $0x27] sm:$0xff]
      %v2229 = vld [vmem:[#allocation4 + $0x2f] sm:$0xff]
      %v2230 = vld [vmem:[#allocation4 + $0x47] sm:$0xff]
      %v2231 = vld [vmem:[#allocation4 + $0x4f] sm:$0xff]
      %v2232 = vld [vmem:[#allocation4 + $0x67] sm:$0xff]
      %v2233 = vld [vmem:[#allocation4 + $0x6f] sm:$0xff]
      %v2234 = vld [vmem:[#allocation4 + $0x87] sm:$0xff]
      %v2235 = vld [vmem:[#allocation4 + $0x8f] sm:$0xff]
      %v2236 = vld [vmem:[#allocation4 + $0xa7] sm:$0xff]
      %v2237 = vld [vmem:[#allocation4 + $0xaf] sm:$0xff]
      %v2238 = vld [vmem:[#allocation4 + $0xc7] sm:$0xff]
      %v2239 = vld [vmem:[#allocation4 + $0xcf] sm:$0xff]
      %v2240 = vld [vmem:[#allocation4 + $0xe7] sm:$0xff]
      %v2241 = vld [vmem:[#allocation4 + $0xef] sm:$0xff]
      %v2242 = vld [vmem:[#allocation4 + $0x107] sm:$0xff]
      %v2243 = vld [vmem:[#allocation4 + $0x10f] sm:$0xff]
      %v2244 = vld [vmem:[#allocation4 + $0x127] sm:$0xff]
      %v2245 = vld [vmem:[#allocation4 + $0x12f] sm:$0xff]
      %v2246 = vld [vmem:[#allocation4 + $0x147] sm:$0xff]
      %v2247 = vld [vmem:[#allocation4 + $0x14f] sm:$0xff]
      %v2248 = vld [vmem:[#allocation4 + $0x167] sm:$0xff]
      %v2249 = vld [vmem:[#allocation4 + $0x16f] sm:$0xff]
      %v2250 = vld [vmem:[#allocation4 + $0x187] sm:$0xff]
      %v2251 = vld [vmem:[#allocation4 + $0x18f] sm:$0xff]
      %v2252 = vld [vmem:[#allocation4 + $0x1a7] sm:$0xff]
      %v2253 = vld [vmem:[#allocation4 + $0x1af] sm:$0xff]
      %v2254 = vld [vmem:[#allocation4 + $0x1c7] sm:$0xff]
      %v2255 = vld [vmem:[#allocation4 + $0x1cf] sm:$0xff]
      %v2256 = vld [vmem:[#allocation4 + $0x1e7] sm:$0xff]
      %v2257 = vld [vmem:[#allocation4 + $0x1ef] sm:$0xff]
      %v2258 = vld [vmem:[#allocation4 + $0x207] sm:$0xff]
      %v2259 = vld [vmem:[#allocation4 + $0x20f] sm:$0xff]
      %v2260 = vld [vmem:[#allocation4 + $0x227] sm:$0xff]
      %v2261 = vld [vmem:[#allocation4 + $0x22f] sm:$0xff]
      %2262 = vst.msk [vmem:[#allocation6] sm:$0xff] %vm321, %v2226
      %2263 = vst.msk [vmem:[#allocation6 + $0x8] sm:$0xff] %vm321, %v2227
      %2264 = vst.msk [vmem:[#allocation6 + $0x10] sm:$0xff] %vm321, %v2228
      %2265 = vst.msk [vmem:[#allocation6 + $0x18] sm:$0xff] %vm321, %v2229
      %2266 = vst.msk [vmem:[#allocation6 + $0x20] sm:$0xff] %vm321, %v2230
      %2267 = vst.msk [vmem:[#allocation6 + $0x28] sm:$0xff] %vm321, %v2231
      %2268 = vst.msk [vmem:[#allocation6 + $0x30] sm:$0xff] %vm321, %v2232
      %2269 = vst.msk [vmem:[#allocation6 + $0x38] sm:$0xff] %vm321, %v2233
      %2270 = vst.msk [vmem:[#allocation6 + $0x40] sm:$0xff] %vm321, %v2234
      %2271 = vst.msk [vmem:[#allocation6 + $0x48] sm:$0xff] %vm321, %v2235
      %2272 = vst.msk [vmem:[#allocation6 + $0x50] sm:$0xff] %vm321, %v2236
      %2273 = vst.msk [vmem:[#allocation6 + $0x58] sm:$0xff] %vm321, %v2237
      %2274 = vst.msk [vmem:[#allocation6 + $0x60] sm:$0xff] %vm321, %v2238
      %2275 = vst.msk [vmem:[#allocation6 + $0x68] sm:$0xff] %vm321, %v2239
      %2276 = vst.msk [vmem:[#allocation6 + $0x70] sm:$0xff] %vm321, %v2240
      %2277 = vst.msk [vmem:[#allocation6 + $0x78] sm:$0xff] %vm321, %v2241
      %2278 = vst.msk [vmem:[#allocation6 + $0x80] sm:$0xff] %vm321, %v2242
      %2279 = vst.msk [vmem:[#allocation6 + $0x88] sm:$0xff] %vm321, %v2243
      %2280 = vst.msk [vmem:[#allocation6 + $0x90] sm:$0xff] %vm321, %v2244
      %2281 = vst.msk [vmem:[#allocation6 + $0x98] sm:$0xff] %vm321, %v2245
      %2282 = vst.msk [vmem:[#allocation6 + $0xa0] sm:$0xff] %vm321, %v2246
      %2283 = vst.msk [vmem:[#allocation6 + $0xa8] sm:$0xff] %vm321, %v2247
      %2284 = vst.msk [vmem:[#allocation6 + $0xb0] sm:$0xff] %vm321, %v2248
      %2285 = vst.msk [vmem:[#allocation6 + $0xb8] sm:$0xff] %vm321, %v2249
      %2286 = vst.msk [vmem:[#allocation6 + $0xc0] sm:$0xff] %vm321, %v2250
      %2287 = vst.msk [vmem:[#allocation6 + $0xc8] sm:$0xff] %vm321, %v2251
      %2288 = vst.msk [vmem:[#allocation6 + $0xd0] sm:$0xff] %vm321, %v2252
      %2289 = vst.msk [vmem:[#allocation6 + $0xd8] sm:$0xff] %vm321, %v2253
      %2290 = vst.msk [vmem:[#allocation6 + $0xe0] sm:$0xff] %vm321, %v2254
      %2291 = vst.msk [vmem:[#allocation6 + $0xe8] sm:$0xff] %vm321, %v2255
      %2292 = vst.msk [vmem:[#allocation6 + $0xf0] sm:$0xff] %vm321, %v2256
      %2293 = vst.msk [vmem:[#allocation6 + $0xf8] sm:$0xff] %vm321, %v2257
      %2294 = vst.msk [vmem:[#allocation6 + $0x100] sm:$0xff] %vm321, %v2258
      %2295 = vst.msk [vmem:[#allocation6 + $0x108] sm:$0xff] %vm321, %v2259
      %2296 = vst.msk [vmem:[#allocation6 + $0x110] sm:$0xff] %vm321, %v2260
      %2297 = vst.msk [vmem:[#allocation6 + $0x118] sm:$0xff] %vm321, %v2261
      %v2298 = vld [vmem:[#allocation4 + $0x8] sm:$0xff]
      %v2299 = vld [vmem:[#allocation4 + $0x10] sm:$0xff]
      %v2300 = vld [vmem:[#allocation4 + $0x28] sm:$0xff]
      %v2301 = vld [vmem:[#allocation4 + $0x30] sm:$0xff]
      %v2302 = vld [vmem:[#allocation4 + $0x48] sm:$0xff]
      %v2303 = vld [vmem:[#allocation4 + $0x50] sm:$0xff]
      %v2304 = vld [vmem:[#allocation4 + $0x68] sm:$0xff]
      %v2305 = vld [vmem:[#allocation4 + $0x70] sm:$0xff]
      %v2306 = vld [vmem:[#allocation4 + $0x88] sm:$0xff]
      %v2307 = vld [vmem:[#allocation4 + $0x90] sm:$0xff]
      %v2308 = vld [vmem:[#allocation4 + $0xa8] sm:$0xff]
      %v2309 = vld [vmem:[#allocation4 + $0xb0] sm:$0xff]
      %v2310 = vld [vmem:[#allocation4 + $0xc8] sm:$0xff]
      %v2311 = vld [vmem:[#allocation4 + $0xd0] sm:$0xff]
      %v2312 = vld [vmem:[#allocation4 + $0xe8] sm:$0xff]
      %v2313 = vld [vmem:[#allocation4 + $0xf0] sm:$0xff]
      %v2314 = vld [vmem:[#allocation4 + $0x108] sm:$0xff]
      %v2315 = vld [vmem:[#allocation4 + $0x110] sm:$0xff]
      %v2316 = vld [vmem:[#allocation4 + $0x128] sm:$0xff]
      %v2317 = vld [vmem:[#allocation4 + $0x130] sm:$0xff]
      %v2318 = vld [vmem:[#allocation4 + $0x148] sm:$0xff]
      %v2319 = vld [vmem:[#allocation4 + $0x150] sm:$0xff]
      %v2320 = vld [vmem:[#allocation4 + $0x168] sm:$0xff]
      %v2321 = vld [vmem:[#allocation4 + $0x170] sm:$0xff]
      %v2322 = vld [vmem:[#allocation4 + $0x188] sm:$0xff]
      %v2323 = vld [vmem:[#allocation4 + $0x190] sm:$0xff]
      %v2324 = vld [vmem:[#allocation4 + $0x1a8] sm:$0xff]
      %v2325 = vld [vmem:[#allocation4 + $0x1b0] sm:$0xff]
      %v2326 = vld [vmem:[#allocation4 + $0x1c8] sm:$0xff]
      %v2327 = vld [vmem:[#allocation4 + $0x1d0] sm:$0xff]
      %v2328 = vld [vmem:[#allocation4 + $0x1e8] sm:$0xff]
      %v2329 = vld [vmem:[#allocation4 + $0x1f0] sm:$0xff]
      %v2330 = vld [vmem:[#allocation4 + $0x208] sm:$0xff]
      %v2331 = vld [vmem:[#allocation4 + $0x210] sm:$0xff]
      %v2332 = vld [vmem:[#allocation4 + $0x228] sm:$0xff]
      %v2333 = vld [vmem:[#allocation4 + $0x230] sm:$0xff]
      %2370 = vrot.lane.b32.xlu0 %v2298, 32
      %v2371 = vpop.permute.xlu0 %2370
      %2372 = vrot.lane.b32.xlu0 %v2299, 32
      %v2373 = vpop.permute.xlu0 %2372
      %2374 = vrot.lane.b32.xlu0 %v2300, 32
      %v2375 = vpop.permute.xlu0 %2374
      %2376 = vrot.lane.b32.xlu0 %v2301, 32
      %v2377 = vpop.permute.xlu0 %2376
      %2378 = vrot.lane.b32.xlu0 %v2302, 32
      %v2379 = vpop.permute.xlu0 %2378
      %2380 = vrot.lane.b32.xlu0 %v2303, 32
      %v2381 = vpop.permute.xlu0 %2380
      %2382 = vrot.lane.b32.xlu0 %v2304, 32
      %v2383 = vpop.permute.xlu0 %2382
      %2384 = vrot.lane.b32.xlu0 %v2305, 32
      %v2385 = vpop.permute.xlu0 %2384
      %2386 = vrot.lane.b32.xlu0 %v2306, 32
      %v2387 = vpop.permute.xlu0 %2386
      %2388 = vrot.lane.b32.xlu0 %v2307, 32
      %v2389 = vpop.permute.xlu0 %2388
      %2390 = vrot.lane.b32.xlu0 %v2308, 32
      %v2391 = vpop.permute.xlu0 %2390
      %2392 = vrot.lane.b32.xlu0 %v2309, 32
      %v2393 = vpop.permute.xlu0 %2392
      %2394 = vrot.lane.b32.xlu0 %v2310, 32
      %v2395 = vpop.permute.xlu0 %2394
      %2396 = vrot.lane.b32.xlu0 %v2311, 32
      %v2397 = vpop.permute.xlu0 %2396
      %2398 = vrot.lane.b32.xlu0 %v2312, 32
      %v2399 = vpop.permute.xlu0 %2398
      %2400 = vrot.lane.b32.xlu0 %v2313, 32
      %v2401 = vpop.permute.xlu0 %2400
      %2402 = vrot.lane.b32.xlu0 %v2314, 32
      %v2403 = vpop.permute.xlu0 %2402
      %2404 = vrot.lane.b32.xlu0 %v2315, 32
      %v2405 = vpop.permute.xlu0 %2404
      %2406 = vrot.lane.b32.xlu0 %v2316, 32
      %v2407 = vpop.permute.xlu0 %2406
      %2408 = vrot.lane.b32.xlu0 %v2317, 32
      %v2409 = vpop.permute.xlu0 %2408
      %2410 = vrot.lane.b32.xlu0 %v2318, 32
      %v2411 = vpop.permute.xlu0 %2410
      %2412 = vrot.lane.b32.xlu0 %v2319, 32
      %v2413 = vpop.permute.xlu0 %2412
      %2414 = vrot.lane.b32.xlu0 %v2320, 32
      %v2415 = vpop.permute.xlu0 %2414
      %2416 = vrot.lane.b32.xlu0 %v2321, 32
      %v2417 = vpop.permute.xlu0 %2416
      %2418 = vrot.lane.b32.xlu0 %v2322, 32
      %v2419 = vpop.permute.xlu0 %2418
      %2420 = vrot.lane.b32.xlu0 %v2323, 32
      %v2421 = vpop.permute.xlu0 %2420
      %2422 = vrot.lane.b32.xlu0 %v2324, 32
      %v2423 = vpop.permute.xlu0 %2422
      %2424 = vrot.lane.b32.xlu0 %v2325, 32
      %v2425 = vpop.permute.xlu0 %2424
      %2426 = vrot.lane.b32.xlu0 %v2326, 32
      %v2427 = vpop.permute.xlu0 %2426
      %2428 = vrot.lane.b32.xlu0 %v2327, 32
      %v2429 = vpop.permute.xlu0 %2428
      %2430 = vrot.lane.b32.xlu0 %v2328, 32
      %v2431 = vpop.permute.xlu0 %2430
      %2432 = vrot.lane.b32.xlu0 %v2329, 32
      %v2433 = vpop.permute.xlu0 %2432
      %2434 = vrot.lane.b32.xlu0 %v2330, 32
      %v2435 = vpop.permute.xlu0 %2434
      %2436 = vrot.lane.b32.xlu0 %v2331, 32
      %v2437 = vpop.permute.xlu0 %2436
      %2438 = vrot.lane.b32.xlu0 %v2332, 32
      %v2439 = vpop.permute.xlu0 %2438
      %2440 = vrot.lane.b32.xlu0 %v2333, 32
      %v2441 = vpop.permute.xlu0 %2440
      %vm2478 = vcmask 523520
      %2479 = vst.msk [vmem:[#allocation6] sm:$0xff] %vm2478, %v2371
      %2480 = vst.msk [vmem:[#allocation6 + $0x8] sm:$0xff] %vm2478, %v2373
      %2481 = vst.msk [vmem:[#allocation6 + $0x10] sm:$0xff] %vm2478, %v2375
      %2482 = vst.msk [vmem:[#allocation6 + $0x18] sm:$0xff] %vm2478, %v2377
      %2483 = vst.msk [vmem:[#allocation6 + $0x20] sm:$0xff] %vm2478, %v2379
      %2484 = vst.msk [vmem:[#allocation6 + $0x28] sm:$0xff] %vm2478, %v2381
      %2485 = vst.msk [vmem:[#allocation6 + $0x30] sm:$0xff] %vm2478, %v2383
      %2486 = vst.msk [vmem:[#allocation6 + $0x38] sm:$0xff] %vm2478, %v2385
      %2487 = vst.msk [vmem:[#allocation6 + $0x40] sm:$0xff] %vm2478, %v2387
      %2488 = vst.msk [vmem:[#allocation6 + $0x48] sm:$0xff] %vm2478, %v2389
      %2489 = vst.msk [vmem:[#allocation6 + $0x50] sm:$0xff] %vm2478, %v2391
      %2490 = vst.msk [vmem:[#allocation6 + $0x58] sm:$0xff] %vm2478, %v2393
      %2491 = vst.msk [vmem:[#allocation6 + $0x60] sm:$0xff] %vm2478, %v2395
      %2492 = vst.msk [vmem:[#allocation6 + $0x68] sm:$0xff] %vm2478, %v2397
      %2493 = vst.msk [vmem:[#allocation6 + $0x70] sm:$0xff] %vm2478, %v2399
      %2494 = vst.msk [vmem:[#allocation6 + $0x78] sm:$0xff] %vm2478, %v2401
      %2495 = vst.msk [vmem:[#allocation6 + $0x80] sm:$0xff] %vm2478, %v2403
      %2496 = vst.msk [vmem:[#allocation6 + $0x88] sm:$0xff] %vm2478, %v2405
      %2497 = vst.msk [vmem:[#allocation6 + $0x90] sm:$0xff] %vm2478, %v2407
      %2498 = vst.msk [vmem:[#allocation6 + $0x98] sm:$0xff] %vm2478, %v2409
      %2499 = vst.msk [vmem:[#allocation6 + $0xa0] sm:$0xff] %vm2478, %v2411
      %2500 = vst.msk [vmem:[#allocation6 + $0xa8] sm:$0xff] %vm2478, %v2413
      %2501 = vst.msk [vmem:[#allocation6 + $0xb0] sm:$0xff] %vm2478, %v2415
      %2502 = vst.msk [vmem:[#allocation6 + $0xb8] sm:$0xff] %vm2478, %v2417
      %2503 = vst.msk [vmem:[#allocation6 + $0xc0] sm:$0xff] %vm2478, %v2419
      %2504 = vst.msk [vmem:[#allocation6 + $0xc8] sm:$0xff] %vm2478, %v2421
      %2505 = vst.msk [vmem:[#allocation6 + $0xd0] sm:$0xff] %vm2478, %v2423
      %2506 = vst.msk [vmem:[#allocation6 + $0xd8] sm:$0xff] %vm2478, %v2425
      %2507 = vst.msk [vmem:[#allocation6 + $0xe0] sm:$0xff] %vm2478, %v2427
      %2508 = vst.msk [vmem:[#allocation6 + $0xe8] sm:$0xff] %vm2478, %v2429
      %2509 = vst.msk [vmem:[#allocation6 + $0xf0] sm:$0xff] %vm2478, %v2431
      %2510 = vst.msk [vmem:[#allocation6 + $0xf8] sm:$0xff] %vm2478, %v2433
      %2511 = vst.msk [vmem:[#allocation6 + $0x100] sm:$0xff] %vm2478, %v2435
      %2512 = vst.msk [vmem:[#allocation6 + $0x108] sm:$0xff] %vm2478, %v2437
      %2513 = vst.msk [vmem:[#allocation6 + $0x110] sm:$0xff] %vm2478, %v2439
      %2514 = vst.msk [vmem:[#allocation6 + $0x118] sm:$0xff] %vm2478, %v2441
      %v2515 = vld [vmem:[#allocation4 + $0x9] sm:$0xff]
      %v2516 = vld [vmem:[#allocation4 + $0x11] sm:$0xff]
      %v2517 = vld [vmem:[#allocation4 + $0x29] sm:$0xff]
      %v2518 = vld [vmem:[#allocation4 + $0x31] sm:$0xff]
      %v2519 = vld [vmem:[#allocation4 + $0x49] sm:$0xff]
      %v2520 = vld [vmem:[#allocation4 + $0x51] sm:$0xff]
      %v2521 = vld [vmem:[#allocation4 + $0x69] sm:$0xff]
      %v2522 = vld [vmem:[#allocation4 + $0x71] sm:$0xff]
      %v2523 = vld [vmem:[#allocation4 + $0x89] sm:$0xff]
      %v2524 = vld [vmem:[#allocation4 + $0x91] sm:$0xff]
      %v2525 = vld [vmem:[#allocation4 + $0xa9] sm:$0xff]
      %v2526 = vld [vmem:[#allocation4 + $0xb1] sm:$0xff]
      %v2527 = vld [vmem:[#allocation4 + $0xc9] sm:$0xff]
      %v2528 = vld [vmem:[#allocation4 + $0xd1] sm:$0xff]
      %v2529 = vld [vmem:[#allocation4 + $0xe9] sm:$0xff]
      %v2530 = vld [vmem:[#allocation4 + $0xf1] sm:$0xff]
      %v2531 = vld [vmem:[#allocation4 + $0x109] sm:$0xff]
      %v2532 = vld [vmem:[#allocation4 + $0x111] sm:$0xff]
      %v2533 = vld [vmem:[#allocation4 + $0x129] sm:$0xff]
      %v2534 = vld [vmem:[#allocation4 + $0x131] sm:$0xff]
      %v2535 = vld [vmem:[#allocation4 + $0x149] sm:$0xff]
      %v2536 = vld [vmem:[#allocation4 + $0x151] sm:$0xff]
      %v2537 = vld [vmem:[#allocation4 + $0x169] sm:$0xff]
      %v2538 = vld [vmem:[#allocation4 + $0x171] sm:$0xff]
      %v2539 = vld [vmem:[#allocation4 + $0x189] sm:$0xff]
      %v2540 = vld [vmem:[#allocation4 + $0x191] sm:$0xff]
      %v2541 = vld [vmem:[#allocation4 + $0x1a9] sm:$0xff]
      %v2542 = vld [vmem:[#allocation4 + $0x1b1] sm:$0xff]
      %v2543 = vld [vmem:[#allocation4 + $0x1c9] sm:$0xff]
      %v2544 = vld [vmem:[#allocation4 + $0x1d1] sm:$0xff]
      %v2545 = vld [vmem:[#allocation4 + $0x1e9] sm:$0xff]
      %v2546 = vld [vmem:[#allocation4 + $0x1f1] sm:$0xff]
      %v2547 = vld [vmem:[#allocation4 + $0x209] sm:$0xff]
      %v2548 = vld [vmem:[#allocation4 + $0x211] sm:$0xff]
      %v2549 = vld [vmem:[#allocation4 + $0x229] sm:$0xff]
      %v2550 = vld [vmem:[#allocation4 + $0x231] sm:$0xff]
      %2587 = vrot.lane.b32.xlu0 %v2515, 64
      %v2588 = vpop.permute.xlu0 %2587
      %2589 = vrot.lane.b32.xlu0 %v2516, 64
      %v2590 = vpop.permute.xlu0 %2589
      %2591 = vrot.lane.b32.xlu0 %v2517, 64
      %v2592 = vpop.permute.xlu0 %2591
      %2593 = vrot.lane.b32.xlu0 %v2518, 64
      %v2594 = vpop.permute.xlu0 %2593
      %2595 = vrot.lane.b32.xlu0 %v2519, 64
      %v2596 = vpop.permute.xlu0 %2595
      %2597 = vrot.lane.b32.xlu0 %v2520, 64
      %v2598 = vpop.permute.xlu0 %2597
      %2599 = vrot.lane.b32.xlu0 %v2521, 64
      %v2600 = vpop.permute.xlu0 %2599
      %2601 = vrot.lane.b32.xlu0 %v2522, 64
      %v2602 = vpop.permute.xlu0 %2601
      %2603 = vrot.lane.b32.xlu0 %v2523, 64
      %v2604 = vpop.permute.xlu0 %2603
      %2605 = vrot.lane.b32.xlu0 %v2524, 64
      %v2606 = vpop.permute.xlu0 %2605
      %2607 = vrot.lane.b32.xlu0 %v2525, 64
      %v2608 = vpop.permute.xlu0 %2607
      %2609 = vrot.lane.b32.xlu0 %v2526, 64
      %v2610 = vpop.permute.xlu0 %2609
      %2611 = vrot.lane.b32.xlu0 %v2527, 64
      %v2612 = vpop.permute.xlu0 %2611
      %2613 = vrot.lane.b32.xlu0 %v2528, 64
      %v2614 = vpop.permute.xlu0 %2613
      %2615 = vrot.lane.b32.xlu0 %v2529, 64
      %v2616 = vpop.permute.xlu0 %2615
      %2617 = vrot.lane.b32.xlu0 %v2530, 64
      %v2618 = vpop.permute.xlu0 %2617
      %2619 = vrot.lane.b32.xlu0 %v2531, 64
      %v2620 = vpop.permute.xlu0 %2619
      %2621 = vrot.lane.b32.xlu0 %v2532, 64
      %v2622 = vpop.permute.xlu0 %2621
      %2623 = vrot.lane.b32.xlu0 %v2533, 64
      %v2624 = vpop.permute.xlu0 %2623
      %2625 = vrot.lane.b32.xlu0 %v2534, 64
      %v2626 = vpop.permute.xlu0 %2625
      %2627 = vrot.lane.b32.xlu0 %v2535, 64
      %v2628 = vpop.permute.xlu0 %2627
      %2629 = vrot.lane.b32.xlu0 %v2536, 64
      %v2630 = vpop.permute.xlu0 %2629
      %2631 = vrot.lane.b32.xlu0 %v2537, 64
      %v2632 = vpop.permute.xlu0 %2631
      %2633 = vrot.lane.b32.xlu0 %v2538, 64
      %v2634 = vpop.permute.xlu0 %2633
      %2635 = vrot.lane.b32.xlu0 %v2539, 64
      %v2636 = vpop.permute.xlu0 %2635
      %2637 = vrot.lane.b32.xlu0 %v2540, 64
      %v2638 = vpop.permute.xlu0 %2637
      %2639 = vrot.lane.b32.xlu0 %v2541, 64
      %v2640 = vpop.permute.xlu0 %2639
      %2641 = vrot.lane.b32.xlu0 %v2542, 64
      %v2642 = vpop.permute.xlu0 %2641
      %2643 = vrot.lane.b32.xlu0 %v2543, 64
      %v2644 = vpop.permute.xlu0 %2643
      %2645 = vrot.lane.b32.xlu0 %v2544, 64
      %v2646 = vpop.permute.xlu0 %2645
      %2647 = vrot.lane.b32.xlu0 %v2545, 64
      %v2648 = vpop.permute.xlu0 %2647
      %2649 = vrot.lane.b32.xlu0 %v2546, 64
      %v2650 = vpop.permute.xlu0 %2649
      %2651 = vrot.lane.b32.xlu0 %v2547, 64
      %v2652 = vpop.permute.xlu0 %2651
      %2653 = vrot.lane.b32.xlu0 %v2548, 64
      %v2654 = vpop.permute.xlu0 %2653
      %2655 = vrot.lane.b32.xlu0 %v2549, 64
      %v2656 = vpop.permute.xlu0 %2655
      %2657 = vrot.lane.b32.xlu0 %v2550, 64
      %v2658 = vpop.permute.xlu0 %2657
      %vm2695 = vcmask 785920
      %2696 = vst.msk [vmem:[#allocation6] sm:$0xff] %vm2695, %v2588
      %2697 = vst.msk [vmem:[#allocation6 + $0x8] sm:$0xff] %vm2695, %v2590
      %2698 = vst.msk [vmem:[#allocation6 + $0x10] sm:$0xff] %vm2695, %v2592
      %2699 = vst.msk [vmem:[#allocation6 + $0x18] sm:$0xff] %vm2695, %v2594
      %2700 = vst.msk [vmem:[#allocation6 + $0x20] sm:$0xff] %vm2695, %v2596
      %2701 = vst.msk [vmem:[#allocation6 + $0x28] sm:$0xff] %vm2695, %v2598
      %2702 = vst.msk [vmem:[#allocation6 + $0x30] sm:$0xff] %vm2695, %v2600
      %2703 = vst.msk [vmem:[#allocation6 + $0x38] sm:$0xff] %vm2695, %v2602
      %2704 = vst.msk [vmem:[#allocation6 + $0x40] sm:$0xff] %vm2695, %v2604
      %2705 = vst.msk [vmem:[#allocation6 + $0x48] sm:$0xff] %vm2695, %v2606
      %2706 = vst.msk [vmem:[#allocation6 + $0x50] sm:$0xff] %vm2695, %v2608
      %2707 = vst.msk [vmem:[#allocation6 + $0x58] sm:$0xff] %vm2695, %v2610
      %2708 = vst.msk [vmem:[#allocation6 + $0x60] sm:$0xff] %vm2695, %v2612
      %2709 = vst.msk [vmem:[#allocation6 + $0x68] sm:$0xff] %vm2695, %v2614
      %2710 = vst.msk [vmem:[#allocation6 + $0x70] sm:$0xff] %vm2695, %v2616
      %2711 = vst.msk [vmem:[#allocation6 + $0x78] sm:$0xff] %vm2695, %v2618
      %2712 = vst.msk [vmem:[#allocation6 + $0x80] sm:$0xff] %vm2695, %v2620
      %2713 = vst.msk [vmem:[#allocation6 + $0x88] sm:$0xff] %vm2695, %v2622
      %2714 = vst.msk [vmem:[#allocation6 + $0x90] sm:$0xff] %vm2695, %v2624
      %2715 = vst.msk [vmem:[#allocation6 + $0x98] sm:$0xff] %vm2695, %v2626
      %2716 = vst.msk [vmem:[#allocation6 + $0xa0] sm:$0xff] %vm2695, %v2628
      %2717 = vst.msk [vmem:[#allocation6 + $0xa8] sm:$0xff] %vm2695, %v2630
      %2718 = vst.msk [vmem:[#allocation6 + $0xb0] sm:$0xff] %vm2695, %v2632
      %2719 = vst.msk [vmem:[#allocation6 + $0xb8] sm:$0xff] %vm2695, %v2634
      %2720 = vst.msk [vmem:[#allocation6 + $0xc0] sm:$0xff] %vm2695, %v2636
      %2721 = vst.msk [vmem:[#allocation6 + $0xc8] sm:$0xff] %vm2695, %v2638
      %2722 = vst.msk [vmem:[#allocation6 + $0xd0] sm:$0xff] %vm2695, %v2640
      %2723 = vst.msk [vmem:[#allocation6 + $0xd8] sm:$0xff] %vm2695, %v2642
      %2724 = vst.msk [vmem:[#allocation6 + $0xe0] sm:$0xff] %vm2695, %v2644
      %2725 = vst.msk [vmem:[#allocation6 + $0xe8] sm:$0xff] %vm2695, %v2646
      %2726 = vst.msk [vmem:[#allocation6 + $0xf0] sm:$0xff] %vm2695, %v2648
      %2727 = vst.msk [vmem:[#allocation6 + $0xf8] sm:$0xff] %vm2695, %v2650
      %2728 = vst.msk [vmem:[#allocation6 + $0x100] sm:$0xff] %vm2695, %v2652
      %2729 = vst.msk [vmem:[#allocation6 + $0x108] sm:$0xff] %vm2695, %v2654
      %2730 = vst.msk [vmem:[#allocation6 + $0x110] sm:$0xff] %vm2695, %v2656
      %2731 = vst.msk [vmem:[#allocation6 + $0x118] sm:$0xff] %vm2695, %v2658
      %v2732 = vld [vmem:[#allocation6] sm:$0xff]
      %v2733 = vld [vmem:[#allocation6 + $0x8] sm:$0xff]
      %v2734 = vld [vmem:[#allocation6 + $0x10] sm:$0xff]
      %v2735 = vld [vmem:[#allocation6 + $0x18] sm:$0xff]
      %v2736 = vld [vmem:[#allocation6 + $0x20] sm:$0xff]
      %v2737 = vld [vmem:[#allocation6 + $0x28] sm:$0xff]
      %v2738 = vld [vmem:[#allocation6 + $0x30] sm:$0xff]
      %v2739 = vld [vmem:[#allocation6 + $0x38] sm:$0xff]
      %v2740 = vld [vmem:[#allocation6 + $0x40] sm:$0xff]
      %v2741 = vld [vmem:[#allocation6 + $0x48] sm:$0xff]
      %v2742 = vld [vmem:[#allocation6 + $0x50] sm:$0xff]
      %v2743 = vld [vmem:[#allocation6 + $0x58] sm:$0xff]
      %v2744 = vld [vmem:[#allocation6 + $0x60] sm:$0xff]
      %v2745 = vld [vmem:[#allocation6 + $0x68] sm:$0xff]
      %v2746 = vld [vmem:[#allocation6 + $0x70] sm:$0xff]
      %v2747 = vld [vmem:[#allocation6 + $0x78] sm:$0xff]
      %v2748 = vld [vmem:[#allocation6 + $0x80] sm:$0xff]
      %v2749 = vld [vmem:[#allocation6 + $0x88] sm:$0xff]
      %v2750 = vld [vmem:[#allocation6 + $0x90] sm:$0xff]
      %v2751 = vld [vmem:[#allocation6 + $0x98] sm:$0xff]
      %v2752 = vld [vmem:[#allocation6 + $0xa0] sm:$0xff]
      %v2753 = vld [vmem:[#allocation6 + $0xa8] sm:$0xff]
      %v2754 = vld [vmem:[#allocation6 + $0xb0] sm:$0xff]
      %v2755 = vld [vmem:[#allocation6 + $0xb8] sm:$0xff]
      %v2756 = vld [vmem:[#allocation6 + $0xc0] sm:$0xff]
      %v2757 = vld [vmem:[#allocation6 + $0xc8] sm:$0xff]
      %v2758 = vld [vmem:[#allocation6 + $0xd0] sm:$0xff]
      %v2759 = vld [vmem:[#allocation6 + $0xd8] sm:$0xff]
      %v2760 = vld [vmem:[#allocation6 + $0xe0] sm:$0xff]
      %v2761 = vld [vmem:[#allocation6 + $0xe8] sm:$0xff]
      %v2762 = vld [vmem:[#allocation6 + $0xf0] sm:$0xff]
      %v2763 = vld [vmem:[#allocation6 + $0xf8] sm:$0xff]
      %s2764 = scalar_lea.vmem [#allocation6], 16
      %v2765 = vld [vmem:[%s2764] sm:$0xff]
      %v2766 = vld [vmem:[%s2764 + $0x8] sm:$0xff]
      %v2767 = vld [vmem:[%s2764 + $0x10] sm:$0xff]
      %v2768 = vld [vmem:[%s2764 + $0x18] sm:$0xff]
      %v2769 = vld [vmem:[%s2764 + $0x20] sm:$0xff]
      %v2770 = vld [vmem:[%s2764 + $0x28] sm:$0xff]
      %v2771 = vld [vmem:[%s2764 + $0x30] sm:$0xff]
      %v2772 = vld [vmem:[%s2764 + $0x38] sm:$0xff]
      %v2773 = vld [vmem:[%s2764 + $0x40] sm:$0xff]
      %v2774 = vld [vmem:[%s2764 + $0x48] sm:$0xff]
      %v2775 = vld [vmem:[%s2764 + $0x50] sm:$0xff]
      %v2776 = vld [vmem:[%s2764 + $0x58] sm:$0xff]
      %v2777 = vld [vmem:[%s2764 + $0x60] sm:$0xff]
      %v2778 = vld [vmem:[%s2764 + $0x68] sm:$0xff]
      %v2779 = vld [vmem:[%s2764 + $0x70] sm:$0xff]
      %v2780 = vld [vmem:[%s2764 + $0x78] sm:$0xff]
      %v2781 = vld [vmem:[%s2764 + $0x80] sm:$0xff]
      %v2782 = vld [vmem:[%s2764 + $0x88] sm:$0xff]
      %v2783 = vld [vmem:[%s2764 + $0x90] sm:$0xff]
      %v2784 = vld [vmem:[%s2764 + $0x98] sm:$0xff]
      %v2785 = vld [vmem:[%s2764 + $0xa0] sm:$0xff]
      %v2786 = vld [vmem:[%s2764 + $0xa8] sm:$0xff]
      %v2787 = vld [vmem:[%s2764 + $0xb0] sm:$0xff]
      %v2788 = vld [vmem:[%s2764 + $0xb8] sm:$0xff]
      %v2789 = vld [vmem:[%s2764 + $0xc0] sm:$0xff]
      %v2790 = vld [vmem:[%s2764 + $0xc8] sm:$0xff]
      %v2791 = vld [vmem:[%s2764 + $0xd0] sm:$0xff]
      %v2792 = vld [vmem:[%s2764 + $0xd8] sm:$0xff]
      %v2793 = vld [vmem:[%s2764 + $0xe0] sm:$0xff]
      %v2794 = vld [vmem:[%s2764 + $0xe8] sm:$0xff]
      %v2795 = vld [vmem:[%s2764 + $0xf0] sm:$0xff]
      %v2796 = vld [vmem:[%s2764 + $0xf8] sm:$0xff]
      %vm2797 = vcmask 785408
      %v2799 = vsel %vm2797, %v2765, 0
      %v2802 = vsel %vm2797, %v2766, 0
      %v2805 = vsel %vm2797, %v2767, 0
      %v2808 = vsel %vm2797, %v2768, 0
      %v2811 = vsel %vm2797, %v2769, 0
      %v2814 = vsel %vm2797, %v2770, 0
      %v2817 = vsel %vm2797, %v2771, 0
      %v2820 = vsel %vm2797, %v2772, 0
      %v2823 = vsel %vm2797, %v2773, 0
      %v2826 = vsel %vm2797, %v2774, 0
      %v2829 = vsel %vm2797, %v2775, 0
      %v2832 = vsel %vm2797, %v2776, 0
      %v2835 = vsel %vm2797, %v2777, 0
      %v2838 = vsel %vm2797, %v2778, 0
      %v2841 = vsel %vm2797, %v2779, 0
      %v2844 = vsel %vm2797, %v2780, 0
      %v2847 = vsel %vm2797, %v2781, 0
      %v2850 = vsel %vm2797, %v2782, 0
      %v2853 = vsel %vm2797, %v2783, 0
      %v2856 = vsel %vm2797, %v2784, 0
      %v2859 = vsel %vm2797, %v2785, 0
      %v2862 = vsel %vm2797, %v2786, 0
      %v2865 = vsel %vm2797, %v2787, 0
      %v2868 = vsel %vm2797, %v2788, 0
      %v2871 = vsel %vm2797, %v2789, 0
      %v2874 = vsel %vm2797, %v2790, 0
      %v2877 = vsel %vm2797, %v2791, 0
      %v2880 = vsel %vm2797, %v2792, 0
      %v2883 = vsel %vm2797, %v2793, 0
      %v2886 = vsel %vm2797, %v2794, 0
      %v2889 = vsel %vm2797, %v2795, 0
      %v2892 = vsel %vm2797, %v2796, 0
      %2894 = vmatprep.subr.mxu0 0.0
      %2895 = vmatpush1.msra.mxu0 %v2201
      %2896 = vmatprep.subr.mxu0 0.0
      %2897 = vmatpush1.msra.mxu0 %v2202
      %2898 = vmatprep.subr.mxu0 0.0
      %2899 = vmatpush1.msra.mxu0 %v2203
      %2900 = vmatprep.subr.mxu0 0.0
      %2901 = vmatpush1.msra.mxu0 %v2204
      %2902 = vmatprep.subr.mxu0 0.0
      %2903 = vmatpush1.msra.mxu0 %v2205
      %2904 = vmatprep.subr.mxu0 0.0
      %2905 = vmatpush1.msra.mxu0 %v2206
      %2906 = vmatprep.subr.mxu0 0.0
      %2907 = vmatpush1.msra.mxu0 %v2207
      %2908 = vmatprep.subr.mxu0 0.0
      %2909 = vmatpush1.msra.mxu0 %v2208
      %2910 = vmatprep.subr.mxu0 0.0
      %2911 = vmatpush1.msra.mxu0 %v2209
      %2912 = vmatprep.subr.mxu0 0.0
      %2913 = vmatpush1.msra.mxu0 %v2210
      %2914 = vmatprep.subr.mxu0 0.0
      %2915 = vmatpush1.msra.mxu0 %v2211
      %2916 = vmatprep.subr.mxu0 0.0
      %2917 = vmatpush1.msra.mxu0 %v2212
      %2918 = vmatprep.subr.mxu0 0.0
      %2919 = vmatpush1.msra.mxu0 0.0
      %2920 = vmatprep.subr.mxu0 0.0
      %2921 = vmatpush1.msra.mxu0 0.0
      %2922 = vmatprep.subr.mxu0 0.0
      %2923 = vmatpush1.msra.mxu0 0.0
      %2924 = vmatprep.subr.mxu0 0.0
      %2925 = vmatpush1.msra.mxu0 0.0
      %2926 = vmatprep.subr.mxu0 0.0
      %2927 = vmatpush1.msra.mxu0 0.0
      %2928 = vmatprep.subr.mxu0 0.0
      %2929 = vmatpush1.msra.mxu0 0.0
      %2930 = vmatprep.subr.mxu0 0.0
      %2931 = vmatpush1.msra.mxu0 0.0
      %2932 = vmatprep.subr.mxu0 0.0
      %2933 = vmatpush1.msra.mxu0 0.0
      %2934 = vmatprep.subr.mxu0 0.0
      %2935 = vmatpush1.msra.mxu0 0.0
      %2936 = vmatprep.subr.mxu0 0.0
      %2937 = vmatpush1.msra.mxu0 0.0
      %2938 = vmatprep.subr.mxu0 0.0
      %2939 = vmatpush1.msra.mxu0 0.0
      %2940 = vmatprep.subr.mxu0 0.0
      %2941 = vmatpush1.msra.mxu0 0.0
      %2942 = vmatprep.subr.mxu0 0.0
      %2943 = vmatpush1.msra.mxu0 0.0
      %2944 = vmatprep.subr.mxu0 0.0
      %2945 = vmatpush1.msra.mxu0 0.0
      %2946 = vmatprep.subr.mxu0 0.0
      %2947 = vmatpush1.msra.mxu0 0.0
      %2948 = vmatprep.subr.mxu0 0.0
      %2949 = vmatpush1.msra.mxu0 0.0
      %2950 = vmatprep.subr.mxu0 0.0
      %2951 = vmatpush1.msra.mxu0 0.0
      %2952 = vmatprep.subr.mxu0 0.0
      %2953 = vmatpush1.msra.mxu0 0.0
      %2954 = vmatprep.subr.mxu0 0.0
      %2955 = vmatpush1.msra.mxu0 0.0
      %2956 = vmatprep.subr.mxu0 0.0
      %2957 = vmatpush1.msra.mxu0 0.0
      %2958 = vmatprep.mubr.f32.mxu0 0.0
      %2959 = vmatmul.mubr.f32.gmra.mrb[0].mxu0 %v2799
      %v2960 = vpop.f32.mrb[0].mxu0
      %v2961 = vadd.f32 0.0, %v2960
      %v2962 = vpop.f32.mrb[0].mxu0
      %2963 = vmatprep.mubr.f32.mxu0 0.0
      %2964 = vmatmul.mubr.f32.gmra.mrb[0].mxu0 %v2802
      %v2965 = vpop.f32.mrb[0].mxu0
      %v2966 = vadd.f32 0.0, %v2965
      %v2967 = vpop.f32.mrb[0].mxu0
      %2968 = vmatprep.mubr.f32.mxu0 0.0
      %2969 = vmatmul.mubr.f32.gmra.mrb[0].mxu0 %v2805
      %v2970 = vpop.f32.mrb[0].mxu0
      %v2971 = vadd.f32 0.0, %v2970
      %v2972 = vpop.f32.mrb[0].mxu0
      %2973 = vmatprep.mubr.f32.mxu0 0.0
      %2974 = vmatmul.mubr.f32.gmra.mrb[0].mxu0 %v2808
      %v2975 = vpop.f32.mrb[0].mxu0
      %v2976 = vadd.f32 0.0, %v2975
      %v2977 = vpop.f32.mrb[0].mxu0
      %2978 = vmatprep.mubr.f32.mxu0 0.0
      %2979 = vmatmul.mubr.f32.gmra.mrb[0].mxu0 %v2811
      %v2980 = vpop.f32.mrb[0].mxu0
      %v2981 = vadd.f32 0.0, %v2980
      %v2982 = vpop.f32.mrb[0].mxu0
      %2983 = vmatprep.mubr.f32.mxu0 0.0
      %2984 = vmatmul.mubr.f32.gmra.mrb[0].mxu0 %v2814
      %v2985 = vpop.f32.mrb[0].mxu0
      %v2986 = vadd.f32 0.0, %v2985
      %v2987 = vpop.f32.mrb[0].mxu0
      %2988 = vmatprep.mubr.f32.mxu0 0.0
      %2989 = vmatmul.mubr.f32.gmra.mrb[0].mxu0 %v2817
      %v2990 = vpop.f32.mrb[0].mxu0
      %v2991 = vadd.f32 0.0, %v2990
      %v2992 = vpop.f32.mrb[0].mxu0
      %2993 = vmatprep.mubr.f32.mxu0 0.0
      %2994 = vmatmul.mubr.f32.gmra.mrb[0].mxu0 %v2820
      %v2995 = vpop.f32.mrb[0].mxu0
      %v2996 = vadd.f32 0.0, %v2995
      %v2997 = vpop.f32.mrb[0].mxu0
      %2998 = vmatprep.mubr.f32.mxu0 0.0
      %2999 = vmatmul.mubr.f32.gmra.mrb[0].mxu0 %v2823
      %v3000 = vpop.f32.mrb[0].mxu0
      %v3001 = vadd.f32 0.0, %v3000
      %v3002 = vpop.f32.mrb[0].mxu0
      %3003 = vmatprep.mubr.f32.mxu0 0.0
      %3004 = vmatmul.mubr.f32.gmra.mrb[0].mxu0 %v2826
      %v3005 = vpop.f32.mrb[0].mxu0
      %v3006 = vadd.f32 0.0, %v3005
      %v3007 = vpop.f32.mrb[0].mxu0
      %3008 = vmatprep.mubr.f32.mxu0 0.0
      %3009 = vmatmul.mubr.f32.gmra.mrb[0].mxu0 %v2829
      %v3010 = vpop.f32.mrb[0].mxu0
      %v3011 = vadd.f32 0.0, %v3010
      %v3012 = vpop.f32.mrb[0].mxu0
      %3013 = vmatprep.mubr.f32.mxu0 0.0
      %3014 = vmatmul.mubr.f32.gmra.mrb[0].mxu0 %v2832
      %v3015 = vpop.f32.mrb[0].mxu0
      %v3016 = vadd.f32 0.0, %v3015
      %v3017 = vpop.f32.mrb[0].mxu0
      %3018 = vmatprep.mubr.f32.mxu0 0.0
      %3019 = vmatmul.mubr.f32.gmra.mrb[0].mxu0 %v2835
      %v3020 = vpop.f32.mrb[0].mxu0
      %v3021 = vadd.f32 0.0, %v3020
      %v3022 = vpop.f32.mrb[0].mxu0
      %3023 = vmatprep.mubr.f32.mxu0 0.0
      %3024 = vmatmul.mubr.f32.gmra.mrb[0].mxu0 %v2838
      %v3025 = vpop.f32.mrb[0].mxu0
      %v3026 = vadd.f32 0.0, %v3025
      %v3027 = vpop.f32.mrb[0].mxu0
      %3028 = vmatprep.mubr.f32.mxu0 0.0
      %3029 = vmatmul.mubr.f32.gmra.mrb[0].mxu0 %v2841
      %v3030 = vpop.f32.mrb[0].mxu0
      %v3031 = vadd.f32 0.0, %v3030
      %v3032 = vpop.f32.mrb[0].mxu0
      %3033 = vmatprep.mubr.f32.mxu0 0.0
      %3034 = vmatmul.mubr.f32.gmra.mrb[0].mxu0 %v2844
      %v3035 = vpop.f32.mrb[0].mxu0
      %v3036 = vadd.f32 0.0, %v3035
      %v3037 = vpop.f32.mrb[0].mxu0
      %3038 = vmatprep.mubr.f32.mxu0 0.0
      %3039 = vmatmul.mubr.f32.gmra.mrb[0].mxu0 %v2847
      %v3040 = vpop.f32.mrb[0].mxu0
      %v3041 = vadd.f32 0.0, %v3040
      %v3042 = vpop.f32.mrb[0].mxu0
      %3043 = vmatprep.mubr.f32.mxu0 0.0
      %3044 = vmatmul.mubr.f32.gmra.mrb[0].mxu0 %v2850
      %v3045 = vpop.f32.mrb[0].mxu0
      %v3046 = vadd.f32 0.0, %v3045
      %v3047 = vpop.f32.mrb[0].mxu0
      %3048 = vmatprep.mubr.f32.mxu0 0.0
      %3049 = vmatmul.mubr.f32.gmra.mrb[0].mxu0 %v2853
      %v3050 = vpop.f32.mrb[0].mxu0
      %v3051 = vadd.f32 0.0, %v3050
      %v3052 = vpop.f32.mrb[0].mxu0
      %3053 = vmatprep.mubr.f32.mxu0 0.0
      %3054 = vmatmul.mubr.f32.gmra.mrb[0].mxu0 %v2856
      %v3055 = vpop.f32.mrb[0].mxu0
      %v3056 = vadd.f32 0.0, %v3055
      %v3057 = vpop.f32.mrb[0].mxu0
      %3058 = vmatprep.mubr.f32.mxu0 0.0
      %3059 = vmatmul.mubr.f32.gmra.mrb[0].mxu0 %v2859
      %v3060 = vpop.f32.mrb[0].mxu0
      %v3061 = vadd.f32 0.0, %v3060
      %v3062 = vpop.f32.mrb[0].mxu0
      %3063 = vmatprep.mubr.f32.mxu0 0.0
      %3064 = vmatmul.mubr.f32.gmra.mrb[0].mxu0 %v2862
      %v3065 = vpop.f32.mrb[0].mxu0
      %v3066 = vadd.f32 0.0, %v3065
      %v3067 = vpop.f32.mrb[0].mxu0
      %3068 = vmatprep.mubr.f32.mxu0 0.0
      %3069 = vmatmul.mubr.f32.gmra.mrb[0].mxu0 %v2865
      %v3070 = vpop.f32.mrb[0].mxu0
      %v3071 = vadd.f32 0.0, %v3070
      %v3072 = vpop.f32.mrb[0].mxu0
      %3073 = vmatprep.mubr.f32.mxu0 0.0
      %3074 = vmatmul.mubr.f32.gmra.mrb[0].mxu0 %v2868
      %v3075 = vpop.f32.mrb[0].mxu0
      %v3076 = vadd.f32 0.0, %v3075
      %v3077 = vpop.f32.mrb[0].mxu0
      %3078 = vmatprep.mubr.f32.mxu0 0.0
      %3079 = vmatmul.mubr.f32.gmra.mrb[0].mxu0 %v2871
      %v3080 = vpop.f32.mrb[0].mxu0
      %v3081 = vadd.f32 0.0, %v3080
      %v3082 = vpop.f32.mrb[0].mxu0
      %3083 = vmatprep.mubr.f32.mxu0 0.0
      %3084 = vmatmul.mubr.f32.gmra.mrb[0].mxu0 %v2874
      %v3085 = vpop.f32.mrb[0].mxu0
      %v3086 = vadd.f32 0.0, %v3085
      %v3087 = vpop.f32.mrb[0].mxu0
      %3088 = vmatprep.mubr.f32.mxu0 0.0
      %3089 = vmatmul.mubr.f32.gmra.mrb[0].mxu0 %v2877
      %v3090 = vpop.f32.mrb[0].mxu0
      %v3091 = vadd.f32 0.0, %v3090
      %v3092 = vpop.f32.mrb[0].mxu0
      %3093 = vmatprep.mubr.f32.mxu0 0.0
      %3094 = vmatmul.mubr.f32.gmra.mrb[0].mxu0 %v2880
      %v3095 = vpop.f32.mrb[0].mxu0
      %v3096 = vadd.f32 0.0, %v3095
      %v3097 = vpop.f32.mrb[0].mxu0
      %3098 = vmatprep.mubr.f32.mxu0 0.0
      %3099 = vmatmul.mubr.f32.gmra.mrb[0].mxu0 %v2883
      %v3100 = vpop.f32.mrb[0].mxu0
      %v3101 = vadd.f32 0.0, %v3100
      %v3102 = vpop.f32.mrb[0].mxu0
      %3103 = vmatprep.mubr.f32.mxu0 0.0
      %3104 = vmatmul.mubr.f32.gmra.mrb[0].mxu0 %v2886
      %v3105 = vpop.f32.mrb[0].mxu0
      %v3106 = vadd.f32 0.0, %v3105
      %v3107 = vpop.f32.mrb[0].mxu0
      %3108 = vmatprep.mubr.f32.mxu0 0.0
      %3109 = vmatmul.mubr.f32.gmra.mrb[0].mxu0 %v2889
      %v3110 = vpop.f32.mrb[0].mxu0
      %v3111 = vadd.f32 0.0, %v3110
      %v3112 = vpop.f32.mrb[0].mxu0
      %3113 = vmatprep.mubr.f32.mxu0 0.0
      %3114 = vmatmul.mubr.f32.gmra.mrb[0].mxu0 %v2892
      %v3115 = vpop.f32.mrb[0].mxu0
      %v3116 = vadd.f32 0.0, %v3115
      %v3117 = vpop.f32.mrb[0].mxu0
      %3118 = vdwg.mxu0
      %v3120 = vsel %vm2797, %v2732, 0
      %v3123 = vsel %vm2797, %v2733, 0
      %v3126 = vsel %vm2797, %v2734, 0
      %v3129 = vsel %vm2797, %v2735, 0
      %v3132 = vsel %vm2797, %v2736, 0
      %v3135 = vsel %vm2797, %v2737, 0
      %v3138 = vsel %vm2797, %v2738, 0
      %v3141 = vsel %vm2797, %v2739, 0
      %v3144 = vsel %vm2797, %v2740, 0
      %v3147 = vsel %vm2797, %v2741, 0
      %v3150 = vsel %vm2797, %v2742, 0
      %v3153 = vsel %vm2797, %v2743, 0
      %v3156 = vsel %vm2797, %v2744, 0
      %v3159 = vsel %vm2797, %v2745, 0
      %v3162 = vsel %vm2797, %v2746, 0
      %v3165 = vsel %vm2797, %v2747, 0
      %v3168 = vsel %vm2797, %v2748, 0
      %v3171 = vsel %vm2797, %v2749, 0
      %v3174 = vsel %vm2797, %v2750, 0
      %v3177 = vsel %vm2797, %v2751, 0
      %v3180 = vsel %vm2797, %v2752, 0
      %v3183 = vsel %vm2797, %v2753, 0
      %v3186 = vsel %vm2797, %v2754, 0
      %v3189 = vsel %vm2797, %v2755, 0
      %v3192 = vsel %vm2797, %v2756, 0
      %v3195 = vsel %vm2797, %v2757, 0
      %v3198 = vsel %vm2797, %v2758, 0
      %v3201 = vsel %vm2797, %v2759, 0
      %v3204 = vsel %vm2797, %v2760, 0
      %v3207 = vsel %vm2797, %v2761, 0
      %v3210 = vsel %vm2797, %v2762, 0
      %v3213 = vsel %vm2797, %v2763, 0
      %3215 = vmatprep.subr.mxu0 0.0
      %3216 = vmatpush1.msra.mxu0 %v2189
      %3217 = vmatprep.subr.mxu0 0.0
      %3218 = vmatpush1.msra.mxu0 %v2190
      %3219 = vmatprep.subr.mxu0 0.0
      %3220 = vmatpush1.msra.mxu0 %v2191
      %3221 = vmatprep.subr.mxu0 0.0
      %3222 = vmatpush1.msra.mxu0 %v2192
      %3223 = vmatprep.subr.mxu0 0.0
      %3224 = vmatpush1.msra.mxu0 %v2193
      %3225 = vmatprep.subr.mxu0 0.0
      %3226 = vmatpush1.msra.mxu0 %v2194
      %3227 = vmatprep.subr.mxu0 0.0
      %3228 = vmatpush1.msra.mxu0 %v2195
      %3229 = vmatprep.subr.mxu0 0.0
      %3230 = vmatpush1.msra.mxu0 %v2196
      %3231 = vmatprep.subr.mxu0 0.0
      %3232 = vmatpush1.msra.mxu0 %v2197
      %3233 = vmatprep.subr.mxu0 0.0
      %3234 = vmatpush1.msra.mxu0 %v2198
      %3235 = vmatprep.subr.mxu0 0.0
      %3236 = vmatpush1.msra.mxu0 %v2199
      %3237 = vmatprep.subr.mxu0 0.0
      %3238 = vmatpush1.msra.mxu0 %v2200
      %3239 = vmatprep.subr.mxu0 0.0
      %3240 = vmatpush1.msra.mxu0 0.0
      %3241 = vmatprep.subr.mxu0 0.0
      %3242 = vmatpush1.msra.mxu0 0.0
      %3243 = vmatprep.subr.mxu0 0.0
      %3244 = vmatpush1.msra.mxu0 0.0
      %3245 = vmatprep.subr.mxu0 0.0
      %3246 = vmatpush1.msra.mxu0 0.0
      %3247 = vmatprep.subr.mxu0 0.0
      %3248 = vmatpush1.msra.mxu0 0.0
      %3249 = vmatprep.subr.mxu0 0.0
      %3250 = vmatpush1.msra.mxu0 0.0
      %3251 = vmatprep.subr.mxu0 0.0
      %3252 = vmatpush1.msra.mxu0 0.0
      %3253 = vmatprep.subr.mxu0 0.0
      %3254 = vmatpush1.msra.mxu0 0.0
      %3255 = vmatprep.subr.mxu0 0.0
      %3256 = vmatpush1.msra.mxu0 0.0
      %3257 = vmatprep.subr.mxu0 0.0
      %3258 = vmatpush1.msra.mxu0 0.0
      %3259 = vmatprep.subr.mxu0 0.0
      %3260 = vmatpush1.msra.mxu0 0.0
      %3261 = vmatprep.subr.mxu0 0.0
      %3262 = vmatpush1.msra.mxu0 0.0
      %3263 = vmatprep.subr.mxu0 0.0
      %3264 = vmatpush1.msra.mxu0 0.0
      %3265 = vmatprep.subr.mxu0 0.0
      %3266 = vmatpush1.msra.mxu0 0.0
      %3267 = vmatprep.subr.mxu0 0.0
      %3268 = vmatpush1.msra.mxu0 0.0
      %3269 = vmatprep.subr.mxu0 0.0
      %3270 = vmatpush1.msra.mxu0 0.0
      %3271 = vmatprep.subr.mxu0 0.0
      %3272 = vmatpush1.msra.mxu0 0.0
      %3273 = vmatprep.subr.mxu0 0.0
      %3274 = vmatpush1.msra.mxu0 0.0
      %3275 = vmatprep.subr.mxu0 0.0
      %3276 = vmatpush1.msra.mxu0 0.0
      %3277 = vmatprep.subr.mxu0 0.0
      %3278 = vmatpush1.msra.mxu0 0.0
      %3279 = vmatprep.mubr.f32.mxu0 0.0
      %3280 = vmatmul.mubr.f32.gmra.mrb[0].mxu0 %v3120
      %v3281 = vpop.f32.mrb[0].mxu0
      %v3282 = vadd.f32 %v2961, %v3281
      %v3283 = vpop.f32.mrb[0].mxu0
      %3284 = vmatprep.mubr.f32.mxu0 0.0
      %3285 = vmatmul.mubr.f32.gmra.mrb[0].mxu0 %v3123
      %v3286 = vpop.f32.mrb[0].mxu0
      %v3287 = vadd.f32 %v2966, %v3286
      %v3288 = vpop.f32.mrb[0].mxu0
      %3289 = vmatprep.mubr.f32.mxu0 0.0
      %3290 = vmatmul.mubr.f32.gmra.mrb[0].mxu0 %v3126
      %v3291 = vpop.f32.mrb[0].mxu0
      %v3292 = vadd.f32 %v2971, %v3291
      %v3293 = vpop.f32.mrb[0].mxu0
      %3294 = vmatprep.mubr.f32.mxu0 0.0
      %3295 = vmatmul.mubr.f32.gmra.mrb[0].mxu0 %v3129
      %v3296 = vpop.f32.mrb[0].mxu0
      %v3297 = vadd.f32 %v2976, %v3296
      %v3298 = vpop.f32.mrb[0].mxu0
      %3299 = vmatprep.mubr.f32.mxu0 0.0
      %3300 = vmatmul.mubr.f32.gmra.mrb[0].mxu0 %v3132
      %v3301 = vpop.f32.mrb[0].mxu0
      %v3302 = vadd.f32 %v2981, %v3301
      %v3303 = vpop.f32.mrb[0].mxu0
      %3304 = vmatprep.mubr.f32.mxu0 0.0
      %3305 = vmatmul.mubr.f32.gmra.mrb[0].mxu0 %v3135
      %v3306 = vpop.f32.mrb[0].mxu0
      %v3307 = vadd.f32 %v2986, %v3306
      %v3308 = vpop.f32.mrb[0].mxu0
      %3309 = vmatprep.mubr.f32.mxu0 0.0
      %3310 = vmatmul.mubr.f32.gmra.mrb[0].mxu0 %v3138
      %v3311 = vpop.f32.mrb[0].mxu0
      %v3312 = vadd.f32 %v2991, %v3311
      %v3313 = vpop.f32.mrb[0].mxu0
      %3314 = vmatprep.mubr.f32.mxu0 0.0
      %3315 = vmatmul.mubr.f32.gmra.mrb[0].mxu0 %v3141
      %v3316 = vpop.f32.mrb[0].mxu0
      %v3317 = vadd.f32 %v2996, %v3316
      %v3318 = vpop.f32.mrb[0].mxu0
      %3319 = vmatprep.mubr.f32.mxu0 0.0
      %3320 = vmatmul.mubr.f32.gmra.mrb[0].mxu0 %v3144
      %v3321 = vpop.f32.mrb[0].mxu0
      %v3322 = vadd.f32 %v3001, %v3321
      %v3323 = vpop.f32.mrb[0].mxu0
      %3324 = vmatprep.mubr.f32.mxu0 0.0
      %3325 = vmatmul.mubr.f32.gmra.mrb[0].mxu0 %v3147
      %v3326 = vpop.f32.mrb[0].mxu0
      %v3327 = vadd.f32 %v3006, %v3326
      %v3328 = vpop.f32.mrb[0].mxu0
      %3329 = vmatprep.mubr.f32.mxu0 0.0
      %3330 = vmatmul.mubr.f32.gmra.mrb[0].mxu0 %v3150
      %v3331 = vpop.f32.mrb[0].mxu0
      %v3332 = vadd.f32 %v3011, %v3331
      %v3333 = vpop.f32.mrb[0].mxu0
      %3334 = vmatprep.mubr.f32.mxu0 0.0
      %3335 = vmatmul.mubr.f32.gmra.mrb[0].mxu0 %v3153
      %v3336 = vpop.f32.mrb[0].mxu0
      %v3337 = vadd.f32 %v3016, %v3336
      %v3338 = vpop.f32.mrb[0].mxu0
      %3339 = vmatprep.mubr.f32.mxu0 0.0
      %3340 = vmatmul.mubr.f32.gmra.mrb[0].mxu0 %v3156
      %v3341 = vpop.f32.mrb[0].mxu0
      %v3342 = vadd.f32 %v3021, %v3341
      %v3343 = vpop.f32.mrb[0].mxu0
      %3344 = vmatprep.mubr.f32.mxu0 0.0
      %3345 = vmatmul.mubr.f32.gmra.mrb[0].mxu0 %v3159
      %v3346 = vpop.f32.mrb[0].mxu0
      %v3347 = vadd.f32 %v3026, %v3346
      %v3348 = vpop.f32.mrb[0].mxu0
      %3349 = vmatprep.mubr.f32.mxu0 0.0
      %3350 = vmatmul.mubr.f32.gmra.mrb[0].mxu0 %v3162
      %v3351 = vpop.f32.mrb[0].mxu0
      %v3352 = vadd.f32 %v3031, %v3351
      %v3353 = vpop.f32.mrb[0].mxu0
      %3354 = vmatprep.mubr.f32.mxu0 0.0
      %3355 = vmatmul.mubr.f32.gmra.mrb[0].mxu0 %v3165
      %v3356 = vpop.f32.mrb[0].mxu0
      %v3357 = vadd.f32 %v3036, %v3356
      %v3358 = vpop.f32.mrb[0].mxu0
      %3359 = vmatprep.mubr.f32.mxu0 0.0
      %3360 = vmatmul.mubr.f32.gmra.mrb[0].mxu0 %v3168
      %v3361 = vpop.f32.mrb[0].mxu0
      %v3362 = vadd.f32 %v3041, %v3361
      %v3363 = vpop.f32.mrb[0].mxu0
      %3364 = vmatprep.mubr.f32.mxu0 0.0
      %3365 = vmatmul.mubr.f32.gmra.mrb[0].mxu0 %v3171
      %v3366 = vpop.f32.mrb[0].mxu0
      %v3367 = vadd.f32 %v3046, %v3366
      %v3368 = vpop.f32.mrb[0].mxu0
      %3369 = vmatprep.mubr.f32.mxu0 0.0
      %3370 = vmatmul.mubr.f32.gmra.mrb[0].mxu0 %v3174
      %v3371 = vpop.f32.mrb[0].mxu0
      %v3372 = vadd.f32 %v3051, %v3371
      %v3373 = vpop.f32.mrb[0].mxu0
      %3374 = vmatprep.mubr.f32.mxu0 0.0
      %3375 = vmatmul.mubr.f32.gmra.mrb[0].mxu0 %v3177
      %v3376 = vpop.f32.mrb[0].mxu0
      %v3377 = vadd.f32 %v3056, %v3376
      %v3378 = vpop.f32.mrb[0].mxu0
      %3379 = vmatprep.mubr.f32.mxu0 0.0
      %3380 = vmatmul.mubr.f32.gmra.mrb[0].mxu0 %v3180
      %v3381 = vpop.f32.mrb[0].mxu0
      %v3382 = vadd.f32 %v3061, %v3381
      %v3383 = vpop.f32.mrb[0].mxu0
      %3384 = vmatprep.mubr.f32.mxu0 0.0
      %3385 = vmatmul.mubr.f32.gmra.mrb[0].mxu0 %v3183
      %v3386 = vpop.f32.mrb[0].mxu0
      %v3387 = vadd.f32 %v3066, %v3386
      %v3388 = vpop.f32.mrb[0].mxu0
      %3389 = vmatprep.mubr.f32.mxu0 0.0
      %3390 = vmatmul.mubr.f32.gmra.mrb[0].mxu0 %v3186
      %v3391 = vpop.f32.mrb[0].mxu0
      %v3392 = vadd.f32 %v3071, %v3391
      %v3393 = vpop.f32.mrb[0].mxu0
      %3394 = vmatprep.mubr.f32.mxu0 0.0
      %3395 = vmatmul.mubr.f32.gmra.mrb[0].mxu0 %v3189
      %v3396 = vpop.f32.mrb[0].mxu0
      %v3397 = vadd.f32 %v3076, %v3396
      %v3398 = vpop.f32.mrb[0].mxu0
      %3399 = vmatprep.mubr.f32.mxu0 0.0
      %3400 = vmatmul.mubr.f32.gmra.mrb[0].mxu0 %v3192
      %v3401 = vpop.f32.mrb[0].mxu0
      %v3402 = vadd.f32 %v3081, %v3401
      %v3403 = vpop.f32.mrb[0].mxu0
      %3404 = vmatprep.mubr.f32.mxu0 0.0
      %3405 = vmatmul.mubr.f32.gmra.mrb[0].mxu0 %v3195
      %v3406 = vpop.f32.mrb[0].mxu0
      %v3407 = vadd.f32 %v3086, %v3406
      %v3408 = vpop.f32.mrb[0].mxu0
      %3409 = vmatprep.mubr.f32.mxu0 0.0
      %3410 = vmatmul.mubr.f32.gmra.mrb[0].mxu0 %v3198
      %v3411 = vpop.f32.mrb[0].mxu0
      %v3412 = vadd.f32 %v3091, %v3411
      %v3413 = vpop.f32.mrb[0].mxu0
      %3414 = vmatprep.mubr.f32.mxu0 0.0
      %3415 = vmatmul.mubr.f32.gmra.mrb[0].mxu0 %v3201
      %v3416 = vpop.f32.mrb[0].mxu0
      %v3417 = vadd.f32 %v3096, %v3416
      %v3418 = vpop.f32.mrb[0].mxu0
      %3419 = vmatprep.mubr.f32.mxu0 0.0
      %3420 = vmatmul.mubr.f32.gmra.mrb[0].mxu0 %v3204
      %v3421 = vpop.f32.mrb[0].mxu0
      %v3422 = vadd.f32 %v3101, %v3421
      %v3423 = vpop.f32.mrb[0].mxu0
      %3424 = vmatprep.mubr.f32.mxu0 0.0
      %3425 = vmatmul.mubr.f32.gmra.mrb[0].mxu0 %v3207
      %v3426 = vpop.f32.mrb[0].mxu0
      %v3427 = vadd.f32 %v3106, %v3426
      %v3428 = vpop.f32.mrb[0].mxu0
      %3429 = vmatprep.mubr.f32.mxu0 0.0
      %3430 = vmatmul.mubr.f32.gmra.mrb[0].mxu0 %v3210
      %v3431 = vpop.f32.mrb[0].mxu0
      %v3432 = vadd.f32 %v3111, %v3431
      %v3433 = vpop.f32.mrb[0].mxu0
      %3434 = vmatprep.mubr.f32.mxu0 0.0
      %3435 = vmatmul.mubr.f32.gmra.mrb[0].mxu0 %v3213
      %v3436 = vpop.f32.mrb[0].mxu0
      %v3437 = vadd.f32 %v3116, %v3436
      %v3438 = vpop.f32.mrb[0].mxu0
      %3439 = vdwg.mxu0
      %s3440 = scalar_lea.vmem [#allocation6], 32
      %v3441 = vld [vmem:[%s3440] sm:$0xff]
      %v3442 = vld [vmem:[%s3440 + $0x8] sm:$0xff]
      %v3443 = vld [vmem:[%s3440 + $0x10] sm:$0xff]
      %v3444 = vld [vmem:[%s3440 + $0x18] sm:$0xff]
      %v3445 = vld [vmem:[%s3440 + $0x20] sm:$0xff]
      %v3446 = vld [vmem:[%s3440 + $0x28] sm:$0xff]
      %v3447 = vld [vmem:[%s3440 + $0x30] sm:$0xff]
      %v3448 = vld [vmem:[%s3440 + $0x38] sm:$0xff]
      %v3449 = vld [vmem:[%s3440 + $0x40] sm:$0xff]
      %v3450 = vld [vmem:[%s3440 + $0x48] sm:$0xff]
      %v3451 = vld [vmem:[%s3440 + $0x50] sm:$0xff]
      %v3452 = vld [vmem:[%s3440 + $0x58] sm:$0xff]
      %v3453 = vld [vmem:[%s3440 + $0x60] sm:$0xff]
      %v3454 = vld [vmem:[%s3440 + $0x68] sm:$0xff]
      %v3455 = vld [vmem:[%s3440 + $0x70] sm:$0xff]
      %v3456 = vld [vmem:[%s3440 + $0x78] sm:$0xff]
      %v3457 = vld [vmem:[%s3440 + $0x80] sm:$0xff]
      %v3458 = vld [vmem:[%s3440 + $0x88] sm:$0xff]
      %v3459 = vld [vmem:[%s3440 + $0x90] sm:$0xff]
      %v3460 = vld [vmem:[%s3440 + $0x98] sm:$0xff]
      %v3461 = vld [vmem:[%s3440 + $0xa0] sm:$0xff]
      %v3462 = vld [vmem:[%s3440 + $0xa8] sm:$0xff]
      %v3463 = vld [vmem:[%s3440 + $0xb0] sm:$0xff]
      %v3464 = vld [vmem:[%s3440 + $0xb8] sm:$0xff]
      %v3465 = vld [vmem:[%s3440 + $0xc0] sm:$0xff]
      %v3466 = vld [vmem:[%s3440 + $0xc8] sm:$0xff]
      %v3467 = vld [vmem:[%s3440 + $0xd0] sm:$0xff]
      %v3468 = vld [vmem:[%s3440 + $0xd8] sm:$0xff]
      %v3469 = vld [vmem:[%s3440 + $0xe0] sm:$0xff]
      %v3470 = vld [vmem:[%s3440 + $0xe8] sm:$0xff]
      %v3471 = vld [vmem:[%s3440 + $0xf0] sm:$0xff]
      %v3472 = vld [vmem:[%s3440 + $0xf8] sm:$0xff]
      %v3474 = vsel %vm2797, %v3441, 0
      %v3477 = vsel %vm2797, %v3442, 0
      %v3480 = vsel %vm2797, %v3443, 0
      %v3483 = vsel %vm2797, %v3444, 0
      %v3486 = vsel %vm2797, %v3445, 0
      %v3489 = vsel %vm2797, %v3446, 0
      %v3492 = vsel %vm2797, %v3447, 0
      %v3495 = vsel %vm2797, %v3448, 0
      %v3498 = vsel %vm2797, %v3449, 0
      %v3501 = vsel %vm2797, %v3450, 0
      %v3504 = vsel %vm2797, %v3451, 0
      %v3507 = vsel %vm2797, %v3452, 0
      %v3510 = vsel %vm2797, %v3453, 0
      %v3513 = vsel %vm2797, %v3454, 0
      %v3516 = vsel %vm2797, %v3455, 0
      %v3519 = vsel %vm2797, %v3456, 0
      %v3522 = vsel %vm2797, %v3457, 0
      %v3525 = vsel %vm2797, %v3458, 0
      %v3528 = vsel %vm2797, %v3459, 0
      %v3531 = vsel %vm2797, %v3460, 0
      %v3534 = vsel %vm2797, %v3461, 0
      %v3537 = vsel %vm2797, %v3462, 0
      %v3540 = vsel %vm2797, %v3463, 0
      %v3543 = vsel %vm2797, %v3464, 0
      %v3546 = vsel %vm2797, %v3465, 0
      %v3549 = vsel %vm2797, %v3466, 0
      %v3552 = vsel %vm2797, %v3467, 0
      %v3555 = vsel %vm2797, %v3468, 0
      %v3558 = vsel %vm2797, %v3469, 0
      %v3561 = vsel %vm2797, %v3470, 0
      %v3564 = vsel %vm2797, %v3471, 0
      %v3567 = vsel %vm2797, %v3472, 0
      %3569 = vmatprep.subr.mxu0 0.0
      %3570 = vmatpush1.msra.mxu0 %v2213
      %3571 = vmatprep.subr.mxu0 0.0
      %3572 = vmatpush1.msra.mxu0 %v2214
      %3573 = vmatprep.subr.mxu0 0.0
      %3574 = vmatpush1.msra.mxu0 %v2215
      %3575 = vmatprep.subr.mxu0 0.0
      %3576 = vmatpush1.msra.mxu0 %v2216
      %3577 = vmatprep.subr.mxu0 0.0
      %3578 = vmatpush1.msra.mxu0 %v2217
      %3579 = vmatprep.subr.mxu0 0.0
      %3580 = vmatpush1.msra.mxu0 %v2218
      %3581 = vmatprep.subr.mxu0 0.0
      %3582 = vmatpush1.msra.mxu0 %v2219
      %3583 = vmatprep.subr.mxu0 0.0
      %3584 = vmatpush1.msra.mxu0 %v2220
      %3585 = vmatprep.subr.mxu0 0.0
      %3586 = vmatpush1.msra.mxu0 %v2221
      %3587 = vmatprep.subr.mxu0 0.0
      %3588 = vmatpush1.msra.mxu0 %v2222
      %3589 = vmatprep.subr.mxu0 0.0
      %3590 = vmatpush1.msra.mxu0 %v2223
      %3591 = vmatprep.subr.mxu0 0.0
      %3592 = vmatpush1.msra.mxu0 %v2224
      %3593 = vmatprep.subr.mxu0 0.0
      %3594 = vmatpush1.msra.mxu0 0.0
      %3595 = vmatprep.subr.mxu0 0.0
      %3596 = vmatpush1.msra.mxu0 0.0
      %3597 = vmatprep.subr.mxu0 0.0
      %3598 = vmatpush1.msra.mxu0 0.0
      %3599 = vmatprep.subr.mxu0 0.0
      %3600 = vmatpush1.msra.mxu0 0.0
      %3601 = vmatprep.subr.mxu0 0.0
      %3602 = vmatpush1.msra.mxu0 0.0
      %3603 = vmatprep.subr.mxu0 0.0
      %3604 = vmatpush1.msra.mxu0 0.0
      %3605 = vmatprep.subr.mxu0 0.0
      %3606 = vmatpush1.msra.mxu0 0.0
      %3607 = vmatprep.subr.mxu0 0.0
      %3608 = vmatpush1.msra.mxu0 0.0
      %3609 = vmatprep.subr.mxu0 0.0
      %3610 = vmatpush1.msra.mxu0 0.0
      %3611 = vmatprep.subr.mxu0 0.0
      %3612 = vmatpush1.msra.mxu0 0.0
      %3613 = vmatprep.subr.mxu0 0.0
      %3614 = vmatpush1.msra.mxu0 0.0
      %3615 = vmatprep.subr.mxu0 0.0
      %3616 = vmatpush1.msra.mxu0 0.0
      %3617 = vmatprep.subr.mxu0 0.0
      %3618 = vmatpush1.msra.mxu0 0.0
      %3619 = vmatprep.subr.mxu0 0.0
      %3620 = vmatpush1.msra.mxu0 0.0
      %3621 = vmatprep.subr.mxu0 0.0
      %3622 = vmatpush1.msra.mxu0 0.0
      %3623 = vmatprep.subr.mxu0 0.0
      %3624 = vmatpush1.msra.mxu0 0.0
      %3625 = vmatprep.subr.mxu0 0.0
      %3626 = vmatpush1.msra.mxu0 0.0
      %3627 = vmatprep.subr.mxu0 0.0
      %3628 = vmatpush1.msra.mxu0 0.0
      %3629 = vmatprep.subr.mxu0 0.0
      %3630 = vmatpush1.msra.mxu0 0.0
      %3631 = vmatprep.subr.mxu0 0.0
      %3632 = vmatpush1.msra.mxu0 0.0
      %3633 = vmatprep.mubr.f32.mxu0 0.0
      %3634 = vmatmul.mubr.f32.gmra.mrb[0].mxu0 %v3474
      %v3635 = vpop.f32.mrb[0].mxu0
      %v3636 = vadd.f32 0.0, %v3635
      %v3637 = vpop.f32.mrb[0].mxu0
      %3638 = vmatprep.mubr.f32.mxu0 0.0
      %3639 = vmatmul.mubr.f32.gmra.mrb[0].mxu0 %v3477
      %v3640 = vpop.f32.mrb[0].mxu0
      %v3641 = vadd.f32 0.0, %v3640
      %v3642 = vpop.f32.mrb[0].mxu0
      %3643 = vmatprep.mubr.f32.mxu0 0.0
      %3644 = vmatmul.mubr.f32.gmra.mrb[0].mxu0 %v3480
      %v3645 = vpop.f32.mrb[0].mxu0
      %v3646 = vadd.f32 0.0, %v3645
      %v3647 = vpop.f32.mrb[0].mxu0
      %3648 = vmatprep.mubr.f32.mxu0 0.0
      %3649 = vmatmul.mubr.f32.gmra.mrb[0].mxu0 %v3483
      %v3650 = vpop.f32.mrb[0].mxu0
      %v3651 = vadd.f32 0.0, %v3650
      %v3652 = vpop.f32.mrb[0].mxu0
      %3653 = vmatprep.mubr.f32.mxu0 0.0
      %3654 = vmatmul.mubr.f32.gmra.mrb[0].mxu0 %v3486
      %v3655 = vpop.f32.mrb[0].mxu0
      %v3656 = vadd.f32 0.0, %v3655
      %v3657 = vpop.f32.mrb[0].mxu0
      %3658 = vmatprep.mubr.f32.mxu0 0.0
      %3659 = vmatmul.mubr.f32.gmra.mrb[0].mxu0 %v3489
      %v3660 = vpop.f32.mrb[0].mxu0
      %v3661 = vadd.f32 0.0, %v3660
      %v3662 = vpop.f32.mrb[0].mxu0
      %3663 = vmatprep.mubr.f32.mxu0 0.0
      %3664 = vmatmul.mubr.f32.gmra.mrb[0].mxu0 %v3492
      %v3665 = vpop.f32.mrb[0].mxu0
      %v3666 = vadd.f32 0.0, %v3665
      %v3667 = vpop.f32.mrb[0].mxu0
      %3668 = vmatprep.mubr.f32.mxu0 0.0
      %3669 = vmatmul.mubr.f32.gmra.mrb[0].mxu0 %v3495
      %v3670 = vpop.f32.mrb[0].mxu0
      %v3671 = vadd.f32 0.0, %v3670
      %v3672 = vpop.f32.mrb[0].mxu0
      %3673 = vmatprep.mubr.f32.mxu0 0.0
      %3674 = vmatmul.mubr.f32.gmra.mrb[0].mxu0 %v3498
      %v3675 = vpop.f32.mrb[0].mxu0
      %v3676 = vadd.f32 0.0, %v3675
      %v3677 = vpop.f32.mrb[0].mxu0
      %3678 = vmatprep.mubr.f32.mxu0 0.0
      %3679 = vmatmul.mubr.f32.gmra.mrb[0].mxu0 %v3501
      %v3680 = vpop.f32.mrb[0].mxu0
      %v3681 = vadd.f32 0.0, %v3680
      %v3682 = vpop.f32.mrb[0].mxu0
      %3683 = vmatprep.mubr.f32.mxu0 0.0
      %3684 = vmatmul.mubr.f32.gmra.mrb[0].mxu0 %v3504
      %v3685 = vpop.f32.mrb[0].mxu0
      %v3686 = vadd.f32 0.0, %v3685
      %v3687 = vpop.f32.mrb[0].mxu0
      %3688 = vmatprep.mubr.f32.mxu0 0.0
      %3689 = vmatmul.mubr.f32.gmra.mrb[0].mxu0 %v3507
      %v3690 = vpop.f32.mrb[0].mxu0
      %v3691 = vadd.f32 0.0, %v3690
      %v3692 = vpop.f32.mrb[0].mxu0
      %3693 = vmatprep.mubr.f32.mxu0 0.0
      %3694 = vmatmul.mubr.f32.gmra.mrb[0].mxu0 %v3510
      %v3695 = vpop.f32.mrb[0].mxu0
      %v3696 = vadd.f32 0.0, %v3695
      %v3697 = vpop.f32.mrb[0].mxu0
      %3698 = vmatprep.mubr.f32.mxu0 0.0
      %3699 = vmatmul.mubr.f32.gmra.mrb[0].mxu0 %v3513
      %v3700 = vpop.f32.mrb[0].mxu0
      %v3701 = vadd.f32 0.0, %v3700
      %v3702 = vpop.f32.mrb[0].mxu0
      %3703 = vmatprep.mubr.f32.mxu0 0.0
      %3704 = vmatmul.mubr.f32.gmra.mrb[0].mxu0 %v3516
      %v3705 = vpop.f32.mrb[0].mxu0
      %v3706 = vadd.f32 0.0, %v3705
      %v3707 = vpop.f32.mrb[0].mxu0
      %3708 = vmatprep.mubr.f32.mxu0 0.0
      %3709 = vmatmul.mubr.f32.gmra.mrb[0].mxu0 %v3519
      %v3710 = vpop.f32.mrb[0].mxu0
      %v3711 = vadd.f32 0.0, %v3710
      %v3712 = vpop.f32.mrb[0].mxu0
      %3713 = vmatprep.mubr.f32.mxu0 0.0
      %3714 = vmatmul.mubr.f32.gmra.mrb[0].mxu0 %v3522
      %v3715 = vpop.f32.mrb[0].mxu0
      %v3716 = vadd.f32 0.0, %v3715
      %v3717 = vpop.f32.mrb[0].mxu0
      %3718 = vmatprep.mubr.f32.mxu0 0.0
      %3719 = vmatmul.mubr.f32.gmra.mrb[0].mxu0 %v3525
      %v3720 = vpop.f32.mrb[0].mxu0
      %v3721 = vadd.f32 0.0, %v3720
      %v3722 = vpop.f32.mrb[0].mxu0
      %3723 = vmatprep.mubr.f32.mxu0 0.0
      %3724 = vmatmul.mubr.f32.gmra.mrb[0].mxu0 %v3528
      %v3725 = vpop.f32.mrb[0].mxu0
      %v3726 = vadd.f32 0.0, %v3725
      %v3727 = vpop.f32.mrb[0].mxu0
      %3728 = vmatprep.mubr.f32.mxu0 0.0
      %3729 = vmatmul.mubr.f32.gmra.mrb[0].mxu0 %v3531
      %v3730 = vpop.f32.mrb[0].mxu0
      %v3731 = vadd.f32 0.0, %v3730
      %v3732 = vpop.f32.mrb[0].mxu0
      %3733 = vmatprep.mubr.f32.mxu0 0.0
      %3734 = vmatmul.mubr.f32.gmra.mrb[0].mxu0 %v3534
      %v3735 = vpop.f32.mrb[0].mxu0
      %v3736 = vadd.f32 0.0, %v3735
      %v3737 = vpop.f32.mrb[0].mxu0
      %3738 = vmatprep.mubr.f32.mxu0 0.0
      %3739 = vmatmul.mubr.f32.gmra.mrb[0].mxu0 %v3537
      %v3740 = vpop.f32.mrb[0].mxu0
      %v3741 = vadd.f32 0.0, %v3740
      %v3742 = vpop.f32.mrb[0].mxu0
      %3743 = vmatprep.mubr.f32.mxu0 0.0
      %3744 = vmatmul.mubr.f32.gmra.mrb[0].mxu0 %v3540
      %v3745 = vpop.f32.mrb[0].mxu0
      %v3746 = vadd.f32 0.0, %v3745
      %v3747 = vpop.f32.mrb[0].mxu0
      %3748 = vmatprep.mubr.f32.mxu0 0.0
      %3749 = vmatmul.mubr.f32.gmra.mrb[0].mxu0 %v3543
      %v3750 = vpop.f32.mrb[0].mxu0
      %v3751 = vadd.f32 0.0, %v3750
      %v3752 = vpop.f32.mrb[0].mxu0
      %3753 = vmatprep.mubr.f32.mxu0 0.0
      %3754 = vmatmul.mubr.f32.gmra.mrb[0].mxu0 %v3546
      %v3755 = vpop.f32.mrb[0].mxu0
      %v3756 = vadd.f32 0.0, %v3755
      %v3757 = vpop.f32.mrb[0].mxu0
      %3758 = vmatprep.mubr.f32.mxu0 0.0
      %3759 = vmatmul.mubr.f32.gmra.mrb[0].mxu0 %v3549
      %v3760 = vpop.f32.mrb[0].mxu0
      %v3761 = vadd.f32 0.0, %v3760
      %v3762 = vpop.f32.mrb[0].mxu0
      %3763 = vmatprep.mubr.f32.mxu0 0.0
      %3764 = vmatmul.mubr.f32.gmra.mrb[0].mxu0 %v3552
      %v3765 = vpop.f32.mrb[0].mxu0
      %v3766 = vadd.f32 0.0, %v3765
      %v3767 = vpop.f32.mrb[0].mxu0
      %3768 = vmatprep.mubr.f32.mxu0 0.0
      %3769 = vmatmul.mubr.f32.gmra.mrb[0].mxu0 %v3555
      %v3770 = vpop.f32.mrb[0].mxu0
      %v3771 = vadd.f32 0.0, %v3770
      %v3772 = vpop.f32.mrb[0].mxu0
      %3773 = vmatprep.mubr.f32.mxu0 0.0
      %3774 = vmatmul.mubr.f32.gmra.mrb[0].mxu0 %v3558
      %v3775 = vpop.f32.mrb[0].mxu0
      %v3776 = vadd.f32 0.0, %v3775
      %v3777 = vpop.f32.mrb[0].mxu0
      %3778 = vmatprep.mubr.f32.mxu0 0.0
      %3779 = vmatmul.mubr.f32.gmra.mrb[0].mxu0 %v3561
      %v3780 = vpop.f32.mrb[0].mxu0
      %v3781 = vadd.f32 0.0, %v3780
      %v3782 = vpop.f32.mrb[0].mxu0
      %3783 = vmatprep.mubr.f32.mxu0 0.0
      %3784 = vmatmul.mubr.f32.gmra.mrb[0].mxu0 %v3564
      %v3785 = vpop.f32.mrb[0].mxu0
      %v3786 = vadd.f32 0.0, %v3785
      %v3787 = vpop.f32.mrb[0].mxu0
      %3788 = vmatprep.mubr.f32.mxu0 0.0
      %3789 = vmatmul.mubr.f32.gmra.mrb[0].mxu0 %v3567
      %v3790 = vpop.f32.mrb[0].mxu0
      %v3791 = vadd.f32 0.0, %v3790
      %v3792 = vpop.f32.mrb[0].mxu0
      %3793 = vdwg.mxu0
      %v3794 = vadd.f32 %v3282, %v3636
      %v3795 = vadd.f32 %v3287, %v3641
      %v3796 = vadd.f32 %v3292, %v3646
      %v3797 = vadd.f32 %v3297, %v3651
      %v3798 = vadd.f32 %v3302, %v3656
      %v3799 = vadd.f32 %v3307, %v3661
      %v3800 = vadd.f32 %v3312, %v3666
      %v3801 = vadd.f32 %v3317, %v3671
      %v3802 = vadd.f32 %v3322, %v3676
      %v3803 = vadd.f32 %v3327, %v3681
      %v3804 = vadd.f32 %v3332, %v3686
      %v3805 = vadd.f32 %v3337, %v3691
      %v3806 = vadd.f32 %v3342, %v3696
      %v3807 = vadd.f32 %v3347, %v3701
      %v3808 = vadd.f32 %v3352, %v3706
      %v3809 = vadd.f32 %v3357, %v3711
      %v3810 = vadd.f32 %v3362, %v3716
      %v3811 = vadd.f32 %v3367, %v3721
      %v3812 = vadd.f32 %v3372, %v3726
      %v3813 = vadd.f32 %v3377, %v3731
      %v3814 = vadd.f32 %v3382, %v3736
      %v3815 = vadd.f32 %v3387, %v3741
      %v3816 = vadd.f32 %v3392, %v3746
      %v3817 = vadd.f32 %v3397, %v3751
      %v3818 = vadd.f32 %v3402, %v3756
      %v3819 = vadd.f32 %v3407, %v3761
      %v3820 = vadd.f32 %v3412, %v3766
      %v3821 = vadd.f32 %v3417, %v3771
      %v3822 = vadd.f32 %v3422, %v3776
      %v3823 = vadd.f32 %v3427, %v3781
      %v3824 = vadd.f32 %v3432, %v3786
      %v3825 = vadd.f32 %v3437, %v3791
      %v3827 = vlaneseq
      %v3828 = vshrl.u32 %v3827, 7
      %v3829 = vsub.s32 0, %v3828
      %v3830 = vrot.slane %v2225, %v3829
      %v3832 = vadd.f32 %v3794, %v3830
      %v3833 = vadd.f32 %v3795, %v3830
      %v3834 = vadd.f32 %v3796, %v3830
      %v3835 = vadd.f32 %v3797, %v3830
      %v3836 = vadd.f32 %v3798, %v3830
      %v3837 = vadd.f32 %v3799, %v3830
      %v3838 = vadd.f32 %v3800, %v3830
      %v3839 = vadd.f32 %v3801, %v3830
      %v3840 = vadd.f32 %v3802, %v3830
      %v3841 = vadd.f32 %v3803, %v3830
      %v3842 = vadd.f32 %v3804, %v3830
      %v3843 = vadd.f32 %v3805, %v3830
      %v3844 = vadd.f32 %v3806, %v3830
      %v3845 = vadd.f32 %v3807, %v3830
      %v3846 = vadd.f32 %v3808, %v3830
      %v3847 = vadd.f32 %v3809, %v3830
      %v3848 = vadd.f32 %v3810, %v3830
      %v3849 = vadd.f32 %v3811, %v3830
      %v3850 = vadd.f32 %v3812, %v3830
      %v3851 = vadd.f32 %v3813, %v3830
      %v3852 = vadd.f32 %v3814, %v3830
      %v3853 = vadd.f32 %v3815, %v3830
      %v3854 = vadd.f32 %v3816, %v3830
      %v3855 = vadd.f32 %v3817, %v3830
      %v3856 = vadd.f32 %v3818, %v3830
      %v3857 = vadd.f32 %v3819, %v3830
      %v3858 = vadd.f32 %v3820, %v3830
      %v3859 = vadd.f32 %v3821, %v3830
      %v3860 = vadd.f32 %v3822, %v3830
      %v3861 = vadd.f32 %v3823, %v3830
      %v3862 = vadd.f32 %v3824, %v3830
      %v3863 = vadd.f32 %v3825, %v3830
      %v3864 = vmax.f32 %v3832, 0.0
      %v3865 = vmax.f32 %v3833, 0.0
      %v3866 = vmax.f32 %v3834, 0.0
      %v3867 = vmax.f32 %v3835, 0.0
      %v3868 = vmax.f32 %v3836, 0.0
      %v3869 = vmax.f32 %v3837, 0.0
      %v3870 = vmax.f32 %v3838, 0.0
      %v3871 = vmax.f32 %v3839, 0.0
      %v3872 = vmax.f32 %v3840, 0.0
      %v3873 = vmax.f32 %v3841, 0.0
      %v3874 = vmax.f32 %v3842, 0.0
      %v3875 = vmax.f32 %v3843, 0.0
      %v3876 = vmax.f32 %v3844, 0.0
      %v3877 = vmax.f32 %v3845, 0.0
      %v3878 = vmax.f32 %v3846, 0.0
      %v3879 = vmax.f32 %v3847, 0.0
      %v3880 = vmax.f32 %v3848, 0.0
      %v3881 = vmax.f32 %v3849, 0.0
      %v3882 = vmax.f32 %v3850, 0.0
      %v3883 = vmax.f32 %v3851, 0.0
      %v3884 = vmax.f32 %v3852, 0.0
      %v3885 = vmax.f32 %v3853, 0.0
      %v3886 = vmax.f32 %v3854, 0.0
      %v3887 = vmax.f32 %v3855, 0.0
      %v3888 = vmax.f32 %v3856, 0.0
      %v3889 = vmax.f32 %v3857, 0.0
      %v3890 = vmax.f32 %v3858, 0.0
      %v3891 = vmax.f32 %v3859, 0.0
      %v3892 = vmax.f32 %v3860, 0.0
      %v3893 = vmax.f32 %v3861, 0.0
      %v3894 = vmax.f32 %v3862, 0.0
      %v3895 = vmax.f32 %v3863, 0.0
      %s3896 = scalar_lea.vmem [#allocation5], 32
      %3897 = vst.msk [vmem:[%s3896 + $0x8] sm:$0xff] %vm321, %v3864
      %3898 = vst.msk [vmem:[%s3896 + $0x10] sm:$0xff] %vm321, %v3865
      %3899 = vst.msk [vmem:[%s3896 + $0x28] sm:$0xff] %vm321, %v3866
      %3900 = vst.msk [vmem:[%s3896 + $0x30] sm:$0xff] %vm321, %v3867
      %3901 = vst.msk [vmem:[%s3896 + $0x48] sm:$0xff] %vm321, %v3868
      %3902 = vst.msk [vmem:[%s3896 + $0x50] sm:$0xff] %vm321, %v3869
      %3903 = vst.msk [vmem:[%s3896 + $0x68] sm:$0xff] %vm321, %v3870
      %3904 = vst.msk [vmem:[%s3896 + $0x70] sm:$0xff] %vm321, %v3871
      %3905 = vst.msk [vmem:[%s3896 + $0x88] sm:$0xff] %vm321, %v3872
      %3906 = vst.msk [vmem:[%s3896 + $0x90] sm:$0xff] %vm321, %v3873
      %3907 = vst.msk [vmem:[%s3896 + $0xa8] sm:$0xff] %vm321, %v3874
      %3908 = vst.msk [vmem:[%s3896 + $0xb0] sm:$0xff] %vm321, %v3875
      %3909 = vst.msk [vmem:[%s3896 + $0xc8] sm:$0xff] %vm321, %v3876
      %3910 = vst.msk [vmem:[%s3896 + $0xd0] sm:$0xff] %vm321, %v3877
      %3911 = vst.msk [vmem:[%s3896 + $0xe8] sm:$0xff] %vm321, %v3878
      %3912 = vst.msk [vmem:[%s3896 + $0xf0] sm:$0xff] %vm321, %v3879
      %3913 = vst.msk [vmem:[%s3896 + $0x108] sm:$0xff] %vm321, %v3880
      %3914 = vst.msk [vmem:[%s3896 + $0x110] sm:$0xff] %vm321, %v3881
      %3915 = vst.msk [vmem:[%s3896 + $0x128] sm:$0xff] %vm321, %v3882
      %3916 = vst.msk [vmem:[%s3896 + $0x130] sm:$0xff] %vm321, %v3883
      %3917 = vst.msk [vmem:[%s3896 + $0x148] sm:$0xff] %vm321, %v3884
      %3918 = vst.msk [vmem:[%s3896 + $0x150] sm:$0xff] %vm321, %v3885
      %3919 = vst.msk [vmem:[%s3896 + $0x168] sm:$0xff] %vm321, %v3886
      %3920 = vst.msk [vmem:[%s3896 + $0x170] sm:$0xff] %vm321, %v3887
      %3921 = vst.msk [vmem:[%s3896 + $0x188] sm:$0xff] %vm321, %v3888
      %3922 = vst.msk [vmem:[%s3896 + $0x190] sm:$0xff] %vm321, %v3889
      %3923 = vst.msk [vmem:[%s3896 + $0x1a8] sm:$0xff] %vm321, %v3890
      %3924 = vst.msk [vmem:[%s3896 + $0x1b0] sm:$0xff] %vm321, %v3891
      %3925 = vst.msk [vmem:[%s3896 + $0x1c8] sm:$0xff] %vm321, %v3892
      %3926 = vst.msk [vmem:[%s3896 + $0x1d0] sm:$0xff] %vm321, %v3893
      %3927 = vst.msk [vmem:[%s3896 + $0x1e8] sm:$0xff] %vm321, %v3894
      %3928 = vst.msk [vmem:[%s3896 + $0x1f0] sm:$0xff] %vm321, %v3895
      %v3929 = vld [vmem:[%s5] sm:$0xff]
      %v3930 = vld [vmem:[%s5 + $0x8] sm:$0xff]
      %v3931 = vld [vmem:[%s5 + $0x10] sm:$0xff]
      %v3932 = vld [vmem:[%s5 + $0x18] sm:$0xff]
      %v3933 = vld [vmem:[%s5 + $0x20] sm:$0xff]
      %v3934 = vld [vmem:[%s5 + $0x28] sm:$0xff]
      %v3935 = vld [vmem:[%s5 + $0x30] sm:$0xff]
      %v3936 = vld [vmem:[%s5 + $0x38] sm:$0xff]
      %v3937 = vld [vmem:[%s5 + $0x40] sm:$0xff]
      %v3938 = vld [vmem:[%s5 + $0x48] sm:$0xff]
      %v3939 = vld [vmem:[%s5 + $0x50] sm:$0xff]
      %v3940 = vld [vmem:[%s5 + $0x58] sm:$0xff]
      %v3941 = vld [vmem:[%s5 + $0x60] sm:$0xff]
      %v3942 = vld [vmem:[%s5 + $0x68] sm:$0xff]
      %v3943 = vld [vmem:[%s5 + $0x70] sm:$0xff]
      %v3944 = vld [vmem:[%s5 + $0x78] sm:$0xff]
      %v3945 = vld [vmem:[%s5 + $0x80] sm:$0xff]
      %v3946 = vld [vmem:[%s5 + $0x88] sm:$0xff]
      %v3947 = vld [vmem:[%s5 + $0x90] sm:$0xff]
      %v3948 = vld [vmem:[%s5 + $0x98] sm:$0xff]
      %v3949 = vld [vmem:[%s5 + $0xa0] sm:$0xff]
      %v3950 = vld [vmem:[%s5 + $0xa8] sm:$0xff]
      %v3951 = vld [vmem:[%s5 + $0xb0] sm:$0xff]
      %v3952 = vld [vmem:[%s5 + $0xb8] sm:$0xff]
      %v3953 = vld [vmem:[%s5 + $0xc0] sm:$0xff]
      %v3954 = vld [vmem:[%s5 + $0xc8] sm:$0xff]
      %v3955 = vld [vmem:[%s5 + $0xd0] sm:$0xff]
      %v3956 = vld [vmem:[%s5 + $0xd8] sm:$0xff]
      %v3957 = vld [vmem:[%s5 + $0xe0] sm:$0xff]
      %v3958 = vld [vmem:[%s5 + $0xe8] sm:$0xff]
      %v3959 = vld [vmem:[%s5 + $0xf0] sm:$0xff]
      %v3960 = vld [vmem:[%s5 + $0xf8] sm:$0xff]
      %v3961 = vld [vmem:[%s5 + $0x100] sm:$0xff]
      %v3962 = vld [vmem:[%s5 + $0x108] sm:$0xff]
      %v3963 = vld [vmem:[%s5 + $0x110] sm:$0xff]
      %v3964 = vld [vmem:[%s5 + $0x118] sm:$0xff]
      %v3965 = vld [vmem:[%s6] sm:$0x1]
      %v3966 = vld [vmem:[#allocation5 + $0x7] sm:$0xff]
      %v3967 = vld [vmem:[#allocation5 + $0xf] sm:$0xff]
      %v3968 = vld [vmem:[#allocation5 + $0x27] sm:$0xff]
      %v3969 = vld [vmem:[#allocation5 + $0x2f] sm:$0xff]
      %v3970 = vld [vmem:[#allocation5 + $0x47] sm:$0xff]
      %v3971 = vld [vmem:[#allocation5 + $0x4f] sm:$0xff]
      %v3972 = vld [vmem:[#allocation5 + $0x67] sm:$0xff]
      %v3973 = vld [vmem:[#allocation5 + $0x6f] sm:$0xff]
      %v3974 = vld [vmem:[#allocation5 + $0x87] sm:$0xff]
      %v3975 = vld [vmem:[#allocation5 + $0x8f] sm:$0xff]
      %v3976 = vld [vmem:[#allocation5 + $0xa7] sm:$0xff]
      %v3977 = vld [vmem:[#allocation5 + $0xaf] sm:$0xff]
      %v3978 = vld [vmem:[#allocation5 + $0xc7] sm:$0xff]
      %v3979 = vld [vmem:[#allocation5 + $0xcf] sm:$0xff]
      %v3980 = vld [vmem:[#allocation5 + $0xe7] sm:$0xff]
      %v3981 = vld [vmem:[#allocation5 + $0xef] sm:$0xff]
      %v3982 = vld [vmem:[#allocation5 + $0x107] sm:$0xff]
      %v3983 = vld [vmem:[#allocation5 + $0x10f] sm:$0xff]
      %v3984 = vld [vmem:[#allocation5 + $0x127] sm:$0xff]
      %v3985 = vld [vmem:[#allocation5 + $0x12f] sm:$0xff]
      %v3986 = vld [vmem:[#allocation5 + $0x147] sm:$0xff]
      %v3987 = vld [vmem:[#allocation5 + $0x14f] sm:$0xff]
      %v3988 = vld [vmem:[#allocation5 + $0x167] sm:$0xff]
      %v3989 = vld [vmem:[#allocation5 + $0x16f] sm:$0xff]
      %v3990 = vld [vmem:[#allocation5 + $0x187] sm:$0xff]
      %v3991 = vld [vmem:[#allocation5 + $0x18f] sm:$0xff]
      %v3992 = vld [vmem:[#allocation5 + $0x1a7] sm:$0xff]
      %v3993 = vld [vmem:[#allocation5 + $0x1af] sm:$0xff]
      %v3994 = vld [vmem:[#allocation5 + $0x1c7] sm:$0xff]
      %v3995 = vld [vmem:[#allocation5 + $0x1cf] sm:$0xff]
      %v3996 = vld [vmem:[#allocation5 + $0x1e7] sm:$0xff]
      %v3997 = vld [vmem:[#allocation5 + $0x1ef] sm:$0xff]
      %v3998 = vld [vmem:[#allocation5 + $0x207] sm:$0xff]
      %v3999 = vld [vmem:[#allocation5 + $0x20f] sm:$0xff]
      %v4000 = vld [vmem:[#allocation5 + $0x227] sm:$0xff]
      %v4001 = vld [vmem:[#allocation5 + $0x22f] sm:$0xff]
      %4002 = vst.msk [vmem:[#allocation6] sm:$0xff] %vm321, %v3966
      %4003 = vst.msk [vmem:[#allocation6 + $0x8] sm:$0xff] %vm321, %v3967
      %4004 = vst.msk [vmem:[#allocation6 + $0x10] sm:$0xff] %vm321, %v3968
      %4005 = vst.msk [vmem:[#allocation6 + $0x18] sm:$0xff] %vm321, %v3969
      %4006 = vst.msk [vmem:[#allocation6 + $0x20] sm:$0xff] %vm321, %v3970
      %4007 = vst.msk [vmem:[#allocation6 + $0x28] sm:$0xff] %vm321, %v3971
      %4008 = vst.msk [vmem:[#allocation6 + $0x30] sm:$0xff] %vm321, %v3972
      %4009 = vst.msk [vmem:[#allocation6 + $0x38] sm:$0xff] %vm321, %v3973
      %4010 = vst.msk [vmem:[#allocation6 + $0x40] sm:$0xff] %vm321, %v3974
      %4011 = vst.msk [vmem:[#allocation6 + $0x48] sm:$0xff] %vm321, %v3975
      %4012 = vst.msk [vmem:[#allocation6 + $0x50] sm:$0xff] %vm321, %v3976
      %4013 = vst.msk [vmem:[#allocation6 + $0x58] sm:$0xff] %vm321, %v3977
      %4014 = vst.msk [vmem:[#allocation6 + $0x60] sm:$0xff] %vm321, %v3978
      %4015 = vst.msk [vmem:[#allocation6 + $0x68] sm:$0xff] %vm321, %v3979
      %4016 = vst.msk [vmem:[#allocation6 + $0x70] sm:$0xff] %vm321, %v3980
      %4017 = vst.msk [vmem:[#allocation6 + $0x78] sm:$0xff] %vm321, %v3981
      %4018 = vst.msk [vmem:[#allocation6 + $0x80] sm:$0xff] %vm321, %v3982
      %4019 = vst.msk [vmem:[#allocation6 + $0x88] sm:$0xff] %vm321, %v3983
      %4020 = vst.msk [vmem:[#allocation6 + $0x90] sm:$0xff] %vm321, %v3984
      %4021 = vst.msk [vmem:[#allocation6 + $0x98] sm:$0xff] %vm321, %v3985
      %4022 = vst.msk [vmem:[#allocation6 + $0xa0] sm:$0xff] %vm321, %v3986
      %4023 = vst.msk [vmem:[#allocation6 + $0xa8] sm:$0xff] %vm321, %v3987
      %4024 = vst.msk [vmem:[#allocation6 + $0xb0] sm:$0xff] %vm321, %v3988
      %4025 = vst.msk [vmem:[#allocation6 + $0xb8] sm:$0xff] %vm321, %v3989
      %4026 = vst.msk [vmem:[#allocation6 + $0xc0] sm:$0xff] %vm321, %v3990
      %4027 = vst.msk [vmem:[#allocation6 + $0xc8] sm:$0xff] %vm321, %v3991
      %4028 = vst.msk [vmem:[#allocation6 + $0xd0] sm:$0xff] %vm321, %v3992
      %4029 = vst.msk [vmem:[#allocation6 + $0xd8] sm:$0xff] %vm321, %v3993
      %4030 = vst.msk [vmem:[#allocation6 + $0xe0] sm:$0xff] %vm321, %v3994
      %4031 = vst.msk [vmem:[#allocation6 + $0xe8] sm:$0xff] %vm321, %v3995
      %4032 = vst.msk [vmem:[#allocation6 + $0xf0] sm:$0xff] %vm321, %v3996
      %4033 = vst.msk [vmem:[#allocation6 + $0xf8] sm:$0xff] %vm321, %v3997
      %4034 = vst.msk [vmem:[#allocation6 + $0x100] sm:$0xff] %vm321, %v3998
      %4035 = vst.msk [vmem:[#allocation6 + $0x108] sm:$0xff] %vm321, %v3999
      %4036 = vst.msk [vmem:[#allocation6 + $0x110] sm:$0xff] %vm321, %v4000
      %4037 = vst.msk [vmem:[#allocation6 + $0x118] sm:$0xff] %vm321, %v4001
      %v4038 = vld [vmem:[#allocation5 + $0x8] sm:$0xff]
      %v4039 = vld [vmem:[#allocation5 + $0x10] sm:$0xff]
      %v4040 = vld [vmem:[#allocation5 + $0x28] sm:$0xff]
      %v4041 = vld [vmem:[#allocation5 + $0x30] sm:$0xff]
      %v4042 = vld [vmem:[#allocation5 + $0x48] sm:$0xff]
      %v4043 = vld [vmem:[#allocation5 + $0x50] sm:$0xff]
      %v4044 = vld [vmem:[#allocation5 + $0x68] sm:$0xff]
      %v4045 = vld [vmem:[#allocation5 + $0x70] sm:$0xff]
      %v4046 = vld [vmem:[#allocation5 + $0x88] sm:$0xff]
      %v4047 = vld [vmem:[#allocation5 + $0x90] sm:$0xff]
      %v4048 = vld [vmem:[#allocation5 + $0xa8] sm:$0xff]
      %v4049 = vld [vmem:[#allocation5 + $0xb0] sm:$0xff]
      %v4050 = vld [vmem:[#allocation5 + $0xc8] sm:$0xff]
      %v4051 = vld [vmem:[#allocation5 + $0xd0] sm:$0xff]
      %v4052 = vld [vmem:[#allocation5 + $0xe8] sm:$0xff]
      %v4053 = vld [vmem:[#allocation5 + $0xf0] sm:$0xff]
      %v4054 = vld [vmem:[#allocation5 + $0x108] sm:$0xff]
      %v4055 = vld [vmem:[#allocation5 + $0x110] sm:$0xff]
      %v4056 = vld [vmem:[#allocation5 + $0x128] sm:$0xff]
      %v4057 = vld [vmem:[#allocation5 + $0x130] sm:$0xff]
      %v4058 = vld [vmem:[#allocation5 + $0x148] sm:$0xff]
      %v4059 = vld [vmem:[#allocation5 + $0x150] sm:$0xff]
      %v4060 = vld [vmem:[#allocation5 + $0x168] sm:$0xff]
      %v4061 = vld [vmem:[#allocation5 + $0x170] sm:$0xff]
      %v4062 = vld [vmem:[#allocation5 + $0x188] sm:$0xff]
      %v4063 = vld [vmem:[#allocation5 + $0x190] sm:$0xff]
      %v4064 = vld [vmem:[#allocation5 + $0x1a8] sm:$0xff]
      %v4065 = vld [vmem:[#allocation5 + $0x1b0] sm:$0xff]
      %v4066 = vld [vmem:[#allocation5 + $0x1c8] sm:$0xff]
      %v4067 = vld [vmem:[#allocation5 + $0x1d0] sm:$0xff]
      %v4068 = vld [vmem:[#allocation5 + $0x1e8] sm:$0xff]
      %v4069 = vld [vmem:[#allocation5 + $0x1f0] sm:$0xff]
      %v4070 = vld [vmem:[#allocation5 + $0x208] sm:$0xff]
      %v4071 = vld [vmem:[#allocation5 + $0x210] sm:$0xff]
      %v4072 = vld [vmem:[#allocation5 + $0x228] sm:$0xff]
      %v4073 = vld [vmem:[#allocation5 + $0x230] sm:$0xff]
      %4110 = vrot.lane.b32.xlu0 %v4038, 32
      %v4111 = vpop.permute.xlu0 %4110
      %4112 = vrot.lane.b32.xlu0 %v4039, 32
      %v4113 = vpop.permute.xlu0 %4112
      %4114 = vrot.lane.b32.xlu0 %v4040, 32
      %v4115 = vpop.permute.xlu0 %4114
      %4116 = vrot.lane.b32.xlu0 %v4041, 32
      %v4117 = vpop.permute.xlu0 %4116
      %4118 = vrot.lane.b32.xlu0 %v4042, 32
      %v4119 = vpop.permute.xlu0 %4118
      %4120 = vrot.lane.b32.xlu0 %v4043, 32
      %v4121 = vpop.permute.xlu0 %4120
      %4122 = vrot.lane.b32.xlu0 %v4044, 32
      %v4123 = vpop.permute.xlu0 %4122
      %4124 = vrot.lane.b32.xlu0 %v4045, 32
      %v4125 = vpop.permute.xlu0 %4124
      %4126 = vrot.lane.b32.xlu0 %v4046, 32
      %v4127 = vpop.permute.xlu0 %4126
      %4128 = vrot.lane.b32.xlu0 %v4047, 32
      %v4129 = vpop.permute.xlu0 %4128
      %4130 = vrot.lane.b32.xlu0 %v4048, 32
      %v4131 = vpop.permute.xlu0 %4130
      %4132 = vrot.lane.b32.xlu0 %v4049, 32
      %v4133 = vpop.permute.xlu0 %4132
      %4134 = vrot.lane.b32.xlu0 %v4050, 32
      %v4135 = vpop.permute.xlu0 %4134
      %4136 = vrot.lane.b32.xlu0 %v4051, 32
      %v4137 = vpop.permute.xlu0 %4136
      %4138 = vrot.lane.b32.xlu0 %v4052, 32
      %v4139 = vpop.permute.xlu0 %4138
      %4140 = vrot.lane.b32.xlu0 %v4053, 32
      %v4141 = vpop.permute.xlu0 %4140
      %4142 = vrot.lane.b32.xlu0 %v4054, 32
      %v4143 = vpop.permute.xlu0 %4142
      %4144 = vrot.lane.b32.xlu0 %v4055, 32
      %v4145 = vpop.permute.xlu0 %4144
      %4146 = vrot.lane.b32.xlu0 %v4056, 32
      %v4147 = vpop.permute.xlu0 %4146
      %4148 = vrot.lane.b32.xlu0 %v4057, 32
      %v4149 = vpop.permute.xlu0 %4148
      %4150 = vrot.lane.b32.xlu0 %v4058, 32
      %v4151 = vpop.permute.xlu0 %4150
      %4152 = vrot.lane.b32.xlu0 %v4059, 32
      %v4153 = vpop.permute.xlu0 %4152
      %4154 = vrot.lane.b32.xlu0 %v4060, 32
      %v4155 = vpop.permute.xlu0 %4154
      %4156 = vrot.lane.b32.xlu0 %v4061, 32
      %v4157 = vpop.permute.xlu0 %4156
      %4158 = vrot.lane.b32.xlu0 %v4062, 32
      %v4159 = vpop.permute.xlu0 %4158
      %4160 = vrot.lane.b32.xlu0 %v4063, 32
      %v4161 = vpop.permute.xlu0 %4160
      %4162 = vrot.lane.b32.xlu0 %v4064, 32
      %v4163 = vpop.permute.xlu0 %4162
      %4164 = vrot.lane.b32.xlu0 %v4065, 32
      %v4165 = vpop.permute.xlu0 %4164
      %4166 = vrot.lane.b32.xlu0 %v4066, 32
      %v4167 = vpop.permute.xlu0 %4166
      %4168 = vrot.lane.b32.xlu0 %v4067, 32
      %v4169 = vpop.permute.xlu0 %4168
      %4170 = vrot.lane.b32.xlu0 %v4068, 32
      %v4171 = vpop.permute.xlu0 %4170
      %4172 = vrot.lane.b32.xlu0 %v4069, 32
      %v4173 = vpop.permute.xlu0 %4172
      %4174 = vrot.lane.b32.xlu0 %v4070, 32
      %v4175 = vpop.permute.xlu0 %4174
      %4176 = vrot.lane.b32.xlu0 %v4071, 32
      %v4177 = vpop.permute.xlu0 %4176
      %4178 = vrot.lane.b32.xlu0 %v4072, 32
      %v4179 = vpop.permute.xlu0 %4178
      %4180 = vrot.lane.b32.xlu0 %v4073, 32
      %v4181 = vpop.permute.xlu0 %4180
      %4218 = vst.msk [vmem:[#allocation6] sm:$0xff] %vm2478, %v4111
      %4219 = vst.msk [vmem:[#allocation6 + $0x8] sm:$0xff] %vm2478, %v4113
      %4220 = vst.msk [vmem:[#allocation6 + $0x10] sm:$0xff] %vm2478, %v4115
      %4221 = vst.msk [vmem:[#allocation6 + $0x18] sm:$0xff] %vm2478, %v4117
      %4222 = vst.msk [vmem:[#allocation6 + $0x20] sm:$0xff] %vm2478, %v4119
      %4223 = vst.msk [vmem:[#allocation6 + $0x28] sm:$0xff] %vm2478, %v4121
      %4224 = vst.msk [vmem:[#allocation6 + $0x30] sm:$0xff] %vm2478, %v4123
      %4225 = vst.msk [vmem:[#allocation6 + $0x38] sm:$0xff] %vm2478, %v4125
      %4226 = vst.msk [vmem:[#allocation6 + $0x40] sm:$0xff] %vm2478, %v4127
      %4227 = vst.msk [vmem:[#allocation6 + $0x48] sm:$0xff] %vm2478, %v4129
      %4228 = vst.msk [vmem:[#allocation6 + $0x50] sm:$0xff] %vm2478, %v4131
      %4229 = vst.msk [vmem:[#allocation6 + $0x58] sm:$0xff] %vm2478, %v4133
      %4230 = vst.msk [vmem:[#allocation6 + $0x60] sm:$0xff] %vm2478, %v4135
      %4231 = vst.msk [vmem:[#allocation6 + $0x68] sm:$0xff] %vm2478, %v4137
      %4232 = vst.msk [vmem:[#allocation6 + $0x70] sm:$0xff] %vm2478, %v4139
      %4233 = vst.msk [vmem:[#allocation6 + $0x78] sm:$0xff] %vm2478, %v4141
      %4234 = vst.msk [vmem:[#allocation6 + $0x80] sm:$0xff] %vm2478, %v4143
      %4235 = vst.msk [vmem:[#allocation6 + $0x88] sm:$0xff] %vm2478, %v4145
      %4236 = vst.msk [vmem:[#allocation6 + $0x90] sm:$0xff] %vm2478, %v4147
      %4237 = vst.msk [vmem:[#allocation6 + $0x98] sm:$0xff] %vm2478, %v4149
      %4238 = vst.msk [vmem:[#allocation6 + $0xa0] sm:$0xff] %vm2478, %v4151
      %4239 = vst.msk [vmem:[#allocation6 + $0xa8] sm:$0xff] %vm2478, %v4153
      %4240 = vst.msk [vmem:[#allocation6 + $0xb0] sm:$0xff] %vm2478, %v4155
      %4241 = vst.msk [vmem:[#allocation6 + $0xb8] sm:$0xff] %vm2478, %v4157
      %4242 = vst.msk [vmem:[#allocation6 + $0xc0] sm:$0xff] %vm2478, %v4159
      %4243 = vst.msk [vmem:[#allocation6 + $0xc8] sm:$0xff] %vm2478, %v4161
      %4244 = vst.msk [vmem:[#allocation6 + $0xd0] sm:$0xff] %vm2478, %v4163
      %4245 = vst.msk [vmem:[#allocation6 + $0xd8] sm:$0xff] %vm2478, %v4165
      %4246 = vst.msk [vmem:[#allocation6 + $0xe0] sm:$0xff] %vm2478, %v4167
      %4247 = vst.msk [vmem:[#allocation6 + $0xe8] sm:$0xff] %vm2478, %v4169
      %4248 = vst.msk [vmem:[#allocation6 + $0xf0] sm:$0xff] %vm2478, %v4171
      %4249 = vst.msk [vmem:[#allocation6 + $0xf8] sm:$0xff] %vm2478, %v4173
      %4250 = vst.msk [vmem:[#allocation6 + $0x100] sm:$0xff] %vm2478, %v4175
      %4251 = vst.msk [vmem:[#allocation6 + $0x108] sm:$0xff] %vm2478, %v4177
      %4252 = vst.msk [vmem:[#allocation6 + $0x110] sm:$0xff] %vm2478, %v4179
      %4253 = vst.msk [vmem:[#allocation6 + $0x118] sm:$0xff] %vm2478, %v4181
      %v4254 = vld [vmem:[#allocation5 + $0x9] sm:$0xff]
      %v4255 = vld [vmem:[#allocation5 + $0x11] sm:$0xff]
      %v4256 = vld [vmem:[#allocation5 + $0x29] sm:$0xff]
      %v4257 = vld [vmem:[#allocation5 + $0x31] sm:$0xff]
      %v4258 = vld [vmem:[#allocation5 + $0x49] sm:$0xff]
      %v4259 = vld [vmem:[#allocation5 + $0x51] sm:$0xff]
      %v4260 = vld [vmem:[#allocation5 + $0x69] sm:$0xff]
      %v4261 = vld [vmem:[#allocation5 + $0x71] sm:$0xff]
      %v4262 = vld [vmem:[#allocation5 + $0x89] sm:$0xff]
      %v4263 = vld [vmem:[#allocation5 + $0x91] sm:$0xff]
      %v4264 = vld [vmem:[#allocation5 + $0xa9] sm:$0xff]
      %v4265 = vld [vmem:[#allocation5 + $0xb1] sm:$0xff]
      %v4266 = vld [vmem:[#allocation5 + $0xc9] sm:$0xff]
      %v4267 = vld [vmem:[#allocation5 + $0xd1] sm:$0xff]
      %v4268 = vld [vmem:[#allocation5 + $0xe9] sm:$0xff]
      %v4269 = vld [vmem:[#allocation5 + $0xf1] sm:$0xff]
      %v4270 = vld [vmem:[#allocation5 + $0x109] sm:$0xff]
      %v4271 = vld [vmem:[#allocation5 + $0x111] sm:$0xff]
      %v4272 = vld [vmem:[#allocation5 + $0x129] sm:$0xff]
      %v4273 = vld [vmem:[#allocation5 + $0x131] sm:$0xff]
      %v4274 = vld [vmem:[#allocation5 + $0x149] sm:$0xff]
      %v4275 = vld [vmem:[#allocation5 + $0x151] sm:$0xff]
      %v4276 = vld [vmem:[#allocation5 + $0x169] sm:$0xff]
      %v4277 = vld [vmem:[#allocation5 + $0x171] sm:$0xff]
      %v4278 = vld [vmem:[#allocation5 + $0x189] sm:$0xff]
      %v4279 = vld [vmem:[#allocation5 + $0x191] sm:$0xff]
      %v4280 = vld [vmem:[#allocation5 + $0x1a9] sm:$0xff]
      %v4281 = vld [vmem:[#allocation5 + $0x1b1] sm:$0xff]
      %v4282 = vld [vmem:[#allocation5 + $0x1c9] sm:$0xff]
      %v4283 = vld [vmem:[#allocation5 + $0x1d1] sm:$0xff]
      %v4284 = vld [vmem:[#allocation5 + $0x1e9] sm:$0xff]
      %v4285 = vld [vmem:[#allocation5 + $0x1f1] sm:$0xff]
      %v4286 = vld [vmem:[#allocation5 + $0x209] sm:$0xff]
      %v4287 = vld [vmem:[#allocation5 + $0x211] sm:$0xff]
      %v4288 = vld [vmem:[#allocation5 + $0x229] sm:$0xff]
      %v4289 = vld [vmem:[#allocation5 + $0x231] sm:$0xff]
      %4326 = vrot.lane.b32.xlu0 %v4254, 64
      %v4327 = vpop.permute.xlu0 %4326
      %4328 = vrot.lane.b32.xlu0 %v4255, 64
      %v4329 = vpop.permute.xlu0 %4328
      %4330 = vrot.lane.b32.xlu0 %v4256, 64
      %v4331 = vpop.permute.xlu0 %4330
      %4332 = vrot.lane.b32.xlu0 %v4257, 64
      %v4333 = vpop.permute.xlu0 %4332
      %4334 = vrot.lane.b32.xlu0 %v4258, 64
      %v4335 = vpop.permute.xlu0 %4334
      %4336 = vrot.lane.b32.xlu0 %v4259, 64
      %v4337 = vpop.permute.xlu0 %4336
      %4338 = vrot.lane.b32.xlu0 %v4260, 64
      %v4339 = vpop.permute.xlu0 %4338
      %4340 = vrot.lane.b32.xlu0 %v4261, 64
      %v4341 = vpop.permute.xlu0 %4340
      %4342 = vrot.lane.b32.xlu0 %v4262, 64
      %v4343 = vpop.permute.xlu0 %4342
      %4344 = vrot.lane.b32.xlu0 %v4263, 64
      %v4345 = vpop.permute.xlu0 %4344
      %4346 = vrot.lane.b32.xlu0 %v4264, 64
      %v4347 = vpop.permute.xlu0 %4346
      %4348 = vrot.lane.b32.xlu0 %v4265, 64
      %v4349 = vpop.permute.xlu0 %4348
      %4350 = vrot.lane.b32.xlu0 %v4266, 64
      %v4351 = vpop.permute.xlu0 %4350
      %4352 = vrot.lane.b32.xlu0 %v4267, 64
      %v4353 = vpop.permute.xlu0 %4352
      %4354 = vrot.lane.b32.xlu0 %v4268, 64
      %v4355 = vpop.permute.xlu0 %4354
      %4356 = vrot.lane.b32.xlu0 %v4269, 64
      %v4357 = vpop.permute.xlu0 %4356
      %4358 = vrot.lane.b32.xlu0 %v4270, 64
      %v4359 = vpop.permute.xlu0 %4358
      %4360 = vrot.lane.b32.xlu0 %v4271, 64
      %v4361 = vpop.permute.xlu0 %4360
      %4362 = vrot.lane.b32.xlu0 %v4272, 64
      %v4363 = vpop.permute.xlu0 %4362
      %4364 = vrot.lane.b32.xlu0 %v4273, 64
      %v4365 = vpop.permute.xlu0 %4364
      %4366 = vrot.lane.b32.xlu0 %v4274, 64
      %v4367 = vpop.permute.xlu0 %4366
      %4368 = vrot.lane.b32.xlu0 %v4275, 64
      %v4369 = vpop.permute.xlu0 %4368
      %4370 = vrot.lane.b32.xlu0 %v4276, 64
      %v4371 = vpop.permute.xlu0 %4370
      %4372 = vrot.lane.b32.xlu0 %v4277, 64
      %v4373 = vpop.permute.xlu0 %4372
      %4374 = vrot.lane.b32.xlu0 %v4278, 64
      %v4375 = vpop.permute.xlu0 %4374
      %4376 = vrot.lane.b32.xlu0 %v4279, 64
      %v4377 = vpop.permute.xlu0 %4376
      %4378 = vrot.lane.b32.xlu0 %v4280, 64
      %v4379 = vpop.permute.xlu0 %4378
      %4380 = vrot.lane.b32.xlu0 %v4281, 64
      %v4381 = vpop.permute.xlu0 %4380
      %4382 = vrot.lane.b32.xlu0 %v4282, 64
      %v4383 = vpop.permute.xlu0 %4382
      %4384 = vrot.lane.b32.xlu0 %v4283, 64
      %v4385 = vpop.permute.xlu0 %4384
      %4386 = vrot.lane.b32.xlu0 %v4284, 64
      %v4387 = vpop.permute.xlu0 %4386
      %4388 = vrot.lane.b32.xlu0 %v4285, 64
      %v4389 = vpop.permute.xlu0 %4388
      %4390 = vrot.lane.b32.xlu0 %v4286, 64
      %v4391 = vpop.permute.xlu0 %4390
      %4392 = vrot.lane.b32.xlu0 %v4287, 64
      %v4393 = vpop.permute.xlu0 %4392
      %4394 = vrot.lane.b32.xlu0 %v4288, 64
      %v4395 = vpop.permute.xlu0 %4394
      %4396 = vrot.lane.b32.xlu0 %v4289, 64
      %v4397 = vpop.permute.xlu0 %4396
      %4434 = vst.msk [vmem:[#allocation6] sm:$0xff] %vm2695, %v4327
      %4435 = vst.msk [vmem:[#allocation6 + $0x8] sm:$0xff] %vm2695, %v4329
      %4436 = vst.msk [vmem:[#allocation6 + $0x10] sm:$0xff] %vm2695, %v4331
      %4437 = vst.msk [vmem:[#allocation6 + $0x18] sm:$0xff] %vm2695, %v4333
      %4438 = vst.msk [vmem:[#allocation6 + $0x20] sm:$0xff] %vm2695, %v4335
      %4439 = vst.msk [vmem:[#allocation6 + $0x28] sm:$0xff] %vm2695, %v4337
      %4440 = vst.msk [vmem:[#allocation6 + $0x30] sm:$0xff] %vm2695, %v4339
      %4441 = vst.msk [vmem:[#allocation6 + $0x38] sm:$0xff] %vm2695, %v4341
      %4442 = vst.msk [vmem:[#allocation6 + $0x40] sm:$0xff] %vm2695, %v4343
      %4443 = vst.msk [vmem:[#allocation6 + $0x48] sm:$0xff] %vm2695, %v4345
      %4444 = vst.msk [vmem:[#allocation6 + $0x50] sm:$0xff] %vm2695, %v4347
      %4445 = vst.msk [vmem:[#allocation6 + $0x58] sm:$0xff] %vm2695, %v4349
      %4446 = vst.msk [vmem:[#allocation6 + $0x60] sm:$0xff] %vm2695, %v4351
      %4447 = vst.msk [vmem:[#allocation6 + $0x68] sm:$0xff] %vm2695, %v4353
      %4448 = vst.msk [vmem:[#allocation6 + $0x70] sm:$0xff] %vm2695, %v4355
      %4449 = vst.msk [vmem:[#allocation6 + $0x78] sm:$0xff] %vm2695, %v4357
      %4450 = vst.msk [vmem:[#allocation6 + $0x80] sm:$0xff] %vm2695, %v4359
      %4451 = vst.msk [vmem:[#allocation6 + $0x88] sm:$0xff] %vm2695, %v4361
      %4452 = vst.msk [vmem:[#allocation6 + $0x90] sm:$0xff] %vm2695, %v4363
      %4453 = vst.msk [vmem:[#allocation6 + $0x98] sm:$0xff] %vm2695, %v4365
      %4454 = vst.msk [vmem:[#allocation6 + $0xa0] sm:$0xff] %vm2695, %v4367
      %4455 = vst.msk [vmem:[#allocation6 + $0xa8] sm:$0xff] %vm2695, %v4369
      %4456 = vst.msk [vmem:[#allocation6 + $0xb0] sm:$0xff] %vm2695, %v4371
      %4457 = vst.msk [vmem:[#allocation6 + $0xb8] sm:$0xff] %vm2695, %v4373
      %4458 = vst.msk [vmem:[#allocation6 + $0xc0] sm:$0xff] %vm2695, %v4375
      %4459 = vst.msk [vmem:[#allocation6 + $0xc8] sm:$0xff] %vm2695, %v4377
      %4460 = vst.msk [vmem:[#allocation6 + $0xd0] sm:$0xff] %vm2695, %v4379
      %4461 = vst.msk [vmem:[#allocation6 + $0xd8] sm:$0xff] %vm2695, %v4381
      %4462 = vst.msk [vmem:[#allocation6 + $0xe0] sm:$0xff] %vm2695, %v4383
      %4463 = vst.msk [vmem:[#allocation6 + $0xe8] sm:$0xff] %vm2695, %v4385
      %4464 = vst.msk [vmem:[#allocation6 + $0xf0] sm:$0xff] %vm2695, %v4387
      %4465 = vst.msk [vmem:[#allocation6 + $0xf8] sm:$0xff] %vm2695, %v4389
      %4466 = vst.msk [vmem:[#allocation6 + $0x100] sm:$0xff] %vm2695, %v4391
      %4467 = vst.msk [vmem:[#allocation6 + $0x108] sm:$0xff] %vm2695, %v4393
      %4468 = vst.msk [vmem:[#allocation6 + $0x110] sm:$0xff] %vm2695, %v4395
      %4469 = vst.msk [vmem:[#allocation6 + $0x118] sm:$0xff] %vm2695, %v4397
      %v4470 = vld [vmem:[#allocation6] sm:$0xff]
      %v4471 = vld [vmem:[#allocation6 + $0x8] sm:$0xff]
      %v4472 = vld [vmem:[#allocation6 + $0x10] sm:$0xff]
      %v4473 = vld [vmem:[#allocation6 + $0x18] sm:$0xff]
      %v4474 = vld [vmem:[#allocation6 + $0x20] sm:$0xff]
      %v4475 = vld [vmem:[#allocation6 + $0x28] sm:$0xff]
      %v4476 = vld [vmem:[#allocation6 + $0x30] sm:$0xff]
      %v4477 = vld [vmem:[#allocation6 + $0x38] sm:$0xff]
      %v4478 = vld [vmem:[#allocation6 + $0x40] sm:$0xff]
      %v4479 = vld [vmem:[#allocation6 + $0x48] sm:$0xff]
      %v4480 = vld [vmem:[#allocation6 + $0x50] sm:$0xff]
      %v4481 = vld [vmem:[#allocation6 + $0x58] sm:$0xff]
      %v4482 = vld [vmem:[#allocation6 + $0x60] sm:$0xff]
      %v4483 = vld [vmem:[#allocation6 + $0x68] sm:$0xff]
      %v4484 = vld [vmem:[#allocation6 + $0x70] sm:$0xff]
      %v4485 = vld [vmem:[#allocation6 + $0x78] sm:$0xff]
      %v4486 = vld [vmem:[#allocation6 + $0x80] sm:$0xff]
      %v4487 = vld [vmem:[#allocation6 + $0x88] sm:$0xff]
      %v4488 = vld [vmem:[#allocation6 + $0x90] sm:$0xff]
      %v4489 = vld [vmem:[#allocation6 + $0x98] sm:$0xff]
      %v4490 = vld [vmem:[#allocation6 + $0xa0] sm:$0xff]
      %v4491 = vld [vmem:[#allocation6 + $0xa8] sm:$0xff]
      %v4492 = vld [vmem:[#allocation6 + $0xb0] sm:$0xff]
      %v4493 = vld [vmem:[#allocation6 + $0xb8] sm:$0xff]
      %v4494 = vld [vmem:[#allocation6 + $0xc0] sm:$0xff]
      %v4495 = vld [vmem:[#allocation6 + $0xc8] sm:$0xff]
      %v4496 = vld [vmem:[#allocation6 + $0xd0] sm:$0xff]
      %v4497 = vld [vmem:[#allocation6 + $0xd8] sm:$0xff]
      %v4498 = vld [vmem:[#allocation6 + $0xe0] sm:$0xff]
      %v4499 = vld [vmem:[#allocation6 + $0xe8] sm:$0xff]
      %v4500 = vld [vmem:[#allocation6 + $0xf0] sm:$0xff]
      %v4501 = vld [vmem:[#allocation6 + $0xf8] sm:$0xff]
      %v4502 = vld [vmem:[%s2764] sm:$0xff]
      %v4503 = vld [vmem:[%s2764 + $0x8] sm:$0xff]
      %v4504 = vld [vmem:[%s2764 + $0x10] sm:$0xff]
      %v4505 = vld [vmem:[%s2764 + $0x18] sm:$0xff]
      %v4506 = vld [vmem:[%s2764 + $0x20] sm:$0xff]
      %v4507 = vld [vmem:[%s2764 + $0x28] sm:$0xff]
      %v4508 = vld [vmem:[%s2764 + $0x30] sm:$0xff]
      %v4509 = vld [vmem:[%s2764 + $0x38] sm:$0xff]
      %v4510 = vld [vmem:[%s2764 + $0x40] sm:$0xff]
      %v4511 = vld [vmem:[%s2764 + $0x48] sm:$0xff]
      %v4512 = vld [vmem:[%s2764 + $0x50] sm:$0xff]
      %v4513 = vld [vmem:[%s2764 + $0x58] sm:$0xff]
      %v4514 = vld [vmem:[%s2764 + $0x60] sm:$0xff]
      %v4515 = vld [vmem:[%s2764 + $0x68] sm:$0xff]
      %v4516 = vld [vmem:[%s2764 + $0x70] sm:$0xff]
      %v4517 = vld [vmem:[%s2764 + $0x78] sm:$0xff]
      %v4518 = vld [vmem:[%s2764 + $0x80] sm:$0xff]
      %v4519 = vld [vmem:[%s2764 + $0x88] sm:$0xff]
      %v4520 = vld [vmem:[%s2764 + $0x90] sm:$0xff]
      %v4521 = vld [vmem:[%s2764 + $0x98] sm:$0xff]
      %v4522 = vld [vmem:[%s2764 + $0xa0] sm:$0xff]
      %v4523 = vld [vmem:[%s2764 + $0xa8] sm:$0xff]
      %v4524 = vld [vmem:[%s2764 + $0xb0] sm:$0xff]
      %v4525 = vld [vmem:[%s2764 + $0xb8] sm:$0xff]
      %v4526 = vld [vmem:[%s2764 + $0xc0] sm:$0xff]
      %v4527 = vld [vmem:[%s2764 + $0xc8] sm:$0xff]
      %v4528 = vld [vmem:[%s2764 + $0xd0] sm:$0xff]
      %v4529 = vld [vmem:[%s2764 + $0xd8] sm:$0xff]
      %v4530 = vld [vmem:[%s2764 + $0xe0] sm:$0xff]
      %v4531 = vld [vmem:[%s2764 + $0xe8] sm:$0xff]
      %v4532 = vld [vmem:[%s2764 + $0xf0] sm:$0xff]
      %v4533 = vld [vmem:[%s2764 + $0xf8] sm:$0xff]
      %v4535 = vsel %vm2797, %v4502, 0
      %v4538 = vsel %vm2797, %v4503, 0
      %v4541 = vsel %vm2797, %v4504, 0
      %v4544 = vsel %vm2797, %v4505, 0
      %v4547 = vsel %vm2797, %v4506, 0
      %v4550 = vsel %vm2797, %v4507, 0
      %v4553 = vsel %vm2797, %v4508, 0
      %v4556 = vsel %vm2797, %v4509, 0
      %v4559 = vsel %vm2797, %v4510, 0
      %v4562 = vsel %vm2797, %v4511, 0
      %v4565 = vsel %vm2797, %v4512, 0
      %v4568 = vsel %vm2797, %v4513, 0
      %v4571 = vsel %vm2797, %v4514, 0
      %v4574 = vsel %vm2797, %v4515, 0
      %v4577 = vsel %vm2797, %v4516, 0
      %v4580 = vsel %vm2797, %v4517, 0
      %v4583 = vsel %vm2797, %v4518, 0
      %v4586 = vsel %vm2797, %v4519, 0
      %v4589 = vsel %vm2797, %v4520, 0
      %v4592 = vsel %vm2797, %v4521, 0
      %v4595 = vsel %vm2797, %v4522, 0
      %v4598 = vsel %vm2797, %v4523, 0
      %v4601 = vsel %vm2797, %v4524, 0
      %v4604 = vsel %vm2797, %v4525, 0
      %v4607 = vsel %vm2797, %v4526, 0
      %v4610 = vsel %vm2797, %v4527, 0
      %v4613 = vsel %vm2797, %v4528, 0
      %v4616 = vsel %vm2797, %v4529, 0
      %v4619 = vsel %vm2797, %v4530, 0
      %v4622 = vsel %vm2797, %v4531, 0
      %v4625 = vsel %vm2797, %v4532, 0
      %v4628 = vsel %vm2797, %v4533, 0
      %4630 = vmatprep.subr.mxu0 0.0
      %4631 = vmatpush1.msra.mxu0 %v3941
      %4632 = vmatprep.subr.mxu0 0.0
      %4633 = vmatpush1.msra.mxu0 %v3942
      %4634 = vmatprep.subr.mxu0 0.0
      %4635 = vmatpush1.msra.mxu0 %v3943
      %4636 = vmatprep.subr.mxu0 0.0
      %4637 = vmatpush1.msra.mxu0 %v3944
      %4638 = vmatprep.subr.mxu0 0.0
      %4639 = vmatpush1.msra.mxu0 %v3945
      %4640 = vmatprep.subr.mxu0 0.0
      %4641 = vmatpush1.msra.mxu0 %v3946
      %4642 = vmatprep.subr.mxu0 0.0
      %4643 = vmatpush1.msra.mxu0 %v3947
      %4644 = vmatprep.subr.mxu0 0.0
      %4645 = vmatpush1.msra.mxu0 %v3948
      %4646 = vmatprep.subr.mxu0 0.0
      %4647 = vmatpush1.msra.mxu0 %v3949
      %4648 = vmatprep.subr.mxu0 0.0
      %4649 = vmatpush1.msra.mxu0 %v3950
      %4650 = vmatprep.subr.mxu0 0.0
      %4651 = vmatpush1.msra.mxu0 %v3951
      %4652 = vmatprep.subr.mxu0 0.0
      %4653 = vmatpush1.msra.mxu0 %v3952
      %4654 = vmatprep.subr.mxu0 0.0
      %4655 = vmatpush1.msra.mxu0 0.0
      %4656 = vmatprep.subr.mxu0 0.0
      %4657 = vmatpush1.msra.mxu0 0.0
      %4658 = vmatprep.subr.mxu0 0.0
      %4659 = vmatpush1.msra.mxu0 0.0
      %4660 = vmatprep.subr.mxu0 0.0
      %4661 = vmatpush1.msra.mxu0 0.0
      %4662 = vmatprep.subr.mxu0 0.0
      %4663 = vmatpush1.msra.mxu0 0.0
      %4664 = vmatprep.subr.mxu0 0.0
      %4665 = vmatpush1.msra.mxu0 0.0
      %4666 = vmatprep.subr.mxu0 0.0
      %4667 = vmatpush1.msra.mxu0 0.0
      %4668 = vmatprep.subr.mxu0 0.0
      %4669 = vmatpush1.msra.mxu0 0.0
      %4670 = vmatprep.subr.mxu0 0.0
      %4671 = vmatpush1.msra.mxu0 0.0
      %4672 = vmatprep.subr.mxu0 0.0
      %4673 = vmatpush1.msra.mxu0 0.0
      %4674 = vmatprep.subr.mxu0 0.0
      %4675 = vmatpush1.msra.mxu0 0.0
      %4676 = vmatprep.subr.mxu0 0.0
      %4677 = vmatpush1.msra.mxu0 0.0
      %4678 = vmatprep.subr.mxu0 0.0
      %4679 = vmatpush1.msra.mxu0 0.0
      %4680 = vmatprep.subr.mxu0 0.0
      %4681 = vmatpush1.msra.mxu0 0.0
      %4682 = vmatprep.subr.mxu0 0.0
      %4683 = vmatpush1.msra.mxu0 0.0
      %4684 = vmatprep.subr.mxu0 0.0
      %4685 = vmatpush1.msra.mxu0 0.0
      %4686 = vmatprep.subr.mxu0 0.0
      %4687 = vmatpush1.msra.mxu0 0.0
      %4688 = vmatprep.subr.mxu0 0.0
      %4689 = vmatpush1.msra.mxu0 0.0
      %4690 = vmatprep.subr.mxu0 0.0
      %4691 = vmatpush1.msra.mxu0 0.0
      %4692 = vmatprep.subr.mxu0 0.0
      %4693 = vmatpush1.msra.mxu0 0.0
      %4694 = vmatprep.mubr.f32.mxu0 0.0
      %4695 = vmatmul.mubr.f32.gmra.mrb[0].mxu0 %v4535
      %v4696 = vpop.f32.mrb[0].mxu0
      %v4697 = vadd.f32 0.0, %v4696
      %v4698 = vpop.f32.mrb[0].mxu0
      %4699 = vmatprep.mubr.f32.mxu0 0.0
      %4700 = vmatmul.mubr.f32.gmra.mrb[0].mxu0 %v4538
      %v4701 = vpop.f32.mrb[0].mxu0
      %v4702 = vadd.f32 0.0, %v4701
      %v4703 = vpop.f32.mrb[0].mxu0
      %4704 = vmatprep.mubr.f32.mxu0 0.0
      %4705 = vmatmul.mubr.f32.gmra.mrb[0].mxu0 %v4541
      %v4706 = vpop.f32.mrb[0].mxu0
      %v4707 = vadd.f32 0.0, %v4706
      %v4708 = vpop.f32.mrb[0].mxu0
      %4709 = vmatprep.mubr.f32.mxu0 0.0
      %4710 = vmatmul.mubr.f32.gmra.mrb[0].mxu0 %v4544
      %v4711 = vpop.f32.mrb[0].mxu0
      %v4712 = vadd.f32 0.0, %v4711
      %v4713 = vpop.f32.mrb[0].mxu0
      %4714 = vmatprep.mubr.f32.mxu0 0.0
      %4715 = vmatmul.mubr.f32.gmra.mrb[0].mxu0 %v4547
      %v4716 = vpop.f32.mrb[0].mxu0
      %v4717 = vadd.f32 0.0, %v4716
      %v4718 = vpop.f32.mrb[0].mxu0
      %4719 = vmatprep.mubr.f32.mxu0 0.0
      %4720 = vmatmul.mubr.f32.gmra.mrb[0].mxu0 %v4550
      %v4721 = vpop.f32.mrb[0].mxu0
      %v4722 = vadd.f32 0.0, %v4721
      %v4723 = vpop.f32.mrb[0].mxu0
      %4724 = vmatprep.mubr.f32.mxu0 0.0
      %4725 = vmatmul.mubr.f32.gmra.mrb[0].mxu0 %v4553
      %v4726 = vpop.f32.mrb[0].mxu0
      %v4727 = vadd.f32 0.0, %v4726
      %v4728 = vpop.f32.mrb[0].mxu0
      %4729 = vmatprep.mubr.f32.mxu0 0.0
      %4730 = vmatmul.mubr.f32.gmra.mrb[0].mxu0 %v4556
      %v4731 = vpop.f32.mrb[0].mxu0
      %v4732 = vadd.f32 0.0, %v4731
      %v4733 = vpop.f32.mrb[0].mxu0
      %4734 = vmatprep.mubr.f32.mxu0 0.0
      %4735 = vmatmul.mubr.f32.gmra.mrb[0].mxu0 %v4559
      %v4736 = vpop.f32.mrb[0].mxu0
      %v4737 = vadd.f32 0.0, %v4736
      %v4738 = vpop.f32.mrb[0].mxu0
      %4739 = vmatprep.mubr.f32.mxu0 0.0
      %4740 = vmatmul.mubr.f32.gmra.mrb[0].mxu0 %v4562
      %v4741 = vpop.f32.mrb[0].mxu0
      %v4742 = vadd.f32 0.0, %v4741
      %v4743 = vpop.f32.mrb[0].mxu0
      %4744 = vmatprep.mubr.f32.mxu0 0.0
      %4745 = vmatmul.mubr.f32.gmra.mrb[0].mxu0 %v4565
      %v4746 = vpop.f32.mrb[0].mxu0
      %v4747 = vadd.f32 0.0, %v4746
      %v4748 = vpop.f32.mrb[0].mxu0
      %4749 = vmatprep.mubr.f32.mxu0 0.0
      %4750 = vmatmul.mubr.f32.gmra.mrb[0].mxu0 %v4568
      %v4751 = vpop.f32.mrb[0].mxu0
      %v4752 = vadd.f32 0.0, %v4751
      %v4753 = vpop.f32.mrb[0].mxu0
      %4754 = vmatprep.mubr.f32.mxu0 0.0
      %4755 = vmatmul.mubr.f32.gmra.mrb[0].mxu0 %v4571
      %v4756 = vpop.f32.mrb[0].mxu0
      %v4757 = vadd.f32 0.0, %v4756
      %v4758 = vpop.f32.mrb[0].mxu0
      %4759 = vmatprep.mubr.f32.mxu0 0.0
      %4760 = vmatmul.mubr.f32.gmra.mrb[0].mxu0 %v4574
      %v4761 = vpop.f32.mrb[0].mxu0
      %v4762 = vadd.f32 0.0, %v4761
      %v4763 = vpop.f32.mrb[0].mxu0
      %4764 = vmatprep.mubr.f32.mxu0 0.0
      %4765 = vmatmul.mubr.f32.gmra.mrb[0].mxu0 %v4577
      %v4766 = vpop.f32.mrb[0].mxu0
      %v4767 = vadd.f32 0.0, %v4766
      %v4768 = vpop.f32.mrb[0].mxu0
      %4769 = vmatprep.mubr.f32.mxu0 0.0
      %4770 = vmatmul.mubr.f32.gmra.mrb[0].mxu0 %v4580
      %v4771 = vpop.f32.mrb[0].mxu0
      %v4772 = vadd.f32 0.0, %v4771
      %v4773 = vpop.f32.mrb[0].mxu0
      %4774 = vmatprep.mubr.f32.mxu0 0.0
      %4775 = vmatmul.mubr.f32.gmra.mrb[0].mxu0 %v4583
      %v4776 = vpop.f32.mrb[0].mxu0
      %v4777 = vadd.f32 0.0, %v4776
      %v4778 = vpop.f32.mrb[0].mxu0
      %4779 = vmatprep.mubr.f32.mxu0 0.0
      %4780 = vmatmul.mubr.f32.gmra.mrb[0].mxu0 %v4586
      %v4781 = vpop.f32.mrb[0].mxu0
      %v4782 = vadd.f32 0.0, %v4781
      %v4783 = vpop.f32.mrb[0].mxu0
      %4784 = vmatprep.mubr.f32.mxu0 0.0
      %4785 = vmatmul.mubr.f32.gmra.mrb[0].mxu0 %v4589
      %v4786 = vpop.f32.mrb[0].mxu0
      %v4787 = vadd.f32 0.0, %v4786
      %v4788 = vpop.f32.mrb[0].mxu0
      %4789 = vmatprep.mubr.f32.mxu0 0.0
      %4790 = vmatmul.mubr.f32.gmra.mrb[0].mxu0 %v4592
      %v4791 = vpop.f32.mrb[0].mxu0
      %v4792 = vadd.f32 0.0, %v4791
      %v4793 = vpop.f32.mrb[0].mxu0
      %4794 = vmatprep.mubr.f32.mxu0 0.0
      %4795 = vmatmul.mubr.f32.gmra.mrb[0].mxu0 %v4595
      %v4796 = vpop.f32.mrb[0].mxu0
      %v4797 = vadd.f32 0.0, %v4796
      %v4798 = vpop.f32.mrb[0].mxu0
      %4799 = vmatprep.mubr.f32.mxu0 0.0
      %4800 = vmatmul.mubr.f32.gmra.mrb[0].mxu0 %v4598
      %v4801 = vpop.f32.mrb[0].mxu0
      %v4802 = vadd.f32 0.0, %v4801
      %v4803 = vpop.f32.mrb[0].mxu0
      %4804 = vmatprep.mubr.f32.mxu0 0.0
      %4805 = vmatmul.mubr.f32.gmra.mrb[0].mxu0 %v4601
      %v4806 = vpop.f32.mrb[0].mxu0
      %v4807 = vadd.f32 0.0, %v4806
      %v4808 = vpop.f32.mrb[0].mxu0
      %4809 = vmatprep.mubr.f32.mxu0 0.0
      %4810 = vmatmul.mubr.f32.gmra.mrb[0].mxu0 %v4604
      %v4811 = vpop.f32.mrb[0].mxu0
      %v4812 = vadd.f32 0.0, %v4811
      %v4813 = vpop.f32.mrb[0].mxu0
      %4814 = vmatprep.mubr.f32.mxu0 0.0
      %4815 = vmatmul.mubr.f32.gmra.mrb[0].mxu0 %v4607
      %v4816 = vpop.f32.mrb[0].mxu0
      %v4817 = vadd.f32 0.0, %v4816
      %v4818 = vpop.f32.mrb[0].mxu0
      %4819 = vmatprep.mubr.f32.mxu0 0.0
      %4820 = vmatmul.mubr.f32.gmra.mrb[0].mxu0 %v4610
      %v4821 = vpop.f32.mrb[0].mxu0
      %v4822 = vadd.f32 0.0, %v4821
      %v4823 = vpop.f32.mrb[0].mxu0
      %4824 = vmatprep.mubr.f32.mxu0 0.0
      %4825 = vmatmul.mubr.f32.gmra.mrb[0].mxu0 %v4613
      %v4826 = vpop.f32.mrb[0].mxu0
      %v4827 = vadd.f32 0.0, %v4826
      %v4828 = vpop.f32.mrb[0].mxu0
      %4829 = vmatprep.mubr.f32.mxu0 0.0
      %4830 = vmatmul.mubr.f32.gmra.mrb[0].mxu0 %v4616
      %v4831 = vpop.f32.mrb[0].mxu0
      %v4832 = vadd.f32 0.0, %v4831
      %v4833 = vpop.f32.mrb[0].mxu0
      %4834 = vmatprep.mubr.f32.mxu0 0.0
      %4835 = vmatmul.mubr.f32.gmra.mrb[0].mxu0 %v4619
      %v4836 = vpop.f32.mrb[0].mxu0
      %v4837 = vadd.f32 0.0, %v4836
      %v4838 = vpop.f32.mrb[0].mxu0
      %4839 = vmatprep.mubr.f32.mxu0 0.0
      %4840 = vmatmul.mubr.f32.gmra.mrb[0].mxu0 %v4622
      %v4841 = vpop.f32.mrb[0].mxu0
      %v4842 = vadd.f32 0.0, %v4841
      %v4843 = vpop.f32.mrb[0].mxu0
      %4844 = vmatprep.mubr.f32.mxu0 0.0
      %4845 = vmatmul.mubr.f32.gmra.mrb[0].mxu0 %v4625
      %v4846 = vpop.f32.mrb[0].mxu0
      %v4847 = vadd.f32 0.0, %v4846
      %v4848 = vpop.f32.mrb[0].mxu0
      %4849 = vmatprep.mubr.f32.mxu0 0.0
      %4850 = vmatmul.mubr.f32.gmra.mrb[0].mxu0 %v4628
      %v4851 = vpop.f32.mrb[0].mxu0
      %v4852 = vadd.f32 0.0, %v4851
      %v4853 = vpop.f32.mrb[0].mxu0
      %4854 = vdwg.mxu0
      %v4856 = vsel %vm2797, %v4470, 0
      %v4859 = vsel %vm2797, %v4471, 0
      %v4862 = vsel %vm2797, %v4472, 0
      %v4865 = vsel %vm2797, %v4473, 0
      %v4868 = vsel %vm2797, %v4474, 0
      %v4871 = vsel %vm2797, %v4475, 0
      %v4874 = vsel %vm2797, %v4476, 0
      %v4877 = vsel %vm2797, %v4477, 0
      %v4880 = vsel %vm2797, %v4478, 0
      %v4883 = vsel %vm2797, %v4479, 0
      %v4886 = vsel %vm2797, %v4480, 0
      %v4889 = vsel %vm2797, %v4481, 0
      %v4892 = vsel %vm2797, %v4482, 0
      %v4895 = vsel %vm2797, %v4483, 0
      %v4898 = vsel %vm2797, %v4484, 0
      %v4901 = vsel %vm2797, %v4485, 0
      %v4904 = vsel %vm2797, %v4486, 0
      %v4907 = vsel %vm2797, %v4487, 0
      %v4910 = vsel %vm2797, %v4488, 0
      %v4913 = vsel %vm2797, %v4489, 0
      %v4916 = vsel %vm2797, %v4490, 0
      %v4919 = vsel %vm2797, %v4491, 0
      %v4922 = vsel %vm2797, %v4492, 0
      %v4925 = vsel %vm2797, %v4493, 0
      %v4928 = vsel %vm2797, %v4494, 0
      %v4931 = vsel %vm2797, %v4495, 0
      %v4934 = vsel %vm2797, %v4496, 0
      %v4937 = vsel %vm2797, %v4497, 0
      %v4940 = vsel %vm2797, %v4498, 0
      %v4943 = vsel %vm2797, %v4499, 0
      %v4946 = vsel %vm2797, %v4500, 0
      %v4949 = vsel %vm2797, %v4501, 0
      %4951 = vmatprep.subr.mxu0 0.0
      %4952 = vmatpush1.msra.mxu0 %v3929
      %4953 = vmatprep.subr.mxu0 0.0
      %4954 = vmatpush1.msra.mxu0 %v3930
      %4955 = vmatprep.subr.mxu0 0.0
      %4956 = vmatpush1.msra.mxu0 %v3931
      %4957 = vmatprep.subr.mxu0 0.0
      %4958 = vmatpush1.msra.mxu0 %v3932
      %4959 = vmatprep.subr.mxu0 0.0
      %4960 = vmatpush1.msra.mxu0 %v3933
      %4961 = vmatprep.subr.mxu0 0.0
      %4962 = vmatpush1.msra.mxu0 %v3934
      %4963 = vmatprep.subr.mxu0 0.0
      %4964 = vmatpush1.msra.mxu0 %v3935
      %4965 = vmatprep.subr.mxu0 0.0
      %4966 = vmatpush1.msra.mxu0 %v3936
      %4967 = vmatprep.subr.mxu0 0.0
      %4968 = vmatpush1.msra.mxu0 %v3937
      %4969 = vmatprep.subr.mxu0 0.0
      %4970 = vmatpush1.msra.mxu0 %v3938
      %4971 = vmatprep.subr.mxu0 0.0
      %4972 = vmatpush1.msra.mxu0 %v3939
      %4973 = vmatprep.subr.mxu0 0.0
      %4974 = vmatpush1.msra.mxu0 %v3940
      %4975 = vmatprep.subr.mxu0 0.0
      %4976 = vmatpush1.msra.mxu0 0.0
      %4977 = vmatprep.subr.mxu0 0.0
      %4978 = vmatpush1.msra.mxu0 0.0
      %4979 = vmatprep.subr.mxu0 0.0
      %4980 = vmatpush1.msra.mxu0 0.0
      %4981 = vmatprep.subr.mxu0 0.0
      %4982 = vmatpush1.msra.mxu0 0.0
      %4983 = vmatprep.subr.mxu0 0.0
      %4984 = vmatpush1.msra.mxu0 0.0
      %4985 = vmatprep.subr.mxu0 0.0
      %4986 = vmatpush1.msra.mxu0 0.0
      %4987 = vmatprep.subr.mxu0 0.0
      %4988 = vmatpush1.msra.mxu0 0.0
      %4989 = vmatprep.subr.mxu0 0.0
      %4990 = vmatpush1.msra.mxu0 0.0
      %4991 = vmatprep.subr.mxu0 0.0
      %4992 = vmatpush1.msra.mxu0 0.0
      %4993 = vmatprep.subr.mxu0 0.0
      %4994 = vmatpush1.msra.mxu0 0.0
      %4995 = vmatprep.subr.mxu0 0.0
      %4996 = vmatpush1.msra.mxu0 0.0
      %4997 = vmatprep.subr.mxu0 0.0
      %4998 = vmatpush1.msra.mxu0 0.0
      %4999 = vmatprep.subr.mxu0 0.0
      %5000 = vmatpush1.msra.mxu0 0.0
      %5001 = vmatprep.subr.mxu0 0.0
      %5002 = vmatpush1.msra.mxu0 0.0
      %5003 = vmatprep.subr.mxu0 0.0
      %5004 = vmatpush1.msra.mxu0 0.0
      %5005 = vmatprep.subr.mxu0 0.0
      %5006 = vmatpush1.msra.mxu0 0.0
      %5007 = vmatprep.subr.mxu0 0.0
      %5008 = vmatpush1.msra.mxu0 0.0
      %5009 = vmatprep.subr.mxu0 0.0
      %5010 = vmatpush1.msra.mxu0 0.0
      %5011 = vmatprep.subr.mxu0 0.0
      %5012 = vmatpush1.msra.mxu0 0.0
      %5013 = vmatprep.subr.mxu0 0.0
      %5014 = vmatpush1.msra.mxu0 0.0
      %5015 = vmatprep.mubr.f32.mxu0 0.0
      %5016 = vmatmul.mubr.f32.gmra.mrb[0].mxu0 %v4856
      %v5017 = vpop.f32.mrb[0].mxu0
      %v5018 = vadd.f32 %v4697, %v5017
      %v5019 = vpop.f32.mrb[0].mxu0
      %5020 = vmatprep.mubr.f32.mxu0 0.0
      %5021 = vmatmul.mubr.f32.gmra.mrb[0].mxu0 %v4859
      %v5022 = vpop.f32.mrb[0].mxu0
      %v5023 = vadd.f32 %v4702, %v5022
      %v5024 = vpop.f32.mrb[0].mxu0
      %5025 = vmatprep.mubr.f32.mxu0 0.0
      %5026 = vmatmul.mubr.f32.gmra.mrb[0].mxu0 %v4862
      %v5027 = vpop.f32.mrb[0].mxu0
      %v5028 = vadd.f32 %v4707, %v5027
      %v5029 = vpop.f32.mrb[0].mxu0
      %5030 = vmatprep.mubr.f32.mxu0 0.0
      %5031 = vmatmul.mubr.f32.gmra.mrb[0].mxu0 %v4865
      %v5032 = vpop.f32.mrb[0].mxu0
      %v5033 = vadd.f32 %v4712, %v5032
      %v5034 = vpop.f32.mrb[0].mxu0
      %5035 = vmatprep.mubr.f32.mxu0 0.0
      %5036 = vmatmul.mubr.f32.gmra.mrb[0].mxu0 %v4868
      %v5037 = vpop.f32.mrb[0].mxu0
      %v5038 = vadd.f32 %v4717, %v5037
      %v5039 = vpop.f32.mrb[0].mxu0
      %5040 = vmatprep.mubr.f32.mxu0 0.0
      %5041 = vmatmul.mubr.f32.gmra.mrb[0].mxu0 %v4871
      %v5042 = vpop.f32.mrb[0].mxu0
      %v5043 = vadd.f32 %v4722, %v5042
      %v5044 = vpop.f32.mrb[0].mxu0
      %5045 = vmatprep.mubr.f32.mxu0 0.0
      %5046 = vmatmul.mubr.f32.gmra.mrb[0].mxu0 %v4874
      %v5047 = vpop.f32.mrb[0].mxu0
      %v5048 = vadd.f32 %v4727, %v5047
      %v5049 = vpop.f32.mrb[0].mxu0
      %5050 = vmatprep.mubr.f32.mxu0 0.0
      %5051 = vmatmul.mubr.f32.gmra.mrb[0].mxu0 %v4877
      %v5052 = vpop.f32.mrb[0].mxu0
      %v5053 = vadd.f32 %v4732, %v5052
      %v5054 = vpop.f32.mrb[0].mxu0
      %5055 = vmatprep.mubr.f32.mxu0 0.0
      %5056 = vmatmul.mubr.f32.gmra.mrb[0].mxu0 %v4880
      %v5057 = vpop.f32.mrb[0].mxu0
      %v5058 = vadd.f32 %v4737, %v5057
      %v5059 = vpop.f32.mrb[0].mxu0
      %5060 = vmatprep.mubr.f32.mxu0 0.0
      %5061 = vmatmul.mubr.f32.gmra.mrb[0].mxu0 %v4883
      %v5062 = vpop.f32.mrb[0].mxu0
      %v5063 = vadd.f32 %v4742, %v5062
      %v5064 = vpop.f32.mrb[0].mxu0
      %5065 = vmatprep.mubr.f32.mxu0 0.0
      %5066 = vmatmul.mubr.f32.gmra.mrb[0].mxu0 %v4886
      %v5067 = vpop.f32.mrb[0].mxu0
      %v5068 = vadd.f32 %v4747, %v5067
      %v5069 = vpop.f32.mrb[0].mxu0
      %5070 = vmatprep.mubr.f32.mxu0 0.0
      %5071 = vmatmul.mubr.f32.gmra.mrb[0].mxu0 %v4889
      %v5072 = vpop.f32.mrb[0].mxu0
      %v5073 = vadd.f32 %v4752, %v5072
      %v5074 = vpop.f32.mrb[0].mxu0
      %5075 = vmatprep.mubr.f32.mxu0 0.0
      %5076 = vmatmul.mubr.f32.gmra.mrb[0].mxu0 %v4892
      %v5077 = vpop.f32.mrb[0].mxu0
      %v5078 = vadd.f32 %v4757, %v5077
      %v5079 = vpop.f32.mrb[0].mxu0
      %5080 = vmatprep.mubr.f32.mxu0 0.0
      %5081 = vmatmul.mubr.f32.gmra.mrb[0].mxu0 %v4895
      %v5082 = vpop.f32.mrb[0].mxu0
      %v5083 = vadd.f32 %v4762, %v5082
      %v5084 = vpop.f32.mrb[0].mxu0
      %5085 = vmatprep.mubr.f32.mxu0 0.0
      %5086 = vmatmul.mubr.f32.gmra.mrb[0].mxu0 %v4898
      %v5087 = vpop.f32.mrb[0].mxu0
      %v5088 = vadd.f32 %v4767, %v5087
      %v5089 = vpop.f32.mrb[0].mxu0
      %5090 = vmatprep.mubr.f32.mxu0 0.0
      %5091 = vmatmul.mubr.f32.gmra.mrb[0].mxu0 %v4901
      %v5092 = vpop.f32.mrb[0].mxu0
      %v5093 = vadd.f32 %v4772, %v5092
      %v5094 = vpop.f32.mrb[0].mxu0
      %5095 = vmatprep.mubr.f32.mxu0 0.0
      %5096 = vmatmul.mubr.f32.gmra.mrb[0].mxu0 %v4904
      %v5097 = vpop.f32.mrb[0].mxu0
      %v5098 = vadd.f32 %v4777, %v5097
      %v5099 = vpop.f32.mrb[0].mxu0
      %5100 = vmatprep.mubr.f32.mxu0 0.0
      %5101 = vmatmul.mubr.f32.gmra.mrb[0].mxu0 %v4907
      %v5102 = vpop.f32.mrb[0].mxu0
      %v5103 = vadd.f32 %v4782, %v5102
      %v5104 = vpop.f32.mrb[0].mxu0
      %5105 = vmatprep.mubr.f32.mxu0 0.0
      %5106 = vmatmul.mubr.f32.gmra.mrb[0].mxu0 %v4910
      %v5107 = vpop.f32.mrb[0].mxu0
      %v5108 = vadd.f32 %v4787, %v5107
      %v5109 = vpop.f32.mrb[0].mxu0
      %5110 = vmatprep.mubr.f32.mxu0 0.0
      %5111 = vmatmul.mubr.f32.gmra.mrb[0].mxu0 %v4913
      %v5112 = vpop.f32.mrb[0].mxu0
      %v5113 = vadd.f32 %v4792, %v5112
      %v5114 = vpop.f32.mrb[0].mxu0
      %5115 = vmatprep.mubr.f32.mxu0 0.0
      %5116 = vmatmul.mubr.f32.gmra.mrb[0].mxu0 %v4916
      %v5117 = vpop.f32.mrb[0].mxu0
      %v5118 = vadd.f32 %v4797, %v5117
      %v5119 = vpop.f32.mrb[0].mxu0
      %5120 = vmatprep.mubr.f32.mxu0 0.0
      %5121 = vmatmul.mubr.f32.gmra.mrb[0].mxu0 %v4919
      %v5122 = vpop.f32.mrb[0].mxu0
      %v5123 = vadd.f32 %v4802, %v5122
      %v5124 = vpop.f32.mrb[0].mxu0
      %5125 = vmatprep.mubr.f32.mxu0 0.0
      %5126 = vmatmul.mubr.f32.gmra.mrb[0].mxu0 %v4922
      %v5127 = vpop.f32.mrb[0].mxu0
      %v5128 = vadd.f32 %v4807, %v5127
      %v5129 = vpop.f32.mrb[0].mxu0
      %5130 = vmatprep.mubr.f32.mxu0 0.0
      %5131 = vmatmul.mubr.f32.gmra.mrb[0].mxu0 %v4925
      %v5132 = vpop.f32.mrb[0].mxu0
      %v5133 = vadd.f32 %v4812, %v5132
      %v5134 = vpop.f32.mrb[0].mxu0
      %5135 = vmatprep.mubr.f32.mxu0 0.0
      %5136 = vmatmul.mubr.f32.gmra.mrb[0].mxu0 %v4928
      %v5137 = vpop.f32.mrb[0].mxu0
      %v5138 = vadd.f32 %v4817, %v5137
      %v5139 = vpop.f32.mrb[0].mxu0
      %5140 = vmatprep.mubr.f32.mxu0 0.0
      %5141 = vmatmul.mubr.f32.gmra.mrb[0].mxu0 %v4931
      %v5142 = vpop.f32.mrb[0].mxu0
      %v5143 = vadd.f32 %v4822, %v5142
      %v5144 = vpop.f32.mrb[0].mxu0
      %5145 = vmatprep.mubr.f32.mxu0 0.0
      %5146 = vmatmul.mubr.f32.gmra.mrb[0].mxu0 %v4934
      %v5147 = vpop.f32.mrb[0].mxu0
      %v5148 = vadd.f32 %v4827, %v5147
      %v5149 = vpop.f32.mrb[0].mxu0
      %5150 = vmatprep.mubr.f32.mxu0 0.0
      %5151 = vmatmul.mubr.f32.gmra.mrb[0].mxu0 %v4937
      %v5152 = vpop.f32.mrb[0].mxu0
      %v5153 = vadd.f32 %v4832, %v5152
      %v5154 = vpop.f32.mrb[0].mxu0
      %5155 = vmatprep.mubr.f32.mxu0 0.0
      %5156 = vmatmul.mubr.f32.gmra.mrb[0].mxu0 %v4940
      %v5157 = vpop.f32.mrb[0].mxu0
      %v5158 = vadd.f32 %v4837, %v5157
      %v5159 = vpop.f32.mrb[0].mxu0
      %5160 = vmatprep.mubr.f32.mxu0 0.0
      %5161 = vmatmul.mubr.f32.gmra.mrb[0].mxu0 %v4943
      %v5162 = vpop.f32.mrb[0].mxu0
      %v5163 = vadd.f32 %v4842, %v5162
      %v5164 = vpop.f32.mrb[0].mxu0
      %5165 = vmatprep.mubr.f32.mxu0 0.0
      %5166 = vmatmul.mubr.f32.gmra.mrb[0].mxu0 %v4946
      %v5167 = vpop.f32.mrb[0].mxu0
      %v5168 = vadd.f32 %v4847, %v5167
      %v5169 = vpop.f32.mrb[0].mxu0
      %5170 = vmatprep.mubr.f32.mxu0 0.0
      %5171 = vmatmul.mubr.f32.gmra.mrb[0].mxu0 %v4949
      %v5172 = vpop.f32.mrb[0].mxu0
      %v5173 = vadd.f32 %v4852, %v5172
      %v5174 = vpop.f32.mrb[0].mxu0
      %5175 = vdwg.mxu0
      %v5176 = vld [vmem:[%s3440] sm:$0xff]
      %v5177 = vld [vmem:[%s3440 + $0x8] sm:$0xff]
      %v5178 = vld [vmem:[%s3440 + $0x10] sm:$0xff]
      %v5179 = vld [vmem:[%s3440 + $0x18] sm:$0xff]
      %v5180 = vld [vmem:[%s3440 + $0x20] sm:$0xff]
      %v5181 = vld [vmem:[%s3440 + $0x28] sm:$0xff]
      %v5182 = vld [vmem:[%s3440 + $0x30] sm:$0xff]
      %v5183 = vld [vmem:[%s3440 + $0x38] sm:$0xff]
      %v5184 = vld [vmem:[%s3440 + $0x40] sm:$0xff]
      %v5185 = vld [vmem:[%s3440 + $0x48] sm:$0xff]
      %v5186 = vld [vmem:[%s3440 + $0x50] sm:$0xff]
      %v5187 = vld [vmem:[%s3440 + $0x58] sm:$0xff]
      %v5188 = vld [vmem:[%s3440 + $0x60] sm:$0xff]
      %v5189 = vld [vmem:[%s3440 + $0x68] sm:$0xff]
      %v5190 = vld [vmem:[%s3440 + $0x70] sm:$0xff]
      %v5191 = vld [vmem:[%s3440 + $0x78] sm:$0xff]
      %v5192 = vld [vmem:[%s3440 + $0x80] sm:$0xff]
      %v5193 = vld [vmem:[%s3440 + $0x88] sm:$0xff]
      %v5194 = vld [vmem:[%s3440 + $0x90] sm:$0xff]
      %v5195 = vld [vmem:[%s3440 + $0x98] sm:$0xff]
      %v5196 = vld [vmem:[%s3440 + $0xa0] sm:$0xff]
      %v5197 = vld [vmem:[%s3440 + $0xa8] sm:$0xff]
      %v5198 = vld [vmem:[%s3440 + $0xb0] sm:$0xff]
      %v5199 = vld [vmem:[%s3440 + $0xb8] sm:$0xff]
      %v5200 = vld [vmem:[%s3440 + $0xc0] sm:$0xff]
      %v5201 = vld [vmem:[%s3440 + $0xc8] sm:$0xff]
      %v5202 = vld [vmem:[%s3440 + $0xd0] sm:$0xff]
      %v5203 = vld [vmem:[%s3440 + $0xd8] sm:$0xff]
      %v5204 = vld [vmem:[%s3440 + $0xe0] sm:$0xff]
      %v5205 = vld [vmem:[%s3440 + $0xe8] sm:$0xff]
      %v5206 = vld [vmem:[%s3440 + $0xf0] sm:$0xff]
      %v5207 = vld [vmem:[%s3440 + $0xf8] sm:$0xff]
      %v5209 = vsel %vm2797, %v5176, 0
      %v5212 = vsel %vm2797, %v5177, 0
      %v5215 = vsel %vm2797, %v5178, 0
      %v5218 = vsel %vm2797, %v5179, 0
      %v5221 = vsel %vm2797, %v5180, 0
      %v5224 = vsel %vm2797, %v5181, 0
      %v5227 = vsel %vm2797, %v5182, 0
      %v5230 = vsel %vm2797, %v5183, 0
      %v5233 = vsel %vm2797, %v5184, 0
      %v5236 = vsel %vm2797, %v5185, 0
      %v5239 = vsel %vm2797, %v5186, 0
      %v5242 = vsel %vm2797, %v5187, 0
      %v5245 = vsel %vm2797, %v5188, 0
      %v5248 = vsel %vm2797, %v5189, 0
      %v5251 = vsel %vm2797, %v5190, 0
      %v5254 = vsel %vm2797, %v5191, 0
      %v5257 = vsel %vm2797, %v5192, 0
      %v5260 = vsel %vm2797, %v5193, 0
      %v5263 = vsel %vm2797, %v5194, 0
      %v5266 = vsel %vm2797, %v5195, 0
      %v5269 = vsel %vm2797, %v5196, 0
      %v5272 = vsel %vm2797, %v5197, 0
      %v5275 = vsel %vm2797, %v5198, 0
      %v5278 = vsel %vm2797, %v5199, 0
      %v5281 = vsel %vm2797, %v5200, 0
      %v5284 = vsel %vm2797, %v5201, 0
      %v5287 = vsel %vm2797, %v5202, 0
      %v5290 = vsel %vm2797, %v5203, 0
      %v5293 = vsel %vm2797, %v5204, 0
      %v5296 = vsel %vm2797, %v5205, 0
      %v5299 = vsel %vm2797, %v5206, 0
      %v5302 = vsel %vm2797, %v5207, 0
      %5304 = vmatprep.subr.mxu0 0.0
      %5305 = vmatpush1.msra.mxu0 %v3953
      %5306 = vmatprep.subr.mxu0 0.0
      %5307 = vmatpush1.msra.mxu0 %v3954
      %5308 = vmatprep.subr.mxu0 0.0
      %5309 = vmatpush1.msra.mxu0 %v3955
      %5310 = vmatprep.subr.mxu0 0.0
      %5311 = vmatpush1.msra.mxu0 %v3956
      %5312 = vmatprep.subr.mxu0 0.0
      %5313 = vmatpush1.msra.mxu0 %v3957
      %5314 = vmatprep.subr.mxu0 0.0
      %5315 = vmatpush1.msra.mxu0 %v3958
      %5316 = vmatprep.subr.mxu0 0.0
      %5317 = vmatpush1.msra.mxu0 %v3959
      %5318 = vmatprep.subr.mxu0 0.0
      %5319 = vmatpush1.msra.mxu0 %v3960
      %5320 = vmatprep.subr.mxu0 0.0
      %5321 = vmatpush1.msra.mxu0 %v3961
      %5322 = vmatprep.subr.mxu0 0.0
      %5323 = vmatpush1.msra.mxu0 %v3962
      %5324 = vmatprep.subr.mxu0 0.0
      %5325 = vmatpush1.msra.mxu0 %v3963
      %5326 = vmatprep.subr.mxu0 0.0
      %5327 = vmatpush1.msra.mxu0 %v3964
      %5328 = vmatprep.subr.mxu0 0.0
      %5329 = vmatpush1.msra.mxu0 0.0
      %5330 = vmatprep.subr.mxu0 0.0
      %5331 = vmatpush1.msra.mxu0 0.0
      %5332 = vmatprep.subr.mxu0 0.0
      %5333 = vmatpush1.msra.mxu0 0.0
      %5334 = vmatprep.subr.mxu0 0.0
      %5335 = vmatpush1.msra.mxu0 0.0
      %5336 = vmatprep.subr.mxu0 0.0
      %5337 = vmatpush1.msra.mxu0 0.0
      %5338 = vmatprep.subr.mxu0 0.0
      %5339 = vmatpush1.msra.mxu0 0.0
      %5340 = vmatprep.subr.mxu0 0.0
      %5341 = vmatpush1.msra.mxu0 0.0
      %5342 = vmatprep.subr.mxu0 0.0
      %5343 = vmatpush1.msra.mxu0 0.0
      %5344 = vmatprep.subr.mxu0 0.0
      %5345 = vmatpush1.msra.mxu0 0.0
      %5346 = vmatprep.subr.mxu0 0.0
      %5347 = vmatpush1.msra.mxu0 0.0
      %5348 = vmatprep.subr.mxu0 0.0
      %5349 = vmatpush1.msra.mxu0 0.0
      %5350 = vmatprep.subr.mxu0 0.0
      %5351 = vmatpush1.msra.mxu0 0.0
      %5352 = vmatprep.subr.mxu0 0.0
      %5353 = vmatpush1.msra.mxu0 0.0
      %5354 = vmatprep.subr.mxu0 0.0
      %5355 = vmatpush1.msra.mxu0 0.0
      %5356 = vmatprep.subr.mxu0 0.0
      %5357 = vmatpush1.msra.mxu0 0.0
      %5358 = vmatprep.subr.mxu0 0.0
      %5359 = vmatpush1.msra.mxu0 0.0
      %5360 = vmatprep.subr.mxu0 0.0
      %5361 = vmatpush1.msra.mxu0 0.0
      %5362 = vmatprep.subr.mxu0 0.0
      %5363 = vmatpush1.msra.mxu0 0.0
      %5364 = vmatprep.subr.mxu0 0.0
      %5365 = vmatpush1.msra.mxu0 0.0
      %5366 = vmatprep.subr.mxu0 0.0
      %5367 = vmatpush1.msra.mxu0 0.0
      %5368 = vmatprep.mubr.f32.mxu0 0.0
      %5369 = vmatmul.mubr.f32.gmra.mrb[0].mxu0 %v5209
      %v5370 = vpop.f32.mrb[0].mxu0
      %v5371 = vadd.f32 0.0, %v5370
      %v5372 = vpop.f32.mrb[0].mxu0
      %5373 = vmatprep.mubr.f32.mxu0 0.0
      %5374 = vmatmul.mubr.f32.gmra.mrb[0].mxu0 %v5212
      %v5375 = vpop.f32.mrb[0].mxu0
      %v5376 = vadd.f32 0.0, %v5375
      %v5377 = vpop.f32.mrb[0].mxu0
      %5378 = vmatprep.mubr.f32.mxu0 0.0
      %5379 = vmatmul.mubr.f32.gmra.mrb[0].mxu0 %v5215
      %v5380 = vpop.f32.mrb[0].mxu0
      %v5381 = vadd.f32 0.0, %v5380
      %v5382 = vpop.f32.mrb[0].mxu0
      %5383 = vmatprep.mubr.f32.mxu0 0.0
      %5384 = vmatmul.mubr.f32.gmra.mrb[0].mxu0 %v5218
      %v5385 = vpop.f32.mrb[0].mxu0
      %v5386 = vadd.f32 0.0, %v5385
      %v5387 = vpop.f32.mrb[0].mxu0
      %5388 = vmatprep.mubr.f32.mxu0 0.0
      %5389 = vmatmul.mubr.f32.gmra.mrb[0].mxu0 %v5221
      %v5390 = vpop.f32.mrb[0].mxu0
      %v5391 = vadd.f32 0.0, %v5390
      %v5392 = vpop.f32.mrb[0].mxu0
      %5393 = vmatprep.mubr.f32.mxu0 0.0
      %5394 = vmatmul.mubr.f32.gmra.mrb[0].mxu0 %v5224
      %v5395 = vpop.f32.mrb[0].mxu0
      %v5396 = vadd.f32 0.0, %v5395
      %v5397 = vpop.f32.mrb[0].mxu0
      %5398 = vmatprep.mubr.f32.mxu0 0.0
      %5399 = vmatmul.mubr.f32.gmra.mrb[0].mxu0 %v5227
      %v5400 = vpop.f32.mrb[0].mxu0
      %v5401 = vadd.f32 0.0, %v5400
      %v5402 = vpop.f32.mrb[0].mxu0
      %5403 = vmatprep.mubr.f32.mxu0 0.0
      %5404 = vmatmul.mubr.f32.gmra.mrb[0].mxu0 %v5230
      %v5405 = vpop.f32.mrb[0].mxu0
      %v5406 = vadd.f32 0.0, %v5405
      %v5407 = vpop.f32.mrb[0].mxu0
      %5408 = vmatprep.mubr.f32.mxu0 0.0
      %5409 = vmatmul.mubr.f32.gmra.mrb[0].mxu0 %v5233
      %v5410 = vpop.f32.mrb[0].mxu0
      %v5411 = vadd.f32 0.0, %v5410
      %v5412 = vpop.f32.mrb[0].mxu0
      %5413 = vmatprep.mubr.f32.mxu0 0.0
      %5414 = vmatmul.mubr.f32.gmra.mrb[0].mxu0 %v5236
      %v5415 = vpop.f32.mrb[0].mxu0
      %v5416 = vadd.f32 0.0, %v5415
      %v5417 = vpop.f32.mrb[0].mxu0
      %5418 = vmatprep.mubr.f32.mxu0 0.0
      %5419 = vmatmul.mubr.f32.gmra.mrb[0].mxu0 %v5239
      %v5420 = vpop.f32.mrb[0].mxu0
      %v5421 = vadd.f32 0.0, %v5420
      %v5422 = vpop.f32.mrb[0].mxu0
      %5423 = vmatprep.mubr.f32.mxu0 0.0
      %5424 = vmatmul.mubr.f32.gmra.mrb[0].mxu0 %v5242
      %v5425 = vpop.f32.mrb[0].mxu0
      %v5426 = vadd.f32 0.0, %v5425
      %v5427 = vpop.f32.mrb[0].mxu0
      %5428 = vmatprep.mubr.f32.mxu0 0.0
      %5429 = vmatmul.mubr.f32.gmra.mrb[0].mxu0 %v5245
      %v5430 = vpop.f32.mrb[0].mxu0
      %v5431 = vadd.f32 0.0, %v5430
      %v5432 = vpop.f32.mrb[0].mxu0
      %5433 = vmatprep.mubr.f32.mxu0 0.0
      %5434 = vmatmul.mubr.f32.gmra.mrb[0].mxu0 %v5248
      %v5435 = vpop.f32.mrb[0].mxu0
      %v5436 = vadd.f32 0.0, %v5435
      %v5437 = vpop.f32.mrb[0].mxu0
      %5438 = vmatprep.mubr.f32.mxu0 0.0
      %5439 = vmatmul.mubr.f32.gmra.mrb[0].mxu0 %v5251
      %v5440 = vpop.f32.mrb[0].mxu0
      %v5441 = vadd.f32 0.0, %v5440
      %v5442 = vpop.f32.mrb[0].mxu0
      %5443 = vmatprep.mubr.f32.mxu0 0.0
      %5444 = vmatmul.mubr.f32.gmra.mrb[0].mxu0 %v5254
      %v5445 = vpop.f32.mrb[0].mxu0
      %v5446 = vadd.f32 0.0, %v5445
      %v5447 = vpop.f32.mrb[0].mxu0
      %5448 = vmatprep.mubr.f32.mxu0 0.0
      %5449 = vmatmul.mubr.f32.gmra.mrb[0].mxu0 %v5257
      %v5450 = vpop.f32.mrb[0].mxu0
      %v5451 = vadd.f32 0.0, %v5450
      %v5452 = vpop.f32.mrb[0].mxu0
      %5453 = vmatprep.mubr.f32.mxu0 0.0
      %5454 = vmatmul.mubr.f32.gmra.mrb[0].mxu0 %v5260
      %v5455 = vpop.f32.mrb[0].mxu0
      %v5456 = vadd.f32 0.0, %v5455
      %v5457 = vpop.f32.mrb[0].mxu0
      %5458 = vmatprep.mubr.f32.mxu0 0.0
      %5459 = vmatmul.mubr.f32.gmra.mrb[0].mxu0 %v5263
      %v5460 = vpop.f32.mrb[0].mxu0
      %v5461 = vadd.f32 0.0, %v5460
      %v5462 = vpop.f32.mrb[0].mxu0
      %5463 = vmatprep.mubr.f32.mxu0 0.0
      %5464 = vmatmul.mubr.f32.gmra.mrb[0].mxu0 %v5266
      %v5465 = vpop.f32.mrb[0].mxu0
      %v5466 = vadd.f32 0.0, %v5465
      %v5467 = vpop.f32.mrb[0].mxu0
      %5468 = vmatprep.mubr.f32.mxu0 0.0
      %5469 = vmatmul.mubr.f32.gmra.mrb[0].mxu0 %v5269
      %v5470 = vpop.f32.mrb[0].mxu0
      %v5471 = vadd.f32 0.0, %v5470
      %v5472 = vpop.f32.mrb[0].mxu0
      %5473 = vmatprep.mubr.f32.mxu0 0.0
      %5474 = vmatmul.mubr.f32.gmra.mrb[0].mxu0 %v5272
      %v5475 = vpop.f32.mrb[0].mxu0
      %v5476 = vadd.f32 0.0, %v5475
      %v5477 = vpop.f32.mrb[0].mxu0
      %5478 = vmatprep.mubr.f32.mxu0 0.0
      %5479 = vmatmul.mubr.f32.gmra.mrb[0].mxu0 %v5275
      %v5480 = vpop.f32.mrb[0].mxu0
      %v5481 = vadd.f32 0.0, %v5480
      %v5482 = vpop.f32.mrb[0].mxu0
      %5483 = vmatprep.mubr.f32.mxu0 0.0
      %5484 = vmatmul.mubr.f32.gmra.mrb[0].mxu0 %v5278
      %v5485 = vpop.f32.mrb[0].mxu0
      %v5486 = vadd.f32 0.0, %v5485
      %v5487 = vpop.f32.mrb[0].mxu0
      %5488 = vmatprep.mubr.f32.mxu0 0.0
      %5489 = vmatmul.mubr.f32.gmra.mrb[0].mxu0 %v5281
      %v5490 = vpop.f32.mrb[0].mxu0
      %v5491 = vadd.f32 0.0, %v5490
      %v5492 = vpop.f32.mrb[0].mxu0
      %5493 = vmatprep.mubr.f32.mxu0 0.0
      %5494 = vmatmul.mubr.f32.gmra.mrb[0].mxu0 %v5284
      %v5495 = vpop.f32.mrb[0].mxu0
      %v5496 = vadd.f32 0.0, %v5495
      %v5497 = vpop.f32.mrb[0].mxu0
      %5498 = vmatprep.mubr.f32.mxu0 0.0
      %5499 = vmatmul.mubr.f32.gmra.mrb[0].mxu0 %v5287
      %v5500 = vpop.f32.mrb[0].mxu0
      %v5501 = vadd.f32 0.0, %v5500
      %v5502 = vpop.f32.mrb[0].mxu0
      %5503 = vmatprep.mubr.f32.mxu0 0.0
      %5504 = vmatmul.mubr.f32.gmra.mrb[0].mxu0 %v5290
      %v5505 = vpop.f32.mrb[0].mxu0
      %v5506 = vadd.f32 0.0, %v5505
      %v5507 = vpop.f32.mrb[0].mxu0
      %5508 = vmatprep.mubr.f32.mxu0 0.0
      %5509 = vmatmul.mubr.f32.gmra.mrb[0].mxu0 %v5293
      %v5510 = vpop.f32.mrb[0].mxu0
      %v5511 = vadd.f32 0.0, %v5510
      %v5512 = vpop.f32.mrb[0].mxu0
      %5513 = vmatprep.mubr.f32.mxu0 0.0
      %5514 = vmatmul.mubr.f32.gmra.mrb[0].mxu0 %v5296
      %v5515 = vpop.f32.mrb[0].mxu0
      %v5516 = vadd.f32 0.0, %v5515
      %v5517 = vpop.f32.mrb[0].mxu0
      %5518 = vmatprep.mubr.f32.mxu0 0.0
      %5519 = vmatmul.mubr.f32.gmra.mrb[0].mxu0 %v5299
      %v5520 = vpop.f32.mrb[0].mxu0
      %v5521 = vadd.f32 0.0, %v5520
      %v5522 = vpop.f32.mrb[0].mxu0
      %5523 = vmatprep.mubr.f32.mxu0 0.0
      %5524 = vmatmul.mubr.f32.gmra.mrb[0].mxu0 %v5302
      %v5525 = vpop.f32.mrb[0].mxu0
      %v5526 = vadd.f32 0.0, %v5525
      %v5527 = vpop.f32.mrb[0].mxu0
      %5528 = vdwg.mxu0
      %v5529 = vadd.f32 %v5018, %v5371
      %v5530 = vadd.f32 %v5023, %v5376
      %v5531 = vadd.f32 %v5028, %v5381
      %v5532 = vadd.f32 %v5033, %v5386
      %v5533 = vadd.f32 %v5038, %v5391
      %v5534 = vadd.f32 %v5043, %v5396
      %v5535 = vadd.f32 %v5048, %v5401
      %v5536 = vadd.f32 %v5053, %v5406
      %v5537 = vadd.f32 %v5058, %v5411
      %v5538 = vadd.f32 %v5063, %v5416
      %v5539 = vadd.f32 %v5068, %v5421
      %v5540 = vadd.f32 %v5073, %v5426
      %v5541 = vadd.f32 %v5078, %v5431
      %v5542 = vadd.f32 %v5083, %v5436
      %v5543 = vadd.f32 %v5088, %v5441
      %v5544 = vadd.f32 %v5093, %v5446
      %v5545 = vadd.f32 %v5098, %v5451
      %v5546 = vadd.f32 %v5103, %v5456
      %v5547 = vadd.f32 %v5108, %v5461
      %v5548 = vadd.f32 %v5113, %v5466
      %v5549 = vadd.f32 %v5118, %v5471
      %v5550 = vadd.f32 %v5123, %v5476
      %v5551 = vadd.f32 %v5128, %v5481
      %v5552 = vadd.f32 %v5133, %v5486
      %v5553 = vadd.f32 %v5138, %v5491
      %v5554 = vadd.f32 %v5143, %v5496
      %v5555 = vadd.f32 %v5148, %v5501
      %v5556 = vadd.f32 %v5153, %v5506
      %v5557 = vadd.f32 %v5158, %v5511
      %v5558 = vadd.f32 %v5163, %v5516
      %v5559 = vadd.f32 %v5168, %v5521
      %v5560 = vadd.f32 %v5173, %v5526
      %v5562 = vlaneseq
      %v5563 = vshrl.u32 %v5562, 7
      %v5564 = vsub.s32 0, %v5563
      %v5565 = vrot.slane %v3965, %v5564
      %v5567 = vadd.f32 %v5529, %v5565
      %v5568 = vadd.f32 %v5530, %v5565
      %v5569 = vadd.f32 %v5531, %v5565
      %v5570 = vadd.f32 %v5532, %v5565
      %v5571 = vadd.f32 %v5533, %v5565
      %v5572 = vadd.f32 %v5534, %v5565
      %v5573 = vadd.f32 %v5535, %v5565
      %v5574 = vadd.f32 %v5536, %v5565
      %v5575 = vadd.f32 %v5537, %v5565
      %v5576 = vadd.f32 %v5538, %v5565
      %v5577 = vadd.f32 %v5539, %v5565
      %v5578 = vadd.f32 %v5540, %v5565
      %v5579 = vadd.f32 %v5541, %v5565
      %v5580 = vadd.f32 %v5542, %v5565
      %v5581 = vadd.f32 %v5543, %v5565
      %v5582 = vadd.f32 %v5544, %v5565
      %v5583 = vadd.f32 %v5545, %v5565
      %v5584 = vadd.f32 %v5546, %v5565
      %v5585 = vadd.f32 %v5547, %v5565
      %v5586 = vadd.f32 %v5548, %v5565
      %v5587 = vadd.f32 %v5549, %v5565
      %v5588 = vadd.f32 %v5550, %v5565
      %v5589 = vadd.f32 %v5551, %v5565
      %v5590 = vadd.f32 %v5552, %v5565
      %v5591 = vadd.f32 %v5553, %v5565
      %v5592 = vadd.f32 %v5554, %v5565
      %v5593 = vadd.f32 %v5555, %v5565
      %v5594 = vadd.f32 %v5556, %v5565
      %v5595 = vadd.f32 %v5557, %v5565
      %v5596 = vadd.f32 %v5558, %v5565
      %v5597 = vadd.f32 %v5559, %v5565
      %v5598 = vadd.f32 %v5560, %v5565
      %v5599 = vld [vmem:[%s2156 + $0x8] sm:$0xff]
      %v5600 = vld [vmem:[%s2156 + $0x10] sm:$0xff]
      %v5601 = vld [vmem:[%s2156 + $0x28] sm:$0xff]
      %v5602 = vld [vmem:[%s2156 + $0x30] sm:$0xff]
      %v5603 = vld [vmem:[%s2156 + $0x48] sm:$0xff]
      %v5604 = vld [vmem:[%s2156 + $0x50] sm:$0xff]
      %v5605 = vld [vmem:[%s2156 + $0x68] sm:$0xff]
      %v5606 = vld [vmem:[%s2156 + $0x70] sm:$0xff]
      %v5607 = vld [vmem:[%s2156 + $0x88] sm:$0xff]
      %v5608 = vld [vmem:[%s2156 + $0x90] sm:$0xff]
      %v5609 = vld [vmem:[%s2156 + $0xa8] sm:$0xff]
      %v5610 = vld [vmem:[%s2156 + $0xb0] sm:$0xff]
      %v5611 = vld [vmem:[%s2156 + $0xc8] sm:$0xff]
      %v5612 = vld [vmem:[%s2156 + $0xd0] sm:$0xff]
      %v5613 = vld [vmem:[%s2156 + $0xe8] sm:$0xff]
      %v5614 = vld [vmem:[%s2156 + $0xf0] sm:$0xff]
      %v5615 = vld [vmem:[%s2156 + $0x108] sm:$0xff]
      %v5616 = vld [vmem:[%s2156 + $0x110] sm:$0xff]
      %v5617 = vld [vmem:[%s2156 + $0x128] sm:$0xff]
      %v5618 = vld [vmem:[%s2156 + $0x130] sm:$0xff]
      %v5619 = vld [vmem:[%s2156 + $0x148] sm:$0xff]
      %v5620 = vld [vmem:[%s2156 + $0x150] sm:$0xff]
      %v5621 = vld [vmem:[%s2156 + $0x168] sm:$0xff]
      %v5622 = vld [vmem:[%s2156 + $0x170] sm:$0xff]
      %v5623 = vld [vmem:[%s2156 + $0x188] sm:$0xff]
      %v5624 = vld [vmem:[%s2156 + $0x190] sm:$0xff]
      %v5625 = vld [vmem:[%s2156 + $0x1a8] sm:$0xff]
      %v5626 = vld [vmem:[%s2156 + $0x1b0] sm:$0xff]
      %v5627 = vld [vmem:[%s2156 + $0x1c8] sm:$0xff]
      %v5628 = vld [vmem:[%s2156 + $0x1d0] sm:$0xff]
      %v5629 = vld [vmem:[%s2156 + $0x1e8] sm:$0xff]
      %v5630 = vld [vmem:[%s2156 + $0x1f0] sm:$0xff]
      %v5631 = vadd.f32 %v5567, %v5599
      %v5632 = vadd.f32 %v5568, %v5600
      %v5633 = vadd.f32 %v5569, %v5601
      %v5634 = vadd.f32 %v5570, %v5602
      %v5635 = vadd.f32 %v5571, %v5603
      %v5636 = vadd.f32 %v5572, %v5604
      %v5637 = vadd.f32 %v5573, %v5605
      %v5638 = vadd.f32 %v5574, %v5606
      %v5639 = vadd.f32 %v5575, %v5607
      %v5640 = vadd.f32 %v5576, %v5608
      %v5641 = vadd.f32 %v5577, %v5609
      %v5642 = vadd.f32 %v5578, %v5610
      %v5643 = vadd.f32 %v5579, %v5611
      %v5644 = vadd.f32 %v5580, %v5612
      %v5645 = vadd.f32 %v5581, %v5613
      %v5646 = vadd.f32 %v5582, %v5614
      %v5647 = vadd.f32 %v5583, %v5615
      %v5648 = vadd.f32 %v5584, %v5616
      %v5649 = vadd.f32 %v5585, %v5617
      %v5650 = vadd.f32 %v5586, %v5618
      %v5651 = vadd.f32 %v5587, %v5619
      %v5652 = vadd.f32 %v5588, %v5620
      %v5653 = vadd.f32 %v5589, %v5621
      %v5654 = vadd.f32 %v5590, %v5622
      %v5655 = vadd.f32 %v5591, %v5623
      %v5656 = vadd.f32 %v5592, %v5624
      %v5657 = vadd.f32 %v5593, %v5625
      %v5658 = vadd.f32 %v5594, %v5626
      %v5659 = vadd.f32 %v5595, %v5627
      %v5660 = vadd.f32 %v5596, %v5628
      %v5661 = vadd.f32 %v5597, %v5629
      %v5662 = vadd.f32 %v5598, %v5630
      %5663 = vst.msk [vmem:[%s2156 + $0x8] sm:$0xff] %vm321, %v5631
      %5664 = vst.msk [vmem:[%s2156 + $0x10] sm:$0xff] %vm321, %v5632
      %5665 = vst.msk [vmem:[%s2156 + $0x28] sm:$0xff] %vm321, %v5633
      %5666 = vst.msk [vmem:[%s2156 + $0x30] sm:$0xff] %vm321, %v5634
      %5667 = vst.msk [vmem:[%s2156 + $0x48] sm:$0xff] %vm321, %v5635
      %5668 = vst.msk [vmem:[%s2156 + $0x50] sm:$0xff] %vm321, %v5636
      %5669 = vst.msk [vmem:[%s2156 + $0x68] sm:$0xff] %vm321, %v5637
      %5670 = vst.msk [vmem:[%s2156 + $0x70] sm:$0xff] %vm321, %v5638
      %5671 = vst.msk [vmem:[%s2156 + $0x88] sm:$0xff] %vm321, %v5639
      %5672 = vst.msk [vmem:[%s2156 + $0x90] sm:$0xff] %vm321, %v5640
      %5673 = vst.msk [vmem:[%s2156 + $0xa8] sm:$0xff] %vm321, %v5641
      %5674 = vst.msk [vmem:[%s2156 + $0xb0] sm:$0xff] %vm321, %v5642
      %5675 = vst.msk [vmem:[%s2156 + $0xc8] sm:$0xff] %vm321, %v5643
      %5676 = vst.msk [vmem:[%s2156 + $0xd0] sm:$0xff] %vm321, %v5644
      %5677 = vst.msk [vmem:[%s2156 + $0xe8] sm:$0xff] %vm321, %v5645
      %5678 = vst.msk [vmem:[%s2156 + $0xf0] sm:$0xff] %vm321, %v5646
      %5679 = vst.msk [vmem:[%s2156 + $0x108] sm:$0xff] %vm321, %v5647
      %5680 = vst.msk [vmem:[%s2156 + $0x110] sm:$0xff] %vm321, %v5648
      %5681 = vst.msk [vmem:[%s2156 + $0x128] sm:$0xff] %vm321, %v5649
      %5682 = vst.msk [vmem:[%s2156 + $0x130] sm:$0xff] %vm321, %v5650
      %5683 = vst.msk [vmem:[%s2156 + $0x148] sm:$0xff] %vm321, %v5651
      %5684 = vst.msk [vmem:[%s2156 + $0x150] sm:$0xff] %vm321, %v5652
      %5685 = vst.msk [vmem:[%s2156 + $0x168] sm:$0xff] %vm321, %v5653
      %5686 = vst.msk [vmem:[%s2156 + $0x170] sm:$0xff] %vm321, %v5654
      %5687 = vst.msk [vmem:[%s2156 + $0x188] sm:$0xff] %vm321, %v5655
      %5688 = vst.msk [vmem:[%s2156 + $0x190] sm:$0xff] %vm321, %v5656
      %5689 = vst.msk [vmem:[%s2156 + $0x1a8] sm:$0xff] %vm321, %v5657
      %5690 = vst.msk [vmem:[%s2156 + $0x1b0] sm:$0xff] %vm321, %v5658
      %5691 = vst.msk [vmem:[%s2156 + $0x1c8] sm:$0xff] %vm321, %v5659
      %5692 = vst.msk [vmem:[%s2156 + $0x1d0] sm:$0xff] %vm321, %v5660
      %5693 = vst.msk [vmem:[%s2156 + $0x1e8] sm:$0xff] %vm321, %v5661
      %5694 = vst.msk [vmem:[%s2156 + $0x1f0] sm:$0xff] %vm321, %v5662
      %s5695 = scalar_lea.vmem %s3, 288
      %v5696 = vld [vmem:[%s5695] sm:$0xff]
      %v5697 = vld [vmem:[%s5695 + $0x8] sm:$0xff]
      %v5698 = vld [vmem:[%s5695 + $0x10] sm:$0xff]
      %v5699 = vld [vmem:[%s5695 + $0x18] sm:$0xff]
      %v5700 = vld [vmem:[%s5695 + $0x20] sm:$0xff]
      %v5701 = vld [vmem:[%s5695 + $0x28] sm:$0xff]
      %v5702 = vld [vmem:[%s5695 + $0x30] sm:$0xff]
      %v5703 = vld [vmem:[%s5695 + $0x38] sm:$0xff]
      %v5704 = vld [vmem:[%s5695 + $0x40] sm:$0xff]
      %v5705 = vld [vmem:[%s5695 + $0x48] sm:$0xff]
      %v5706 = vld [vmem:[%s5695 + $0x50] sm:$0xff]
      %v5707 = vld [vmem:[%s5695 + $0x58] sm:$0xff]
      %v5708 = vld [vmem:[%s5695 + $0x60] sm:$0xff]
      %v5709 = vld [vmem:[%s5695 + $0x68] sm:$0xff]
      %v5710 = vld [vmem:[%s5695 + $0x70] sm:$0xff]
      %v5711 = vld [vmem:[%s5695 + $0x78] sm:$0xff]
      %v5712 = vld [vmem:[%s5695 + $0x80] sm:$0xff]
      %v5713 = vld [vmem:[%s5695 + $0x88] sm:$0xff]
      %v5714 = vld [vmem:[%s5695 + $0x90] sm:$0xff]
      %v5715 = vld [vmem:[%s5695 + $0x98] sm:$0xff]
      %v5716 = vld [vmem:[%s5695 + $0xa0] sm:$0xff]
      %v5717 = vld [vmem:[%s5695 + $0xa8] sm:$0xff]
      %v5718 = vld [vmem:[%s5695 + $0xb0] sm:$0xff]
      %v5719 = vld [vmem:[%s5695 + $0xb8] sm:$0xff]
      %v5720 = vld [vmem:[%s5695 + $0xc0] sm:$0xff]
      %v5721 = vld [vmem:[%s5695 + $0xc8] sm:$0xff]
      %v5722 = vld [vmem:[%s5695 + $0xd0] sm:$0xff]
      %v5723 = vld [vmem:[%s5695 + $0xd8] sm:$0xff]
      %v5724 = vld [vmem:[%s5695 + $0xe0] sm:$0xff]
      %v5725 = vld [vmem:[%s5695 + $0xe8] sm:$0xff]
      %v5726 = vld [vmem:[%s5695 + $0xf0] sm:$0xff]
      %v5727 = vld [vmem:[%s5695 + $0xf8] sm:$0xff]
      %v5728 = vld [vmem:[%s5695 + $0x100] sm:$0xff]
      %v5729 = vld [vmem:[%s5695 + $0x108] sm:$0xff]
      %v5730 = vld [vmem:[%s5695 + $0x110] sm:$0xff]
      %v5731 = vld [vmem:[%s5695 + $0x118] sm:$0xff]
      %s5732 = scalar_lea.vmem %s4, 1
      %v5733 = vld [vmem:[%s5732] sm:$0x1]
      %v5734 = vld [vmem:[#allocation4 + $0x7] sm:$0xff]
      %v5735 = vld [vmem:[#allocation4 + $0xf] sm:$0xff]
      %v5736 = vld [vmem:[#allocation4 + $0x27] sm:$0xff]
      %v5737 = vld [vmem:[#allocation4 + $0x2f] sm:$0xff]
      %v5738 = vld [vmem:[#allocation4 + $0x47] sm:$0xff]
      %v5739 = vld [vmem:[#allocation4 + $0x4f] sm:$0xff]
      %v5740 = vld [vmem:[#allocation4 + $0x67] sm:$0xff]
      %v5741 = vld [vmem:[#allocation4 + $0x6f] sm:$0xff]
      %v5742 = vld [vmem:[#allocation4 + $0x87] sm:$0xff]
      %v5743 = vld [vmem:[#allocation4 + $0x8f] sm:$0xff]
      %v5744 = vld [vmem:[#allocation4 + $0xa7] sm:$0xff]
      %v5745 = vld [vmem:[#allocation4 + $0xaf] sm:$0xff]
      %v5746 = vld [vmem:[#allocation4 + $0xc7] sm:$0xff]
      %v5747 = vld [vmem:[#allocation4 + $0xcf] sm:$0xff]
      %v5748 = vld [vmem:[#allocation4 + $0xe7] sm:$0xff]
      %v5749 = vld [vmem:[#allocation4 + $0xef] sm:$0xff]
      %v5750 = vld [vmem:[#allocation4 + $0x107] sm:$0xff]
      %v5751 = vld [vmem:[#allocation4 + $0x10f] sm:$0xff]
      %v5752 = vld [vmem:[#allocation4 + $0x127] sm:$0xff]
      %v5753 = vld [vmem:[#allocation4 + $0x12f] sm:$0xff]
      %v5754 = vld [vmem:[#allocation4 + $0x147] sm:$0xff]
      %v5755 = vld [vmem:[#allocation4 + $0x14f] sm:$0xff]
      %v5756 = vld [vmem:[#allocation4 + $0x167] sm:$0xff]
      %v5757 = vld [vmem:[#allocation4 + $0x16f] sm:$0xff]
      %v5758 = vld [vmem:[#allocation4 + $0x187] sm:$0xff]
      %v5759 = vld [vmem:[#allocation4 + $0x18f] sm:$0xff]
      %v5760 = vld [vmem:[#allocation4 + $0x1a7] sm:$0xff]
      %v5761 = vld [vmem:[#allocation4 + $0x1af] sm:$0xff]
      %v5762 = vld [vmem:[#allocation4 + $0x1c7] sm:$0xff]
      %v5763 = vld [vmem:[#allocation4 + $0x1cf] sm:$0xff]
      %v5764 = vld [vmem:[#allocation4 + $0x1e7] sm:$0xff]
      %v5765 = vld [vmem:[#allocation4 + $0x1ef] sm:$0xff]
      %v5766 = vld [vmem:[#allocation4 + $0x207] sm:$0xff]
      %v5767 = vld [vmem:[#allocation4 + $0x20f] sm:$0xff]
      %v5768 = vld [vmem:[#allocation4 + $0x227] sm:$0xff]
      %v5769 = vld [vmem:[#allocation4 + $0x22f] sm:$0xff]
      %5770 = vst.msk [vmem:[#allocation6] sm:$0xff] %vm321, %v5734
      %5771 = vst.msk [vmem:[#allocation6 + $0x8] sm:$0xff] %vm321, %v5735
      %5772 = vst.msk [vmem:[#allocation6 + $0x10] sm:$0xff] %vm321, %v5736
      %5773 = vst.msk [vmem:[#allocation6 + $0x18] sm:$0xff] %vm321, %v5737
      %5774 = vst.msk [vmem:[#allocation6 + $0x20] sm:$0xff] %vm321, %v5738
      %5775 = vst.msk [vmem:[#allocation6 + $0x28] sm:$0xff] %vm321, %v5739
      %5776 = vst.msk [vmem:[#allocation6 + $0x30] sm:$0xff] %vm321, %v5740
      %5777 = vst.msk [vmem:[#allocation6 + $0x38] sm:$0xff] %vm321, %v5741
      %5778 = vst.msk [vmem:[#allocation6 + $0x40] sm:$0xff] %vm321, %v5742
      %5779 = vst.msk [vmem:[#allocation6 + $0x48] sm:$0xff] %vm321, %v5743
      %5780 = vst.msk [vmem:[#allocation6 + $0x50] sm:$0xff] %vm321, %v5744
      %5781 = vst.msk [vmem:[#allocation6 + $0x58] sm:$0xff] %vm321, %v5745
      %5782 = vst.msk [vmem:[#allocation6 + $0x60] sm:$0xff] %vm321, %v5746
      %5783 = vst.msk [vmem:[#allocation6 + $0x68] sm:$0xff] %vm321, %v5747
      %5784 = vst.msk [vmem:[#allocation6 + $0x70] sm:$0xff] %vm321, %v5748
      %5785 = vst.msk [vmem:[#allocation6 + $0x78] sm:$0xff] %vm321, %v5749
      %5786 = vst.msk [vmem:[#allocation6 + $0x80] sm:$0xff] %vm321, %v5750
      %5787 = vst.msk [vmem:[#allocation6 + $0x88] sm:$0xff] %vm321, %v5751
      %5788 = vst.msk [vmem:[#allocation6 + $0x90] sm:$0xff] %vm321, %v5752
      %5789 = vst.msk [vmem:[#allocation6 + $0x98] sm:$0xff] %vm321, %v5753
      %5790 = vst.msk [vmem:[#allocation6 + $0xa0] sm:$0xff] %vm321, %v5754
      %5791 = vst.msk [vmem:[#allocation6 + $0xa8] sm:$0xff] %vm321, %v5755
      %5792 = vst.msk [vmem:[#allocation6 + $0xb0] sm:$0xff] %vm321, %v5756
      %5793 = vst.msk [vmem:[#allocation6 + $0xb8] sm:$0xff] %vm321, %v5757
      %5794 = vst.msk [vmem:[#allocation6 + $0xc0] sm:$0xff] %vm321, %v5758
      %5795 = vst.msk [vmem:[#allocation6 + $0xc8] sm:$0xff] %vm321, %v5759
      %5796 = vst.msk [vmem:[#allocation6 + $0xd0] sm:$0xff] %vm321, %v5760
      %5797 = vst.msk [vmem:[#allocation6 + $0xd8] sm:$0xff] %vm321, %v5761
      %5798 = vst.msk [vmem:[#allocation6 + $0xe0] sm:$0xff] %vm321, %v5762
      %5799 = vst.msk [vmem:[#allocation6 + $0xe8] sm:$0xff] %vm321, %v5763
      %5800 = vst.msk [vmem:[#allocation6 + $0xf0] sm:$0xff] %vm321, %v5764
      %5801 = vst.msk [vmem:[#allocation6 + $0xf8] sm:$0xff] %vm321, %v5765
      %5802 = vst.msk [vmem:[#allocation6 + $0x100] sm:$0xff] %vm321, %v5766
      %5803 = vst.msk [vmem:[#allocation6 + $0x108] sm:$0xff] %vm321, %v5767
      %5804 = vst.msk [vmem:[#allocation6 + $0x110] sm:$0xff] %vm321, %v5768
      %5805 = vst.msk [vmem:[#allocation6 + $0x118] sm:$0xff] %vm321, %v5769
      %v5806 = vld [vmem:[#allocation4 + $0x8] sm:$0xff]
      %v5807 = vld [vmem:[#allocation4 + $0x10] sm:$0xff]
      %v5808 = vld [vmem:[#allocation4 + $0x28] sm:$0xff]
      %v5809 = vld [vmem:[#allocation4 + $0x30] sm:$0xff]
      %v5810 = vld [vmem:[#allocation4 + $0x48] sm:$0xff]
      %v5811 = vld [vmem:[#allocation4 + $0x50] sm:$0xff]
      %v5812 = vld [vmem:[#allocation4 + $0x68] sm:$0xff]
      %v5813 = vld [vmem:[#allocation4 + $0x70] sm:$0xff]
      %v5814 = vld [vmem:[#allocation4 + $0x88] sm:$0xff]
      %v5815 = vld [vmem:[#allocation4 + $0x90] sm:$0xff]
      %v5816 = vld [vmem:[#allocation4 + $0xa8] sm:$0xff]
      %v5817 = vld [vmem:[#allocation4 + $0xb0] sm:$0xff]
      %v5818 = vld [vmem:[#allocation4 + $0xc8] sm:$0xff]
      %v5819 = vld [vmem:[#allocation4 + $0xd0] sm:$0xff]
      %v5820 = vld [vmem:[#allocation4 + $0xe8] sm:$0xff]
      %v5821 = vld [vmem:[#allocation4 + $0xf0] sm:$0xff]
      %v5822 = vld [vmem:[#allocation4 + $0x108] sm:$0xff]
      %v5823 = vld [vmem:[#allocation4 + $0x110] sm:$0xff]
      %v5824 = vld [vmem:[#allocation4 + $0x128] sm:$0xff]
      %v5825 = vld [vmem:[#allocation4 + $0x130] sm:$0xff]
      %v5826 = vld [vmem:[#allocation4 + $0x148] sm:$0xff]
      %v5827 = vld [vmem:[#allocation4 + $0x150] sm:$0xff]
      %v5828 = vld [vmem:[#allocation4 + $0x168] sm:$0xff]
      %v5829 = vld [vmem:[#allocation4 + $0x170] sm:$0xff]
      %v5830 = vld [vmem:[#allocation4 + $0x188] sm:$0xff]
      %v5831 = vld [vmem:[#allocation4 + $0x190] sm:$0xff]
      %v5832 = vld [vmem:[#allocation4 + $0x1a8] sm:$0xff]
      %v5833 = vld [vmem:[#allocation4 + $0x1b0] sm:$0xff]
      %v5834 = vld [vmem:[#allocation4 + $0x1c8] sm:$0xff]
      %v5835 = vld [vmem:[#allocation4 + $0x1d0] sm:$0xff]
      %v5836 = vld [vmem:[#allocation4 + $0x1e8] sm:$0xff]
      %v5837 = vld [vmem:[#allocation4 + $0x1f0] sm:$0xff]
      %v5838 = vld [vmem:[#allocation4 + $0x208] sm:$0xff]
      %v5839 = vld [vmem:[#allocation4 + $0x210] sm:$0xff]
      %v5840 = vld [vmem:[#allocation4 + $0x228] sm:$0xff]
      %v5841 = vld [vmem:[#allocation4 + $0x230] sm:$0xff]
      %5878 = vrot.lane.b32.xlu0 %v5806, 32
      %v5879 = vpop.permute.xlu0 %5878
      %5880 = vrot.lane.b32.xlu0 %v5807, 32
      %v5881 = vpop.permute.xlu0 %5880
      %5882 = vrot.lane.b32.xlu0 %v5808, 32
      %v5883 = vpop.permute.xlu0 %5882
      %5884 = vrot.lane.b32.xlu0 %v5809, 32
      %v5885 = vpop.permute.xlu0 %5884
      %5886 = vrot.lane.b32.xlu0 %v5810, 32
      %v5887 = vpop.permute.xlu0 %5886
      %5888 = vrot.lane.b32.xlu0 %v5811, 32
      %v5889 = vpop.permute.xlu0 %5888
      %5890 = vrot.lane.b32.xlu0 %v5812, 32
      %v5891 = vpop.permute.xlu0 %5890
      %5892 = vrot.lane.b32.xlu0 %v5813, 32
      %v5893 = vpop.permute.xlu0 %5892
      %5894 = vrot.lane.b32.xlu0 %v5814, 32
      %v5895 = vpop.permute.xlu0 %5894
      %5896 = vrot.lane.b32.xlu0 %v5815, 32
      %v5897 = vpop.permute.xlu0 %5896
      %5898 = vrot.lane.b32.xlu0 %v5816, 32
      %v5899 = vpop.permute.xlu0 %5898
      %5900 = vrot.lane.b32.xlu0 %v5817, 32
      %v5901 = vpop.permute.xlu0 %5900
      %5902 = vrot.lane.b32.xlu0 %v5818, 32
      %v5903 = vpop.permute.xlu0 %5902
      %5904 = vrot.lane.b32.xlu0 %v5819, 32
      %v5905 = vpop.permute.xlu0 %5904
      %5906 = vrot.lane.b32.xlu0 %v5820, 32
      %v5907 = vpop.permute.xlu0 %5906
      %5908 = vrot.lane.b32.xlu0 %v5821, 32
      %v5909 = vpop.permute.xlu0 %5908
      %5910 = vrot.lane.b32.xlu0 %v5822, 32
      %v5911 = vpop.permute.xlu0 %5910
      %5912 = vrot.lane.b32.xlu0 %v5823, 32
      %v5913 = vpop.permute.xlu0 %5912
      %5914 = vrot.lane.b32.xlu0 %v5824, 32
      %v5915 = vpop.permute.xlu0 %5914
      %5916 = vrot.lane.b32.xlu0 %v5825, 32
      %v5917 = vpop.permute.xlu0 %5916
      %5918 = vrot.lane.b32.xlu0 %v5826, 32
      %v5919 = vpop.permute.xlu0 %5918
      %5920 = vrot.lane.b32.xlu0 %v5827, 32
      %v5921 = vpop.permute.xlu0 %5920
      %5922 = vrot.lane.b32.xlu0 %v5828, 32
      %v5923 = vpop.permute.xlu0 %5922
      %5924 = vrot.lane.b32.xlu0 %v5829, 32
      %v5925 = vpop.permute.xlu0 %5924
      %5926 = vrot.lane.b32.xlu0 %v5830, 32
      %v5927 = vpop.permute.xlu0 %5926
      %5928 = vrot.lane.b32.xlu0 %v5831, 32
      %v5929 = vpop.permute.xlu0 %5928
      %5930 = vrot.lane.b32.xlu0 %v5832, 32
      %v5931 = vpop.permute.xlu0 %5930
      %5932 = vrot.lane.b32.xlu0 %v5833, 32
      %v5933 = vpop.permute.xlu0 %5932
      %5934 = vrot.lane.b32.xlu0 %v5834, 32
      %v5935 = vpop.permute.xlu0 %5934
      %5936 = vrot.lane.b32.xlu0 %v5835, 32
      %v5937 = vpop.permute.xlu0 %5936
      %5938 = vrot.lane.b32.xlu0 %v5836, 32
      %v5939 = vpop.permute.xlu0 %5938
      %5940 = vrot.lane.b32.xlu0 %v5837, 32
      %v5941 = vpop.permute.xlu0 %5940
      %5942 = vrot.lane.b32.xlu0 %v5838, 32
      %v5943 = vpop.permute.xlu0 %5942
      %5944 = vrot.lane.b32.xlu0 %v5839, 32
      %v5945 = vpop.permute.xlu0 %5944
      %5946 = vrot.lane.b32.xlu0 %v5840, 32
      %v5947 = vpop.permute.xlu0 %5946
      %5948 = vrot.lane.b32.xlu0 %v5841, 32
      %v5949 = vpop.permute.xlu0 %5948
      %5986 = vst.msk [vmem:[#allocation6] sm:$0xff] %vm2478, %v5879
      %5987 = vst.msk [vmem:[#allocation6 + $0x8] sm:$0xff] %vm2478, %v5881
      %5988 = vst.msk [vmem:[#allocation6 + $0x10] sm:$0xff] %vm2478, %v5883
      %5989 = vst.msk [vmem:[#allocation6 + $0x18] sm:$0xff] %vm2478, %v5885
      %5990 = vst.msk [vmem:[#allocation6 + $0x20] sm:$0xff] %vm2478, %v5887
      %5991 = vst.msk [vmem:[#allocation6 + $0x28] sm:$0xff] %vm2478, %v5889
      %5992 = vst.msk [vmem:[#allocation6 + $0x30] sm:$0xff] %vm2478, %v5891
      %5993 = vst.msk [vmem:[#allocation6 + $0x38] sm:$0xff] %vm2478, %v5893
      %5994 = vst.msk [vmem:[#allocation6 + $0x40] sm:$0xff] %vm2478, %v5895
      %5995 = vst.msk [vmem:[#allocation6 + $0x48] sm:$0xff] %vm2478, %v5897
      %5996 = vst.msk [vmem:[#allocation6 + $0x50] sm:$0xff] %vm2478, %v5899
      %5997 = vst.msk [vmem:[#allocation6 + $0x58] sm:$0xff] %vm2478, %v5901
      %5998 = vst.msk [vmem:[#allocation6 + $0x60] sm:$0xff] %vm2478, %v5903
      %5999 = vst.msk [vmem:[#allocation6 + $0x68] sm:$0xff] %vm2478, %v5905
      %6000 = vst.msk [vmem:[#allocation6 + $0x70] sm:$0xff] %vm2478, %v5907
      %6001 = vst.msk [vmem:[#allocation6 + $0x78] sm:$0xff] %vm2478, %v5909
      %6002 = vst.msk [vmem:[#allocation6 + $0x80] sm:$0xff] %vm2478, %v5911
      %6003 = vst.msk [vmem:[#allocation6 + $0x88] sm:$0xff] %vm2478, %v5913
      %6004 = vst.msk [vmem:[#allocation6 + $0x90] sm:$0xff] %vm2478, %v5915
      %6005 = vst.msk [vmem:[#allocation6 + $0x98] sm:$0xff] %vm2478, %v5917
      %6006 = vst.msk [vmem:[#allocation6 + $0xa0] sm:$0xff] %vm2478, %v5919
      %6007 = vst.msk [vmem:[#allocation6 + $0xa8] sm:$0xff] %vm2478, %v5921
      %6008 = vst.msk [vmem:[#allocation6 + $0xb0] sm:$0xff] %vm2478, %v5923
      %6009 = vst.msk [vmem:[#allocation6 + $0xb8] sm:$0xff] %vm2478, %v5925
      %6010 = vst.msk [vmem:[#allocation6 + $0xc0] sm:$0xff] %vm2478, %v5927
      %6011 = vst.msk [vmem:[#allocation6 + $0xc8] sm:$0xff] %vm2478, %v5929
      %6012 = vst.msk [vmem:[#allocation6 + $0xd0] sm:$0xff] %vm2478, %v5931
      %6013 = vst.msk [vmem:[#allocation6 + $0xd8] sm:$0xff] %vm2478, %v5933
      %6014 = vst.msk [vmem:[#allocation6 + $0xe0] sm:$0xff] %vm2478, %v5935
      %6015 = vst.msk [vmem:[#allocation6 + $0xe8] sm:$0xff] %vm2478, %v5937
      %6016 = vst.msk [vmem:[#allocation6 + $0xf0] sm:$0xff] %vm2478, %v5939
      %6017 = vst.msk [vmem:[#allocation6 + $0xf8] sm:$0xff] %vm2478, %v5941
      %6018 = vst.msk [vmem:[#allocation6 + $0x100] sm:$0xff] %vm2478, %v5943
      %6019 = vst.msk [vmem:[#allocation6 + $0x108] sm:$0xff] %vm2478, %v5945
      %6020 = vst.msk [vmem:[#allocation6 + $0x110] sm:$0xff] %vm2478, %v5947
      %6021 = vst.msk [vmem:[#allocation6 + $0x118] sm:$0xff] %vm2478, %v5949
      %v6022 = vld [vmem:[#allocation4 + $0x9] sm:$0xff]
      %v6023 = vld [vmem:[#allocation4 + $0x11] sm:$0xff]
      %v6024 = vld [vmem:[#allocation4 + $0x29] sm:$0xff]
      %v6025 = vld [vmem:[#allocation4 + $0x31] sm:$0xff]
      %v6026 = vld [vmem:[#allocation4 + $0x49] sm:$0xff]
      %v6027 = vld [vmem:[#allocation4 + $0x51] sm:$0xff]
      %v6028 = vld [vmem:[#allocation4 + $0x69] sm:$0xff]
      %v6029 = vld [vmem:[#allocation4 + $0x71] sm:$0xff]
      %v6030 = vld [vmem:[#allocation4 + $0x89] sm:$0xff]
      %v6031 = vld [vmem:[#allocation4 + $0x91] sm:$0xff]
      %v6032 = vld [vmem:[#allocation4 + $0xa9] sm:$0xff]
      %v6033 = vld [vmem:[#allocation4 + $0xb1] sm:$0xff]
      %v6034 = vld [vmem:[#allocation4 + $0xc9] sm:$0xff]
      %v6035 = vld [vmem:[#allocation4 + $0xd1] sm:$0xff]
      %v6036 = vld [vmem:[#allocation4 + $0xe9] sm:$0xff]
      %v6037 = vld [vmem:[#allocation4 + $0xf1] sm:$0xff]
      %v6038 = vld [vmem:[#allocation4 + $0x109] sm:$0xff]
      %v6039 = vld [vmem:[#allocation4 + $0x111] sm:$0xff]
      %v6040 = vld [vmem:[#allocation4 + $0x129] sm:$0xff]
      %v6041 = vld [vmem:[#allocation4 + $0x131] sm:$0xff]
      %v6042 = vld [vmem:[#allocation4 + $0x149] sm:$0xff]
      %v6043 = vld [vmem:[#allocation4 + $0x151] sm:$0xff]
      %v6044 = vld [vmem:[#allocation4 + $0x169] sm:$0xff]
      %v6045 = vld [vmem:[#allocation4 + $0x171] sm:$0xff]
      %v6046 = vld [vmem:[#allocation4 + $0x189] sm:$0xff]
      %v6047 = vld [vmem:[#allocation4 + $0x191] sm:$0xff]
      %v6048 = vld [vmem:[#allocation4 + $0x1a9] sm:$0xff]
      %v6049 = vld [vmem:[#allocation4 + $0x1b1] sm:$0xff]
      %v6050 = vld [vmem:[#allocation4 + $0x1c9] sm:$0xff]
      %v6051 = vld [vmem:[#allocation4 + $0x1d1] sm:$0xff]
      %v6052 = vld [vmem:[#allocation4 + $0x1e9] sm:$0xff]
      %v6053 = vld [vmem:[#allocation4 + $0x1f1] sm:$0xff]
      %v6054 = vld [vmem:[#allocation4 + $0x209] sm:$0xff]
      %v6055 = vld [vmem:[#allocation4 + $0x211] sm:$0xff]
      %v6056 = vld [vmem:[#allocation4 + $0x229] sm:$0xff]
      %v6057 = vld [vmem:[#allocation4 + $0x231] sm:$0xff]
      %6094 = vrot.lane.b32.xlu0 %v6022, 64
      %v6095 = vpop.permute.xlu0 %6094
      %6096 = vrot.lane.b32.xlu0 %v6023, 64
      %v6097 = vpop.permute.xlu0 %6096
      %6098 = vrot.lane.b32.xlu0 %v6024, 64
      %v6099 = vpop.permute.xlu0 %6098
      %6100 = vrot.lane.b32.xlu0 %v6025, 64
      %v6101 = vpop.permute.xlu0 %6100
      %6102 = vrot.lane.b32.xlu0 %v6026, 64
      %v6103 = vpop.permute.xlu0 %6102
      %6104 = vrot.lane.b32.xlu0 %v6027, 64
      %v6105 = vpop.permute.xlu0 %6104
      %6106 = vrot.lane.b32.xlu0 %v6028, 64
      %v6107 = vpop.permute.xlu0 %6106
      %6108 = vrot.lane.b32.xlu0 %v6029, 64
      %v6109 = vpop.permute.xlu0 %6108
      %6110 = vrot.lane.b32.xlu0 %v6030, 64
      %v6111 = vpop.permute.xlu0 %6110
      %6112 = vrot.lane.b32.xlu0 %v6031, 64
      %v6113 = vpop.permute.xlu0 %6112
      %6114 = vrot.lane.b32.xlu0 %v6032, 64
      %v6115 = vpop.permute.xlu0 %6114
      %6116 = vrot.lane.b32.xlu0 %v6033, 64
      %v6117 = vpop.permute.xlu0 %6116
      %6118 = vrot.lane.b32.xlu0 %v6034, 64
      %v6119 = vpop.permute.xlu0 %6118
      %6120 = vrot.lane.b32.xlu0 %v6035, 64
      %v6121 = vpop.permute.xlu0 %6120
      %6122 = vrot.lane.b32.xlu0 %v6036, 64
      %v6123 = vpop.permute.xlu0 %6122
      %6124 = vrot.lane.b32.xlu0 %v6037, 64
      %v6125 = vpop.permute.xlu0 %6124
      %6126 = vrot.lane.b32.xlu0 %v6038, 64
      %v6127 = vpop.permute.xlu0 %6126
      %6128 = vrot.lane.b32.xlu0 %v6039, 64
      %v6129 = vpop.permute.xlu0 %6128
      %6130 = vrot.lane.b32.xlu0 %v6040, 64
      %v6131 = vpop.permute.xlu0 %6130
      %6132 = vrot.lane.b32.xlu0 %v6041, 64
      %v6133 = vpop.permute.xlu0 %6132
      %6134 = vrot.lane.b32.xlu0 %v6042, 64
      %v6135 = vpop.permute.xlu0 %6134
      %6136 = vrot.lane.b32.xlu0 %v6043, 64
      %v6137 = vpop.permute.xlu0 %6136
      %6138 = vrot.lane.b32.xlu0 %v6044, 64
      %v6139 = vpop.permute.xlu0 %6138
      %6140 = vrot.lane.b32.xlu0 %v6045, 64
      %v6141 = vpop.permute.xlu0 %6140
      %6142 = vrot.lane.b32.xlu0 %v6046, 64
      %v6143 = vpop.permute.xlu0 %6142
      %6144 = vrot.lane.b32.xlu0 %v6047, 64
      %v6145 = vpop.permute.xlu0 %6144
      %6146 = vrot.lane.b32.xlu0 %v6048, 64
      %v6147 = vpop.permute.xlu0 %6146
      %6148 = vrot.lane.b32.xlu0 %v6049, 64
      %v6149 = vpop.permute.xlu0 %6148
      %6150 = vrot.lane.b32.xlu0 %v6050, 64
      %v6151 = vpop.permute.xlu0 %6150
      %6152 = vrot.lane.b32.xlu0 %v6051, 64
      %v6153 = vpop.permute.xlu0 %6152
      %6154 = vrot.lane.b32.xlu0 %v6052, 64
      %v6155 = vpop.permute.xlu0 %6154
      %6156 = vrot.lane.b32.xlu0 %v6053, 64
      %v6157 = vpop.permute.xlu0 %6156
      %6158 = vrot.lane.b32.xlu0 %v6054, 64
      %v6159 = vpop.permute.xlu0 %6158
      %6160 = vrot.lane.b32.xlu0 %v6055, 64
      %v6161 = vpop.permute.xlu0 %6160
      %6162 = vrot.lane.b32.xlu0 %v6056, 64
      %v6163 = vpop.permute.xlu0 %6162
      %6164 = vrot.lane.b32.xlu0 %v6057, 64
      %v6165 = vpop.permute.xlu0 %6164
      %6202 = vst.msk [vmem:[#allocation6] sm:$0xff] %vm2695, %v6095
      %6203 = vst.msk [vmem:[#allocation6 + $0x8] sm:$0xff] %vm2695, %v6097
      %6204 = vst.msk [vmem:[#allocation6 + $0x10] sm:$0xff] %vm2695, %v6099
      %6205 = vst.msk [vmem:[#allocation6 + $0x18] sm:$0xff] %vm2695, %v6101
      %6206 = vst.msk [vmem:[#allocation6 + $0x20] sm:$0xff] %vm2695, %v6103
      %6207 = vst.msk [vmem:[#allocation6 + $0x28] sm:$0xff] %vm2695, %v6105
      %6208 = vst.msk [vmem:[#allocation6 + $0x30] sm:$0xff] %vm2695, %v6107
      %6209 = vst.msk [vmem:[#allocation6 + $0x38] sm:$0xff] %vm2695, %v6109
      %6210 = vst.msk [vmem:[#allocation6 + $0x40] sm:$0xff] %vm2695, %v6111
      %6211 = vst.msk [vmem:[#allocation6 + $0x48] sm:$0xff] %vm2695, %v6113
      %6212 = vst.msk [vmem:[#allocation6 + $0x50] sm:$0xff] %vm2695, %v6115
      %6213 = vst.msk [vmem:[#allocation6 + $0x58] sm:$0xff] %vm2695, %v6117
      %6214 = vst.msk [vmem:[#allocation6 + $0x60] sm:$0xff] %vm2695, %v6119
      %6215 = vst.msk [vmem:[#allocation6 + $0x68] sm:$0xff] %vm2695, %v6121
      %6216 = vst.msk [vmem:[#allocation6 + $0x70] sm:$0xff] %vm2695, %v6123
      %6217 = vst.msk [vmem:[#allocation6 + $0x78] sm:$0xff] %vm2695, %v6125
      %6218 = vst.msk [vmem:[#allocation6 + $0x80] sm:$0xff] %vm2695, %v6127
      %6219 = vst.msk [vmem:[#allocation6 + $0x88] sm:$0xff] %vm2695, %v6129
      %6220 = vst.msk [vmem:[#allocation6 + $0x90] sm:$0xff] %vm2695, %v6131
      %6221 = vst.msk [vmem:[#allocation6 + $0x98] sm:$0xff] %vm2695, %v6133
      %6222 = vst.msk [vmem:[#allocation6 + $0xa0] sm:$0xff] %vm2695, %v6135
      %6223 = vst.msk [vmem:[#allocation6 + $0xa8] sm:$0xff] %vm2695, %v6137
      %6224 = vst.msk [vmem:[#allocation6 + $0xb0] sm:$0xff] %vm2695, %v6139
      %6225 = vst.msk [vmem:[#allocation6 + $0xb8] sm:$0xff] %vm2695, %v6141
      %6226 = vst.msk [vmem:[#allocation6 + $0xc0] sm:$0xff] %vm2695, %v6143
      %6227 = vst.msk [vmem:[#allocation6 + $0xc8] sm:$0xff] %vm2695, %v6145
      %6228 = vst.msk [vmem:[#allocation6 + $0xd0] sm:$0xff] %vm2695, %v6147
      %6229 = vst.msk [vmem:[#allocation6 + $0xd8] sm:$0xff] %vm2695, %v6149
      %6230 = vst.msk [vmem:[#allocation6 + $0xe0] sm:$0xff] %vm2695, %v6151
      %6231 = vst.msk [vmem:[#allocation6 + $0xe8] sm:$0xff] %vm2695, %v6153
      %6232 = vst.msk [vmem:[#allocation6 + $0xf0] sm:$0xff] %vm2695, %v6155
      %6233 = vst.msk [vmem:[#allocation6 + $0xf8] sm:$0xff] %vm2695, %v6157
      %6234 = vst.msk [vmem:[#allocation6 + $0x100] sm:$0xff] %vm2695, %v6159
      %6235 = vst.msk [vmem:[#allocation6 + $0x108] sm:$0xff] %vm2695, %v6161
      %6236 = vst.msk [vmem:[#allocation6 + $0x110] sm:$0xff] %vm2695, %v6163
      %6237 = vst.msk [vmem:[#allocation6 + $0x118] sm:$0xff] %vm2695, %v6165
      %v6238 = vld [vmem:[#allocation6] sm:$0xff]
      %v6239 = vld [vmem:[#allocation6 + $0x8] sm:$0xff]
      %v6240 = vld [vmem:[#allocation6 + $0x10] sm:$0xff]
      %v6241 = vld [vmem:[#allocation6 + $0x18] sm:$0xff]
      %v6242 = vld [vmem:[#allocation6 + $0x20] sm:$0xff]
      %v6243 = vld [vmem:[#allocation6 + $0x28] sm:$0xff]
      %v6244 = vld [vmem:[#allocation6 + $0x30] sm:$0xff]
      %v6245 = vld [vmem:[#allocation6 + $0x38] sm:$0xff]
      %v6246 = vld [vmem:[#allocation6 + $0x40] sm:$0xff]
      %v6247 = vld [vmem:[#allocation6 + $0x48] sm:$0xff]
      %v6248 = vld [vmem:[#allocation6 + $0x50] sm:$0xff]
      %v6249 = vld [vmem:[#allocation6 + $0x58] sm:$0xff]
      %v6250 = vld [vmem:[#allocation6 + $0x60] sm:$0xff]
      %v6251 = vld [vmem:[#allocation6 + $0x68] sm:$0xff]
      %v6252 = vld [vmem:[#allocation6 + $0x70] sm:$0xff]
      %v6253 = vld [vmem:[#allocation6 + $0x78] sm:$0xff]
      %v6254 = vld [vmem:[#allocation6 + $0x80] sm:$0xff]
      %v6255 = vld [vmem:[#allocation6 + $0x88] sm:$0xff]
      %v6256 = vld [vmem:[#allocation6 + $0x90] sm:$0xff]
      %v6257 = vld [vmem:[#allocation6 + $0x98] sm:$0xff]
      %v6258 = vld [vmem:[#allocation6 + $0xa0] sm:$0xff]
      %v6259 = vld [vmem:[#allocation6 + $0xa8] sm:$0xff]
      %v6260 = vld [vmem:[#allocation6 + $0xb0] sm:$0xff]
      %v6261 = vld [vmem:[#allocation6 + $0xb8] sm:$0xff]
      %v6262 = vld [vmem:[#allocation6 + $0xc0] sm:$0xff]
      %v6263 = vld [vmem:[#allocation6 + $0xc8] sm:$0xff]
      %v6264 = vld [vmem:[#allocation6 + $0xd0] sm:$0xff]
      %v6265 = vld [vmem:[#allocation6 + $0xd8] sm:$0xff]
      %v6266 = vld [vmem:[#allocation6 + $0xe0] sm:$0xff]
      %v6267 = vld [vmem:[#allocation6 + $0xe8] sm:$0xff]
      %v6268 = vld [vmem:[#allocation6 + $0xf0] sm:$0xff]
      %v6269 = vld [vmem:[#allocation6 + $0xf8] sm:$0xff]
      %v6270 = vld [vmem:[%s2764] sm:$0xff]
      %v6271 = vld [vmem:[%s2764 + $0x8] sm:$0xff]
      %v6272 = vld [vmem:[%s2764 + $0x10] sm:$0xff]
      %v6273 = vld [vmem:[%s2764 + $0x18] sm:$0xff]
      %v6274 = vld [vmem:[%s2764 + $0x20] sm:$0xff]
      %v6275 = vld [vmem:[%s2764 + $0x28] sm:$0xff]
      %v6276 = vld [vmem:[%s2764 + $0x30] sm:$0xff]
      %v6277 = vld [vmem:[%s2764 + $0x38] sm:$0xff]
      %v6278 = vld [vmem:[%s2764 + $0x40] sm:$0xff]
      %v6279 = vld [vmem:[%s2764 + $0x48] sm:$0xff]
      %v6280 = vld [vmem:[%s2764 + $0x50] sm:$0xff]
      %v6281 = vld [vmem:[%s2764 + $0x58] sm:$0xff]
      %v6282 = vld [vmem:[%s2764 + $0x60] sm:$0xff]
      %v6283 = vld [vmem:[%s2764 + $0x68] sm:$0xff]
      %v6284 = vld [vmem:[%s2764 + $0x70] sm:$0xff]
      %v6285 = vld [vmem:[%s2764 + $0x78] sm:$0xff]
      %v6286 = vld [vmem:[%s2764 + $0x80] sm:$0xff]
      %v6287 = vld [vmem:[%s2764 + $0x88] sm:$0xff]
      %v6288 = vld [vmem:[%s2764 + $0x90] sm:$0xff]
      %v6289 = vld [vmem:[%s2764 + $0x98] sm:$0xff]
      %v6290 = vld [vmem:[%s2764 + $0xa0] sm:$0xff]
      %v6291 = vld [vmem:[%s2764 + $0xa8] sm:$0xff]
      %v6292 = vld [vmem:[%s2764 + $0xb0] sm:$0xff]
      %v6293 = vld [vmem:[%s2764 + $0xb8] sm:$0xff]
      %v6294 = vld [vmem:[%s2764 + $0xc0] sm:$0xff]
      %v6295 = vld [vmem:[%s2764 + $0xc8] sm:$0xff]
      %v6296 = vld [vmem:[%s2764 + $0xd0] sm:$0xff]
      %v6297 = vld [vmem:[%s2764 + $0xd8] sm:$0xff]
      %v6298 = vld [vmem:[%s2764 + $0xe0] sm:$0xff]
      %v6299 = vld [vmem:[%s2764 + $0xe8] sm:$0xff]
      %v6300 = vld [vmem:[%s2764 + $0xf0] sm:$0xff]
      %v6301 = vld [vmem:[%s2764 + $0xf8] sm:$0xff]
      %v6303 = vsel %vm2797, %v6270, 0
      %v6306 = vsel %vm2797, %v6271, 0
      %v6309 = vsel %vm2797, %v6272, 0
      %v6312 = vsel %vm2797, %v6273, 0
      %v6315 = vsel %vm2797, %v6274, 0
      %v6318 = vsel %vm2797, %v6275, 0
      %v6321 = vsel %vm2797, %v6276, 0
      %v6324 = vsel %vm2797, %v6277, 0
      %v6327 = vsel %vm2797, %v6278, 0
      %v6330 = vsel %vm2797, %v6279, 0
      %v6333 = vsel %vm2797, %v6280, 0
      %v6336 = vsel %vm2797, %v6281, 0
      %v6339 = vsel %vm2797, %v6282, 0
      %v6342 = vsel %vm2797, %v6283, 0
      %v6345 = vsel %vm2797, %v6284, 0
      %v6348 = vsel %vm2797, %v6285, 0
      %v6351 = vsel %vm2797, %v6286, 0
      %v6354 = vsel %vm2797, %v6287, 0
      %v6357 = vsel %vm2797, %v6288, 0
      %v6360 = vsel %vm2797, %v6289, 0
      %v6363 = vsel %vm2797, %v6290, 0
      %v6366 = vsel %vm2797, %v6291, 0
      %v6369 = vsel %vm2797, %v6292, 0
      %v6372 = vsel %vm2797, %v6293, 0
      %v6375 = vsel %vm2797, %v6294, 0
      %v6378 = vsel %vm2797, %v6295, 0
      %v6381 = vsel %vm2797, %v6296, 0
      %v6384 = vsel %vm2797, %v6297, 0
      %v6387 = vsel %vm2797, %v6298, 0
      %v6390 = vsel %vm2797, %v6299, 0
      %v6393 = vsel %vm2797, %v6300, 0
      %v6396 = vsel %vm2797, %v6301, 0
      %6398 = vmatprep.subr.mxu0 0.0
      %6399 = vmatpush1.msra.mxu0 %v5708
      %6400 = vmatprep.subr.mxu0 0.0
      %6401 = vmatpush1.msra.mxu0 %v5709
      %6402 = vmatprep.subr.mxu0 0.0
      %6403 = vmatpush1.msra.mxu0 %v5710
      %6404 = vmatprep.subr.mxu0 0.0
      %6405 = vmatpush1.msra.mxu0 %v5711
      %6406 = vmatprep.subr.mxu0 0.0
      %6407 = vmatpush1.msra.mxu0 %v5712
      %6408 = vmatprep.subr.mxu0 0.0
      %6409 = vmatpush1.msra.mxu0 %v5713
      %6410 = vmatprep.subr.mxu0 0.0
      %6411 = vmatpush1.msra.mxu0 %v5714
      %6412 = vmatprep.subr.mxu0 0.0
      %6413 = vmatpush1.msra.mxu0 %v5715
      %6414 = vmatprep.subr.mxu0 0.0
      %6415 = vmatpush1.msra.mxu0 %v5716
      %6416 = vmatprep.subr.mxu0 0.0
      %6417 = vmatpush1.msra.mxu0 %v5717
      %6418 = vmatprep.subr.mxu0 0.0
      %6419 = vmatpush1.msra.mxu0 %v5718
      %6420 = vmatprep.subr.mxu0 0.0
      %6421 = vmatpush1.msra.mxu0 %v5719
      %6422 = vmatprep.subr.mxu0 0.0
      %6423 = vmatpush1.msra.mxu0 0.0
      %6424 = vmatprep.subr.mxu0 0.0
      %6425 = vmatpush1.msra.mxu0 0.0
      %6426 = vmatprep.subr.mxu0 0.0
      %6427 = vmatpush1.msra.mxu0 0.0
      %6428 = vmatprep.subr.mxu0 0.0
      %6429 = vmatpush1.msra.mxu0 0.0
      %6430 = vmatprep.subr.mxu0 0.0
      %6431 = vmatpush1.msra.mxu0 0.0
      %6432 = vmatprep.subr.mxu0 0.0
      %6433 = vmatpush1.msra.mxu0 0.0
      %6434 = vmatprep.subr.mxu0 0.0
      %6435 = vmatpush1.msra.mxu0 0.0
      %6436 = vmatprep.subr.mxu0 0.0
      %6437 = vmatpush1.msra.mxu0 0.0
      %6438 = vmatprep.subr.mxu0 0.0
      %6439 = vmatpush1.msra.mxu0 0.0
      %6440 = vmatprep.subr.mxu0 0.0
      %6441 = vmatpush1.msra.mxu0 0.0
      %6442 = vmatprep.subr.mxu0 0.0
      %6443 = vmatpush1.msra.mxu0 0.0
      %6444 = vmatprep.subr.mxu0 0.0
      %6445 = vmatpush1.msra.mxu0 0.0
      %6446 = vmatprep.subr.mxu0 0.0
      %6447 = vmatpush1.msra.mxu0 0.0
      %6448 = vmatprep.subr.mxu0 0.0
      %6449 = vmatpush1.msra.mxu0 0.0
      %6450 = vmatprep.subr.mxu0 0.0
      %6451 = vmatpush1.msra.mxu0 0.0
      %6452 = vmatprep.subr.mxu0 0.0
      %6453 = vmatpush1.msra.mxu0 0.0
      %6454 = vmatprep.subr.mxu0 0.0
      %6455 = vmatpush1.msra.mxu0 0.0
      %6456 = vmatprep.subr.mxu0 0.0
      %6457 = vmatpush1.msra.mxu0 0.0
      %6458 = vmatprep.subr.mxu0 0.0
      %6459 = vmatpush1.msra.mxu0 0.0
      %6460 = vmatprep.subr.mxu0 0.0
      %6461 = vmatpush1.msra.mxu0 0.0
      %6462 = vmatprep.mubr.f32.mxu0 0.0
      %6463 = vmatmul.mubr.f32.gmra.mrb[0].mxu0 %v6303
      %v6464 = vpop.f32.mrb[0].mxu0
      %v6465 = vadd.f32 0.0, %v6464
      %v6466 = vpop.f32.mrb[0].mxu0
      %6467 = vmatprep.mubr.f32.mxu0 0.0
      %6468 = vmatmul.mubr.f32.gmra.mrb[0].mxu0 %v6306
      %v6469 = vpop.f32.mrb[0].mxu0
      %v6470 = vadd.f32 0.0, %v6469
      %v6471 = vpop.f32.mrb[0].mxu0
      %6472 = vmatprep.mubr.f32.mxu0 0.0
      %6473 = vmatmul.mubr.f32.gmra.mrb[0].mxu0 %v6309
      %v6474 = vpop.f32.mrb[0].mxu0
      %v6475 = vadd.f32 0.0, %v6474
      %v6476 = vpop.f32.mrb[0].mxu0
      %6477 = vmatprep.mubr.f32.mxu0 0.0
      %6478 = vmatmul.mubr.f32.gmra.mrb[0].mxu0 %v6312
      %v6479 = vpop.f32.mrb[0].mxu0
      %v6480 = vadd.f32 0.0, %v6479
      %v6481 = vpop.f32.mrb[0].mxu0
      %6482 = vmatprep.mubr.f32.mxu0 0.0
      %6483 = vmatmul.mubr.f32.gmra.mrb[0].mxu0 %v6315
      %v6484 = vpop.f32.mrb[0].mxu0
      %v6485 = vadd.f32 0.0, %v6484
      %v6486 = vpop.f32.mrb[0].mxu0
      %6487 = vmatprep.mubr.f32.mxu0 0.0
      %6488 = vmatmul.mubr.f32.gmra.mrb[0].mxu0 %v6318
      %v6489 = vpop.f32.mrb[0].mxu0
      %v6490 = vadd.f32 0.0, %v6489
      %v6491 = vpop.f32.mrb[0].mxu0
      %6492 = vmatprep.mubr.f32.mxu0 0.0
      %6493 = vmatmul.mubr.f32.gmra.mrb[0].mxu0 %v6321
      %v6494 = vpop.f32.mrb[0].mxu0
      %v6495 = vadd.f32 0.0, %v6494
      %v6496 = vpop.f32.mrb[0].mxu0
      %6497 = vmatprep.mubr.f32.mxu0 0.0
      %6498 = vmatmul.mubr.f32.gmra.mrb[0].mxu0 %v6324
      %v6499 = vpop.f32.mrb[0].mxu0
      %v6500 = vadd.f32 0.0, %v6499
      %v6501 = vpop.f32.mrb[0].mxu0
      %6502 = vmatprep.mubr.f32.mxu0 0.0
      %6503 = vmatmul.mubr.f32.gmra.mrb[0].mxu0 %v6327
      %v6504 = vpop.f32.mrb[0].mxu0
      %v6505 = vadd.f32 0.0, %v6504
      %v6506 = vpop.f32.mrb[0].mxu0
      %6507 = vmatprep.mubr.f32.mxu0 0.0
      %6508 = vmatmul.mubr.f32.gmra.mrb[0].mxu0 %v6330
      %v6509 = vpop.f32.mrb[0].mxu0
      %v6510 = vadd.f32 0.0, %v6509
      %v6511 = vpop.f32.mrb[0].mxu0
      %6512 = vmatprep.mubr.f32.mxu0 0.0
      %6513 = vmatmul.mubr.f32.gmra.mrb[0].mxu0 %v6333
      %v6514 = vpop.f32.mrb[0].mxu0
      %v6515 = vadd.f32 0.0, %v6514
      %v6516 = vpop.f32.mrb[0].mxu0
      %6517 = vmatprep.mubr.f32.mxu0 0.0
      %6518 = vmatmul.mubr.f32.gmra.mrb[0].mxu0 %v6336
      %v6519 = vpop.f32.mrb[0].mxu0
      %v6520 = vadd.f32 0.0, %v6519
      %v6521 = vpop.f32.mrb[0].mxu0
      %6522 = vmatprep.mubr.f32.mxu0 0.0
      %6523 = vmatmul.mubr.f32.gmra.mrb[0].mxu0 %v6339
      %v6524 = vpop.f32.mrb[0].mxu0
      %v6525 = vadd.f32 0.0, %v6524
      %v6526 = vpop.f32.mrb[0].mxu0
      %6527 = vmatprep.mubr.f32.mxu0 0.0
      %6528 = vmatmul.mubr.f32.gmra.mrb[0].mxu0 %v6342
      %v6529 = vpop.f32.mrb[0].mxu0
      %v6530 = vadd.f32 0.0, %v6529
      %v6531 = vpop.f32.mrb[0].mxu0
      %6532 = vmatprep.mubr.f32.mxu0 0.0
      %6533 = vmatmul.mubr.f32.gmra.mrb[0].mxu0 %v6345
      %v6534 = vpop.f32.mrb[0].mxu0
      %v6535 = vadd.f32 0.0, %v6534
      %v6536 = vpop.f32.mrb[0].mxu0
      %6537 = vmatprep.mubr.f32.mxu0 0.0
      %6538 = vmatmul.mubr.f32.gmra.mrb[0].mxu0 %v6348
      %v6539 = vpop.f32.mrb[0].mxu0
      %v6540 = vadd.f32 0.0, %v6539
      %v6541 = vpop.f32.mrb[0].mxu0
      %6542 = vmatprep.mubr.f32.mxu0 0.0
      %6543 = vmatmul.mubr.f32.gmra.mrb[0].mxu0 %v6351
      %v6544 = vpop.f32.mrb[0].mxu0
      %v6545 = vadd.f32 0.0, %v6544
      %v6546 = vpop.f32.mrb[0].mxu0
      %6547 = vmatprep.mubr.f32.mxu0 0.0
      %6548 = vmatmul.mubr.f32.gmra.mrb[0].mxu0 %v6354
      %v6549 = vpop.f32.mrb[0].mxu0
      %v6550 = vadd.f32 0.0, %v6549
      %v6551 = vpop.f32.mrb[0].mxu0
      %6552 = vmatprep.mubr.f32.mxu0 0.0
      %6553 = vmatmul.mubr.f32.gmra.mrb[0].mxu0 %v6357
      %v6554 = vpop.f32.mrb[0].mxu0
      %v6555 = vadd.f32 0.0, %v6554
      %v6556 = vpop.f32.mrb[0].mxu0
      %6557 = vmatprep.mubr.f32.mxu0 0.0
      %6558 = vmatmul.mubr.f32.gmra.mrb[0].mxu0 %v6360
      %v6559 = vpop.f32.mrb[0].mxu0
      %v6560 = vadd.f32 0.0, %v6559
      %v6561 = vpop.f32.mrb[0].mxu0
      %6562 = vmatprep.mubr.f32.mxu0 0.0
      %6563 = vmatmul.mubr.f32.gmra.mrb[0].mxu0 %v6363
      %v6564 = vpop.f32.mrb[0].mxu0
      %v6565 = vadd.f32 0.0, %v6564
      %v6566 = vpop.f32.mrb[0].mxu0
      %6567 = vmatprep.mubr.f32.mxu0 0.0
      %6568 = vmatmul.mubr.f32.gmra.mrb[0].mxu0 %v6366
      %v6569 = vpop.f32.mrb[0].mxu0
      %v6570 = vadd.f32 0.0, %v6569
      %v6571 = vpop.f32.mrb[0].mxu0
      %6572 = vmatprep.mubr.f32.mxu0 0.0
      %6573 = vmatmul.mubr.f32.gmra.mrb[0].mxu0 %v6369
      %v6574 = vpop.f32.mrb[0].mxu0
      %v6575 = vadd.f32 0.0, %v6574
      %v6576 = vpop.f32.mrb[0].mxu0
      %6577 = vmatprep.mubr.f32.mxu0 0.0
      %6578 = vmatmul.mubr.f32.gmra.mrb[0].mxu0 %v6372
      %v6579 = vpop.f32.mrb[0].mxu0
      %v6580 = vadd.f32 0.0, %v6579
      %v6581 = vpop.f32.mrb[0].mxu0
      %6582 = vmatprep.mubr.f32.mxu0 0.0
      %6583 = vmatmul.mubr.f32.gmra.mrb[0].mxu0 %v6375
      %v6584 = vpop.f32.mrb[0].mxu0
      %v6585 = vadd.f32 0.0, %v6584
      %v6586 = vpop.f32.mrb[0].mxu0
      %6587 = vmatprep.mubr.f32.mxu0 0.0
      %6588 = vmatmul.mubr.f32.gmra.mrb[0].mxu0 %v6378
      %v6589 = vpop.f32.mrb[0].mxu0
      %v6590 = vadd.f32 0.0, %v6589
      %v6591 = vpop.f32.mrb[0].mxu0
      %6592 = vmatprep.mubr.f32.mxu0 0.0
      %6593 = vmatmul.mubr.f32.gmra.mrb[0].mxu0 %v6381
      %v6594 = vpop.f32.mrb[0].mxu0
      %v6595 = vadd.f32 0.0, %v6594
      %v6596 = vpop.f32.mrb[0].mxu0
      %6597 = vmatprep.mubr.f32.mxu0 0.0
      %6598 = vmatmul.mubr.f32.gmra.mrb[0].mxu0 %v6384
      %v6599 = vpop.f32.mrb[0].mxu0
      %v6600 = vadd.f32 0.0, %v6599
      %v6601 = vpop.f32.mrb[0].mxu0
      %6602 = vmatprep.mubr.f32.mxu0 0.0
      %6603 = vmatmul.mubr.f32.gmra.mrb[0].mxu0 %v6387
      %v6604 = vpop.f32.mrb[0].mxu0
      %v6605 = vadd.f32 0.0, %v6604
      %v6606 = vpop.f32.mrb[0].mxu0
      %6607 = vmatprep.mubr.f32.mxu0 0.0
      %6608 = vmatmul.mubr.f32.gmra.mrb[0].mxu0 %v6390
      %v6609 = vpop.f32.mrb[0].mxu0
      %v6610 = vadd.f32 0.0, %v6609
      %v6611 = vpop.f32.mrb[0].mxu0
      %6612 = vmatprep.mubr.f32.mxu0 0.0
      %6613 = vmatmul.mubr.f32.gmra.mrb[0].mxu0 %v6393
      %v6614 = vpop.f32.mrb[0].mxu0
      %v6615 = vadd.f32 0.0, %v6614
      %v6616 = vpop.f32.mrb[0].mxu0
      %6617 = vmatprep.mubr.f32.mxu0 0.0
      %6618 = vmatmul.mubr.f32.gmra.mrb[0].mxu0 %v6396
      %v6619 = vpop.f32.mrb[0].mxu0
      %v6620 = vadd.f32 0.0, %v6619
      %v6621 = vpop.f32.mrb[0].mxu0
      %6622 = vdwg.mxu0
      %v6624 = vsel %vm2797, %v6238, 0
      %v6627 = vsel %vm2797, %v6239, 0
      %v6630 = vsel %vm2797, %v6240, 0
      %v6633 = vsel %vm2797, %v6241, 0
      %v6636 = vsel %vm2797, %v6242, 0
      %v6639 = vsel %vm2797, %v6243, 0
      %v6642 = vsel %vm2797, %v6244, 0
      %v6645 = vsel %vm2797, %v6245, 0
      %v6648 = vsel %vm2797, %v6246, 0
      %v6651 = vsel %vm2797, %v6247, 0
      %v6654 = vsel %vm2797, %v6248, 0
      %v6657 = vsel %vm2797, %v6249, 0
      %v6660 = vsel %vm2797, %v6250, 0
      %v6663 = vsel %vm2797, %v6251, 0
      %v6666 = vsel %vm2797, %v6252, 0
      %v6669 = vsel %vm2797, %v6253, 0
      %v6672 = vsel %vm2797, %v6254, 0
      %v6675 = vsel %vm2797, %v6255, 0
      %v6678 = vsel %vm2797, %v6256, 0
      %v6681 = vsel %vm2797, %v6257, 0
      %v6684 = vsel %vm2797, %v6258, 0
      %v6687 = vsel %vm2797, %v6259, 0
      %v6690 = vsel %vm2797, %v6260, 0
      %v6693 = vsel %vm2797, %v6261, 0
      %v6696 = vsel %vm2797, %v6262, 0
      %v6699 = vsel %vm2797, %v6263, 0
      %v6702 = vsel %vm2797, %v6264, 0
      %v6705 = vsel %vm2797, %v6265, 0
      %v6708 = vsel %vm2797, %v6266, 0
      %v6711 = vsel %vm2797, %v6267, 0
      %v6714 = vsel %vm2797, %v6268, 0
      %v6717 = vsel %vm2797, %v6269, 0
      %6719 = vmatprep.subr.mxu0 0.0
      %6720 = vmatpush1.msra.mxu0 %v5696
      %6721 = vmatprep.subr.mxu0 0.0
      %6722 = vmatpush1.msra.mxu0 %v5697
      %6723 = vmatprep.subr.mxu0 0.0
      %6724 = vmatpush1.msra.mxu0 %v5698
      %6725 = vmatprep.subr.mxu0 0.0
      %6726 = vmatpush1.msra.mxu0 %v5699
      %6727 = vmatprep.subr.mxu0 0.0
      %6728 = vmatpush1.msra.mxu0 %v5700
      %6729 = vmatprep.subr.mxu0 0.0
      %6730 = vmatpush1.msra.mxu0 %v5701
      %6731 = vmatprep.subr.mxu0 0.0
      %6732 = vmatpush1.msra.mxu0 %v5702
      %6733 = vmatprep.subr.mxu0 0.0
      %6734 = vmatpush1.msra.mxu0 %v5703
      %6735 = vmatprep.subr.mxu0 0.0
      %6736 = vmatpush1.msra.mxu0 %v5704
      %6737 = vmatprep.subr.mxu0 0.0
      %6738 = vmatpush1.msra.mxu0 %v5705
      %6739 = vmatprep.subr.mxu0 0.0
      %6740 = vmatpush1.msra.mxu0 %v5706
      %6741 = vmatprep.subr.mxu0 0.0
      %6742 = vmatpush1.msra.mxu0 %v5707
      %6743 = vmatprep.subr.mxu0 0.0
      %6744 = vmatpush1.msra.mxu0 0.0
      %6745 = vmatprep.subr.mxu0 0.0
      %6746 = vmatpush1.msra.mxu0 0.0
      %6747 = vmatprep.subr.mxu0 0.0
      %6748 = vmatpush1.msra.mxu0 0.0
      %6749 = vmatprep.subr.mxu0 0.0
      %6750 = vmatpush1.msra.mxu0 0.0
      %6751 = vmatprep.subr.mxu0 0.0
      %6752 = vmatpush1.msra.mxu0 0.0
      %6753 = vmatprep.subr.mxu0 0.0
      %6754 = vmatpush1.msra.mxu0 0.0
      %6755 = vmatprep.subr.mxu0 0.0
      %6756 = vmatpush1.msra.mxu0 0.0
      %6757 = vmatprep.subr.mxu0 0.0
      %6758 = vmatpush1.msra.mxu0 0.0
      %6759 = vmatprep.subr.mxu0 0.0
      %6760 = vmatpush1.msra.mxu0 0.0
      %6761 = vmatprep.subr.mxu0 0.0
      %6762 = vmatpush1.msra.mxu0 0.0
      %6763 = vmatprep.subr.mxu0 0.0
      %6764 = vmatpush1.msra.mxu0 0.0
      %6765 = vmatprep.subr.mxu0 0.0
      %6766 = vmatpush1.msra.mxu0 0.0
      %6767 = vmatprep.subr.mxu0 0.0
      %6768 = vmatpush1.msra.mxu0 0.0
      %6769 = vmatprep.subr.mxu0 0.0
      %6770 = vmatpush1.msra.mxu0 0.0
      %6771 = vmatprep.subr.mxu0 0.0
      %6772 = vmatpush1.msra.mxu0 0.0
      %6773 = vmatprep.subr.mxu0 0.0
      %6774 = vmatpush1.msra.mxu0 0.0
      %6775 = vmatprep.subr.mxu0 0.0
      %6776 = vmatpush1.msra.mxu0 0.0
      %6777 = vmatprep.subr.mxu0 0.0
      %6778 = vmatpush1.msra.mxu0 0.0
      %6779 = vmatprep.subr.mxu0 0.0
      %6780 = vmatpush1.msra.mxu0 0.0
      %6781 = vmatprep.subr.mxu0 0.0
      %6782 = vmatpush1.msra.mxu0 0.0
      %6783 = vmatprep.mubr.f32.mxu0 0.0
      %6784 = vmatmul.mubr.f32.gmra.mrb[0].mxu0 %v6624
      %v6785 = vpop.f32.mrb[0].mxu0
      %v6786 = vadd.f32 %v6465, %v6785
      %v6787 = vpop.f32.mrb[0].mxu0
      %6788 = vmatprep.mubr.f32.mxu0 0.0
      %6789 = vmatmul.mubr.f32.gmra.mrb[0].mxu0 %v6627
      %v6790 = vpop.f32.mrb[0].mxu0
      %v6791 = vadd.f32 %v6470, %v6790
      %v6792 = vpop.f32.mrb[0].mxu0
      %6793 = vmatprep.mubr.f32.mxu0 0.0
      %6794 = vmatmul.mubr.f32.gmra.mrb[0].mxu0 %v6630
      %v6795 = vpop.f32.mrb[0].mxu0
      %v6796 = vadd.f32 %v6475, %v6795
      %v6797 = vpop.f32.mrb[0].mxu0
      %6798 = vmatprep.mubr.f32.mxu0 0.0
      %6799 = vmatmul.mubr.f32.gmra.mrb[0].mxu0 %v6633
      %v6800 = vpop.f32.mrb[0].mxu0
      %v6801 = vadd.f32 %v6480, %v6800
      %v6802 = vpop.f32.mrb[0].mxu0
      %6803 = vmatprep.mubr.f32.mxu0 0.0
      %6804 = vmatmul.mubr.f32.gmra.mrb[0].mxu0 %v6636
      %v6805 = vpop.f32.mrb[0].mxu0
      %v6806 = vadd.f32 %v6485, %v6805
      %v6807 = vpop.f32.mrb[0].mxu0
      %6808 = vmatprep.mubr.f32.mxu0 0.0
      %6809 = vmatmul.mubr.f32.gmra.mrb[0].mxu0 %v6639
      %v6810 = vpop.f32.mrb[0].mxu0
      %v6811 = vadd.f32 %v6490, %v6810
      %v6812 = vpop.f32.mrb[0].mxu0
      %6813 = vmatprep.mubr.f32.mxu0 0.0
      %6814 = vmatmul.mubr.f32.gmra.mrb[0].mxu0 %v6642
      %v6815 = vpop.f32.mrb[0].mxu0
      %v6816 = vadd.f32 %v6495, %v6815
      %v6817 = vpop.f32.mrb[0].mxu0
      %6818 = vmatprep.mubr.f32.mxu0 0.0
      %6819 = vmatmul.mubr.f32.gmra.mrb[0].mxu0 %v6645
      %v6820 = vpop.f32.mrb[0].mxu0
      %v6821 = vadd.f32 %v6500, %v6820
      %v6822 = vpop.f32.mrb[0].mxu0
      %6823 = vmatprep.mubr.f32.mxu0 0.0
      %6824 = vmatmul.mubr.f32.gmra.mrb[0].mxu0 %v6648
      %v6825 = vpop.f32.mrb[0].mxu0
      %v6826 = vadd.f32 %v6505, %v6825
      %v6827 = vpop.f32.mrb[0].mxu0
      %6828 = vmatprep.mubr.f32.mxu0 0.0
      %6829 = vmatmul.mubr.f32.gmra.mrb[0].mxu0 %v6651
      %v6830 = vpop.f32.mrb[0].mxu0
      %v6831 = vadd.f32 %v6510, %v6830
      %v6832 = vpop.f32.mrb[0].mxu0
      %6833 = vmatprep.mubr.f32.mxu0 0.0
      %6834 = vmatmul.mubr.f32.gmra.mrb[0].mxu0 %v6654
      %v6835 = vpop.f32.mrb[0].mxu0
      %v6836 = vadd.f32 %v6515, %v6835
      %v6837 = vpop.f32.mrb[0].mxu0
      %6838 = vmatprep.mubr.f32.mxu0 0.0
      %6839 = vmatmul.mubr.f32.gmra.mrb[0].mxu0 %v6657
      %v6840 = vpop.f32.mrb[0].mxu0
      %v6841 = vadd.f32 %v6520, %v6840
      %v6842 = vpop.f32.mrb[0].mxu0
      %6843 = vmatprep.mubr.f32.mxu0 0.0
      %6844 = vmatmul.mubr.f32.gmra.mrb[0].mxu0 %v6660
      %v6845 = vpop.f32.mrb[0].mxu0
      %v6846 = vadd.f32 %v6525, %v6845
      %v6847 = vpop.f32.mrb[0].mxu0
      %6848 = vmatprep.mubr.f32.mxu0 0.0
      %6849 = vmatmul.mubr.f32.gmra.mrb[0].mxu0 %v6663
      %v6850 = vpop.f32.mrb[0].mxu0
      %v6851 = vadd.f32 %v6530, %v6850
      %v6852 = vpop.f32.mrb[0].mxu0
      %6853 = vmatprep.mubr.f32.mxu0 0.0
      %6854 = vmatmul.mubr.f32.gmra.mrb[0].mxu0 %v6666
      %v6855 = vpop.f32.mrb[0].mxu0
      %v6856 = vadd.f32 %v6535, %v6855
      %v6857 = vpop.f32.mrb[0].mxu0
      %6858 = vmatprep.mubr.f32.mxu0 0.0
      %6859 = vmatmul.mubr.f32.gmra.mrb[0].mxu0 %v6669
      %v6860 = vpop.f32.mrb[0].mxu0
      %v6861 = vadd.f32 %v6540, %v6860
      %v6862 = vpop.f32.mrb[0].mxu0
      %6863 = vmatprep.mubr.f32.mxu0 0.0
      %6864 = vmatmul.mubr.f32.gmra.mrb[0].mxu0 %v6672
      %v6865 = vpop.f32.mrb[0].mxu0
      %v6866 = vadd.f32 %v6545, %v6865
      %v6867 = vpop.f32.mrb[0].mxu0
      %6868 = vmatprep.mubr.f32.mxu0 0.0
      %6869 = vmatmul.mubr.f32.gmra.mrb[0].mxu0 %v6675
      %v6870 = vpop.f32.mrb[0].mxu0
      %v6871 = vadd.f32 %v6550, %v6870
      %v6872 = vpop.f32.mrb[0].mxu0
      %6873 = vmatprep.mubr.f32.mxu0 0.0
      %6874 = vmatmul.mubr.f32.gmra.mrb[0].mxu0 %v6678
      %v6875 = vpop.f32.mrb[0].mxu0
      %v6876 = vadd.f32 %v6555, %v6875
      %v6877 = vpop.f32.mrb[0].mxu0
      %6878 = vmatprep.mubr.f32.mxu0 0.0
      %6879 = vmatmul.mubr.f32.gmra.mrb[0].mxu0 %v6681
      %v6880 = vpop.f32.mrb[0].mxu0
      %v6881 = vadd.f32 %v6560, %v6880
      %v6882 = vpop.f32.mrb[0].mxu0
      %6883 = vmatprep.mubr.f32.mxu0 0.0
      %6884 = vmatmul.mubr.f32.gmra.mrb[0].mxu0 %v6684
      %v6885 = vpop.f32.mrb[0].mxu0
      %v6886 = vadd.f32 %v6565, %v6885
      %v6887 = vpop.f32.mrb[0].mxu0
      %6888 = vmatprep.mubr.f32.mxu0 0.0
      %6889 = vmatmul.mubr.f32.gmra.mrb[0].mxu0 %v6687
      %v6890 = vpop.f32.mrb[0].mxu0
      %v6891 = vadd.f32 %v6570, %v6890
      %v6892 = vpop.f32.mrb[0].mxu0
      %6893 = vmatprep.mubr.f32.mxu0 0.0
      %6894 = vmatmul.mubr.f32.gmra.mrb[0].mxu0 %v6690
      %v6895 = vpop.f32.mrb[0].mxu0
      %v6896 = vadd.f32 %v6575, %v6895
      %v6897 = vpop.f32.mrb[0].mxu0
      %6898 = vmatprep.mubr.f32.mxu0 0.0
      %6899 = vmatmul.mubr.f32.gmra.mrb[0].mxu0 %v6693
      %v6900 = vpop.f32.mrb[0].mxu0
      %v6901 = vadd.f32 %v6580, %v6900
      %v6902 = vpop.f32.mrb[0].mxu0
      %6903 = vmatprep.mubr.f32.mxu0 0.0
      %6904 = vmatmul.mubr.f32.gmra.mrb[0].mxu0 %v6696
      %v6905 = vpop.f32.mrb[0].mxu0
      %v6906 = vadd.f32 %v6585, %v6905
      %v6907 = vpop.f32.mrb[0].mxu0
      %6908 = vmatprep.mubr.f32.mxu0 0.0
      %6909 = vmatmul.mubr.f32.gmra.mrb[0].mxu0 %v6699
      %v6910 = vpop.f32.mrb[0].mxu0
      %v6911 = vadd.f32 %v6590, %v6910
      %v6912 = vpop.f32.mrb[0].mxu0
      %6913 = vmatprep.mubr.f32.mxu0 0.0
      %6914 = vmatmul.mubr.f32.gmra.mrb[0].mxu0 %v6702
      %v6915 = vpop.f32.mrb[0].mxu0
      %v6916 = vadd.f32 %v6595, %v6915
      %v6917 = vpop.f32.mrb[0].mxu0
      %6918 = vmatprep.mubr.f32.mxu0 0.0
      %6919 = vmatmul.mubr.f32.gmra.mrb[0].mxu0 %v6705
      %v6920 = vpop.f32.mrb[0].mxu0
      %v6921 = vadd.f32 %v6600, %v6920
      %v6922 = vpop.f32.mrb[0].mxu0
      %6923 = vmatprep.mubr.f32.mxu0 0.0
      %6924 = vmatmul.mubr.f32.gmra.mrb[0].mxu0 %v6708
      %v6925 = vpop.f32.mrb[0].mxu0
      %v6926 = vadd.f32 %v6605, %v6925
      %v6927 = vpop.f32.mrb[0].mxu0
      %6928 = vmatprep.mubr.f32.mxu0 0.0
      %6929 = vmatmul.mubr.f32.gmra.mrb[0].mxu0 %v6711
      %v6930 = vpop.f32.mrb[0].mxu0
      %v6931 = vadd.f32 %v6610, %v6930
      %v6932 = vpop.f32.mrb[0].mxu0
      %6933 = vmatprep.mubr.f32.mxu0 0.0
      %6934 = vmatmul.mubr.f32.gmra.mrb[0].mxu0 %v6714
      %v6935 = vpop.f32.mrb[0].mxu0
      %v6936 = vadd.f32 %v6615, %v6935
      %v6937 = vpop.f32.mrb[0].mxu0
      %6938 = vmatprep.mubr.f32.mxu0 0.0
      %6939 = vmatmul.mubr.f32.gmra.mrb[0].mxu0 %v6717
      %v6940 = vpop.f32.mrb[0].mxu0
      %v6941 = vadd.f32 %v6620, %v6940
      %v6942 = vpop.f32.mrb[0].mxu0
      %6943 = vdwg.mxu0
      %v6944 = vld [vmem:[%s3440] sm:$0xff]
      %v6945 = vld [vmem:[%s3440 + $0x8] sm:$0xff]
      %v6946 = vld [vmem:[%s3440 + $0x10] sm:$0xff]
      %v6947 = vld [vmem:[%s3440 + $0x18] sm:$0xff]
      %v6948 = vld [vmem:[%s3440 + $0x20] sm:$0xff]
      %v6949 = vld [vmem:[%s3440 + $0x28] sm:$0xff]
      %v6950 = vld [vmem:[%s3440 + $0x30] sm:$0xff]
      %v6951 = vld [vmem:[%s3440 + $0x38] sm:$0xff]
      %v6952 = vld [vmem:[%s3440 + $0x40] sm:$0xff]
      %v6953 = vld [vmem:[%s3440 + $0x48] sm:$0xff]
      %v6954 = vld [vmem:[%s3440 + $0x50] sm:$0xff]
      %v6955 = vld [vmem:[%s3440 + $0x58] sm:$0xff]
      %v6956 = vld [vmem:[%s3440 + $0x60] sm:$0xff]
      %v6957 = vld [vmem:[%s3440 + $0x68] sm:$0xff]
      %v6958 = vld [vmem:[%s3440 + $0x70] sm:$0xff]
      %v6959 = vld [vmem:[%s3440 + $0x78] sm:$0xff]
      %v6960 = vld [vmem:[%s3440 + $0x80] sm:$0xff]
      %v6961 = vld [vmem:[%s3440 + $0x88] sm:$0xff]
      %v6962 = vld [vmem:[%s3440 + $0x90] sm:$0xff]
      %v6963 = vld [vmem:[%s3440 + $0x98] sm:$0xff]
      %v6964 = vld [vmem:[%s3440 + $0xa0] sm:$0xff]
      %v6965 = vld [vmem:[%s3440 + $0xa8] sm:$0xff]
      %v6966 = vld [vmem:[%s3440 + $0xb0] sm:$0xff]
      %v6967 = vld [vmem:[%s3440 + $0xb8] sm:$0xff]
      %v6968 = vld [vmem:[%s3440 + $0xc0] sm:$0xff]
      %v6969 = vld [vmem:[%s3440 + $0xc8] sm:$0xff]
      %v6970 = vld [vmem:[%s3440 + $0xd0] sm:$0xff]
      %v6971 = vld [vmem:[%s3440 + $0xd8] sm:$0xff]
      %v6972 = vld [vmem:[%s3440 + $0xe0] sm:$0xff]
      %v6973 = vld [vmem:[%s3440 + $0xe8] sm:$0xff]
      %v6974 = vld [vmem:[%s3440 + $0xf0] sm:$0xff]
      %v6975 = vld [vmem:[%s3440 + $0xf8] sm:$0xff]
      %v6977 = vsel %vm2797, %v6944, 0
      %v6980 = vsel %vm2797, %v6945, 0
      %v6983 = vsel %vm2797, %v6946, 0
      %v6986 = vsel %vm2797, %v6947, 0
      %v6989 = vsel %vm2797, %v6948, 0
      %v6992 = vsel %vm2797, %v6949, 0
      %v6995 = vsel %vm2797, %v6950, 0
      %v6998 = vsel %vm2797, %v6951, 0
      %v7001 = vsel %vm2797, %v6952, 0
      %v7004 = vsel %vm2797, %v6953, 0
      %v7007 = vsel %vm2797, %v6954, 0
      %v7010 = vsel %vm2797, %v6955, 0
      %v7013 = vsel %vm2797, %v6956, 0
      %v7016 = vsel %vm2797, %v6957, 0
      %v7019 = vsel %vm2797, %v6958, 0
      %v7022 = vsel %vm2797, %v6959, 0
      %v7025 = vsel %vm2797, %v6960, 0
      %v7028 = vsel %vm2797, %v6961, 0
      %v7031 = vsel %vm2797, %v6962, 0
      %v7034 = vsel %vm2797, %v6963, 0
      %v7037 = vsel %vm2797, %v6964, 0
      %v7040 = vsel %vm2797, %v6965, 0
      %v7043 = vsel %vm2797, %v6966, 0
      %v7046 = vsel %vm2797, %v6967, 0
      %v7049 = vsel %vm2797, %v6968, 0
      %v7052 = vsel %vm2797, %v6969, 0
      %v7055 = vsel %vm2797, %v6970, 0
      %v7058 = vsel %vm2797, %v6971, 0
      %v7061 = vsel %vm2797, %v6972, 0
      %v7064 = vsel %vm2797, %v6973, 0
      %v7067 = vsel %vm2797, %v6974, 0
      %v7070 = vsel %vm2797, %v6975, 0
      %7072 = vmatprep.subr.mxu0 0.0
      %7073 = vmatpush1.msra.mxu0 %v5720
      %7074 = vmatprep.subr.mxu0 0.0
      %7075 = vmatpush1.msra.mxu0 %v5721
      %7076 = vmatprep.subr.mxu0 0.0
      %7077 = vmatpush1.msra.mxu0 %v5722
      %7078 = vmatprep.subr.mxu0 0.0
      %7079 = vmatpush1.msra.mxu0 %v5723
      %7080 = vmatprep.subr.mxu0 0.0
      %7081 = vmatpush1.msra.mxu0 %v5724
      %7082 = vmatprep.subr.mxu0 0.0
      %7083 = vmatpush1.msra.mxu0 %v5725
      %7084 = vmatprep.subr.mxu0 0.0
      %7085 = vmatpush1.msra.mxu0 %v5726
      %7086 = vmatprep.subr.mxu0 0.0
      %7087 = vmatpush1.msra.mxu0 %v5727
      %7088 = vmatprep.subr.mxu0 0.0
      %7089 = vmatpush1.msra.mxu0 %v5728
      %7090 = vmatprep.subr.mxu0 0.0
      %7091 = vmatpush1.msra.mxu0 %v5729
      %7092 = vmatprep.subr.mxu0 0.0
      %7093 = vmatpush1.msra.mxu0 %v5730
      %7094 = vmatprep.subr.mxu0 0.0
      %7095 = vmatpush1.msra.mxu0 %v5731
      %7096 = vmatprep.subr.mxu0 0.0
      %7097 = vmatpush1.msra.mxu0 0.0
      %7098 = vmatprep.subr.mxu0 0.0
      %7099 = vmatpush1.msra.mxu0 0.0
      %7100 = vmatprep.subr.mxu0 0.0
      %7101 = vmatpush1.msra.mxu0 0.0
      %7102 = vmatprep.subr.mxu0 0.0
      %7103 = vmatpush1.msra.mxu0 0.0
      %7104 = vmatprep.subr.mxu0 0.0
      %7105 = vmatpush1.msra.mxu0 0.0
      %7106 = vmatprep.subr.mxu0 0.0
      %7107 = vmatpush1.msra.mxu0 0.0
      %7108 = vmatprep.subr.mxu0 0.0
      %7109 = vmatpush1.msra.mxu0 0.0
      %7110 = vmatprep.subr.mxu0 0.0
      %7111 = vmatpush1.msra.mxu0 0.0
      %7112 = vmatprep.subr.mxu0 0.0
      %7113 = vmatpush1.msra.mxu0 0.0
      %7114 = vmatprep.subr.mxu0 0.0
      %7115 = vmatpush1.msra.mxu0 0.0
      %7116 = vmatprep.subr.mxu0 0.0
      %7117 = vmatpush1.msra.mxu0 0.0
      %7118 = vmatprep.subr.mxu0 0.0
      %7119 = vmatpush1.msra.mxu0 0.0
      %7120 = vmatprep.subr.mxu0 0.0
      %7121 = vmatpush1.msra.mxu0 0.0
      %7122 = vmatprep.subr.mxu0 0.0
      %7123 = vmatpush1.msra.mxu0 0.0
      %7124 = vmatprep.subr.mxu0 0.0
      %7125 = vmatpush1.msra.mxu0 0.0
      %7126 = vmatprep.subr.mxu0 0.0
      %7127 = vmatpush1.msra.mxu0 0.0
      %7128 = vmatprep.subr.mxu0 0.0
      %7129 = vmatpush1.msra.mxu0 0.0
      %7130 = vmatprep.subr.mxu0 0.0
      %7131 = vmatpush1.msra.mxu0 0.0
      %7132 = vmatprep.subr.mxu0 0.0
      %7133 = vmatpush1.msra.mxu0 0.0
      %7134 = vmatprep.subr.mxu0 0.0
      %7135 = vmatpush1.msra.mxu0 0.0
      %7136 = vmatprep.mubr.f32.mxu0 0.0
      %7137 = vmatmul.mubr.f32.gmra.mrb[0].mxu0 %v6977
      %v7138 = vpop.f32.mrb[0].mxu0
      %v7139 = vadd.f32 0.0, %v7138
      %v7140 = vpop.f32.mrb[0].mxu0
      %7141 = vmatprep.mubr.f32.mxu0 0.0
      %7142 = vmatmul.mubr.f32.gmra.mrb[0].mxu0 %v6980
      %v7143 = vpop.f32.mrb[0].mxu0
      %v7144 = vadd.f32 0.0, %v7143
      %v7145 = vpop.f32.mrb[0].mxu0
      %7146 = vmatprep.mubr.f32.mxu0 0.0
      %7147 = vmatmul.mubr.f32.gmra.mrb[0].mxu0 %v6983
      %v7148 = vpop.f32.mrb[0].mxu0
      %v7149 = vadd.f32 0.0, %v7148
      %v7150 = vpop.f32.mrb[0].mxu0
      %7151 = vmatprep.mubr.f32.mxu0 0.0
      %7152 = vmatmul.mubr.f32.gmra.mrb[0].mxu0 %v6986
      %v7153 = vpop.f32.mrb[0].mxu0
      %v7154 = vadd.f32 0.0, %v7153
      %v7155 = vpop.f32.mrb[0].mxu0
      %7156 = vmatprep.mubr.f32.mxu0 0.0
      %7157 = vmatmul.mubr.f32.gmra.mrb[0].mxu0 %v6989
      %v7158 = vpop.f32.mrb[0].mxu0
      %v7159 = vadd.f32 0.0, %v7158
      %v7160 = vpop.f32.mrb[0].mxu0
      %7161 = vmatprep.mubr.f32.mxu0 0.0
      %7162 = vmatmul.mubr.f32.gmra.mrb[0].mxu0 %v6992
      %v7163 = vpop.f32.mrb[0].mxu0
      %v7164 = vadd.f32 0.0, %v7163
      %v7165 = vpop.f32.mrb[0].mxu0
      %7166 = vmatprep.mubr.f32.mxu0 0.0
      %7167 = vmatmul.mubr.f32.gmra.mrb[0].mxu0 %v6995
      %v7168 = vpop.f32.mrb[0].mxu0
      %v7169 = vadd.f32 0.0, %v7168
      %v7170 = vpop.f32.mrb[0].mxu0
      %7171 = vmatprep.mubr.f32.mxu0 0.0
      %7172 = vmatmul.mubr.f32.gmra.mrb[0].mxu0 %v6998
      %v7173 = vpop.f32.mrb[0].mxu0
      %v7174 = vadd.f32 0.0, %v7173
      %v7175 = vpop.f32.mrb[0].mxu0
      %7176 = vmatprep.mubr.f32.mxu0 0.0
      %7177 = vmatmul.mubr.f32.gmra.mrb[0].mxu0 %v7001
      %v7178 = vpop.f32.mrb[0].mxu0
      %v7179 = vadd.f32 0.0, %v7178
      %v7180 = vpop.f32.mrb[0].mxu0
      %7181 = vmatprep.mubr.f32.mxu0 0.0
      %7182 = vmatmul.mubr.f32.gmra.mrb[0].mxu0 %v7004
      %v7183 = vpop.f32.mrb[0].mxu0
      %v7184 = vadd.f32 0.0, %v7183
      %v7185 = vpop.f32.mrb[0].mxu0
      %7186 = vmatprep.mubr.f32.mxu0 0.0
      %7187 = vmatmul.mubr.f32.gmra.mrb[0].mxu0 %v7007
      %v7188 = vpop.f32.mrb[0].mxu0
      %v7189 = vadd.f32 0.0, %v7188
      %v7190 = vpop.f32.mrb[0].mxu0
      %7191 = vmatprep.mubr.f32.mxu0 0.0
      %7192 = vmatmul.mubr.f32.gmra.mrb[0].mxu0 %v7010
      %v7193 = vpop.f32.mrb[0].mxu0
      %v7194 = vadd.f32 0.0, %v7193
      %v7195 = vpop.f32.mrb[0].mxu0
      %7196 = vmatprep.mubr.f32.mxu0 0.0
      %7197 = vmatmul.mubr.f32.gmra.mrb[0].mxu0 %v7013
      %v7198 = vpop.f32.mrb[0].mxu0
      %v7199 = vadd.f32 0.0, %v7198
      %v7200 = vpop.f32.mrb[0].mxu0
      %7201 = vmatprep.mubr.f32.mxu0 0.0
      %7202 = vmatmul.mubr.f32.gmra.mrb[0].mxu0 %v7016
      %v7203 = vpop.f32.mrb[0].mxu0
      %v7204 = vadd.f32 0.0, %v7203
      %v7205 = vpop.f32.mrb[0].mxu0
      %7206 = vmatprep.mubr.f32.mxu0 0.0
      %7207 = vmatmul.mubr.f32.gmra.mrb[0].mxu0 %v7019
      %v7208 = vpop.f32.mrb[0].mxu0
      %v7209 = vadd.f32 0.0, %v7208
      %v7210 = vpop.f32.mrb[0].mxu0
      %7211 = vmatprep.mubr.f32.mxu0 0.0
      %7212 = vmatmul.mubr.f32.gmra.mrb[0].mxu0 %v7022
      %v7213 = vpop.f32.mrb[0].mxu0
      %v7214 = vadd.f32 0.0, %v7213
      %v7215 = vpop.f32.mrb[0].mxu0
      %7216 = vmatprep.mubr.f32.mxu0 0.0
      %7217 = vmatmul.mubr.f32.gmra.mrb[0].mxu0 %v7025
      %v7218 = vpop.f32.mrb[0].mxu0
      %v7219 = vadd.f32 0.0, %v7218
      %v7220 = vpop.f32.mrb[0].mxu0
      %7221 = vmatprep.mubr.f32.mxu0 0.0
      %7222 = vmatmul.mubr.f32.gmra.mrb[0].mxu0 %v7028
      %v7223 = vpop.f32.mrb[0].mxu0
      %v7224 = vadd.f32 0.0, %v7223
      %v7225 = vpop.f32.mrb[0].mxu0
      %7226 = vmatprep.mubr.f32.mxu0 0.0
      %7227 = vmatmul.mubr.f32.gmra.mrb[0].mxu0 %v7031
      %v7228 = vpop.f32.mrb[0].mxu0
      %v7229 = vadd.f32 0.0, %v7228
      %v7230 = vpop.f32.mrb[0].mxu0
      %7231 = vmatprep.mubr.f32.mxu0 0.0
      %7232 = vmatmul.mubr.f32.gmra.mrb[0].mxu0 %v7034
      %v7233 = vpop.f32.mrb[0].mxu0
      %v7234 = vadd.f32 0.0, %v7233
      %v7235 = vpop.f32.mrb[0].mxu0
      %7236 = vmatprep.mubr.f32.mxu0 0.0
      %7237 = vmatmul.mubr.f32.gmra.mrb[0].mxu0 %v7037
      %v7238 = vpop.f32.mrb[0].mxu0
      %v7239 = vadd.f32 0.0, %v7238
      %v7240 = vpop.f32.mrb[0].mxu0
      %7241 = vmatprep.mubr.f32.mxu0 0.0
      %7242 = vmatmul.mubr.f32.gmra.mrb[0].mxu0 %v7040
      %v7243 = vpop.f32.mrb[0].mxu0
      %v7244 = vadd.f32 0.0, %v7243
      %v7245 = vpop.f32.mrb[0].mxu0
      %7246 = vmatprep.mubr.f32.mxu0 0.0
      %7247 = vmatmul.mubr.f32.gmra.mrb[0].mxu0 %v7043
      %v7248 = vpop.f32.mrb[0].mxu0
      %v7249 = vadd.f32 0.0, %v7248
      %v7250 = vpop.f32.mrb[0].mxu0
      %7251 = vmatprep.mubr.f32.mxu0 0.0
      %7252 = vmatmul.mubr.f32.gmra.mrb[0].mxu0 %v7046
      %v7253 = vpop.f32.mrb[0].mxu0
      %v7254 = vadd.f32 0.0, %v7253
      %v7255 = vpop.f32.mrb[0].mxu0
      %7256 = vmatprep.mubr.f32.mxu0 0.0
      %7257 = vmatmul.mubr.f32.gmra.mrb[0].mxu0 %v7049
      %v7258 = vpop.f32.mrb[0].mxu0
      %v7259 = vadd.f32 0.0, %v7258
      %v7260 = vpop.f32.mrb[0].mxu0
      %7261 = vmatprep.mubr.f32.mxu0 0.0
      %7262 = vmatmul.mubr.f32.gmra.mrb[0].mxu0 %v7052
      %v7263 = vpop.f32.mrb[0].mxu0
      %v7264 = vadd.f32 0.0, %v7263
      %v7265 = vpop.f32.mrb[0].mxu0
      %7266 = vmatprep.mubr.f32.mxu0 0.0
      %7267 = vmatmul.mubr.f32.gmra.mrb[0].mxu0 %v7055
      %v7268 = vpop.f32.mrb[0].mxu0
      %v7269 = vadd.f32 0.0, %v7268
      %v7270 = vpop.f32.mrb[0].mxu0
      %7271 = vmatprep.mubr.f32.mxu0 0.0
      %7272 = vmatmul.mubr.f32.gmra.mrb[0].mxu0 %v7058
      %v7273 = vpop.f32.mrb[0].mxu0
      %v7274 = vadd.f32 0.0, %v7273
      %v7275 = vpop.f32.mrb[0].mxu0
      %7276 = vmatprep.mubr.f32.mxu0 0.0
      %7277 = vmatmul.mubr.f32.gmra.mrb[0].mxu0 %v7061
      %v7278 = vpop.f32.mrb[0].mxu0
      %v7279 = vadd.f32 0.0, %v7278
      %v7280 = vpop.f32.mrb[0].mxu0
      %7281 = vmatprep.mubr.f32.mxu0 0.0
      %7282 = vmatmul.mubr.f32.gmra.mrb[0].mxu0 %v7064
      %v7283 = vpop.f32.mrb[0].mxu0
      %v7284 = vadd.f32 0.0, %v7283
      %v7285 = vpop.f32.mrb[0].mxu0
      %7286 = vmatprep.mubr.f32.mxu0 0.0
      %7287 = vmatmul.mubr.f32.gmra.mrb[0].mxu0 %v7067
      %v7288 = vpop.f32.mrb[0].mxu0
      %v7289 = vadd.f32 0.0, %v7288
      %v7290 = vpop.f32.mrb[0].mxu0
      %7291 = vmatprep.mubr.f32.mxu0 0.0
      %7292 = vmatmul.mubr.f32.gmra.mrb[0].mxu0 %v7070
      %v7293 = vpop.f32.mrb[0].mxu0
      %v7294 = vadd.f32 0.0, %v7293
      %v7295 = vpop.f32.mrb[0].mxu0
      %7296 = vdwg.mxu0
      %v7297 = vadd.f32 %v6786, %v7139
      %v7298 = vadd.f32 %v6791, %v7144
      %v7299 = vadd.f32 %v6796, %v7149
      %v7300 = vadd.f32 %v6801, %v7154
      %v7301 = vadd.f32 %v6806, %v7159
      %v7302 = vadd.f32 %v6811, %v7164
      %v7303 = vadd.f32 %v6816, %v7169
      %v7304 = vadd.f32 %v6821, %v7174
      %v7305 = vadd.f32 %v6826, %v7179
      %v7306 = vadd.f32 %v6831, %v7184
      %v7307 = vadd.f32 %v6836, %v7189
      %v7308 = vadd.f32 %v6841, %v7194
      %v7309 = vadd.f32 %v6846, %v7199
      %v7310 = vadd.f32 %v6851, %v7204
      %v7311 = vadd.f32 %v6856, %v7209
      %v7312 = vadd.f32 %v6861, %v7214
      %v7313 = vadd.f32 %v6866, %v7219
      %v7314 = vadd.f32 %v6871, %v7224
      %v7315 = vadd.f32 %v6876, %v7229
      %v7316 = vadd.f32 %v6881, %v7234
      %v7317 = vadd.f32 %v6886, %v7239
      %v7318 = vadd.f32 %v6891, %v7244
      %v7319 = vadd.f32 %v6896, %v7249
      %v7320 = vadd.f32 %v6901, %v7254
      %v7321 = vadd.f32 %v6906, %v7259
      %v7322 = vadd.f32 %v6911, %v7264
      %v7323 = vadd.f32 %v6916, %v7269
      %v7324 = vadd.f32 %v6921, %v7274
      %v7325 = vadd.f32 %v6926, %v7279
      %v7326 = vadd.f32 %v6931, %v7284
      %v7327 = vadd.f32 %v6936, %v7289
      %v7328 = vadd.f32 %v6941, %v7294
      %v7330 = vlaneseq
      %v7331 = vshrl.u32 %v7330, 7
      %v7332 = vsub.s32 0, %v7331
      %v7333 = vrot.slane %v5733, %v7332
      %v7335 = vadd.f32 %v7297, %v7333
      %v7336 = vadd.f32 %v7298, %v7333
      %v7337 = vadd.f32 %v7299, %v7333
      %v7338 = vadd.f32 %v7300, %v7333
      %v7339 = vadd.f32 %v7301, %v7333
      %v7340 = vadd.f32 %v7302, %v7333
      %v7341 = vadd.f32 %v7303, %v7333
      %v7342 = vadd.f32 %v7304, %v7333
      %v7343 = vadd.f32 %v7305, %v7333
      %v7344 = vadd.f32 %v7306, %v7333
      %v7345 = vadd.f32 %v7307, %v7333
      %v7346 = vadd.f32 %v7308, %v7333
      %v7347 = vadd.f32 %v7309, %v7333
      %v7348 = vadd.f32 %v7310, %v7333
      %v7349 = vadd.f32 %v7311, %v7333
      %v7350 = vadd.f32 %v7312, %v7333
      %v7351 = vadd.f32 %v7313, %v7333
      %v7352 = vadd.f32 %v7314, %v7333
      %v7353 = vadd.f32 %v7315, %v7333
      %v7354 = vadd.f32 %v7316, %v7333
      %v7355 = vadd.f32 %v7317, %v7333
      %v7356 = vadd.f32 %v7318, %v7333
      %v7357 = vadd.f32 %v7319, %v7333
      %v7358 = vadd.f32 %v7320, %v7333
      %v7359 = vadd.f32 %v7321, %v7333
      %v7360 = vadd.f32 %v7322, %v7333
      %v7361 = vadd.f32 %v7323, %v7333
      %v7362 = vadd.f32 %v7324, %v7333
      %v7363 = vadd.f32 %v7325, %v7333
      %v7364 = vadd.f32 %v7326, %v7333
      %v7365 = vadd.f32 %v7327, %v7333
      %v7366 = vadd.f32 %v7328, %v7333
      %v7367 = vmax.f32 %v7335, 0.0
      %v7368 = vmax.f32 %v7336, 0.0
      %v7369 = vmax.f32 %v7337, 0.0
      %v7370 = vmax.f32 %v7338, 0.0
      %v7371 = vmax.f32 %v7339, 0.0
      %v7372 = vmax.f32 %v7340, 0.0
      %v7373 = vmax.f32 %v7341, 0.0
      %v7374 = vmax.f32 %v7342, 0.0
      %v7375 = vmax.f32 %v7343, 0.0
      %v7376 = vmax.f32 %v7344, 0.0
      %v7377 = vmax.f32 %v7345, 0.0
      %v7378 = vmax.f32 %v7346, 0.0
      %v7379 = vmax.f32 %v7347, 0.0
      %v7380 = vmax.f32 %v7348, 0.0
      %v7381 = vmax.f32 %v7349, 0.0
      %v7382 = vmax.f32 %v7350, 0.0
      %v7383 = vmax.f32 %v7351, 0.0
      %v7384 = vmax.f32 %v7352, 0.0
      %v7385 = vmax.f32 %v7353, 0.0
      %v7386 = vmax.f32 %v7354, 0.0
      %v7387 = vmax.f32 %v7355, 0.0
      %v7388 = vmax.f32 %v7356, 0.0
      %v7389 = vmax.f32 %v7357, 0.0
      %v7390 = vmax.f32 %v7358, 0.0
      %v7391 = vmax.f32 %v7359, 0.0
      %v7392 = vmax.f32 %v7360, 0.0
      %v7393 = vmax.f32 %v7361, 0.0
      %v7394 = vmax.f32 %v7362, 0.0
      %v7395 = vmax.f32 %v7363, 0.0
      %v7396 = vmax.f32 %v7364, 0.0
      %v7397 = vmax.f32 %v7365, 0.0
      %v7398 = vmax.f32 %v7366, 0.0
      %7399 = vst.msk [vmem:[%s3896 + $0x8] sm:$0xff] %vm321, %v7367
      %7400 = vst.msk [vmem:[%s3896 + $0x10] sm:$0xff] %vm321, %v7368
      %7401 = vst.msk [vmem:[%s3896 + $0x28] sm:$0xff] %vm321, %v7369
      %7402 = vst.msk [vmem:[%s3896 + $0x30] sm:$0xff] %vm321, %v7370
      %7403 = vst.msk [vmem:[%s3896 + $0x48] sm:$0xff] %vm321, %v7371
      %7404 = vst.msk [vmem:[%s3896 + $0x50] sm:$0xff] %vm321, %v7372
      %7405 = vst.msk [vmem:[%s3896 + $0x68] sm:$0xff] %vm321, %v7373
      %7406 = vst.msk [vmem:[%s3896 + $0x70] sm:$0xff] %vm321, %v7374
      %7407 = vst.msk [vmem:[%s3896 + $0x88] sm:$0xff] %vm321, %v7375
      %7408 = vst.msk [vmem:[%s3896 + $0x90] sm:$0xff] %vm321, %v7376
      %7409 = vst.msk [vmem:[%s3896 + $0xa8] sm:$0xff] %vm321, %v7377
      %7410 = vst.msk [vmem:[%s3896 + $0xb0] sm:$0xff] %vm321, %v7378
      %7411 = vst.msk [vmem:[%s3896 + $0xc8] sm:$0xff] %vm321, %v7379
      %7412 = vst.msk [vmem:[%s3896 + $0xd0] sm:$0xff] %vm321, %v7380
      %7413 = vst.msk [vmem:[%s3896 + $0xe8] sm:$0xff] %vm321, %v7381
      %7414 = vst.msk [vmem:[%s3896 + $0xf0] sm:$0xff] %vm321, %v7382
      %7415 = vst.msk [vmem:[%s3896 + $0x108] sm:$0xff] %vm321, %v7383
      %7416 = vst.msk [vmem:[%s3896 + $0x110] sm:$0xff] %vm321, %v7384
      %7417 = vst.msk [vmem:[%s3896 + $0x128] sm:$0xff] %vm321, %v7385
      %7418 = vst.msk [vmem:[%s3896 + $0x130] sm:$0xff] %vm321, %v7386
      %7419 = vst.msk [vmem:[%s3896 + $0x148] sm:$0xff] %vm321, %v7387
      %7420 = vst.msk [vmem:[%s3896 + $0x150] sm:$0xff] %vm321, %v7388
      %7421 = vst.msk [vmem:[%s3896 + $0x168] sm:$0xff] %vm321, %v7389
      %7422 = vst.msk [vmem:[%s3896 + $0x170] sm:$0xff] %vm321, %v7390
      %7423 = vst.msk [vmem:[%s3896 + $0x188] sm:$0xff] %vm321, %v7391
      %7424 = vst.msk [vmem:[%s3896 + $0x190] sm:$0xff] %vm321, %v7392
      %7425 = vst.msk [vmem:[%s3896 + $0x1a8] sm:$0xff] %vm321, %v7393
      %7426 = vst.msk [vmem:[%s3896 + $0x1b0] sm:$0xff] %vm321, %v7394
      %7427 = vst.msk [vmem:[%s3896 + $0x1c8] sm:$0xff] %vm321, %v7395
      %7428 = vst.msk [vmem:[%s3896 + $0x1d0] sm:$0xff] %vm321, %v7396
      %7429 = vst.msk [vmem:[%s3896 + $0x1e8] sm:$0xff] %vm321, %v7397
      %7430 = vst.msk [vmem:[%s3896 + $0x1f0] sm:$0xff] %vm321, %v7398
      %s7431 = scalar_lea.vmem %s5, 288
      %v7432 = vld [vmem:[%s7431] sm:$0xff]
      %v7433 = vld [vmem:[%s7431 + $0x8] sm:$0xff]
      %v7434 = vld [vmem:[%s7431 + $0x10] sm:$0xff]
      %v7435 = vld [vmem:[%s7431 + $0x18] sm:$0xff]
      %v7436 = vld [vmem:[%s7431 + $0x20] sm:$0xff]
      %v7437 = vld [vmem:[%s7431 + $0x28] sm:$0xff]
      %v7438 = vld [vmem:[%s7431 + $0x30] sm:$0xff]
      %v7439 = vld [vmem:[%s7431 + $0x38] sm:$0xff]
      %v7440 = vld [vmem:[%s7431 + $0x40] sm:$0xff]
      %v7441 = vld [vmem:[%s7431 + $0x48] sm:$0xff]
      %v7442 = vld [vmem:[%s7431 + $0x50] sm:$0xff]
      %v7443 = vld [vmem:[%s7431 + $0x58] sm:$0xff]
      %v7444 = vld [vmem:[%s7431 + $0x60] sm:$0xff]
      %v7445 = vld [vmem:[%s7431 + $0x68] sm:$0xff]
      %v7446 = vld [vmem:[%s7431 + $0x70] sm:$0xff]
      %v7447 = vld [vmem:[%s7431 + $0x78] sm:$0xff]
      %v7448 = vld [vmem:[%s7431 + $0x80] sm:$0xff]
      %v7449 = vld [vmem:[%s7431 + $0x88] sm:$0xff]
      %v7450 = vld [vmem:[%s7431 + $0x90] sm:$0xff]
      %v7451 = vld [vmem:[%s7431 + $0x98] sm:$0xff]
      %v7452 = vld [vmem:[%s7431 + $0xa0] sm:$0xff]
      %v7453 = vld [vmem:[%s7431 + $0xa8] sm:$0xff]
      %v7454 = vld [vmem:[%s7431 + $0xb0] sm:$0xff]
      %v7455 = vld [vmem:[%s7431 + $0xb8] sm:$0xff]
      %v7456 = vld [vmem:[%s7431 + $0xc0] sm:$0xff]
      %v7457 = vld [vmem:[%s7431 + $0xc8] sm:$0xff]
      %v7458 = vld [vmem:[%s7431 + $0xd0] sm:$0xff]
      %v7459 = vld [vmem:[%s7431 + $0xd8] sm:$0xff]
      %v7460 = vld [vmem:[%s7431 + $0xe0] sm:$0xff]
      %v7461 = vld [vmem:[%s7431 + $0xe8] sm:$0xff]
      %v7462 = vld [vmem:[%s7431 + $0xf0] sm:$0xff]
      %v7463 = vld [vmem:[%s7431 + $0xf8] sm:$0xff]
      %v7464 = vld [vmem:[%s7431 + $0x100] sm:$0xff]
      %v7465 = vld [vmem:[%s7431 + $0x108] sm:$0xff]
      %v7466 = vld [vmem:[%s7431 + $0x110] sm:$0xff]
      %v7467 = vld [vmem:[%s7431 + $0x118] sm:$0xff]
      %s7468 = scalar_lea.vmem %s6, 1
      %v7469 = vld [vmem:[%s7468] sm:$0x1]
      %v7470 = vld [vmem:[#allocation5 + $0x7] sm:$0xff]
      %v7471 = vld [vmem:[#allocation5 + $0xf] sm:$0xff]
      %v7472 = vld [vmem:[#allocation5 + $0x27] sm:$0xff]
      %v7473 = vld [vmem:[#allocation5 + $0x2f] sm:$0xff]
      %v7474 = vld [vmem:[#allocation5 + $0x47] sm:$0xff]
      %v7475 = vld [vmem:[#allocation5 + $0x4f] sm:$0xff]
      %v7476 = vld [vmem:[#allocation5 + $0x67] sm:$0xff]
      %v7477 = vld [vmem:[#allocation5 + $0x6f] sm:$0xff]
      %v7478 = vld [vmem:[#allocation5 + $0x87] sm:$0xff]
      %v7479 = vld [vmem:[#allocation5 + $0x8f] sm:$0xff]
      %v7480 = vld [vmem:[#allocation5 + $0xa7] sm:$0xff]
      %v7481 = vld [vmem:[#allocation5 + $0xaf] sm:$0xff]
      %v7482 = vld [vmem:[#allocation5 + $0xc7] sm:$0xff]
      %v7483 = vld [vmem:[#allocation5 + $0xcf] sm:$0xff]
      %v7484 = vld [vmem:[#allocation5 + $0xe7] sm:$0xff]
      %v7485 = vld [vmem:[#allocation5 + $0xef] sm:$0xff]
      %v7486 = vld [vmem:[#allocation5 + $0x107] sm:$0xff]
      %v7487 = vld [vmem:[#allocation5 + $0x10f] sm:$0xff]
      %v7488 = vld [vmem:[#allocation5 + $0x127] sm:$0xff]
      %v7489 = vld [vmem:[#allocation5 + $0x12f] sm:$0xff]
      %v7490 = vld [vmem:[#allocation5 + $0x147] sm:$0xff]
      %v7491 = vld [vmem:[#allocation5 + $0x14f] sm:$0xff]
      %v7492 = vld [vmem:[#allocation5 + $0x167] sm:$0xff]
      %v7493 = vld [vmem:[#allocation5 + $0x16f] sm:$0xff]
      %v7494 = vld [vmem:[#allocation5 + $0x187] sm:$0xff]
      %v7495 = vld [vmem:[#allocation5 + $0x18f] sm:$0xff]
      %v7496 = vld [vmem:[#allocation5 + $0x1a7] sm:$0xff]
      %v7497 = vld [vmem:[#allocation5 + $0x1af] sm:$0xff]
      %v7498 = vld [vmem:[#allocation5 + $0x1c7] sm:$0xff]
      %v7499 = vld [vmem:[#allocation5 + $0x1cf] sm:$0xff]
      %v7500 = vld [vmem:[#allocation5 + $0x1e7] sm:$0xff]
      %v7501 = vld [vmem:[#allocation5 + $0x1ef] sm:$0xff]
      %v7502 = vld [vmem:[#allocation5 + $0x207] sm:$0xff]
      %v7503 = vld [vmem:[#allocation5 + $0x20f] sm:$0xff]
      %v7504 = vld [vmem:[#allocation5 + $0x227] sm:$0xff]
      %v7505 = vld [vmem:[#allocation5 + $0x22f] sm:$0xff]
      %7506 = vst.msk [vmem:[#allocation6] sm:$0xff] %vm321, %v7470
      %7507 = vst.msk [vmem:[#allocation6 + $0x8] sm:$0xff] %vm321, %v7471
      %7508 = vst.msk [vmem:[#allocation6 + $0x10] sm:$0xff] %vm321, %v7472
      %7509 = vst.msk [vmem:[#allocation6 + $0x18] sm:$0xff] %vm321, %v7473
      %7510 = vst.msk [vmem:[#allocation6 + $0x20] sm:$0xff] %vm321, %v7474
      %7511 = vst.msk [vmem:[#allocation6 + $0x28] sm:$0xff] %vm321, %v7475
      %7512 = vst.msk [vmem:[#allocation6 + $0x30] sm:$0xff] %vm321, %v7476
      %7513 = vst.msk [vmem:[#allocation6 + $0x38] sm:$0xff] %vm321, %v7477
      %7514 = vst.msk [vmem:[#allocation6 + $0x40] sm:$0xff] %vm321, %v7478
      %7515 = vst.msk [vmem:[#allocation6 + $0x48] sm:$0xff] %vm321, %v7479
      %7516 = vst.msk [vmem:[#allocation6 + $0x50] sm:$0xff] %vm321, %v7480
      %7517 = vst.msk [vmem:[#allocation6 + $0x58] sm:$0xff] %vm321, %v7481
      %7518 = vst.msk [vmem:[#allocation6 + $0x60] sm:$0xff] %vm321, %v7482
      %7519 = vst.msk [vmem:[#allocation6 + $0x68] sm:$0xff] %vm321, %v7483
      %7520 = vst.msk [vmem:[#allocation6 + $0x70] sm:$0xff] %vm321, %v7484
      %7521 = vst.msk [vmem:[#allocation6 + $0x78] sm:$0xff] %vm321, %v7485
      %7522 = vst.msk [vmem:[#allocation6 + $0x80] sm:$0xff] %vm321, %v7486
      %7523 = vst.msk [vmem:[#allocation6 + $0x88] sm:$0xff] %vm321, %v7487
      %7524 = vst.msk [vmem:[#allocation6 + $0x90] sm:$0xff] %vm321, %v7488
      %7525 = vst.msk [vmem:[#allocation6 + $0x98] sm:$0xff] %vm321, %v7489
      %7526 = vst.msk [vmem:[#allocation6 + $0xa0] sm:$0xff] %vm321, %v7490
      %7527 = vst.msk [vmem:[#allocation6 + $0xa8] sm:$0xff] %vm321, %v7491
      %7528 = vst.msk [vmem:[#allocation6 + $0xb0] sm:$0xff] %vm321, %v7492
      %7529 = vst.msk [vmem:[#allocation6 + $0xb8] sm:$0xff] %vm321, %v7493
      %7530 = vst.msk [vmem:[#allocation6 + $0xc0] sm:$0xff] %vm321, %v7494
      %7531 = vst.msk [vmem:[#allocation6 + $0xc8] sm:$0xff] %vm321, %v7495
      %7532 = vst.msk [vmem:[#allocation6 + $0xd0] sm:$0xff] %vm321, %v7496
      %7533 = vst.msk [vmem:[#allocation6 + $0xd8] sm:$0xff] %vm321, %v7497
      %7534 = vst.msk [vmem:[#allocation6 + $0xe0] sm:$0xff] %vm321, %v7498
      %7535 = vst.msk [vmem:[#allocation6 + $0xe8] sm:$0xff] %vm321, %v7499
      %7536 = vst.msk [vmem:[#allocation6 + $0xf0] sm:$0xff] %vm321, %v7500
      %7537 = vst.msk [vmem:[#allocation6 + $0xf8] sm:$0xff] %vm321, %v7501
      %7538 = vst.msk [vmem:[#allocation6 + $0x100] sm:$0xff] %vm321, %v7502
      %7539 = vst.msk [vmem:[#allocation6 + $0x108] sm:$0xff] %vm321, %v7503
      %7540 = vst.msk [vmem:[#allocation6 + $0x110] sm:$0xff] %vm321, %v7504
      %7541 = vst.msk [vmem:[#allocation6 + $0x118] sm:$0xff] %vm321, %v7505
      %v7542 = vld [vmem:[#allocation5 + $0x8] sm:$0xff]
      %v7543 = vld [vmem:[#allocation5 + $0x10] sm:$0xff]
      %v7544 = vld [vmem:[#allocation5 + $0x28] sm:$0xff]
      %v7545 = vld [vmem:[#allocation5 + $0x30] sm:$0xff]
      %v7546 = vld [vmem:[#allocation5 + $0x48] sm:$0xff]
      %v7547 = vld [vmem:[#allocation5 + $0x50] sm:$0xff]
      %v7548 = vld [vmem:[#allocation5 + $0x68] sm:$0xff]
      %v7549 = vld [vmem:[#allocation5 + $0x70] sm:$0xff]
      %v7550 = vld [vmem:[#allocation5 + $0x88] sm:$0xff]
      %v7551 = vld [vmem:[#allocation5 + $0x90] sm:$0xff]
      %v7552 = vld [vmem:[#allocation5 + $0xa8] sm:$0xff]
      %v7553 = vld [vmem:[#allocation5 + $0xb0] sm:$0xff]
      %v7554 = vld [vmem:[#allocation5 + $0xc8] sm:$0xff]
      %v7555 = vld [vmem:[#allocation5 + $0xd0] sm:$0xff]
      %v7556 = vld [vmem:[#allocation5 + $0xe8] sm:$0xff]
      %v7557 = vld [vmem:[#allocation5 + $0xf0] sm:$0xff]
      %v7558 = vld [vmem:[#allocation5 + $0x108] sm:$0xff]
      %v7559 = vld [vmem:[#allocation5 + $0x110] sm:$0xff]
      %v7560 = vld [vmem:[#allocation5 + $0x128] sm:$0xff]
      %v7561 = vld [vmem:[#allocation5 + $0x130] sm:$0xff]
      %v7562 = vld [vmem:[#allocation5 + $0x148] sm:$0xff]
      %v7563 = vld [vmem:[#allocation5 + $0x150] sm:$0xff]
      %v7564 = vld [vmem:[#allocation5 + $0x168] sm:$0xff]
      %v7565 = vld [vmem:[#allocation5 + $0x170] sm:$0xff]
      %v7566 = vld [vmem:[#allocation5 + $0x188] sm:$0xff]
      %v7567 = vld [vmem:[#allocation5 + $0x190] sm:$0xff]
      %v7568 = vld [vmem:[#allocation5 + $0x1a8] sm:$0xff]
      %v7569 = vld [vmem:[#allocation5 + $0x1b0] sm:$0xff]
      %v7570 = vld [vmem:[#allocation5 + $0x1c8] sm:$0xff]
      %v7571 = vld [vmem:[#allocation5 + $0x1d0] sm:$0xff]
      %v7572 = vld [vmem:[#allocation5 + $0x1e8] sm:$0xff]
      %v7573 = vld [vmem:[#allocation5 + $0x1f0] sm:$0xff]
      %v7574 = vld [vmem:[#allocation5 + $0x208] sm:$0xff]
      %v7575 = vld [vmem:[#allocation5 + $0x210] sm:$0xff]
      %v7576 = vld [vmem:[#allocation5 + $0x228] sm:$0xff]
      %v7577 = vld [vmem:[#allocation5 + $0x230] sm:$0xff]
      %7614 = vrot.lane.b32.xlu0 %v7542, 32
      %v7615 = vpop.permute.xlu0 %7614
      %7616 = vrot.lane.b32.xlu0 %v7543, 32
      %v7617 = vpop.permute.xlu0 %7616
      %7618 = vrot.lane.b32.xlu0 %v7544, 32
      %v7619 = vpop.permute.xlu0 %7618
      %7620 = vrot.lane.b32.xlu0 %v7545, 32
      %v7621 = vpop.permute.xlu0 %7620
      %7622 = vrot.lane.b32.xlu0 %v7546, 32
      %v7623 = vpop.permute.xlu0 %7622
      %7624 = vrot.lane.b32.xlu0 %v7547, 32
      %v7625 = vpop.permute.xlu0 %7624
      %7626 = vrot.lane.b32.xlu0 %v7548, 32
      %v7627 = vpop.permute.xlu0 %7626
      %7628 = vrot.lane.b32.xlu0 %v7549, 32
      %v7629 = vpop.permute.xlu0 %7628
      %7630 = vrot.lane.b32.xlu0 %v7550, 32
      %v7631 = vpop.permute.xlu0 %7630
      %7632 = vrot.lane.b32.xlu0 %v7551, 32
      %v7633 = vpop.permute.xlu0 %7632
      %7634 = vrot.lane.b32.xlu0 %v7552, 32
      %v7635 = vpop.permute.xlu0 %7634
      %7636 = vrot.lane.b32.xlu0 %v7553, 32
      %v7637 = vpop.permute.xlu0 %7636
      %7638 = vrot.lane.b32.xlu0 %v7554, 32
      %v7639 = vpop.permute.xlu0 %7638
      %7640 = vrot.lane.b32.xlu0 %v7555, 32
      %v7641 = vpop.permute.xlu0 %7640
      %7642 = vrot.lane.b32.xlu0 %v7556, 32
      %v7643 = vpop.permute.xlu0 %7642
      %7644 = vrot.lane.b32.xlu0 %v7557, 32
      %v7645 = vpop.permute.xlu0 %7644
      %7646 = vrot.lane.b32.xlu0 %v7558, 32
      %v7647 = vpop.permute.xlu0 %7646
      %7648 = vrot.lane.b32.xlu0 %v7559, 32
      %v7649 = vpop.permute.xlu0 %7648
      %7650 = vrot.lane.b32.xlu0 %v7560, 32
      %v7651 = vpop.permute.xlu0 %7650
      %7652 = vrot.lane.b32.xlu0 %v7561, 32
      %v7653 = vpop.permute.xlu0 %7652
      %7654 = vrot.lane.b32.xlu0 %v7562, 32
      %v7655 = vpop.permute.xlu0 %7654
      %7656 = vrot.lane.b32.xlu0 %v7563, 32
      %v7657 = vpop.permute.xlu0 %7656
      %7658 = vrot.lane.b32.xlu0 %v7564, 32
      %v7659 = vpop.permute.xlu0 %7658
      %7660 = vrot.lane.b32.xlu0 %v7565, 32
      %v7661 = vpop.permute.xlu0 %7660
      %7662 = vrot.lane.b32.xlu0 %v7566, 32
      %v7663 = vpop.permute.xlu0 %7662
      %7664 = vrot.lane.b32.xlu0 %v7567, 32
      %v7665 = vpop.permute.xlu0 %7664
      %7666 = vrot.lane.b32.xlu0 %v7568, 32
      %v7667 = vpop.permute.xlu0 %7666
      %7668 = vrot.lane.b32.xlu0 %v7569, 32
      %v7669 = vpop.permute.xlu0 %7668
      %7670 = vrot.lane.b32.xlu0 %v7570, 32
      %v7671 = vpop.permute.xlu0 %7670
      %7672 = vrot.lane.b32.xlu0 %v7571, 32
      %v7673 = vpop.permute.xlu0 %7672
      %7674 = vrot.lane.b32.xlu0 %v7572, 32
      %v7675 = vpop.permute.xlu0 %7674
      %7676 = vrot.lane.b32.xlu0 %v7573, 32
      %v7677 = vpop.permute.xlu0 %7676
      %7678 = vrot.lane.b32.xlu0 %v7574, 32
      %v7679 = vpop.permute.xlu0 %7678
      %7680 = vrot.lane.b32.xlu0 %v7575, 32
      %v7681 = vpop.permute.xlu0 %7680
      %7682 = vrot.lane.b32.xlu0 %v7576, 32
      %v7683 = vpop.permute.xlu0 %7682
      %7684 = vrot.lane.b32.xlu0 %v7577, 32
      %v7685 = vpop.permute.xlu0 %7684
      %7722 = vst.msk [vmem:[#allocation6] sm:$0xff] %vm2478, %v7615
      %7723 = vst.msk [vmem:[#allocation6 + $0x8] sm:$0xff] %vm2478, %v7617
      %7724 = vst.msk [vmem:[#allocation6 + $0x10] sm:$0xff] %vm2478, %v7619
      %7725 = vst.msk [vmem:[#allocation6 + $0x18] sm:$0xff] %vm2478, %v7621
      %7726 = vst.msk [vmem:[#allocation6 + $0x20] sm:$0xff] %vm2478, %v7623
      %7727 = vst.msk [vmem:[#allocation6 + $0x28] sm:$0xff] %vm2478, %v7625
      %7728 = vst.msk [vmem:[#allocation6 + $0x30] sm:$0xff] %vm2478, %v7627
      %7729 = vst.msk [vmem:[#allocation6 + $0x38] sm:$0xff] %vm2478, %v7629
      %7730 = vst.msk [vmem:[#allocation6 + $0x40] sm:$0xff] %vm2478, %v7631
      %7731 = vst.msk [vmem:[#allocation6 + $0x48] sm:$0xff] %vm2478, %v7633
      %7732 = vst.msk [vmem:[#allocation6 + $0x50] sm:$0xff] %vm2478, %v7635
      %7733 = vst.msk [vmem:[#allocation6 + $0x58] sm:$0xff] %vm2478, %v7637
      %7734 = vst.msk [vmem:[#allocation6 + $0x60] sm:$0xff] %vm2478, %v7639
      %7735 = vst.msk [vmem:[#allocation6 + $0x68] sm:$0xff] %vm2478, %v7641
      %7736 = vst.msk [vmem:[#allocation6 + $0x70] sm:$0xff] %vm2478, %v7643
      %7737 = vst.msk [vmem:[#allocation6 + $0x78] sm:$0xff] %vm2478, %v7645
      %7738 = vst.msk [vmem:[#allocation6 + $0x80] sm:$0xff] %vm2478, %v7647
      %7739 = vst.msk [vmem:[#allocation6 + $0x88] sm:$0xff] %vm2478, %v7649
      %7740 = vst.msk [vmem:[#allocation6 + $0x90] sm:$0xff] %vm2478, %v7651
      %7741 = vst.msk [vmem:[#allocation6 + $0x98] sm:$0xff] %vm2478, %v7653
      %7742 = vst.msk [vmem:[#allocation6 + $0xa0] sm:$0xff] %vm2478, %v7655
      %7743 = vst.msk [vmem:[#allocation6 + $0xa8] sm:$0xff] %vm2478, %v7657
      %7744 = vst.msk [vmem:[#allocation6 + $0xb0] sm:$0xff] %vm2478, %v7659
      %7745 = vst.msk [vmem:[#allocation6 + $0xb8] sm:$0xff] %vm2478, %v7661
      %7746 = vst.msk [vmem:[#allocation6 + $0xc0] sm:$0xff] %vm2478, %v7663
      %7747 = vst.msk [vmem:[#allocation6 + $0xc8] sm:$0xff] %vm2478, %v7665
      %7748 = vst.msk [vmem:[#allocation6 + $0xd0] sm:$0xff] %vm2478, %v7667
      %7749 = vst.msk [vmem:[#allocation6 + $0xd8] sm:$0xff] %vm2478, %v7669
      %7750 = vst.msk [vmem:[#allocation6 + $0xe0] sm:$0xff] %vm2478, %v7671
      %7751 = vst.msk [vmem:[#allocation6 + $0xe8] sm:$0xff] %vm2478, %v7673
      %7752 = vst.msk [vmem:[#allocation6 + $0xf0] sm:$0xff] %vm2478, %v7675
      %7753 = vst.msk [vmem:[#allocation6 + $0xf8] sm:$0xff] %vm2478, %v7677
      %7754 = vst.msk [vmem:[#allocation6 + $0x100] sm:$0xff] %vm2478, %v7679
      %7755 = vst.msk [vmem:[#allocation6 + $0x108] sm:$0xff] %vm2478, %v7681
      %7756 = vst.msk [vmem:[#allocation6 + $0x110] sm:$0xff] %vm2478, %v7683
      %7757 = vst.msk [vmem:[#allocation6 + $0x118] sm:$0xff] %vm2478, %v7685
      %v7758 = vld [vmem:[#allocation5 + $0x9] sm:$0xff]
      %v7759 = vld [vmem:[#allocation5 + $0x11] sm:$0xff]
      %v7760 = vld [vmem:[#allocation5 + $0x29] sm:$0xff]
      %v7761 = vld [vmem:[#allocation5 + $0x31] sm:$0xff]
      %v7762 = vld [vmem:[#allocation5 + $0x49] sm:$0xff]
      %v7763 = vld [vmem:[#allocation5 + $0x51] sm:$0xff]
      %v7764 = vld [vmem:[#allocation5 + $0x69] sm:$0xff]
      %v7765 = vld [vmem:[#allocation5 + $0x71] sm:$0xff]
      %v7766 = vld [vmem:[#allocation5 + $0x89] sm:$0xff]
      %v7767 = vld [vmem:[#allocation5 + $0x91] sm:$0xff]
      %v7768 = vld [vmem:[#allocation5 + $0xa9] sm:$0xff]
      %v7769 = vld [vmem:[#allocation5 + $0xb1] sm:$0xff]
      %v7770 = vld [vmem:[#allocation5 + $0xc9] sm:$0xff]
      %v7771 = vld [vmem:[#allocation5 + $0xd1] sm:$0xff]
      %v7772 = vld [vmem:[#allocation5 + $0xe9] sm:$0xff]
      %v7773 = vld [vmem:[#allocation5 + $0xf1] sm:$0xff]
      %v7774 = vld [vmem:[#allocation5 + $0x109] sm:$0xff]
      %v7775 = vld [vmem:[#allocation5 + $0x111] sm:$0xff]
      %v7776 = vld [vmem:[#allocation5 + $0x129] sm:$0xff]
      %v7777 = vld [vmem:[#allocation5 + $0x131] sm:$0xff]
      %v7778 = vld [vmem:[#allocation5 + $0x149] sm:$0xff]
      %v7779 = vld [vmem:[#allocation5 + $0x151] sm:$0xff]
      %v7780 = vld [vmem:[#allocation5 + $0x169] sm:$0xff]
      %v7781 = vld [vmem:[#allocation5 + $0x171] sm:$0xff]
      %v7782 = vld [vmem:[#allocation5 + $0x189] sm:$0xff]
      %v7783 = vld [vmem:[#allocation5 + $0x191] sm:$0xff]
      %v7784 = vld [vmem:[#allocation5 + $0x1a9] sm:$0xff]
      %v7785 = vld [vmem:[#allocation5 + $0x1b1] sm:$0xff]
      %v7786 = vld [vmem:[#allocation5 + $0x1c9] sm:$0xff]
      %v7787 = vld [vmem:[#allocation5 + $0x1d1] sm:$0xff]
      %v7788 = vld [vmem:[#allocation5 + $0x1e9] sm:$0xff]
      %v7789 = vld [vmem:[#allocation5 + $0x1f1] sm:$0xff]
      %v7790 = vld [vmem:[#allocation5 + $0x209] sm:$0xff]
      %v7791 = vld [vmem:[#allocation5 + $0x211] sm:$0xff]
      %v7792 = vld [vmem:[#allocation5 + $0x229] sm:$0xff]
      %v7793 = vld [vmem:[#allocation5 + $0x231] sm:$0xff]
      %7830 = vrot.lane.b32.xlu0 %v7758, 64
      %v7831 = vpop.permute.xlu0 %7830
      %7832 = vrot.lane.b32.xlu0 %v7759, 64
      %v7833 = vpop.permute.xlu0 %7832
      %7834 = vrot.lane.b32.xlu0 %v7760, 64
      %v7835 = vpop.permute.xlu0 %7834
      %7836 = vrot.lane.b32.xlu0 %v7761, 64
      %v7837 = vpop.permute.xlu0 %7836
      %7838 = vrot.lane.b32.xlu0 %v7762, 64
      %v7839 = vpop.permute.xlu0 %7838
      %7840 = vrot.lane.b32.xlu0 %v7763, 64
      %v7841 = vpop.permute.xlu0 %7840
      %7842 = vrot.lane.b32.xlu0 %v7764, 64
      %v7843 = vpop.permute.xlu0 %7842
      %7844 = vrot.lane.b32.xlu0 %v7765, 64
      %v7845 = vpop.permute.xlu0 %7844
      %7846 = vrot.lane.b32.xlu0 %v7766, 64
      %v7847 = vpop.permute.xlu0 %7846
      %7848 = vrot.lane.b32.xlu0 %v7767, 64
      %v7849 = vpop.permute.xlu0 %7848
      %7850 = vrot.lane.b32.xlu0 %v7768, 64
      %v7851 = vpop.permute.xlu0 %7850
      %7852 = vrot.lane.b32.xlu0 %v7769, 64
      %v7853 = vpop.permute.xlu0 %7852
      %7854 = vrot.lane.b32.xlu0 %v7770, 64
      %v7855 = vpop.permute.xlu0 %7854
      %7856 = vrot.lane.b32.xlu0 %v7771, 64
      %v7857 = vpop.permute.xlu0 %7856
      %7858 = vrot.lane.b32.xlu0 %v7772, 64
      %v7859 = vpop.permute.xlu0 %7858
      %7860 = vrot.lane.b32.xlu0 %v7773, 64
      %v7861 = vpop.permute.xlu0 %7860
      %7862 = vrot.lane.b32.xlu0 %v7774, 64
      %v7863 = vpop.permute.xlu0 %7862
      %7864 = vrot.lane.b32.xlu0 %v7775, 64
      %v7865 = vpop.permute.xlu0 %7864
      %7866 = vrot.lane.b32.xlu0 %v7776, 64
      %v7867 = vpop.permute.xlu0 %7866
      %7868 = vrot.lane.b32.xlu0 %v7777, 64
      %v7869 = vpop.permute.xlu0 %7868
      %7870 = vrot.lane.b32.xlu0 %v7778, 64
      %v7871 = vpop.permute.xlu0 %7870
      %7872 = vrot.lane.b32.xlu0 %v7779, 64
      %v7873 = vpop.permute.xlu0 %7872
      %7874 = vrot.lane.b32.xlu0 %v7780, 64
      %v7875 = vpop.permute.xlu0 %7874
      %7876 = vrot.lane.b32.xlu0 %v7781, 64
      %v7877 = vpop.permute.xlu0 %7876
      %7878 = vrot.lane.b32.xlu0 %v7782, 64
      %v7879 = vpop.permute.xlu0 %7878
      %7880 = vrot.lane.b32.xlu0 %v7783, 64
      %v7881 = vpop.permute.xlu0 %7880
      %7882 = vrot.lane.b32.xlu0 %v7784, 64
      %v7883 = vpop.permute.xlu0 %7882
      %7884 = vrot.lane.b32.xlu0 %v7785, 64
      %v7885 = vpop.permute.xlu0 %7884
      %7886 = vrot.lane.b32.xlu0 %v7786, 64
      %v7887 = vpop.permute.xlu0 %7886
      %7888 = vrot.lane.b32.xlu0 %v7787, 64
      %v7889 = vpop.permute.xlu0 %7888
      %7890 = vrot.lane.b32.xlu0 %v7788, 64
      %v7891 = vpop.permute.xlu0 %7890
      %7892 = vrot.lane.b32.xlu0 %v7789, 64
      %v7893 = vpop.permute.xlu0 %7892
      %7894 = vrot.lane.b32.xlu0 %v7790, 64
      %v7895 = vpop.permute.xlu0 %7894
      %7896 = vrot.lane.b32.xlu0 %v7791, 64
      %v7897 = vpop.permute.xlu0 %7896
      %7898 = vrot.lane.b32.xlu0 %v7792, 64
      %v7899 = vpop.permute.xlu0 %7898
      %7900 = vrot.lane.b32.xlu0 %v7793, 64
      %v7901 = vpop.permute.xlu0 %7900
      %7938 = vst.msk [vmem:[#allocation6] sm:$0xff] %vm2695, %v7831
      %7939 = vst.msk [vmem:[#allocation6 + $0x8] sm:$0xff] %vm2695, %v7833
      %7940 = vst.msk [vmem:[#allocation6 + $0x10] sm:$0xff] %vm2695, %v7835
      %7941 = vst.msk [vmem:[#allocation6 + $0x18] sm:$0xff] %vm2695, %v7837
      %7942 = vst.msk [vmem:[#allocation6 + $0x20] sm:$0xff] %vm2695, %v7839
      %7943 = vst.msk [vmem:[#allocation6 + $0x28] sm:$0xff] %vm2695, %v7841
      %7944 = vst.msk [vmem:[#allocation6 + $0x30] sm:$0xff] %vm2695, %v7843
      %7945 = vst.msk [vmem:[#allocation6 + $0x38] sm:$0xff] %vm2695, %v7845
      %7946 = vst.msk [vmem:[#allocation6 + $0x40] sm:$0xff] %vm2695, %v7847
      %7947 = vst.msk [vmem:[#allocation6 + $0x48] sm:$0xff] %vm2695, %v7849
      %7948 = vst.msk [vmem:[#allocation6 + $0x50] sm:$0xff] %vm2695, %v7851
      %7949 = vst.msk [vmem:[#allocation6 + $0x58] sm:$0xff] %vm2695, %v7853
      %7950 = vst.msk [vmem:[#allocation6 + $0x60] sm:$0xff] %vm2695, %v7855
      %7951 = vst.msk [vmem:[#allocation6 + $0x68] sm:$0xff] %vm2695, %v7857
      %7952 = vst.msk [vmem:[#allocation6 + $0x70] sm:$0xff] %vm2695, %v7859
      %7953 = vst.msk [vmem:[#allocation6 + $0x78] sm:$0xff] %vm2695, %v7861
      %7954 = vst.msk [vmem:[#allocation6 + $0x80] sm:$0xff] %vm2695, %v7863
      %7955 = vst.msk [vmem:[#allocation6 + $0x88] sm:$0xff] %vm2695, %v7865
      %7956 = vst.msk [vmem:[#allocation6 + $0x90] sm:$0xff] %vm2695, %v7867
      %7957 = vst.msk [vmem:[#allocation6 + $0x98] sm:$0xff] %vm2695, %v7869
      %7958 = vst.msk [vmem:[#allocation6 + $0xa0] sm:$0xff] %vm2695, %v7871
      %7959 = vst.msk [vmem:[#allocation6 + $0xa8] sm:$0xff] %vm2695, %v7873
      %7960 = vst.msk [vmem:[#allocation6 + $0xb0] sm:$0xff] %vm2695, %v7875
      %7961 = vst.msk [vmem:[#allocation6 + $0xb8] sm:$0xff] %vm2695, %v7877
      %7962 = vst.msk [vmem:[#allocation6 + $0xc0] sm:$0xff] %vm2695, %v7879
      %7963 = vst.msk [vmem:[#allocation6 + $0xc8] sm:$0xff] %vm2695, %v7881
      %7964 = vst.msk [vmem:[#allocation6 + $0xd0] sm:$0xff] %vm2695, %v7883
      %7965 = vst.msk [vmem:[#allocation6 + $0xd8] sm:$0xff] %vm2695, %v7885
      %7966 = vst.msk [vmem:[#allocation6 + $0xe0] sm:$0xff] %vm2695, %v7887
      %7967 = vst.msk [vmem:[#allocation6 + $0xe8] sm:$0xff] %vm2695, %v7889
      %7968 = vst.msk [vmem:[#allocation6 + $0xf0] sm:$0xff] %vm2695, %v7891
      %7969 = vst.msk [vmem:[#allocation6 + $0xf8] sm:$0xff] %vm2695, %v7893
      %7970 = vst.msk [vmem:[#allocation6 + $0x100] sm:$0xff] %vm2695, %v7895
      %7971 = vst.msk [vmem:[#allocation6 + $0x108] sm:$0xff] %vm2695, %v7897
      %7972 = vst.msk [vmem:[#allocation6 + $0x110] sm:$0xff] %vm2695, %v7899
      %7973 = vst.msk [vmem:[#allocation6 + $0x118] sm:$0xff] %vm2695, %v7901
      %v7974 = vld [vmem:[#allocation6] sm:$0xff]
      %v7975 = vld [vmem:[#allocation6 + $0x8] sm:$0xff]
      %v7976 = vld [vmem:[#allocation6 + $0x10] sm:$0xff]
      %v7977 = vld [vmem:[#allocation6 + $0x18] sm:$0xff]
      %v7978 = vld [vmem:[#allocation6 + $0x20] sm:$0xff]
      %v7979 = vld [vmem:[#allocation6 + $0x28] sm:$0xff]
      %v7980 = vld [vmem:[#allocation6 + $0x30] sm:$0xff]
      %v7981 = vld [vmem:[#allocation6 + $0x38] sm:$0xff]
      %v7982 = vld [vmem:[#allocation6 + $0x40] sm:$0xff]
      %v7983 = vld [vmem:[#allocation6 + $0x48] sm:$0xff]
      %v7984 = vld [vmem:[#allocation6 + $0x50] sm:$0xff]
      %v7985 = vld [vmem:[#allocation6 + $0x58] sm:$0xff]
      %v7986 = vld [vmem:[#allocation6 + $0x60] sm:$0xff]
      %v7987 = vld [vmem:[#allocation6 + $0x68] sm:$0xff]
      %v7988 = vld [vmem:[#allocation6 + $0x70] sm:$0xff]
      %v7989 = vld [vmem:[#allocation6 + $0x78] sm:$0xff]
      %v7990 = vld [vmem:[#allocation6 + $0x80] sm:$0xff]
      %v7991 = vld [vmem:[#allocation6 + $0x88] sm:$0xff]
      %v7992 = vld [vmem:[#allocation6 + $0x90] sm:$0xff]
      %v7993 = vld [vmem:[#allocation6 + $0x98] sm:$0xff]
      %v7994 = vld [vmem:[#allocation6 + $0xa0] sm:$0xff]
      %v7995 = vld [vmem:[#allocation6 + $0xa8] sm:$0xff]
      %v7996 = vld [vmem:[#allocation6 + $0xb0] sm:$0xff]
      %v7997 = vld [vmem:[#allocation6 + $0xb8] sm:$0xff]
      %v7998 = vld [vmem:[#allocation6 + $0xc0] sm:$0xff]
      %v7999 = vld [vmem:[#allocation6 + $0xc8] sm:$0xff]
      %v8000 = vld [vmem:[#allocation6 + $0xd0] sm:$0xff]
      %v8001 = vld [vmem:[#allocation6 + $0xd8] sm:$0xff]
      %v8002 = vld [vmem:[#allocation6 + $0xe0] sm:$0xff]
      %v8003 = vld [vmem:[#allocation6 + $0xe8] sm:$0xff]
      %v8004 = vld [vmem:[#allocation6 + $0xf0] sm:$0xff]
      %v8005 = vld [vmem:[#allocation6 + $0xf8] sm:$0xff]
      %v8006 = vld [vmem:[%s2764] sm:$0xff]
      %v8007 = vld [vmem:[%s2764 + $0x8] sm:$0xff]
      %v8008 = vld [vmem:[%s2764 + $0x10] sm:$0xff]
      %v8009 = vld [vmem:[%s2764 + $0x18] sm:$0xff]
      %v8010 = vld [vmem:[%s2764 + $0x20] sm:$0xff]
      %v8011 = vld [vmem:[%s2764 + $0x28] sm:$0xff]
      %v8012 = vld [vmem:[%s2764 + $0x30] sm:$0xff]
      %v8013 = vld [vmem:[%s2764 + $0x38] sm:$0xff]
      %v8014 = vld [vmem:[%s2764 + $0x40] sm:$0xff]
      %v8015 = vld [vmem:[%s2764 + $0x48] sm:$0xff]
      %v8016 = vld [vmem:[%s2764 + $0x50] sm:$0xff]
      %v8017 = vld [vmem:[%s2764 + $0x58] sm:$0xff]
      %v8018 = vld [vmem:[%s2764 + $0x60] sm:$0xff]
      %v8019 = vld [vmem:[%s2764 + $0x68] sm:$0xff]
      %v8020 = vld [vmem:[%s2764 + $0x70] sm:$0xff]
      %v8021 = vld [vmem:[%s2764 + $0x78] sm:$0xff]
      %v8022 = vld [vmem:[%s2764 + $0x80] sm:$0xff]
      %v8023 = vld [vmem:[%s2764 + $0x88] sm:$0xff]
      %v8024 = vld [vmem:[%s2764 + $0x90] sm:$0xff]
      %v8025 = vld [vmem:[%s2764 + $0x98] sm:$0xff]
      %v8026 = vld [vmem:[%s2764 + $0xa0] sm:$0xff]
      %v8027 = vld [vmem:[%s2764 + $0xa8] sm:$0xff]
      %v8028 = vld [vmem:[%s2764 + $0xb0] sm:$0xff]
      %v8029 = vld [vmem:[%s2764 + $0xb8] sm:$0xff]
      %v8030 = vld [vmem:[%s2764 + $0xc0] sm:$0xff]
      %v8031 = vld [vmem:[%s2764 + $0xc8] sm:$0xff]
      %v8032 = vld [vmem:[%s2764 + $0xd0] sm:$0xff]
      %v8033 = vld [vmem:[%s2764 + $0xd8] sm:$0xff]
      %v8034 = vld [vmem:[%s2764 + $0xe0] sm:$0xff]
      %v8035 = vld [vmem:[%s2764 + $0xe8] sm:$0xff]
      %v8036 = vld [vmem:[%s2764 + $0xf0] sm:$0xff]
      %v8037 = vld [vmem:[%s2764 + $0xf8] sm:$0xff]
      %v8039 = vsel %vm2797, %v8006, 0
      %v8042 = vsel %vm2797, %v8007, 0
      %v8045 = vsel %vm2797, %v8008, 0
      %v8048 = vsel %vm2797, %v8009, 0
      %v8051 = vsel %vm2797, %v8010, 0
      %v8054 = vsel %vm2797, %v8011, 0
      %v8057 = vsel %vm2797, %v8012, 0
      %v8060 = vsel %vm2797, %v8013, 0
      %v8063 = vsel %vm2797, %v8014, 0
      %v8066 = vsel %vm2797, %v8015, 0
      %v8069 = vsel %vm2797, %v8016, 0
      %v8072 = vsel %vm2797, %v8017, 0
      %v8075 = vsel %vm2797, %v8018, 0
      %v8078 = vsel %vm2797, %v8019, 0
      %v8081 = vsel %vm2797, %v8020, 0
      %v8084 = vsel %vm2797, %v8021, 0
      %v8087 = vsel %vm2797, %v8022, 0
      %v8090 = vsel %vm2797, %v8023, 0
      %v8093 = vsel %vm2797, %v8024, 0
      %v8096 = vsel %vm2797, %v8025, 0
      %v8099 = vsel %vm2797, %v8026, 0
      %v8102 = vsel %vm2797, %v8027, 0
      %v8105 = vsel %vm2797, %v8028, 0
      %v8108 = vsel %vm2797, %v8029, 0
      %v8111 = vsel %vm2797, %v8030, 0
      %v8114 = vsel %vm2797, %v8031, 0
      %v8117 = vsel %vm2797, %v8032, 0
      %v8120 = vsel %vm2797, %v8033, 0
      %v8123 = vsel %vm2797, %v8034, 0
      %v8126 = vsel %vm2797, %v8035, 0
      %v8129 = vsel %vm2797, %v8036, 0
      %v8132 = vsel %vm2797, %v8037, 0
      %8134 = vmatprep.subr.mxu0 0.0
      %8135 = vmatpush1.msra.mxu0 %v7444
      %8136 = vmatprep.subr.mxu0 0.0
      %8137 = vmatpush1.msra.mxu0 %v7445
      %8138 = vmatprep.subr.mxu0 0.0
      %8139 = vmatpush1.msra.mxu0 %v7446
      %8140 = vmatprep.subr.mxu0 0.0
      %8141 = vmatpush1.msra.mxu0 %v7447
      %8142 = vmatprep.subr.mxu0 0.0
      %8143 = vmatpush1.msra.mxu0 %v7448
      %8144 = vmatprep.subr.mxu0 0.0
      %8145 = vmatpush1.msra.mxu0 %v7449
      %8146 = vmatprep.subr.mxu0 0.0
      %8147 = vmatpush1.msra.mxu0 %v7450
      %8148 = vmatprep.subr.mxu0 0.0
      %8149 = vmatpush1.msra.mxu0 %v7451
      %8150 = vmatprep.subr.mxu0 0.0
      %8151 = vmatpush1.msra.mxu0 %v7452
      %8152 = vmatprep.subr.mxu0 0.0
      %8153 = vmatpush1.msra.mxu0 %v7453
      %8154 = vmatprep.subr.mxu0 0.0
      %8155 = vmatpush1.msra.mxu0 %v7454
      %8156 = vmatprep.subr.mxu0 0.0
      %8157 = vmatpush1.msra.mxu0 %v7455
      %8158 = vmatprep.subr.mxu0 0.0
      %8159 = vmatpush1.msra.mxu0 0.0
      %8160 = vmatprep.subr.mxu0 0.0
      %8161 = vmatpush1.msra.mxu0 0.0
      %8162 = vmatprep.subr.mxu0 0.0
      %8163 = vmatpush1.msra.mxu0 0.0
      %8164 = vmatprep.subr.mxu0 0.0
      %8165 = vmatpush1.msra.mxu0 0.0
      %8166 = vmatprep.subr.mxu0 0.0
      %8167 = vmatpush1.msra.mxu0 0.0
      %8168 = vmatprep.subr.mxu0 0.0
      %8169 = vmatpush1.msra.mxu0 0.0
      %8170 = vmatprep.subr.mxu0 0.0
      %8171 = vmatpush1.msra.mxu0 0.0
      %8172 = vmatprep.subr.mxu0 0.0
      %8173 = vmatpush1.msra.mxu0 0.0
      %8174 = vmatprep.subr.mxu0 0.0
      %8175 = vmatpush1.msra.mxu0 0.0
      %8176 = vmatprep.subr.mxu0 0.0
      %8177 = vmatpush1.msra.mxu0 0.0
      %8178 = vmatprep.subr.mxu0 0.0
      %8179 = vmatpush1.msra.mxu0 0.0
      %8180 = vmatprep.subr.mxu0 0.0
      %8181 = vmatpush1.msra.mxu0 0.0
      %8182 = vmatprep.subr.mxu0 0.0
      %8183 = vmatpush1.msra.mxu0 0.0
      %8184 = vmatprep.subr.mxu0 0.0
      %8185 = vmatpush1.msra.mxu0 0.0
      %8186 = vmatprep.subr.mxu0 0.0
      %8187 = vmatpush1.msra.mxu0 0.0
      %8188 = vmatprep.subr.mxu0 0.0
      %8189 = vmatpush1.msra.mxu0 0.0
      %8190 = vmatprep.subr.mxu0 0.0
      %8191 = vmatpush1.msra.mxu0 0.0
      %8192 = vmatprep.subr.mxu0 0.0
      %8193 = vmatpush1.msra.mxu0 0.0
      %8194 = vmatprep.subr.mxu0 0.0
      %8195 = vmatpush1.msra.mxu0 0.0
      %8196 = vmatprep.subr.mxu0 0.0
      %8197 = vmatpush1.msra.mxu0 0.0
      %8198 = vmatprep.mubr.f32.mxu0 0.0
      %8199 = vmatmul.mubr.f32.gmra.mrb[0].mxu0 %v8039
      %v8200 = vpop.f32.mrb[0].mxu0
      %v8201 = vadd.f32 0.0, %v8200
      %v8202 = vpop.f32.mrb[0].mxu0
      %8203 = vmatprep.mubr.f32.mxu0 0.0
      %8204 = vmatmul.mubr.f32.gmra.mrb[0].mxu0 %v8042
      %v8205 = vpop.f32.mrb[0].mxu0
      %v8206 = vadd.f32 0.0, %v8205
      %v8207 = vpop.f32.mrb[0].mxu0
      %8208 = vmatprep.mubr.f32.mxu0 0.0
      %8209 = vmatmul.mubr.f32.gmra.mrb[0].mxu0 %v8045
      %v8210 = vpop.f32.mrb[0].mxu0
      %v8211 = vadd.f32 0.0, %v8210
      %v8212 = vpop.f32.mrb[0].mxu0
      %8213 = vmatprep.mubr.f32.mxu0 0.0
      %8214 = vmatmul.mubr.f32.gmra.mrb[0].mxu0 %v8048
      %v8215 = vpop.f32.mrb[0].mxu0
      %v8216 = vadd.f32 0.0, %v8215
      %v8217 = vpop.f32.mrb[0].mxu0
      %8218 = vmatprep.mubr.f32.mxu0 0.0
      %8219 = vmatmul.mubr.f32.gmra.mrb[0].mxu0 %v8051
      %v8220 = vpop.f32.mrb[0].mxu0
      %v8221 = vadd.f32 0.0, %v8220
      %v8222 = vpop.f32.mrb[0].mxu0
      %8223 = vmatprep.mubr.f32.mxu0 0.0
      %8224 = vmatmul.mubr.f32.gmra.mrb[0].mxu0 %v8054
      %v8225 = vpop.f32.mrb[0].mxu0
      %v8226 = vadd.f32 0.0, %v8225
      %v8227 = vpop.f32.mrb[0].mxu0
      %8228 = vmatprep.mubr.f32.mxu0 0.0
      %8229 = vmatmul.mubr.f32.gmra.mrb[0].mxu0 %v8057
      %v8230 = vpop.f32.mrb[0].mxu0
      %v8231 = vadd.f32 0.0, %v8230
      %v8232 = vpop.f32.mrb[0].mxu0
      %8233 = vmatprep.mubr.f32.mxu0 0.0
      %8234 = vmatmul.mubr.f32.gmra.mrb[0].mxu0 %v8060
      %v8235 = vpop.f32.mrb[0].mxu0
      %v8236 = vadd.f32 0.0, %v8235
      %v8237 = vpop.f32.mrb[0].mxu0
      %8238 = vmatprep.mubr.f32.mxu0 0.0
      %8239 = vmatmul.mubr.f32.gmra.mrb[0].mxu0 %v8063
      %v8240 = vpop.f32.mrb[0].mxu0
      %v8241 = vadd.f32 0.0, %v8240
      %v8242 = vpop.f32.mrb[0].mxu0
      %8243 = vmatprep.mubr.f32.mxu0 0.0
      %8244 = vmatmul.mubr.f32.gmra.mrb[0].mxu0 %v8066
      %v8245 = vpop.f32.mrb[0].mxu0
      %v8246 = vadd.f32 0.0, %v8245
      %v8247 = vpop.f32.mrb[0].mxu0
      %8248 = vmatprep.mubr.f32.mxu0 0.0
      %8249 = vmatmul.mubr.f32.gmra.mrb[0].mxu0 %v8069
      %v8250 = vpop.f32.mrb[0].mxu0
      %v8251 = vadd.f32 0.0, %v8250
      %v8252 = vpop.f32.mrb[0].mxu0
      %8253 = vmatprep.mubr.f32.mxu0 0.0
      %8254 = vmatmul.mubr.f32.gmra.mrb[0].mxu0 %v8072
      %v8255 = vpop.f32.mrb[0].mxu0
      %v8256 = vadd.f32 0.0, %v8255
      %v8257 = vpop.f32.mrb[0].mxu0
      %8258 = vmatprep.mubr.f32.mxu0 0.0
      %8259 = vmatmul.mubr.f32.gmra.mrb[0].mxu0 %v8075
      %v8260 = vpop.f32.mrb[0].mxu0
      %v8261 = vadd.f32 0.0, %v8260
      %v8262 = vpop.f32.mrb[0].mxu0
      %8263 = vmatprep.mubr.f32.mxu0 0.0
      %8264 = vmatmul.mubr.f32.gmra.mrb[0].mxu0 %v8078
      %v8265 = vpop.f32.mrb[0].mxu0
      %v8266 = vadd.f32 0.0, %v8265
      %v8267 = vpop.f32.mrb[0].mxu0
      %8268 = vmatprep.mubr.f32.mxu0 0.0
      %8269 = vmatmul.mubr.f32.gmra.mrb[0].mxu0 %v8081
      %v8270 = vpop.f32.mrb[0].mxu0
      %v8271 = vadd.f32 0.0, %v8270
      %v8272 = vpop.f32.mrb[0].mxu0
      %8273 = vmatprep.mubr.f32.mxu0 0.0
      %8274 = vmatmul.mubr.f32.gmra.mrb[0].mxu0 %v8084
      %v8275 = vpop.f32.mrb[0].mxu0
      %v8276 = vadd.f32 0.0, %v8275
      %v8277 = vpop.f32.mrb[0].mxu0
      %8278 = vmatprep.mubr.f32.mxu0 0.0
      %8279 = vmatmul.mubr.f32.gmra.mrb[0].mxu0 %v8087
      %v8280 = vpop.f32.mrb[0].mxu0
      %v8281 = vadd.f32 0.0, %v8280
      %v8282 = vpop.f32.mrb[0].mxu0
      %8283 = vmatprep.mubr.f32.mxu0 0.0
      %8284 = vmatmul.mubr.f32.gmra.mrb[0].mxu0 %v8090
      %v8285 = vpop.f32.mrb[0].mxu0
      %v8286 = vadd.f32 0.0, %v8285
      %v8287 = vpop.f32.mrb[0].mxu0
      %8288 = vmatprep.mubr.f32.mxu0 0.0
      %8289 = vmatmul.mubr.f32.gmra.mrb[0].mxu0 %v8093
      %v8290 = vpop.f32.mrb[0].mxu0
      %v8291 = vadd.f32 0.0, %v8290
      %v8292 = vpop.f32.mrb[0].mxu0
      %8293 = vmatprep.mubr.f32.mxu0 0.0
      %8294 = vmatmul.mubr.f32.gmra.mrb[0].mxu0 %v8096
      %v8295 = vpop.f32.mrb[0].mxu0
      %v8296 = vadd.f32 0.0, %v8295
      %v8297 = vpop.f32.mrb[0].mxu0
      %8298 = vmatprep.mubr.f32.mxu0 0.0
      %8299 = vmatmul.mubr.f32.gmra.mrb[0].mxu0 %v8099
      %v8300 = vpop.f32.mrb[0].mxu0
      %v8301 = vadd.f32 0.0, %v8300
      %v8302 = vpop.f32.mrb[0].mxu0
      %8303 = vmatprep.mubr.f32.mxu0 0.0
      %8304 = vmatmul.mubr.f32.gmra.mrb[0].mxu0 %v8102
      %v8305 = vpop.f32.mrb[0].mxu0
      %v8306 = vadd.f32 0.0, %v8305
      %v8307 = vpop.f32.mrb[0].mxu0
      %8308 = vmatprep.mubr.f32.mxu0 0.0
      %8309 = vmatmul.mubr.f32.gmra.mrb[0].mxu0 %v8105
      %v8310 = vpop.f32.mrb[0].mxu0
      %v8311 = vadd.f32 0.0, %v8310
      %v8312 = vpop.f32.mrb[0].mxu0
      %8313 = vmatprep.mubr.f32.mxu0 0.0
      %8314 = vmatmul.mubr.f32.gmra.mrb[0].mxu0 %v8108
      %v8315 = vpop.f32.mrb[0].mxu0
      %v8316 = vadd.f32 0.0, %v8315
      %v8317 = vpop.f32.mrb[0].mxu0
      %8318 = vmatprep.mubr.f32.mxu0 0.0
      %8319 = vmatmul.mubr.f32.gmra.mrb[0].mxu0 %v8111
      %v8320 = vpop.f32.mrb[0].mxu0
      %v8321 = vadd.f32 0.0, %v8320
      %v8322 = vpop.f32.mrb[0].mxu0
      %8323 = vmatprep.mubr.f32.mxu0 0.0
      %8324 = vmatmul.mubr.f32.gmra.mrb[0].mxu0 %v8114
      %v8325 = vpop.f32.mrb[0].mxu0
      %v8326 = vadd.f32 0.0, %v8325
      %v8327 = vpop.f32.mrb[0].mxu0
      %8328 = vmatprep.mubr.f32.mxu0 0.0
      %8329 = vmatmul.mubr.f32.gmra.mrb[0].mxu0 %v8117
      %v8330 = vpop.f32.mrb[0].mxu0
      %v8331 = vadd.f32 0.0, %v8330
      %v8332 = vpop.f32.mrb[0].mxu0
      %8333 = vmatprep.mubr.f32.mxu0 0.0
      %8334 = vmatmul.mubr.f32.gmra.mrb[0].mxu0 %v8120
      %v8335 = vpop.f32.mrb[0].mxu0
      %v8336 = vadd.f32 0.0, %v8335
      %v8337 = vpop.f32.mrb[0].mxu0
      %8338 = vmatprep.mubr.f32.mxu0 0.0
      %8339 = vmatmul.mubr.f32.gmra.mrb[0].mxu0 %v8123
      %v8340 = vpop.f32.mrb[0].mxu0
      %v8341 = vadd.f32 0.0, %v8340
      %v8342 = vpop.f32.mrb[0].mxu0
      %8343 = vmatprep.mubr.f32.mxu0 0.0
      %8344 = vmatmul.mubr.f32.gmra.mrb[0].mxu0 %v8126
      %v8345 = vpop.f32.mrb[0].mxu0
      %v8346 = vadd.f32 0.0, %v8345
      %v8347 = vpop.f32.mrb[0].mxu0
      %8348 = vmatprep.mubr.f32.mxu0 0.0
      %8349 = vmatmul.mubr.f32.gmra.mrb[0].mxu0 %v8129
      %v8350 = vpop.f32.mrb[0].mxu0
      %v8351 = vadd.f32 0.0, %v8350
      %v8352 = vpop.f32.mrb[0].mxu0
      %8353 = vmatprep.mubr.f32.mxu0 0.0
      %8354 = vmatmul.mubr.f32.gmra.mrb[0].mxu0 %v8132
      %v8355 = vpop.f32.mrb[0].mxu0
      %v8356 = vadd.f32 0.0, %v8355
      %v8357 = vpop.f32.mrb[0].mxu0
      %8358 = vdwg.mxu0
      %v8360 = vsel %vm2797, %v7974, 0
      %v8363 = vsel %vm2797, %v7975, 0
      %v8366 = vsel %vm2797, %v7976, 0
      %v8369 = vsel %vm2797, %v7977, 0
      %v8372 = vsel %vm2797, %v7978, 0
      %v8375 = vsel %vm2797, %v7979, 0
      %v8378 = vsel %vm2797, %v7980, 0
      %v8381 = vsel %vm2797, %v7981, 0
      %v8384 = vsel %vm2797, %v7982, 0
      %v8387 = vsel %vm2797, %v7983, 0
      %v8390 = vsel %vm2797, %v7984, 0
      %v8393 = vsel %vm2797, %v7985, 0
      %v8396 = vsel %vm2797, %v7986, 0
      %v8399 = vsel %vm2797, %v7987, 0
      %v8402 = vsel %vm2797, %v7988, 0
      %v8405 = vsel %vm2797, %v7989, 0
      %v8408 = vsel %vm2797, %v7990, 0
      %v8411 = vsel %vm2797, %v7991, 0
      %v8414 = vsel %vm2797, %v7992, 0
      %v8417 = vsel %vm2797, %v7993, 0
      %v8420 = vsel %vm2797, %v7994, 0
      %v8423 = vsel %vm2797, %v7995, 0
      %v8426 = vsel %vm2797, %v7996, 0
      %v8429 = vsel %vm2797, %v7997, 0
      %v8432 = vsel %vm2797, %v7998, 0
      %v8435 = vsel %vm2797, %v7999, 0
      %v8438 = vsel %vm2797, %v8000, 0
      %v8441 = vsel %vm2797, %v8001, 0
      %v8444 = vsel %vm2797, %v8002, 0
      %v8447 = vsel %vm2797, %v8003, 0
      %v8450 = vsel %vm2797, %v8004, 0
      %v8453 = vsel %vm2797, %v8005, 0
      %8455 = vmatprep.subr.mxu0 0.0
      %8456 = vmatpush1.msra.mxu0 %v7432
      %8457 = vmatprep.subr.mxu0 0.0
      %8458 = vmatpush1.msra.mxu0 %v7433
      %8459 = vmatprep.subr.mxu0 0.0
      %8460 = vmatpush1.msra.mxu0 %v7434
      %8461 = vmatprep.subr.mxu0 0.0
      %8462 = vmatpush1.msra.mxu0 %v7435
      %8463 = vmatprep.subr.mxu0 0.0
      %8464 = vmatpush1.msra.mxu0 %v7436
      %8465 = vmatprep.subr.mxu0 0.0
      %8466 = vmatpush1.msra.mxu0 %v7437
      %8467 = vmatprep.subr.mxu0 0.0
      %8468 = vmatpush1.msra.mxu0 %v7438
      %8469 = vmatprep.subr.mxu0 0.0
      %8470 = vmatpush1.msra.mxu0 %v7439
      %8471 = vmatprep.subr.mxu0 0.0
      %8472 = vmatpush1.msra.mxu0 %v7440
      %8473 = vmatprep.subr.mxu0 0.0
      %8474 = vmatpush1.msra.mxu0 %v7441
      %8475 = vmatprep.subr.mxu0 0.0
      %8476 = vmatpush1.msra.mxu0 %v7442
      %8477 = vmatprep.subr.mxu0 0.0
      %8478 = vmatpush1.msra.mxu0 %v7443
      %8479 = vmatprep.subr.mxu0 0.0
      %8480 = vmatpush1.msra.mxu0 0.0
      %8481 = vmatprep.subr.mxu0 0.0
      %8482 = vmatpush1.msra.mxu0 0.0
      %8483 = vmatprep.subr.mxu0 0.0
      %8484 = vmatpush1.msra.mxu0 0.0
      %8485 = vmatprep.subr.mxu0 0.0
      %8486 = vmatpush1.msra.mxu0 0.0
      %8487 = vmatprep.subr.mxu0 0.0
      %8488 = vmatpush1.msra.mxu0 0.0
      %8489 = vmatprep.subr.mxu0 0.0
      %8490 = vmatpush1.msra.mxu0 0.0
      %8491 = vmatprep.subr.mxu0 0.0
      %8492 = vmatpush1.msra.mxu0 0.0
      %8493 = vmatprep.subr.mxu0 0.0
      %8494 = vmatpush1.msra.mxu0 0.0
      %8495 = vmatprep.subr.mxu0 0.0
      %8496 = vmatpush1.msra.mxu0 0.0
      %8497 = vmatprep.subr.mxu0 0.0
      %8498 = vmatpush1.msra.mxu0 0.0
      %8499 = vmatprep.subr.mxu0 0.0
      %8500 = vmatpush1.msra.mxu0 0.0
      %8501 = vmatprep.subr.mxu0 0.0
      %8502 = vmatpush1.msra.mxu0 0.0
      %8503 = vmatprep.subr.mxu0 0.0
      %8504 = vmatpush1.msra.mxu0 0.0
      %8505 = vmatprep.subr.mxu0 0.0
      %8506 = vmatpush1.msra.mxu0 0.0
      %8507 = vmatprep.subr.mxu0 0.0
      %8508 = vmatpush1.msra.mxu0 0.0
      %8509 = vmatprep.subr.mxu0 0.0
      %8510 = vmatpush1.msra.mxu0 0.0
      %8511 = vmatprep.subr.mxu0 0.0
      %8512 = vmatpush1.msra.mxu0 0.0
      %8513 = vmatprep.subr.mxu0 0.0
      %8514 = vmatpush1.msra.mxu0 0.0
      %8515 = vmatprep.subr.mxu0 0.0
      %8516 = vmatpush1.msra.mxu0 0.0
      %8517 = vmatprep.subr.mxu0 0.0
      %8518 = vmatpush1.msra.mxu0 0.0
      %8519 = vmatprep.mubr.f32.mxu0 0.0
      %8520 = vmatmul.mubr.f32.gmra.mrb[0].mxu0 %v8360
      %v8521 = vpop.f32.mrb[0].mxu0
      %v8522 = vadd.f32 %v8201, %v8521
      %v8523 = vpop.f32.mrb[0].mxu0
      %8524 = vmatprep.mubr.f32.mxu0 0.0
      %8525 = vmatmul.mubr.f32.gmra.mrb[0].mxu0 %v8363
      %v8526 = vpop.f32.mrb[0].mxu0
      %v8527 = vadd.f32 %v8206, %v8526
      %v8528 = vpop.f32.mrb[0].mxu0
      %8529 = vmatprep.mubr.f32.mxu0 0.0
      %8530 = vmatmul.mubr.f32.gmra.mrb[0].mxu0 %v8366
      %v8531 = vpop.f32.mrb[0].mxu0
      %v8532 = vadd.f32 %v8211, %v8531
      %v8533 = vpop.f32.mrb[0].mxu0
      %8534 = vmatprep.mubr.f32.mxu0 0.0
      %8535 = vmatmul.mubr.f32.gmra.mrb[0].mxu0 %v8369
      %v8536 = vpop.f32.mrb[0].mxu0
      %v8537 = vadd.f32 %v8216, %v8536
      %v8538 = vpop.f32.mrb[0].mxu0
      %8539 = vmatprep.mubr.f32.mxu0 0.0
      %8540 = vmatmul.mubr.f32.gmra.mrb[0].mxu0 %v8372
      %v8541 = vpop.f32.mrb[0].mxu0
      %v8542 = vadd.f32 %v8221, %v8541
      %v8543 = vpop.f32.mrb[0].mxu0
      %8544 = vmatprep.mubr.f32.mxu0 0.0
      %8545 = vmatmul.mubr.f32.gmra.mrb[0].mxu0 %v8375
      %v8546 = vpop.f32.mrb[0].mxu0
      %v8547 = vadd.f32 %v8226, %v8546
      %v8548 = vpop.f32.mrb[0].mxu0
      %8549 = vmatprep.mubr.f32.mxu0 0.0
      %8550 = vmatmul.mubr.f32.gmra.mrb[0].mxu0 %v8378
      %v8551 = vpop.f32.mrb[0].mxu0
      %v8552 = vadd.f32 %v8231, %v8551
      %v8553 = vpop.f32.mrb[0].mxu0
      %8554 = vmatprep.mubr.f32.mxu0 0.0
      %8555 = vmatmul.mubr.f32.gmra.mrb[0].mxu0 %v8381
      %v8556 = vpop.f32.mrb[0].mxu0
      %v8557 = vadd.f32 %v8236, %v8556
      %v8558 = vpop.f32.mrb[0].mxu0
      %8559 = vmatprep.mubr.f32.mxu0 0.0
      %8560 = vmatmul.mubr.f32.gmra.mrb[0].mxu0 %v8384
      %v8561 = vpop.f32.mrb[0].mxu0
      %v8562 = vadd.f32 %v8241, %v8561
      %v8563 = vpop.f32.mrb[0].mxu0
      %8564 = vmatprep.mubr.f32.mxu0 0.0
      %8565 = vmatmul.mubr.f32.gmra.mrb[0].mxu0 %v8387
      %v8566 = vpop.f32.mrb[0].mxu0
      %v8567 = vadd.f32 %v8246, %v8566
      %v8568 = vpop.f32.mrb[0].mxu0
      %8569 = vmatprep.mubr.f32.mxu0 0.0
      %8570 = vmatmul.mubr.f32.gmra.mrb[0].mxu0 %v8390
      %v8571 = vpop.f32.mrb[0].mxu0
      %v8572 = vadd.f32 %v8251, %v8571
      %v8573 = vpop.f32.mrb[0].mxu0
      %8574 = vmatprep.mubr.f32.mxu0 0.0
      %8575 = vmatmul.mubr.f32.gmra.mrb[0].mxu0 %v8393
      %v8576 = vpop.f32.mrb[0].mxu0
      %v8577 = vadd.f32 %v8256, %v8576
      %v8578 = vpop.f32.mrb[0].mxu0
      %8579 = vmatprep.mubr.f32.mxu0 0.0
      %8580 = vmatmul.mubr.f32.gmra.mrb[0].mxu0 %v8396
      %v8581 = vpop.f32.mrb[0].mxu0
      %v8582 = vadd.f32 %v8261, %v8581
      %v8583 = vpop.f32.mrb[0].mxu0
      %8584 = vmatprep.mubr.f32.mxu0 0.0
      %8585 = vmatmul.mubr.f32.gmra.mrb[0].mxu0 %v8399
      %v8586 = vpop.f32.mrb[0].mxu0
      %v8587 = vadd.f32 %v8266, %v8586
      %v8588 = vpop.f32.mrb[0].mxu0
      %8589 = vmatprep.mubr.f32.mxu0 0.0
      %8590 = vmatmul.mubr.f32.gmra.mrb[0].mxu0 %v8402
      %v8591 = vpop.f32.mrb[0].mxu0
      %v8592 = vadd.f32 %v8271, %v8591
      %v8593 = vpop.f32.mrb[0].mxu0
      %8594 = vmatprep.mubr.f32.mxu0 0.0
      %8595 = vmatmul.mubr.f32.gmra.mrb[0].mxu0 %v8405
      %v8596 = vpop.f32.mrb[0].mxu0
      %v8597 = vadd.f32 %v8276, %v8596
      %v8598 = vpop.f32.mrb[0].mxu0
      %8599 = vmatprep.mubr.f32.mxu0 0.0
      %8600 = vmatmul.mubr.f32.gmra.mrb[0].mxu0 %v8408
      %v8601 = vpop.f32.mrb[0].mxu0
      %v8602 = vadd.f32 %v8281, %v8601
      %v8603 = vpop.f32.mrb[0].mxu0
      %8604 = vmatprep.mubr.f32.mxu0 0.0
      %8605 = vmatmul.mubr.f32.gmra.mrb[0].mxu0 %v8411
      %v8606 = vpop.f32.mrb[0].mxu0
      %v8607 = vadd.f32 %v8286, %v8606
      %v8608 = vpop.f32.mrb[0].mxu0
      %8609 = vmatprep.mubr.f32.mxu0 0.0
      %8610 = vmatmul.mubr.f32.gmra.mrb[0].mxu0 %v8414
      %v8611 = vpop.f32.mrb[0].mxu0
      %v8612 = vadd.f32 %v8291, %v8611
      %v8613 = vpop.f32.mrb[0].mxu0
      %8614 = vmatprep.mubr.f32.mxu0 0.0
      %8615 = vmatmul.mubr.f32.gmra.mrb[0].mxu0 %v8417
      %v8616 = vpop.f32.mrb[0].mxu0
      %v8617 = vadd.f32 %v8296, %v8616
      %v8618 = vpop.f32.mrb[0].mxu0
      %8619 = vmatprep.mubr.f32.mxu0 0.0
      %8620 = vmatmul.mubr.f32.gmra.mrb[0].mxu0 %v8420
      %v8621 = vpop.f32.mrb[0].mxu0
      %v8622 = vadd.f32 %v8301, %v8621
      %v8623 = vpop.f32.mrb[0].mxu0
      %8624 = vmatprep.mubr.f32.mxu0 0.0
      %8625 = vmatmul.mubr.f32.gmra.mrb[0].mxu0 %v8423
      %v8626 = vpop.f32.mrb[0].mxu0
      %v8627 = vadd.f32 %v8306, %v8626
      %v8628 = vpop.f32.mrb[0].mxu0
      %8629 = vmatprep.mubr.f32.mxu0 0.0
      %8630 = vmatmul.mubr.f32.gmra.mrb[0].mxu0 %v8426
      %v8631 = vpop.f32.mrb[0].mxu0
      %v8632 = vadd.f32 %v8311, %v8631
      %v8633 = vpop.f32.mrb[0].mxu0
      %8634 = vmatprep.mubr.f32.mxu0 0.0
      %8635 = vmatmul.mubr.f32.gmra.mrb[0].mxu0 %v8429
      %v8636 = vpop.f32.mrb[0].mxu0
      %v8637 = vadd.f32 %v8316, %v8636
      %v8638 = vpop.f32.mrb[0].mxu0
      %8639 = vmatprep.mubr.f32.mxu0 0.0
      %8640 = vmatmul.mubr.f32.gmra.mrb[0].mxu0 %v8432
      %v8641 = vpop.f32.mrb[0].mxu0
      %v8642 = vadd.f32 %v8321, %v8641
      %v8643 = vpop.f32.mrb[0].mxu0
      %8644 = vmatprep.mubr.f32.mxu0 0.0
      %8645 = vmatmul.mubr.f32.gmra.mrb[0].mxu0 %v8435
      %v8646 = vpop.f32.mrb[0].mxu0
      %v8647 = vadd.f32 %v8326, %v8646
      %v8648 = vpop.f32.mrb[0].mxu0
      %8649 = vmatprep.mubr.f32.mxu0 0.0
      %8650 = vmatmul.mubr.f32.gmra.mrb[0].mxu0 %v8438
      %v8651 = vpop.f32.mrb[0].mxu0
      %v8652 = vadd.f32 %v8331, %v8651
      %v8653 = vpop.f32.mrb[0].mxu0
      %8654 = vmatprep.mubr.f32.mxu0 0.0
      %8655 = vmatmul.mubr.f32.gmra.mrb[0].mxu0 %v8441
      %v8656 = vpop.f32.mrb[0].mxu0
      %v8657 = vadd.f32 %v8336, %v8656
      %v8658 = vpop.f32.mrb[0].mxu0
      %8659 = vmatprep.mubr.f32.mxu0 0.0
      %8660 = vmatmul.mubr.f32.gmra.mrb[0].mxu0 %v8444
      %v8661 = vpop.f32.mrb[0].mxu0
      %v8662 = vadd.f32 %v8341, %v8661
      %v8663 = vpop.f32.mrb[0].mxu0
      %8664 = vmatprep.mubr.f32.mxu0 0.0
      %8665 = vmatmul.mubr.f32.gmra.mrb[0].mxu0 %v8447
      %v8666 = vpop.f32.mrb[0].mxu0
      %v8667 = vadd.f32 %v8346, %v8666
      %v8668 = vpop.f32.mrb[0].mxu0
      %8669 = vmatprep.mubr.f32.mxu0 0.0
      %8670 = vmatmul.mubr.f32.gmra.mrb[0].mxu0 %v8450
      %v8671 = vpop.f32.mrb[0].mxu0
      %v8672 = vadd.f32 %v8351, %v8671
      %v8673 = vpop.f32.mrb[0].mxu0
      %8674 = vmatprep.mubr.f32.mxu0 0.0
      %8675 = vmatmul.mubr.f32.gmra.mrb[0].mxu0 %v8453
      %v8676 = vpop.f32.mrb[0].mxu0
      %v8677 = vadd.f32 %v8356, %v8676
      %v8678 = vpop.f32.mrb[0].mxu0
      %8679 = vdwg.mxu0
      %v8680 = vld [vmem:[%s3440] sm:$0xff]
      %v8681 = vld [vmem:[%s3440 + $0x8] sm:$0xff]
      %v8682 = vld [vmem:[%s3440 + $0x10] sm:$0xff]
      %v8683 = vld [vmem:[%s3440 + $0x18] sm:$0xff]
      %v8684 = vld [vmem:[%s3440 + $0x20] sm:$0xff]
      %v8685 = vld [vmem:[%s3440 + $0x28] sm:$0xff]
      %v8686 = vld [vmem:[%s3440 + $0x30] sm:$0xff]
      %v8687 = vld [vmem:[%s3440 + $0x38] sm:$0xff]
      %v8688 = vld [vmem:[%s3440 + $0x40] sm:$0xff]
      %v8689 = vld [vmem:[%s3440 + $0x48] sm:$0xff]
      %v8690 = vld [vmem:[%s3440 + $0x50] sm:$0xff]
      %v8691 = vld [vmem:[%s3440 + $0x58] sm:$0xff]
      %v8692 = vld [vmem:[%s3440 + $0x60] sm:$0xff]
      %v8693 = vld [vmem:[%s3440 + $0x68] sm:$0xff]
      %v8694 = vld [vmem:[%s3440 + $0x70] sm:$0xff]
      %v8695 = vld [vmem:[%s3440 + $0x78] sm:$0xff]
      %v8696 = vld [vmem:[%s3440 + $0x80] sm:$0xff]
      %v8697 = vld [vmem:[%s3440 + $0x88] sm:$0xff]
      %v8698 = vld [vmem:[%s3440 + $0x90] sm:$0xff]
      %v8699 = vld [vmem:[%s3440 + $0x98] sm:$0xff]
      %v8700 = vld [vmem:[%s3440 + $0xa0] sm:$0xff]
      %v8701 = vld [vmem:[%s3440 + $0xa8] sm:$0xff]
      %v8702 = vld [vmem:[%s3440 + $0xb0] sm:$0xff]
      %v8703 = vld [vmem:[%s3440 + $0xb8] sm:$0xff]
      %v8704 = vld [vmem:[%s3440 + $0xc0] sm:$0xff]
      %v8705 = vld [vmem:[%s3440 + $0xc8] sm:$0xff]
      %v8706 = vld [vmem:[%s3440 + $0xd0] sm:$0xff]
      %v8707 = vld [vmem:[%s3440 + $0xd8] sm:$0xff]
      %v8708 = vld [vmem:[%s3440 + $0xe0] sm:$0xff]
      %v8709 = vld [vmem:[%s3440 + $0xe8] sm:$0xff]
      %v8710 = vld [vmem:[%s3440 + $0xf0] sm:$0xff]
      %v8711 = vld [vmem:[%s3440 + $0xf8] sm:$0xff]
      %v8713 = vsel %vm2797, %v8680, 0
      %v8716 = vsel %vm2797, %v8681, 0
      %v8719 = vsel %vm2797, %v8682, 0
      %v8722 = vsel %vm2797, %v8683, 0
      %v8725 = vsel %vm2797, %v8684, 0
      %v8728 = vsel %vm2797, %v8685, 0
      %v8731 = vsel %vm2797, %v8686, 0
      %v8734 = vsel %vm2797, %v8687, 0
      %v8737 = vsel %vm2797, %v8688, 0
      %v8740 = vsel %vm2797, %v8689, 0
      %v8743 = vsel %vm2797, %v8690, 0
      %v8746 = vsel %vm2797, %v8691, 0
      %v8749 = vsel %vm2797, %v8692, 0
      %v8752 = vsel %vm2797, %v8693, 0
      %v8755 = vsel %vm2797, %v8694, 0
      %v8758 = vsel %vm2797, %v8695, 0
      %v8761 = vsel %vm2797, %v8696, 0
      %v8764 = vsel %vm2797, %v8697, 0
      %v8767 = vsel %vm2797, %v8698, 0
      %v8770 = vsel %vm2797, %v8699, 0
      %v8773 = vsel %vm2797, %v8700, 0
      %v8776 = vsel %vm2797, %v8701, 0
      %v8779 = vsel %vm2797, %v8702, 0
      %v8782 = vsel %vm2797, %v8703, 0
      %v8785 = vsel %vm2797, %v8704, 0
      %v8788 = vsel %vm2797, %v8705, 0
      %v8791 = vsel %vm2797, %v8706, 0
      %v8794 = vsel %vm2797, %v8707, 0
      %v8797 = vsel %vm2797, %v8708, 0
      %v8800 = vsel %vm2797, %v8709, 0
      %v8803 = vsel %vm2797, %v8710, 0
      %v8806 = vsel %vm2797, %v8711, 0
      %8808 = vmatprep.subr.mxu0 0.0
      %8809 = vmatpush1.msra.mxu0 %v7456
      %8810 = vmatprep.subr.mxu0 0.0
      %8811 = vmatpush1.msra.mxu0 %v7457
      %8812 = vmatprep.subr.mxu0 0.0
      %8813 = vmatpush1.msra.mxu0 %v7458
      %8814 = vmatprep.subr.mxu0 0.0
      %8815 = vmatpush1.msra.mxu0 %v7459
      %8816 = vmatprep.subr.mxu0 0.0
      %8817 = vmatpush1.msra.mxu0 %v7460
      %8818 = vmatprep.subr.mxu0 0.0
      %8819 = vmatpush1.msra.mxu0 %v7461
      %8820 = vmatprep.subr.mxu0 0.0
      %8821 = vmatpush1.msra.mxu0 %v7462
      %8822 = vmatprep.subr.mxu0 0.0
      %8823 = vmatpush1.msra.mxu0 %v7463
      %8824 = vmatprep.subr.mxu0 0.0
      %8825 = vmatpush1.msra.mxu0 %v7464
      %8826 = vmatprep.subr.mxu0 0.0
      %8827 = vmatpush1.msra.mxu0 %v7465
      %8828 = vmatprep.subr.mxu0 0.0
      %8829 = vmatpush1.msra.mxu0 %v7466
      %8830 = vmatprep.subr.mxu0 0.0
      %8831 = vmatpush1.msra.mxu0 %v7467
      %8832 = vmatprep.subr.mxu0 0.0
      %8833 = vmatpush1.msra.mxu0 0.0
      %8834 = vmatprep.subr.mxu0 0.0
      %8835 = vmatpush1.msra.mxu0 0.0
      %8836 = vmatprep.subr.mxu0 0.0
      %8837 = vmatpush1.msra.mxu0 0.0
      %8838 = vmatprep.subr.mxu0 0.0
      %8839 = vmatpush1.msra.mxu0 0.0
      %8840 = vmatprep.subr.mxu0 0.0
      %8841 = vmatpush1.msra.mxu0 0.0
      %8842 = vmatprep.subr.mxu0 0.0
      %8843 = vmatpush1.msra.mxu0 0.0
      %8844 = vmatprep.subr.mxu0 0.0
      %8845 = vmatpush1.msra.mxu0 0.0
      %8846 = vmatprep.subr.mxu0 0.0
      %8847 = vmatpush1.msra.mxu0 0.0
      %8848 = vmatprep.subr.mxu0 0.0
      %8849 = vmatpush1.msra.mxu0 0.0
      %8850 = vmatprep.subr.mxu0 0.0
      %8851 = vmatpush1.msra.mxu0 0.0
      %8852 = vmatprep.subr.mxu0 0.0
      %8853 = vmatpush1.msra.mxu0 0.0
      %8854 = vmatprep.subr.mxu0 0.0
      %8855 = vmatpush1.msra.mxu0 0.0
      %8856 = vmatprep.subr.mxu0 0.0
      %8857 = vmatpush1.msra.mxu0 0.0
      %8858 = vmatprep.subr.mxu0 0.0
      %8859 = vmatpush1.msra.mxu0 0.0
      %8860 = vmatprep.subr.mxu0 0.0
      %8861 = vmatpush1.msra.mxu0 0.0
      %8862 = vmatprep.subr.mxu0 0.0
      %8863 = vmatpush1.msra.mxu0 0.0
      %8864 = vmatprep.subr.mxu0 0.0
      %8865 = vmatpush1.msra.mxu0 0.0
      %8866 = vmatprep.subr.mxu0 0.0
      %8867 = vmatpush1.msra.mxu0 0.0
      %8868 = vmatprep.subr.mxu0 0.0
      %8869 = vmatpush1.msra.mxu0 0.0
      %8870 = vmatprep.subr.mxu0 0.0
      %8871 = vmatpush1.msra.mxu0 0.0
      %8872 = vmatprep.mubr.f32.mxu0 0.0
      %8873 = vmatmul.mubr.f32.gmra.mrb[0].mxu0 %v8713
      %v8874 = vpop.f32.mrb[0].mxu0
      %v8875 = vadd.f32 0.0, %v8874
      %v8876 = vpop.f32.mrb[0].mxu0
      %8877 = vmatprep.mubr.f32.mxu0 0.0
      %8878 = vmatmul.mubr.f32.gmra.mrb[0].mxu0 %v8716
      %v8879 = vpop.f32.mrb[0].mxu0
      %v8880 = vadd.f32 0.0, %v8879
      %v8881 = vpop.f32.mrb[0].mxu0
      %8882 = vmatprep.mubr.f32.mxu0 0.0
      %8883 = vmatmul.mubr.f32.gmra.mrb[0].mxu0 %v8719
      %v8884 = vpop.f32.mrb[0].mxu0
      %v8885 = vadd.f32 0.0, %v8884
      %v8886 = vpop.f32.mrb[0].mxu0
      %8887 = vmatprep.mubr.f32.mxu0 0.0
      %8888 = vmatmul.mubr.f32.gmra.mrb[0].mxu0 %v8722
      %v8889 = vpop.f32.mrb[0].mxu0
      %v8890 = vadd.f32 0.0, %v8889
      %v8891 = vpop.f32.mrb[0].mxu0
      %8892 = vmatprep.mubr.f32.mxu0 0.0
      %8893 = vmatmul.mubr.f32.gmra.mrb[0].mxu0 %v8725
      %v8894 = vpop.f32.mrb[0].mxu0
      %v8895 = vadd.f32 0.0, %v8894
      %v8896 = vpop.f32.mrb[0].mxu0
      %8897 = vmatprep.mubr.f32.mxu0 0.0
      %8898 = vmatmul.mubr.f32.gmra.mrb[0].mxu0 %v8728
      %v8899 = vpop.f32.mrb[0].mxu0
      %v8900 = vadd.f32 0.0, %v8899
      %v8901 = vpop.f32.mrb[0].mxu0
      %8902 = vmatprep.mubr.f32.mxu0 0.0
      %8903 = vmatmul.mubr.f32.gmra.mrb[0].mxu0 %v8731
      %v8904 = vpop.f32.mrb[0].mxu0
      %v8905 = vadd.f32 0.0, %v8904
      %v8906 = vpop.f32.mrb[0].mxu0
      %8907 = vmatprep.mubr.f32.mxu0 0.0
      %8908 = vmatmul.mubr.f32.gmra.mrb[0].mxu0 %v8734
      %v8909 = vpop.f32.mrb[0].mxu0
      %v8910 = vadd.f32 0.0, %v8909
      %v8911 = vpop.f32.mrb[0].mxu0
      %8912 = vmatprep.mubr.f32.mxu0 0.0
      %8913 = vmatmul.mubr.f32.gmra.mrb[0].mxu0 %v8737
      %v8914 = vpop.f32.mrb[0].mxu0
      %v8915 = vadd.f32 0.0, %v8914
      %v8916 = vpop.f32.mrb[0].mxu0
      %8917 = vmatprep.mubr.f32.mxu0 0.0
      %8918 = vmatmul.mubr.f32.gmra.mrb[0].mxu0 %v8740
      %v8919 = vpop.f32.mrb[0].mxu0
      %v8920 = vadd.f32 0.0, %v8919
      %v8921 = vpop.f32.mrb[0].mxu0
      %8922 = vmatprep.mubr.f32.mxu0 0.0
      %8923 = vmatmul.mubr.f32.gmra.mrb[0].mxu0 %v8743
      %v8924 = vpop.f32.mrb[0].mxu0
      %v8925 = vadd.f32 0.0, %v8924
      %v8926 = vpop.f32.mrb[0].mxu0
      %8927 = vmatprep.mubr.f32.mxu0 0.0
      %8928 = vmatmul.mubr.f32.gmra.mrb[0].mxu0 %v8746
      %v8929 = vpop.f32.mrb[0].mxu0
      %v8930 = vadd.f32 0.0, %v8929
      %v8931 = vpop.f32.mrb[0].mxu0
      %8932 = vmatprep.mubr.f32.mxu0 0.0
      %8933 = vmatmul.mubr.f32.gmra.mrb[0].mxu0 %v8749
      %v8934 = vpop.f32.mrb[0].mxu0
      %v8935 = vadd.f32 0.0, %v8934
      %v8936 = vpop.f32.mrb[0].mxu0
      %8937 = vmatprep.mubr.f32.mxu0 0.0
      %8938 = vmatmul.mubr.f32.gmra.mrb[0].mxu0 %v8752
      %v8939 = vpop.f32.mrb[0].mxu0
      %v8940 = vadd.f32 0.0, %v8939
      %v8941 = vpop.f32.mrb[0].mxu0
      %8942 = vmatprep.mubr.f32.mxu0 0.0
      %8943 = vmatmul.mubr.f32.gmra.mrb[0].mxu0 %v8755
      %v8944 = vpop.f32.mrb[0].mxu0
      %v8945 = vadd.f32 0.0, %v8944
      %v8946 = vpop.f32.mrb[0].mxu0
      %8947 = vmatprep.mubr.f32.mxu0 0.0
      %8948 = vmatmul.mubr.f32.gmra.mrb[0].mxu0 %v8758
      %v8949 = vpop.f32.mrb[0].mxu0
      %v8950 = vadd.f32 0.0, %v8949
      %v8951 = vpop.f32.mrb[0].mxu0
      %8952 = vmatprep.mubr.f32.mxu0 0.0
      %8953 = vmatmul.mubr.f32.gmra.mrb[0].mxu0 %v8761
      %v8954 = vpop.f32.mrb[0].mxu0
      %v8955 = vadd.f32 0.0, %v8954
      %v8956 = vpop.f32.mrb[0].mxu0
      %8957 = vmatprep.mubr.f32.mxu0 0.0
      %8958 = vmatmul.mubr.f32.gmra.mrb[0].mxu0 %v8764
      %v8959 = vpop.f32.mrb[0].mxu0
      %v8960 = vadd.f32 0.0, %v8959
      %v8961 = vpop.f32.mrb[0].mxu0
      %8962 = vmatprep.mubr.f32.mxu0 0.0
      %8963 = vmatmul.mubr.f32.gmra.mrb[0].mxu0 %v8767
      %v8964 = vpop.f32.mrb[0].mxu0
      %v8965 = vadd.f32 0.0, %v8964
      %v8966 = vpop.f32.mrb[0].mxu0
      %8967 = vmatprep.mubr.f32.mxu0 0.0
      %8968 = vmatmul.mubr.f32.gmra.mrb[0].mxu0 %v8770
      %v8969 = vpop.f32.mrb[0].mxu0
      %v8970 = vadd.f32 0.0, %v8969
      %v8971 = vpop.f32.mrb[0].mxu0
      %8972 = vmatprep.mubr.f32.mxu0 0.0
      %8973 = vmatmul.mubr.f32.gmra.mrb[0].mxu0 %v8773
      %v8974 = vpop.f32.mrb[0].mxu0
      %v8975 = vadd.f32 0.0, %v8974
      %v8976 = vpop.f32.mrb[0].mxu0
      %8977 = vmatprep.mubr.f32.mxu0 0.0
      %8978 = vmatmul.mubr.f32.gmra.mrb[0].mxu0 %v8776
      %v8979 = vpop.f32.mrb[0].mxu0
      %v8980 = vadd.f32 0.0, %v8979
      %v8981 = vpop.f32.mrb[0].mxu0
      %8982 = vmatprep.mubr.f32.mxu0 0.0
      %8983 = vmatmul.mubr.f32.gmra.mrb[0].mxu0 %v8779
      %v8984 = vpop.f32.mrb[0].mxu0
      %v8985 = vadd.f32 0.0, %v8984
      %v8986 = vpop.f32.mrb[0].mxu0
      %8987 = vmatprep.mubr.f32.mxu0 0.0
      %8988 = vmatmul.mubr.f32.gmra.mrb[0].mxu0 %v8782
      %v8989 = vpop.f32.mrb[0].mxu0
      %v8990 = vadd.f32 0.0, %v8989
      %v8991 = vpop.f32.mrb[0].mxu0
      %8992 = vmatprep.mubr.f32.mxu0 0.0
      %8993 = vmatmul.mubr.f32.gmra.mrb[0].mxu0 %v8785
      %v8994 = vpop.f32.mrb[0].mxu0
      %v8995 = vadd.f32 0.0, %v8994
      %v8996 = vpop.f32.mrb[0].mxu0
      %8997 = vmatprep.mubr.f32.mxu0 0.0
      %8998 = vmatmul.mubr.f32.gmra.mrb[0].mxu0 %v8788
      %v8999 = vpop.f32.mrb[0].mxu0
      %v9000 = vadd.f32 0.0, %v8999
      %v9001 = vpop.f32.mrb[0].mxu0
      %9002 = vmatprep.mubr.f32.mxu0 0.0
      %9003 = vmatmul.mubr.f32.gmra.mrb[0].mxu0 %v8791
      %v9004 = vpop.f32.mrb[0].mxu0
      %v9005 = vadd.f32 0.0, %v9004
      %v9006 = vpop.f32.mrb[0].mxu0
      %9007 = vmatprep.mubr.f32.mxu0 0.0
      %9008 = vmatmul.mubr.f32.gmra.mrb[0].mxu0 %v8794
      %v9009 = vpop.f32.mrb[0].mxu0
      %v9010 = vadd.f32 0.0, %v9009
      %v9011 = vpop.f32.mrb[0].mxu0
      %9012 = vmatprep.mubr.f32.mxu0 0.0
      %9013 = vmatmul.mubr.f32.gmra.mrb[0].mxu0 %v8797
      %v9014 = vpop.f32.mrb[0].mxu0
      %v9015 = vadd.f32 0.0, %v9014
      %v9016 = vpop.f32.mrb[0].mxu0
      %9017 = vmatprep.mubr.f32.mxu0 0.0
      %9018 = vmatmul.mubr.f32.gmra.mrb[0].mxu0 %v8800
      %v9019 = vpop.f32.mrb[0].mxu0
      %v9020 = vadd.f32 0.0, %v9019
      %v9021 = vpop.f32.mrb[0].mxu0
      %9022 = vmatprep.mubr.f32.mxu0 0.0
      %9023 = vmatmul.mubr.f32.gmra.mrb[0].mxu0 %v8803
      %v9024 = vpop.f32.mrb[0].mxu0
      %v9025 = vadd.f32 0.0, %v9024
      %v9026 = vpop.f32.mrb[0].mxu0
      %9027 = vmatprep.mubr.f32.mxu0 0.0
      %9028 = vmatmul.mubr.f32.gmra.mrb[0].mxu0 %v8806
      %v9029 = vpop.f32.mrb[0].mxu0
      %v9030 = vadd.f32 0.0, %v9029
      %v9031 = vpop.f32.mrb[0].mxu0
      %9032 = vdwg.mxu0
      %v9033 = vadd.f32 %v8522, %v8875
      %v9034 = vadd.f32 %v8527, %v8880
      %v9035 = vadd.f32 %v8532, %v8885
      %v9036 = vadd.f32 %v8537, %v8890
      %v9037 = vadd.f32 %v8542, %v8895
      %v9038 = vadd.f32 %v8547, %v8900
      %v9039 = vadd.f32 %v8552, %v8905
      %v9040 = vadd.f32 %v8557, %v8910
      %v9041 = vadd.f32 %v8562, %v8915
      %v9042 = vadd.f32 %v8567, %v8920
      %v9043 = vadd.f32 %v8572, %v8925
      %v9044 = vadd.f32 %v8577, %v8930
      %v9045 = vadd.f32 %v8582, %v8935
      %v9046 = vadd.f32 %v8587, %v8940
      %v9047 = vadd.f32 %v8592, %v8945
      %v9048 = vadd.f32 %v8597, %v8950
      %v9049 = vadd.f32 %v8602, %v8955
      %v9050 = vadd.f32 %v8607, %v8960
      %v9051 = vadd.f32 %v8612, %v8965
      %v9052 = vadd.f32 %v8617, %v8970
      %v9053 = vadd.f32 %v8622, %v8975
      %v9054 = vadd.f32 %v8627, %v8980
      %v9055 = vadd.f32 %v8632, %v8985
      %v9056 = vadd.f32 %v8637, %v8990
      %v9057 = vadd.f32 %v8642, %v8995
      %v9058 = vadd.f32 %v8647, %v9000
      %v9059 = vadd.f32 %v8652, %v9005
      %v9060 = vadd.f32 %v8657, %v9010
      %v9061 = vadd.f32 %v8662, %v9015
      %v9062 = vadd.f32 %v8667, %v9020
      %v9063 = vadd.f32 %v8672, %v9025
      %v9064 = vadd.f32 %v8677, %v9030
      %v9066 = vlaneseq
      %v9067 = vshrl.u32 %v9066, 7
      %v9068 = vsub.s32 0, %v9067
      %v9069 = vrot.slane %v7469, %v9068
      %v9071 = vadd.f32 %v9033, %v9069
      %v9072 = vadd.f32 %v9034, %v9069
      %v9073 = vadd.f32 %v9035, %v9069
      %v9074 = vadd.f32 %v9036, %v9069
      %v9075 = vadd.f32 %v9037, %v9069
      %v9076 = vadd.f32 %v9038, %v9069
      %v9077 = vadd.f32 %v9039, %v9069
      %v9078 = vadd.f32 %v9040, %v9069
      %v9079 = vadd.f32 %v9041, %v9069
      %v9080 = vadd.f32 %v9042, %v9069
      %v9081 = vadd.f32 %v9043, %v9069
      %v9082 = vadd.f32 %v9044, %v9069
      %v9083 = vadd.f32 %v9045, %v9069
      %v9084 = vadd.f32 %v9046, %v9069
      %v9085 = vadd.f32 %v9047, %v9069
      %v9086 = vadd.f32 %v9048, %v9069
      %v9087 = vadd.f32 %v9049, %v9069
      %v9088 = vadd.f32 %v9050, %v9069
      %v9089 = vadd.f32 %v9051, %v9069
      %v9090 = vadd.f32 %v9052, %v9069
      %v9091 = vadd.f32 %v9053, %v9069
      %v9092 = vadd.f32 %v9054, %v9069
      %v9093 = vadd.f32 %v9055, %v9069
      %v9094 = vadd.f32 %v9056, %v9069
      %v9095 = vadd.f32 %v9057, %v9069
      %v9096 = vadd.f32 %v9058, %v9069
      %v9097 = vadd.f32 %v9059, %v9069
      %v9098 = vadd.f32 %v9060, %v9069
      %v9099 = vadd.f32 %v9061, %v9069
      %v9100 = vadd.f32 %v9062, %v9069
      %v9101 = vadd.f32 %v9063, %v9069
      %v9102 = vadd.f32 %v9064, %v9069
      %v9103 = vld [vmem:[%s2156 + $0x8] sm:$0xff]
      %v9104 = vld [vmem:[%s2156 + $0x10] sm:$0xff]
      %v9105 = vld [vmem:[%s2156 + $0x28] sm:$0xff]
      %v9106 = vld [vmem:[%s2156 + $0x30] sm:$0xff]
      %v9107 = vld [vmem:[%s2156 + $0x48] sm:$0xff]
      %v9108 = vld [vmem:[%s2156 + $0x50] sm:$0xff]
      %v9109 = vld [vmem:[%s2156 + $0x68] sm:$0xff]
      %v9110 = vld [vmem:[%s2156 + $0x70] sm:$0xff]
      %v9111 = vld [vmem:[%s2156 + $0x88] sm:$0xff]
      %v9112 = vld [vmem:[%s2156 + $0x90] sm:$0xff]
      %v9113 = vld [vmem:[%s2156 + $0xa8] sm:$0xff]
      %v9114 = vld [vmem:[%s2156 + $0xb0] sm:$0xff]
      %v9115 = vld [vmem:[%s2156 + $0xc8] sm:$0xff]
      %v9116 = vld [vmem:[%s2156 + $0xd0] sm:$0xff]
      %v9117 = vld [vmem:[%s2156 + $0xe8] sm:$0xff]
      %v9118 = vld [vmem:[%s2156 + $0xf0] sm:$0xff]
      %v9119 = vld [vmem:[%s2156 + $0x108] sm:$0xff]
      %v9120 = vld [vmem:[%s2156 + $0x110] sm:$0xff]
      %v9121 = vld [vmem:[%s2156 + $0x128] sm:$0xff]
      %v9122 = vld [vmem:[%s2156 + $0x130] sm:$0xff]
      %v9123 = vld [vmem:[%s2156 + $0x148] sm:$0xff]
      %v9124 = vld [vmem:[%s2156 + $0x150] sm:$0xff]
      %v9125 = vld [vmem:[%s2156 + $0x168] sm:$0xff]
      %v9126 = vld [vmem:[%s2156 + $0x170] sm:$0xff]
      %v9127 = vld [vmem:[%s2156 + $0x188] sm:$0xff]
      %v9128 = vld [vmem:[%s2156 + $0x190] sm:$0xff]
      %v9129 = vld [vmem:[%s2156 + $0x1a8] sm:$0xff]
      %v9130 = vld [vmem:[%s2156 + $0x1b0] sm:$0xff]
      %v9131 = vld [vmem:[%s2156 + $0x1c8] sm:$0xff]
      %v9132 = vld [vmem:[%s2156 + $0x1d0] sm:$0xff]
      %v9133 = vld [vmem:[%s2156 + $0x1e8] sm:$0xff]
      %v9134 = vld [vmem:[%s2156 + $0x1f0] sm:$0xff]
      %v9135 = vadd.f32 %v9071, %v9103
      %v9136 = vadd.f32 %v9072, %v9104
      %v9137 = vadd.f32 %v9073, %v9105
      %v9138 = vadd.f32 %v9074, %v9106
      %v9139 = vadd.f32 %v9075, %v9107
      %v9140 = vadd.f32 %v9076, %v9108
      %v9141 = vadd.f32 %v9077, %v9109
      %v9142 = vadd.f32 %v9078, %v9110
      %v9143 = vadd.f32 %v9079, %v9111
      %v9144 = vadd.f32 %v9080, %v9112
      %v9145 = vadd.f32 %v9081, %v9113
      %v9146 = vadd.f32 %v9082, %v9114
      %v9147 = vadd.f32 %v9083, %v9115
      %v9148 = vadd.f32 %v9084, %v9116
      %v9149 = vadd.f32 %v9085, %v9117
      %v9150 = vadd.f32 %v9086, %v9118
      %v9151 = vadd.f32 %v9087, %v9119
      %v9152 = vadd.f32 %v9088, %v9120
      %v9153 = vadd.f32 %v9089, %v9121
      %v9154 = vadd.f32 %v9090, %v9122
      %v9155 = vadd.f32 %v9091, %v9123
      %v9156 = vadd.f32 %v9092, %v9124
      %v9157 = vadd.f32 %v9093, %v9125
      %v9158 = vadd.f32 %v9094, %v9126
      %v9159 = vadd.f32 %v9095, %v9127
      %v9160 = vadd.f32 %v9096, %v9128
      %v9161 = vadd.f32 %v9097, %v9129
      %v9162 = vadd.f32 %v9098, %v9130
      %v9163 = vadd.f32 %v9099, %v9131
      %v9164 = vadd.f32 %v9100, %v9132
      %v9165 = vadd.f32 %v9101, %v9133
      %v9166 = vadd.f32 %v9102, %v9134
      %9167 = vxpose.xlu0.b32.start [1/16] %v9135, 128
      %9168 = vxpose.xlu0.b32.cont [2/16] %v9136, 128
      %9169 = vxpose.xlu0.b32.cont [3/16] %v9137, 128
      %9170 = vxpose.xlu0.b32.cont [4/16] %v9138, 128
      %9171 = vxpose.xlu0.b32.cont [5/16] %v9139, 128
      %9172 = vxpose.xlu0.b32.cont [6/16] %v9140, 128
      %9173 = vxpose.xlu0.b32.cont [7/16] %v9141, 128
      %9174 = vxpose.xlu0.b32.cont [8/16] %v9142, 128
      %9175 = vxpose.xlu0.b32.cont [9/16] %v9143, 128
      %9176 = vxpose.xlu0.b32.cont [10/16] %v9144, 128
      %9177 = vxpose.xlu0.b32.cont [11/16] %v9145, 128
      %9178 = vxpose.xlu0.b32.cont [12/16] %v9146, 128
      %9179 = vxpose.xlu0.b32.cont [13/16] %v9147, 128
      %9180 = vxpose.xlu0.b32.cont [14/16] %v9148, 128
      %9181 = vxpose.xlu0.b32.cont [15/16] %v9149, 128
      %9182 = vxpose.xlu0.b32.end [16/16] %v9150, 128
      %v9183 = vpop.trf.xlu0
      %v9184 = vpop.trf.xlu0
      %v9185 = vpop.trf.xlu0
      %v9186 = vpop.trf.xlu0
      %v9187 = vpop.trf.xlu0
      %v9188 = vpop.trf.xlu0
      %v9189 = vpop.trf.xlu0
      %v9190 = vpop.trf.xlu0
      %v9191 = vpop.trf.xlu0
      %v9192 = vpop.trf.xlu0
      %v9193 = vpop.trf.xlu0
      %v9194 = vpop.trf.xlu0
      %v9195 = vpop.trf.xlu0
      %v9196 = vpop.trf.xlu0
      %v9197 = vpop.trf.xlu0
      %v9198 = vpop.trf.xlu0
      %9199 = vxpose.xlu0.b32.start [1/16] %v9151, 128
      %9200 = vxpose.xlu0.b32.cont [2/16] %v9152, 128
      %9201 = vxpose.xlu0.b32.cont [3/16] %v9153, 128
      %9202 = vxpose.xlu0.b32.cont [4/16] %v9154, 128
      %9203 = vxpose.xlu0.b32.cont [5/16] %v9155, 128
      %9204 = vxpose.xlu0.b32.cont [6/16] %v9156, 128
      %9205 = vxpose.xlu0.b32.cont [7/16] %v9157, 128
      %9206 = vxpose.xlu0.b32.cont [8/16] %v9158, 128
      %9207 = vxpose.xlu0.b32.cont [9/16] %v9159, 128
      %9208 = vxpose.xlu0.b32.cont [10/16] %v9160, 128
      %9209 = vxpose.xlu0.b32.cont [11/16] %v9161, 128
      %9210 = vxpose.xlu0.b32.cont [12/16] %v9162, 128
      %9211 = vxpose.xlu0.b32.cont [13/16] %v9163, 128
      %9212 = vxpose.xlu0.b32.cont [14/16] %v9164, 128
      %9213 = vxpose.xlu0.b32.cont [15/16] %v9165, 128
      %9214 = vxpose.xlu0.b32.end [16/16] %v9166, 128
      %v9215 = vpop.trf.xlu0
      %v9216 = vpop.trf.xlu0
      %v9217 = vpop.trf.xlu0
      %v9218 = vpop.trf.xlu0
      %v9219 = vpop.trf.xlu0
      %v9220 = vpop.trf.xlu0
      %v9221 = vpop.trf.xlu0
      %v9222 = vpop.trf.xlu0
      %v9223 = vpop.trf.xlu0
      %v9224 = vpop.trf.xlu0
      %v9225 = vpop.trf.xlu0
      %v9226 = vpop.trf.xlu0
      %v9227 = vpop.trf.xlu0
      %v9228 = vpop.trf.xlu0
      %v9229 = vpop.trf.xlu0
      %v9230 = vpop.trf.xlu0
      %9231 = vst [vmem:[%s278] sm:$0xff] %v9183
      %9232 = vst [vmem:[%s278 + $0x8] sm:$0xff] %v9215
      %9233 = vst [vmem:[%s278 + $0x10] sm:$0xff] %v9184
      %9234 = vst [vmem:[%s278 + $0x18] sm:$0xff] %v9216
      %9235 = vst [vmem:[%s278 + $0x20] sm:$0xff] %v9185
      %9236 = vst [vmem:[%s278 + $0x28] sm:$0xff] %v9217
      %9237 = vst [vmem:[%s278 + $0x30] sm:$0xff] %v9186
      %9238 = vst [vmem:[%s278 + $0x38] sm:$0xff] %v9218
      %p9239 = scmp.lt.s32.totalorder %s18, 1
      %s9240 = scalar_select %p9239, %s18, 1
      %s9241 = smul.addr %s9240, 8
      %s9242 = smul.addr %s9241, 8
      %s9243 = scalar_lea.vmem %s7, %s9242
      // Predicated region
      $region49: #{residual_blocks_forward.1} parent=47 // pred_check
        %p9244 = pneg %p188
      $region50: #{residual_blocks_forward.1} parent=47 // pred_check_branch
        %9246 = sbr.rel (%p9244) target = $region52
      $region51: #{residual_blocks_forward.1} parent=47 // pred_region
        _
      $region52: #{residual_blocks_forward.1} parent=47 // pred_fallthru
        _
    $region48: #{residual_blocks_forward.1} parent=5 // pred_fallthru
      _
    %p9247 = scmp.le.s32.totalorder 2, %s13
    // Predicated region
    $region53: #{residual_blocks_forward.1} parent=5 // pred_check
      %p9248 = pneg %p9247
    $region54: #{residual_blocks_forward.1} parent=5 // pred_check_branch
      %9250 = sbr.rel (%p9248) target = $region56
    $region55: #{residual_blocks_forward.1} parent=5 // pred_region
      %s9251 = ssub.s32 %s13, 2
      // Predicated region
      $region57: #{residual_blocks_forward.1} parent=55 // pred_check
        %p9252 = pneg %p194
      $region58: #{residual_blocks_forward.1} parent=55 // pred_check_branch
        %9254 = sbr.rel (%p9252) target = $region60
      $region59: #{residual_blocks_forward.1} parent=55 // pred_region
        %p9255 = scmp.lt.s32.totalorder %s19, 1
        %s9256 = scalar_select %p9255, %s19, 1
        %s9257 = smul.addr %s9256, 8
        %s9258 = smul.addr %s9257, 8
        %s9259 = scalar_lea.vmem %s7, %s9258
      $region60: #{residual_blocks_forward.1} parent=55 // pred_fallthru
        _
    $region56: #{residual_blocks_forward.1} parent=5 // pred_fallthru
      _
  $region6: #{residual_blocks_forward.1} parent=0 // loop_footer
    %s17 = sadd.s32 1, %s13
  $region7: #{residual_blocks_forward.1} parent=0 // loop_footer_branch
    %12 = sbr.rel target = $region3
  $region8: #{residual_blocks_forward.1} parent=0 // loop_exit
    _

</llo_original>
